<compile_context>
chip_gen: v5e
topology: v5e:2x2
jax: 0.10.0
libtpu: 0.0.40
codegen_flags: <defaults>
</compile_context>

<pallas_src>
import functools

import jax
import jax.numpy as jnp
from jax.experimental import pallas as pl
from jax.experimental.pallas import tpu as pltpu

_NEG_INF = -1e30
_LEAKY_SLOPE = 0.2


def _gat_layer(x_in, adj, w_pad, off, a_pad, head_mask, bias,
               acc_ref, dst_ref, *, heads, fo, relu):
    """One GAT layer. x_in is bf16; writes the concat'd head outputs to dst_ref."""
    hf = heads * fo

    # Widened linear transform: xw_ext = [x @ W | 1...1]   (bf16 MXU, f32 accumulate)
    xw_ext = jnp.dot(x_in, w_pad, preferred_element_type=jnp.float32) + off  # (N, 2*HF) f32
    xw_b = xw_ext.astype(jnp.bfloat16)                                       # MXU operand copy

    # Attention logits for every head in one small matmul:
    #   logits[:, h] = a_dst_h . x'_i   ;   logits[:, H+h] = a_src_h . x'_i
    logits = jnp.dot(xw_b, a_pad, preferred_element_type=jnp.float32)        # (N, 2*H)
    a_d = logits[:, :heads]                                                  # (N, H)
    a_s_t = jnp.transpose(logits[:, heads:])                                 # (H, N), one small XLU transpose

    acc_ref[...] = jnp.zeros_like(acc_ref)
    # TODO(synk): static unroll over heads is fine at H=8 (per-head working set is
    #             small now that aggregation goes straight to acc_ref); revisit
    #             with a fori_loop / head grid axis for much larger H.
    for h in range(heads):
        # e[i, j] = LeakyReLU(a_dst.x'_i + a_src.x'_j, 0.2), masked to real edges.
        e = a_d[:, h:h + 1] + a_s_t[h:h + 1, :]                              # (N, N)
        e = jnp.maximum(e, _LEAKY_SLOPE * e)                                 # leaky relu (slope < 1)
        e = jnp.where(adj > 0, e, _NEG_INF)                                  # mask non-edges (matches ref)
        p = jnp.exp(e - jnp.max(e, axis=-1, keepdims=True))                  # masked entries -> exactly 0
        # Lane-dense RHS: [xw_h | ones_h] in head-h column slots, zero elsewhere,
        # so the same matmul also emits the per-head row sum (softmax denominator).
        rhs = xw_b * head_mask[h:h + 1, :]                                   # (N, 2*HF) bf16
        acc_ref[...] += jnp.dot(p.astype(jnp.bfloat16), rhs,
                                preferred_element_type=jnp.float32)          # (N, 2*HF) f32

    res = acc_ref[...]
    # Deferred softmax normalization: columns [HF:2HF] hold the per-head row sums
    # replicated Fo times, already aligned with the aggregation columns [0:HF].
    out = res[:, :hf] / res[:, hf:] + bias
    if relu:
        out = jnp.maximum(out, 0.0)
    dst_ref[...] = out.astype(dst_ref.dtype)                                 # one full-width store per layer


def _dysat2_kernel(x_ref, adj_ref,
                   w1_ref, a1_ref, m1_ref, o1_ref, b1_ref,
                   w2_ref, a2_ref, m2_ref, o2_ref, b2_ref,
                   out_ref,
                   h_ref, acc1_ref, acc2_ref, *, heads, fo1, fo2):
    adj = adj_ref[...]                       # bf16 0/1 mask; never copied to f32
    # Layer 1 (+ ReLU); output stays in a bf16 VMEM scratch (feeds layer-2 MXU).
    _gat_layer(x_ref[...], adj, w1_ref[...], o1_ref[...], a1_ref[...],
               m1_ref[...], b1_ref[...], acc1_ref, h_ref,
               heads=heads, fo=fo1, relu=True)
    # F.dropout(p=0.5) between layers is identity in eval mode.
    # Layer 2 (no activation); output goes straight to out_ref.
    _gat_layer(h_ref[...], adj, w2_ref[...], o2_ref[...], a2_ref[...],
               m2_ref[...], b2_ref[...], acc2_ref, out_ref,
               heads=heads, fo=fo2, relu=False)


def _layer_operands(p, num_heads):
    """Host-side precompute of padded / fused per-layer operands."""
    w = p["w"]                                # (F_in, H*Fo)
    hf = w.shape[1]
    fo = hf // num_heads

    # [W | 0] so the matmul emits 2*HF lanes; the ones offset fills the right half.
    w_pad = jnp.concatenate([w, jnp.zeros_like(w)], axis=1).astype(jnp.bfloat16)   # (F_in, 2*HF)

    # One (2*HF, 2*H) projection for all per-head a_dst / a_src dot products.
    rows = jnp.arange(hf)
    a_full = jnp.zeros((2 * hf, 2 * num_heads), jnp.float32)
    a_full = a_full.at[rows, rows // fo].set(p["a_dst"].reshape(hf))
    a_full = a_full.at[rows, num_heads + rows // fo].set(p["a_src"].reshape(hf))
    a_pad = a_full.astype(jnp.bfloat16)                                            # (2*HF, 2*H)

    cols = jnp.arange(2 * hf)
    head_mask = ((cols % hf) // fo ==
                 jnp.arange(num_heads)[:, None]).astype(jnp.bfloat16)              # (H, 2*HF)
    off = (cols >= hf).astype(jnp.float32)[None, :]                                # (1, 2*HF) ones offset
    bias = p["bias"].reshape(1, hf).astype(jnp.float32)                            # (1, HF)
    return w_pad, a_pad, head_mask, off, bias


def _dysat_cost(n, heads, layer_dims, operands, out_bytes):
    flops = 0
    trans = 0
    for f_in, hf in layer_dims:
        w = 2 * hf                         # widened [xW | ones] lane width
        flops += 2 * n * f_in * w          # x @ W_pad
        flops += 2 * n * w * 2 * heads     # attention-logit projection
        flops += 2 * heads * n * n * w     # per-head lane-dense aggregation
        flops += 8 * heads * n * n         # leaky-relu / mask / softmax elementwise
        trans += heads * n * n             # exp
    bytes_accessed = out_bytes + sum(int(a.size) * a.dtype.itemsize for a in operands)
    return pl.CostEstimate(flops=flops, transcendentals=trans,
                           bytes_accessed=bytes_accessed)


def dysat_forward(x, edge_index, params, *, num_heads):
    """Fused 2-layer DySAT forward (eval mode) as a single Pallas call."""
    assert len(params) == 2, "fused kernel implements the default num_layers=2"
    n = x.shape[0]

    # Dense adjacency mask with self-loops (glue, not hot path). bf16 0/1 is exact.
    src, dst = edge_index[0], edge_index[1]
    adj = jnp.zeros((n, n), jnp.float32)
    adj = adj.at[dst, src].set(1.0)                 # message flows src -> dst
    idx = jnp.arange(n)
    adj = adj.at[idx, idx].set(1.0)                 # add self loops
    adj = adj.astype(jnp.bfloat16)

    p1, p2 = params
    hf1 = p1["w"].shape[1]
    hf2 = p2["w"].shape[1]
    fo1 = hf1 // num_heads
    fo2 = hf2 // num_heads

    l1 = _layer_operands(p1, num_heads)
    l2 = _layer_operands(p2, num_heads)
    operands = (x.astype(jnp.bfloat16), adj) + l1 + l2

    kernel = functools.partial(_dysat2_kernel, heads=num_heads, fo1=fo1, fo2=fo2)
    vmem = pl.BlockSpec(memory_space=pltpu.MemorySpace.VMEM)

    operand_bytes = sum(int(a.size) * a.dtype.itemsize for a in operands)
    scratch_bytes = n * hf1 * 2 + n * 2 * hf1 * 4 + n * 2 * hf2 * 4
    # Per-layer temporaries: xw_ext / xw_b copies, per-head (N, N) e/p, matmul staging.
    temp_bytes = 8 * n * max(2 * hf1, 2 * hf2) * 4 + 6 * n * n * 4
    vmem_limit = min(96 * 1024 * 1024,
                     int(1.5 * (operand_bytes + scratch_bytes + temp_bytes))
                     + 8 * 1024 * 1024)

    cost = _dysat_cost(n, num_heads, [(x.shape[1], hf1), (hf1, hf2)],
                       operands, n * hf2 * 4)

    return pl.pallas_call(
        kernel,
        out_shape=jax.ShapeDtypeStruct((n, hf2), jnp.float32),
        in_specs=[vmem] * len(operands),
        out_specs=vmem,
        scratch_shapes=[
            pltpu.VMEM((n, hf1), jnp.bfloat16),      # layer-1 activations (bf16 feeds layer-2 MXU)
            pltpu.VMEM((n, 2 * hf1), jnp.float32),   # layer-1 [agg | rowsum] accumulator
            pltpu.VMEM((n, 2 * hf2), jnp.float32),   # layer-2 [agg | rowsum] accumulator
        ],
        compiler_params=pltpu.CompilerParams(vmem_limit_bytes=vmem_limit),
        cost_estimate=cost,
    )(*operands)


def init_dysat_params(key, input_dim, hidden_dim, output_dim, num_heads):
    """Deterministic synthetic parameters (glorot-ish normals)."""
    dims = [(input_dim, hidden_dim), (hidden_dim, output_dim)]
    params = []
    for (f_in, f_out) in dims:
        key, k_w, k_s, k_d = jax.random.split(key, 4)
        head_dim = f_out // num_heads
        scale = 1.0 / jnp.sqrt(jnp.float32(f_in))
        w = jax.random.normal(k_w, (f_in, f_out), jnp.float32) * scale
        a_src = jax.random.normal(k_s, (num_heads, head_dim), jnp.float32) * 0.1
        a_dst = jax.random.normal(k_d, (num_heads, head_dim), jnp.float32) * 0.1
        bias = jnp.zeros((1, f_out), jnp.float32)
        params.append(dict(w=w, a_src=a_src, a_dst=a_dst, bias=bias))
    return params


def dysat_reference(x, edge_index, params, *, num_heads):
    """Pure-JAX reference mirroring the kernel's bf16-operand matmul policy."""
    n = x.shape[0]
    src, dst = edge_index[0], edge_index[1]
    adj = jnp.zeros((n, n), jnp.float32).at[dst, src].set(1.0)
    idx = jnp.arange(n)
    adj = adj.at[idx, idx].set(1.0)

    h = x
    for li, p in enumerate(params):
        last = li == len(params) - 1
        hf = p["w"].shape[1]
        fo = hf // num_heads
        xw = jnp.dot(h.astype(jnp.bfloat16), p["w"].astype(jnp.bfloat16),
                     preferred_element_type=jnp.float32)                       # (N, HF)
        xw3b = xw.reshape(n, num_heads, fo).astype(jnp.bfloat16)
        a_d = jnp.einsum("nhf,hf->nh", xw3b, p["a_dst"].astype(jnp.bfloat16),
                         preferred_element_type=jnp.float32)
        a_s = jnp.einsum("nhf,hf->nh", xw3b, p["a_src"].astype(jnp.bfloat16),
                         preferred_element_type=jnp.float32)
        e = a_d.T[:, :, None] + a_s.T[:, None, :]                              # (H, N, N)
        e = jnp.maximum(e, _LEAKY_SLOPE * e)
        e = jnp.where(adj[None] > 0, e, _NEG_INF)
        pnum = jnp.exp(e - e.max(-1, keepdims=True)).astype(jnp.bfloat16)
        num = jnp.einsum("hij,jhf->ihf", pnum, xw3b,
                         preferred_element_type=jnp.float32)                   # (N, H, Fo)
        den = pnum.astype(jnp.float32).sum(-1).T[:, :, None]                   # (N, H, 1)
        out = (num / den).reshape(n, hf) + p["bias"].reshape(1, hf)
        if not last:
            out = jnp.maximum(out, 0.0).astype(jnp.bfloat16).astype(jnp.float32)
        h = out
    return h


if __name__ == "__main__":
    NUM_NODES = 128
    NUM_EDGES = 512
    INPUT_DIM = 32
    HIDDEN_DIM = 64
    OUTPUT_DIM = 64
    NUM_HEADS = 8

    key = jax.random.PRNGKey(0)
    k_x, k_e, k_p = jax.random.split(key, 3)

    x = jax.random.normal(k_x, (NUM_NODES, INPUT_DIM), jnp.float32)
    edge_index = jax.random.randint(k_e, (2, NUM_EDGES), 0, NUM_NODES,
                                    dtype=jnp.int32)
    params = init_dysat_params(k_p, INPUT_DIM, HIDDEN_DIM, OUTPUT_DIM,
                               NUM_HEADS)

    out = dysat_forward(x, edge_index, params, num_heads=NUM_HEADS)
    out = jax.block_until_ready(out)

    ref = dysat_reference(x, edge_index, params, num_heads=NUM_HEADS)
    assert out.shape == (NUM_NODES, OUTPUT_DIM)
    assert bool(jnp.all(jnp.isfinite(out))), "non-finite values in kernel output"
    # bf16 MXU operands (mirrored in the reference) + differing accumulation order
    # => modest tolerance; a real algorithmic bug would show up as O(1) errors.
    assert jnp.allclose(out, ref, rtol=1e-2, atol=1e-2), "mismatch vs reference"

    print("KERNEL_OK")
</pallas_src>

<mosaic_0001>
module attributes {stable_mosaic.version = 11 : i64} {
  func.func @_dysat2_kernel(%arg0: memref<128x32xbf16, #tpu.memory_space<vmem>>, %arg1: memref<128x128xbf16, #tpu.memory_space<vmem>>, %arg2: memref<32x128xbf16, #tpu.memory_space<vmem>>, %arg3: memref<128x16xbf16, #tpu.memory_space<vmem>>, %arg4: memref<8x128xbf16, #tpu.memory_space<vmem>>, %arg5: memref<1x128xf32, #tpu.memory_space<vmem>>, %arg6: memref<1x64xf32, #tpu.memory_space<vmem>>, %arg7: memref<64x128xbf16, #tpu.memory_space<vmem>>, %arg8: memref<128x16xbf16, #tpu.memory_space<vmem>>, %arg9: memref<8x128xbf16, #tpu.memory_space<vmem>>, %arg10: memref<1x128xf32, #tpu.memory_space<vmem>>, %arg11: memref<1x64xf32, #tpu.memory_space<vmem>>, %arg12: memref<128x64xf32, #tpu.memory_space<vmem>>, %arg13: memref<128x64xbf16, #tpu.memory_space<vmem>>, %arg14: memref<128x128xf32, #tpu.memory_space<vmem>>, %arg15: memref<128x128xf32, #tpu.memory_space<vmem>>) attributes {dimension_semantics = [], scalar_prefetch = 0 : i64, scratch_operands = 3 : i64, tpu.core_type = #tpu.core_type<tc>} {
    %c0 = arith.constant 0 : index
    %c0_0 = arith.constant 0 : index
    %0 = vector.load %arg1[%c0, %c0_0] : memref<128x128xbf16, #tpu.memory_space<vmem>>, vector<128x128xbf16>
    %c0_1 = arith.constant 0 : index
    %c0_2 = arith.constant 0 : index
    %1 = vector.load %arg0[%c0_1, %c0_2] : memref<128x32xbf16, #tpu.memory_space<vmem>>, vector<128x32xbf16>
    %c0_3 = arith.constant 0 : index
    %c0_4 = arith.constant 0 : index
    %2 = vector.load %arg2[%c0_3, %c0_4] : memref<32x128xbf16, #tpu.memory_space<vmem>>, vector<32x128xbf16>
    %c0_5 = arith.constant 0 : index
    %c0_6 = arith.constant 0 : index
    %3 = vector.load %arg5[%c0_5, %c0_6] : memref<1x128xf32, #tpu.memory_space<vmem>>, vector<1x128xf32>
    %c0_7 = arith.constant 0 : index
    %c0_8 = arith.constant 0 : index
    %4 = vector.load %arg3[%c0_7, %c0_8] : memref<128x16xbf16, #tpu.memory_space<vmem>>, vector<128x16xbf16>
    %c0_9 = arith.constant 0 : index
    %c0_10 = arith.constant 0 : index
    %5 = vector.load %arg4[%c0_9, %c0_10] : memref<8x128xbf16, #tpu.memory_space<vmem>>, vector<8x128xbf16>
    %c0_11 = arith.constant 0 : index
    %c0_12 = arith.constant 0 : index
    %6 = vector.load %arg6[%c0_11, %c0_12] : memref<1x64xf32, #tpu.memory_space<vmem>>, vector<1x64xf32>
    %cst = arith.constant dense<0.000000e+00> : vector<128x128xf32>
    %7 = tpu.matmul %1, %2, %cst {dimension_numbers = #tpu.dot_dimension_numbers<[1], [0], [0], [1], [0, 0, 1, 1], [], []>} : vector<128x32xbf16>, vector<32x128xbf16>, vector<128x128xf32> -> vector<128x128xf32>
    %8 = vector.broadcast %3 : vector<1x128xf32> to vector<128x128xf32>
    %9 = arith.addf %7, %8 : vector<128x128xf32>
    %10 = arith.truncf %9 : vector<128x128xf32> to vector<128x128xbf16>
    %cst_13 = arith.constant dense<0.000000e+00> : vector<128x16xf32>
    %11 = tpu.matmul %10, %4, %cst_13 {dimension_numbers = #tpu.dot_dimension_numbers<[1], [0], [0], [1], [0, 0, 1, 1], [], []>} : vector<128x128xbf16>, vector<128x16xbf16>, vector<128x16xf32> -> vector<128x16xf32>
    %12 = vector.extract_strided_slice %11 {offsets = [0, 0], sizes = [128, 8], strides = [1, 1]} : vector<128x16xf32> to vector<128x8xf32>
    %13 = vector.extract_strided_slice %11 {offsets = [0, 8], sizes = [128, 8], strides = [1, 1]} : vector<128x16xf32> to vector<128x8xf32>
    %14 = tpu.transpose %13, [1, 0] : vector<128x8xf32> -> vector<8x128xf32>
    %cst_14 = arith.constant 0.000000e+00 : f32
    %15 = vector.broadcast %cst_14 : f32 to vector<128x128xf32>
    %c0_15 = arith.constant 0 : index
    %c0_16 = arith.constant 0 : index
    %16 = vector.load %arg14[%c0_15, %c0_16] : memref<128x128xf32, #tpu.memory_space<vmem>>, vector<128x128xf32>
    tpu.vector_store %arg14[%c0_15, %c0_16], %15 {strides = array<i32>} : memref<128x128xf32, #tpu.memory_space<vmem>>, vector<128x128xf32>,
    %17 = vector.extract_strided_slice %12 {offsets = [0, 0], sizes = [128, 1], strides = [1, 1]} : vector<128x8xf32> to vector<128x1xf32>
    %18 = vector.extract_strided_slice %14 {offsets = [0, 0], sizes = [1, 128], strides = [1, 1]} : vector<8x128xf32> to vector<1x128xf32>
    %19 = vector.broadcast %17 : vector<128x1xf32> to vector<128x128xf32>
    %20 = vector.broadcast %18 : vector<1x128xf32> to vector<128x128xf32>
    %21 = arith.addf %19, %20 : vector<128x128xf32>
    %cst_17 = arith.constant 2.000000e-01 : f32
    %22 = vector.broadcast %cst_17 : f32 to vector<128x128xf32>
    %23 = arith.mulf %22, %21 : vector<128x128xf32>
    %24 = arith.maximumf %21, %23 : vector<128x128xf32>
    %cst_18 = arith.constant 0.000000e+00 : bf16
    %25 = vector.broadcast %cst_18 : bf16 to vector<128x128xbf16>
    %26 = arith.cmpf ogt, %0, %25 : vector<128x128xbf16>
    %cst_19 = arith.constant -1.000000e+30 : f32
    %27 = vector.broadcast %cst_19 : f32 to vector<128x128xf32>
    %28 = arith.select %26, %24, %27 : vector<128x128xi1>, vector<128x128xf32>
    %cst_20 = arith.constant dense<0xFF800000> : vector<128xf32>
    %29 = vector.multi_reduction <maximumf>, %28, %cst_20 [1] : vector<128x128xf32> to vector<128xf32>
    %30 = vector.shape_cast %29 : vector<128xf32> to vector<128x1xf32>
    %31 = vector.broadcast %30 : vector<128x1xf32> to vector<128x128xf32>
    %32 = arith.subf %28, %31 : vector<128x128xf32>
    %33 = math.exp %32 : vector<128x128xf32>
    %34 = vector.extract_strided_slice %5 {offsets = [0, 0], sizes = [1, 128], strides = [1, 1]} : vector<8x128xbf16> to vector<1x128xbf16>
    %35 = vector.broadcast %34 : vector<1x128xbf16> to vector<128x128xbf16>
    %36 = arith.mulf %10, %35 : vector<128x128xbf16>
    %c0_21 = arith.constant 0 : index
    %c0_22 = arith.constant 0 : index
    %37 = vector.load %arg14[%c0_21, %c0_22] : memref<128x128xf32, #tpu.memory_space<vmem>>, vector<128x128xf32>
    %38 = arith.truncf %33 : vector<128x128xf32> to vector<128x128xbf16>
    %cst_23 = arith.constant dense<0.000000e+00> : vector<128x128xf32>
    %39 = tpu.matmul %38, %36, %cst_23 {dimension_numbers = #tpu.dot_dimension_numbers<[1], [0], [0], [1], [0, 0, 1, 1], [], []>} : vector<128x128xbf16>, vector<128x128xbf16>, vector<128x128xf32> -> vector<128x128xf32>
    %40 = arith.addf %37, %39 : vector<128x128xf32>
    %c0_24 = arith.constant 0 : index
    %c0_25 = arith.constant 0 : index
    %41 = vector.load %arg14[%c0_24, %c0_25] : memref<128x128xf32, #tpu.memory_space<vmem>>, vector<128x128xf32>
    tpu.vector_store %arg14[%c0_24, %c0_25], %40 {strides = array<i32>} : memref<128x128xf32, #tpu.memory_space<vmem>>, vector<128x128xf32>,
    %42 = vector.extract_strided_slice %12 {offsets = [0, 1], sizes = [128, 1], strides = [1, 1]} : vector<128x8xf32> to vector<128x1xf32>
    %43 = vector.extract_strided_slice %14 {offsets = [1, 0], sizes = [1, 128], strides = [1, 1]} : vector<8x128xf32> to vector<1x128xf32>
    %44 = vector.broadcast %42 : vector<128x1xf32> to vector<128x128xf32>
    %45 = vector.broadcast %43 : vector<1x128xf32> to vector<128x128xf32>
    %46 = arith.addf %44, %45 : vector<128x128xf32>
    %cst_26 = arith.constant 2.000000e-01 : f32
    %47 = vector.broadcast %cst_26 : f32 to vector<128x128xf32>
    %48 = arith.mulf %47, %46 : vector<128x128xf32>
    %49 = arith.maximumf %46, %48 : vector<128x128xf32>
    %cst_27 = arith.constant 0.000000e+00 : bf16
    %50 = vector.broadcast %cst_27 : bf16 to vector<128x128xbf16>
    %51 = arith.cmpf ogt, %0, %50 : vector<128x128xbf16>
    %cst_28 = arith.constant -1.000000e+30 : f32
    %52 = vector.broadcast %cst_28 : f32 to vector<128x128xf32>
    %53 = arith.select %51, %49, %52 : vector<128x128xi1>, vector<128x128xf32>
    %cst_29 = arith.constant dense<0xFF800000> : vector<128xf32>
    %54 = vector.multi_reduction <maximumf>, %53, %cst_29 [1] : vector<128x128xf32> to vector<128xf32>
    %55 = vector.shape_cast %54 : vector<128xf32> to vector<128x1xf32>
    %56 = vector.broadcast %55 : vector<128x1xf32> to vector<128x128xf32>
    %57 = arith.subf %53, %56 : vector<128x128xf32>
    %58 = math.exp %57 : vector<128x128xf32>
    %59 = vector.extract_strided_slice %5 {offsets = [1, 0], sizes = [1, 128], strides = [1, 1]} : vector<8x128xbf16> to vector<1x128xbf16>
    %60 = vector.broadcast %59 : vector<1x128xbf16> to vector<128x128xbf16>
    %61 = arith.mulf %10, %60 : vector<128x128xbf16>
    %c0_30 = arith.constant 0 : index
    %c0_31 = arith.constant 0 : index
    %62 = vector.load %arg14[%c0_30, %c0_31] : memref<128x128xf32, #tpu.memory_space<vmem>>, vector<128x128xf32>
    %63 = arith.truncf %58 : vector<128x128xf32> to vector<128x128xbf16>
    %cst_32 = arith.constant dense<0.000000e+00> : vector<128x128xf32>
    %64 = tpu.matmul %63, %61, %cst_32 {dimension_numbers = #tpu.dot_dimension_numbers<[1], [0], [0], [1], [0, 0, 1, 1], [], []>} : vector<128x128xbf16>, vector<128x128xbf16>, vector<128x128xf32> -> vector<128x128xf32>
    %65 = arith.addf %62, %64 : vector<128x128xf32>
    %c0_33 = arith.constant 0 : index
    %c0_34 = arith.constant 0 : index
    %66 = vector.load %arg14[%c0_33, %c0_34] : memref<128x128xf32, #tpu.memory_space<vmem>>, vector<128x128xf32>
    tpu.vector_store %arg14[%c0_33, %c0_34], %65 {strides = array<i32>} : memref<128x128xf32, #tpu.memory_space<vmem>>, vector<128x128xf32>,
    %67 = vector.extract_strided_slice %12 {offsets = [0, 2], sizes = [128, 1], strides = [1, 1]} : vector<128x8xf32> to vector<128x1xf32>
    %68 = vector.extract_strided_slice %14 {offsets = [2, 0], sizes = [1, 128], strides = [1, 1]} : vector<8x128xf32> to vector<1x128xf32>
    %69 = vector.broadcast %67 : vector<128x1xf32> to vector<128x128xf32>
    %70 = vector.broadcast %68 : vector<1x128xf32> to vector<128x128xf32>
    %71 = arith.addf %69, %70 : vector<128x128xf32>
    %cst_35 = arith.constant 2.000000e-01 : f32
    %72 = vector.broadcast %cst_35 : f32 to vector<128x128xf32>
    %73 = arith.mulf %72, %71 : vector<128x128xf32>
    %74 = arith.maximumf %71, %73 : vector<128x128xf32>
    %cst_36 = arith.constant 0.000000e+00 : bf16
    %75 = vector.broadcast %cst_36 : bf16 to vector<128x128xbf16>
    %76 = arith.cmpf ogt, %0, %75 : vector<128x128xbf16>
    %cst_37 = arith.constant -1.000000e+30 : f32
    %77 = vector.broadcast %cst_37 : f32 to vector<128x128xf32>
    %78 = arith.select %76, %74, %77 : vector<128x128xi1>, vector<128x128xf32>
    %cst_38 = arith.constant dense<0xFF800000> : vector<128xf32>
    %79 = vector.multi_reduction <maximumf>, %78, %cst_38 [1] : vector<128x128xf32> to vector<128xf32>
    %80 = vector.shape_cast %79 : vector<128xf32> to vector<128x1xf32>
    %81 = vector.broadcast %80 : vector<128x1xf32> to vector<128x128xf32>
    %82 = arith.subf %78, %81 : vector<128x128xf32>
    %83 = math.exp %82 : vector<128x128xf32>
    %84 = vector.extract_strided_slice %5 {offsets = [2, 0], sizes = [1, 128], strides = [1, 1]} : vector<8x128xbf16> to vector<1x128xbf16>
    %85 = vector.broadcast %84 : vector<1x128xbf16> to vector<128x128xbf16>
    %86 = arith.mulf %10, %85 : vector<128x128xbf16>
    %c0_39 = arith.constant 0 : index
    %c0_40 = arith.constant 0 : index
    %87 = vector.load %arg14[%c0_39, %c0_40] : memref<128x128xf32, #tpu.memory_space<vmem>>, vector<128x128xf32>
    %88 = arith.truncf %83 : vector<128x128xf32> to vector<128x128xbf16>
    %cst_41 = arith.constant dense<0.000000e+00> : vector<128x128xf32>
    %89 = tpu.matmul %88, %86, %cst_41 {dimension_numbers = #tpu.dot_dimension_numbers<[1], [0], [0], [1], [0, 0, 1, 1], [], []>} : vector<128x128xbf16>, vector<128x128xbf16>, vector<128x128xf32> -> vector<128x128xf32>
    %90 = arith.addf %87, %89 : vector<128x128xf32>
    %c0_42 = arith.constant 0 : index
    %c0_43 = arith.constant 0 : index
    %91 = vector.load %arg14[%c0_42, %c0_43] : memref<128x128xf32, #tpu.memory_space<vmem>>, vector<128x128xf32>
    tpu.vector_store %arg14[%c0_42, %c0_43], %90 {strides = array<i32>} : memref<128x128xf32, #tpu.memory_space<vmem>>, vector<128x128xf32>,
    %92 = vector.extract_strided_slice %12 {offsets = [0, 3], sizes = [128, 1], strides = [1, 1]} : vector<128x8xf32> to vector<128x1xf32>
    %93 = vector.extract_strided_slice %14 {offsets = [3, 0], sizes = [1, 128], strides = [1, 1]} : vector<8x128xf32> to vector<1x128xf32>
    %94 = vector.broadcast %92 : vector<128x1xf32> to vector<128x128xf32>
    %95 = vector.broadcast %93 : vector<1x128xf32> to vector<128x128xf32>
    %96 = arith.addf %94, %95 : vector<128x128xf32>
    %cst_44 = arith.constant 2.000000e-01 : f32
    %97 = vector.broadcast %cst_44 : f32 to vector<128x128xf32>
    %98 = arith.mulf %97, %96 : vector<128x128xf32>
    %99 = arith.maximumf %96, %98 : vector<128x128xf32>
    %cst_45 = arith.constant 0.000000e+00 : bf16
    %100 = vector.broadcast %cst_45 : bf16 to vector<128x128xbf16>
    %101 = arith.cmpf ogt, %0, %100 : vector<128x128xbf16>
    %cst_46 = arith.constant -1.000000e+30 : f32
    %102 = vector.broadcast %cst_46 : f32 to vector<128x128xf32>
    %103 = arith.select %101, %99, %102 : vector<128x128xi1>, vector<128x128xf32>
    %cst_47 = arith.constant dense<0xFF800000> : vector<128xf32>
    %104 = vector.multi_reduction <maximumf>, %103, %cst_47 [1] : vector<128x128xf32> to vector<128xf32>
    %105 = vector.shape_cast %104 : vector<128xf32> to vector<128x1xf32>
    %106 = vector.broadcast %105 : vector<128x1xf32> to vector<128x128xf32>
    %107 = arith.subf %103, %106 : vector<128x128xf32>
    %108 = math.exp %107 : vector<128x128xf32>
    %109 = vector.extract_strided_slice %5 {offsets = [3, 0], sizes = [1, 128], strides = [1, 1]} : vector<8x128xbf16> to vector<1x128xbf16>
    %110 = vector.broadcast %109 : vector<1x128xbf16> to vector<128x128xbf16>
    %111 = arith.mulf %10, %110 : vector<128x128xbf16>
    %c0_48 = arith.constant 0 : index
    %c0_49 = arith.constant 0 : index
    %112 = vector.load %arg14[%c0_48, %c0_49] : memref<128x128xf32, #tpu.memory_space<vmem>>, vector<128x128xf32>
    %113 = arith.truncf %108 : vector<128x128xf32> to vector<128x128xbf16>
    %cst_50 = arith.constant dense<0.000000e+00> : vector<128x128xf32>
    %114 = tpu.matmul %113, %111, %cst_50 {dimension_numbers = #tpu.dot_dimension_numbers<[1], [0], [0], [1], [0, 0, 1, 1], [], []>} : vector<128x128xbf16>, vector<128x128xbf16>, vector<128x128xf32> -> vector<128x128xf32>
    %115 = arith.addf %112, %114 : vector<128x128xf32>
    %c0_51 = arith.constant 0 : index
    %c0_52 = arith.constant 0 : index
    %116 = vector.load %arg14[%c0_51, %c0_52] : memref<128x128xf32, #tpu.memory_space<vmem>>, vector<128x128xf32>
    tpu.vector_store %arg14[%c0_51, %c0_52], %115 {strides = array<i32>} : memref<128x128xf32, #tpu.memory_space<vmem>>, vector<128x128xf32>,
    %117 = vector.extract_strided_slice %12 {offsets = [0, 4], sizes = [128, 1], strides = [1, 1]} : vector<128x8xf32> to vector<128x1xf32>
    %118 = vector.extract_strided_slice %14 {offsets = [4, 0], sizes = [1, 128], strides = [1, 1]} : vector<8x128xf32> to vector<1x128xf32>
    %119 = vector.broadcast %117 : vector<128x1xf32> to vector<128x128xf32>
    %120 = vector.broadcast %118 : vector<1x128xf32> to vector<128x128xf32>
    %121 = arith.addf %119, %120 : vector<128x128xf32>
    %cst_53 = arith.constant 2.000000e-01 : f32
    %122 = vector.broadcast %cst_53 : f32 to vector<128x128xf32>
    %123 = arith.mulf %122, %121 : vector<128x128xf32>
    %124 = arith.maximumf %121, %123 : vector<128x128xf32>
    %cst_54 = arith.constant 0.000000e+00 : bf16
    %125 = vector.broadcast %cst_54 : bf16 to vector<128x128xbf16>
    %126 = arith.cmpf ogt, %0, %125 : vector<128x128xbf16>
    %cst_55 = arith.constant -1.000000e+30 : f32
    %127 = vector.broadcast %cst_55 : f32 to vector<128x128xf32>
    %128 = arith.select %126, %124, %127 : vector<128x128xi1>, vector<128x128xf32>
    %cst_56 = arith.constant dense<0xFF800000> : vector<128xf32>
    %129 = vector.multi_reduction <maximumf>, %128, %cst_56 [1] : vector<128x128xf32> to vector<128xf32>
    %130 = vector.shape_cast %129 : vector<128xf32> to vector<128x1xf32>
    %131 = vector.broadcast %130 : vector<128x1xf32> to vector<128x128xf32>
    %132 = arith.subf %128, %131 : vector<128x128xf32>
    %133 = math.exp %132 : vector<128x128xf32>
    %134 = vector.extract_strided_slice %5 {offsets = [4, 0], sizes = [1, 128], strides = [1, 1]} : vector<8x128xbf16> to vector<1x128xbf16>
    %135 = vector.broadcast %134 : vector<1x128xbf16> to vector<128x128xbf16>
    %136 = arith.mulf %10, %135 : vector<128x128xbf16>
    %c0_57 = arith.constant 0 : index
    %c0_58 = arith.constant 0 : index
    %137 = vector.load %arg14[%c0_57, %c0_58] : memref<128x128xf32, #tpu.memory_space<vmem>>, vector<128x128xf32>
    %138 = arith.truncf %133 : vector<128x128xf32> to vector<128x128xbf16>
    %cst_59 = arith.constant dense<0.000000e+00> : vector<128x128xf32>
    %139 = tpu.matmul %138, %136, %cst_59 {dimension_numbers = #tpu.dot_dimension_numbers<[1], [0], [0], [1], [0, 0, 1, 1], [], []>} : vector<128x128xbf16>, vector<128x128xbf16>, vector<128x128xf32> -> vector<128x128xf32>
    %140 = arith.addf %137, %139 : vector<128x128xf32>
    %c0_60 = arith.constant 0 : index
    %c0_61 = arith.constant 0 : index
    %141 = vector.load %arg14[%c0_60, %c0_61] : memref<128x128xf32, #tpu.memory_space<vmem>>, vector<128x128xf32>
    tpu.vector_store %arg14[%c0_60, %c0_61], %140 {strides = array<i32>} : memref<128x128xf32, #tpu.memory_space<vmem>>, vector<128x128xf32>,
    %142 = vector.extract_strided_slice %12 {offsets = [0, 5], sizes = [128, 1], strides = [1, 1]} : vector<128x8xf32> to vector<128x1xf32>
    %143 = vector.extract_strided_slice %14 {offsets = [5, 0], sizes = [1, 128], strides = [1, 1]} : vector<8x128xf32> to vector<1x128xf32>
    %144 = vector.broadcast %142 : vector<128x1xf32> to vector<128x128xf32>
    %145 = vector.broadcast %143 : vector<1x128xf32> to vector<128x128xf32>
    %146 = arith.addf %144, %145 : vector<128x128xf32>
    %cst_62 = arith.constant 2.000000e-01 : f32
    %147 = vector.broadcast %cst_62 : f32 to vector<128x128xf32>
    %148 = arith.mulf %147, %146 : vector<128x128xf32>
    %149 = arith.maximumf %146, %148 : vector<128x128xf32>
    %cst_63 = arith.constant 0.000000e+00 : bf16
    %150 = vector.broadcast %cst_63 : bf16 to vector<128x128xbf16>
    %151 = arith.cmpf ogt, %0, %150 : vector<128x128xbf16>
    %cst_64 = arith.constant -1.000000e+30 : f32
    %152 = vector.broadcast %cst_64 : f32 to vector<128x128xf32>
    %153 = arith.select %151, %149, %152 : vector<128x128xi1>, vector<128x128xf32>
    %cst_65 = arith.constant dense<0xFF800000> : vector<128xf32>
    %154 = vector.multi_reduction <maximumf>, %153, %cst_65 [1] : vector<128x128xf32> to vector<128xf32>
    %155 = vector.shape_cast %154 : vector<128xf32> to vector<128x1xf32>
    %156 = vector.broadcast %155 : vector<128x1xf32> to vector<128x128xf32>
    %157 = arith.subf %153, %156 : vector<128x128xf32>
    %158 = math.exp %157 : vector<128x128xf32>
    %159 = vector.extract_strided_slice %5 {offsets = [5, 0], sizes = [1, 128], strides = [1, 1]} : vector<8x128xbf16> to vector<1x128xbf16>
    %160 = vector.broadcast %159 : vector<1x128xbf16> to vector<128x128xbf16>
    %161 = arith.mulf %10, %160 : vector<128x128xbf16>
    %c0_66 = arith.constant 0 : index
    %c0_67 = arith.constant 0 : index
    %162 = vector.load %arg14[%c0_66, %c0_67] : memref<128x128xf32, #tpu.memory_space<vmem>>, vector<128x128xf32>
    %163 = arith.truncf %158 : vector<128x128xf32> to vector<128x128xbf16>
    %cst_68 = arith.constant dense<0.000000e+00> : vector<128x128xf32>
    %164 = tpu.matmul %163, %161, %cst_68 {dimension_numbers = #tpu.dot_dimension_numbers<[1], [0], [0], [1], [0, 0, 1, 1], [], []>} : vector<128x128xbf16>, vector<128x128xbf16>, vector<128x128xf32> -> vector<128x128xf32>
    %165 = arith.addf %162, %164 : vector<128x128xf32>
    %c0_69 = arith.constant 0 : index
    %c0_70 = arith.constant 0 : index
    %166 = vector.load %arg14[%c0_69, %c0_70] : memref<128x128xf32, #tpu.memory_space<vmem>>, vector<128x128xf32>
    tpu.vector_store %arg14[%c0_69, %c0_70], %165 {strides = array<i32>} : memref<128x128xf32, #tpu.memory_space<vmem>>, vector<128x128xf32>,
    %167 = vector.extract_strided_slice %12 {offsets = [0, 6], sizes = [128, 1], strides = [1, 1]} : vector<128x8xf32> to vector<128x1xf32>
    %168 = vector.extract_strided_slice %14 {offsets = [6, 0], sizes = [1, 128], strides = [1, 1]} : vector<8x128xf32> to vector<1x128xf32>
    %169 = vector.broadcast %167 : vector<128x1xf32> to vector<128x128xf32>
    %170 = vector.broadcast %168 : vector<1x128xf32> to vector<128x128xf32>
    %171 = arith.addf %169, %170 : vector<128x128xf32>
    %cst_71 = arith.constant 2.000000e-01 : f32
    %172 = vector.broadcast %cst_71 : f32 to vector<128x128xf32>
    %173 = arith.mulf %172, %171 : vector<128x128xf32>
    %174 = arith.maximumf %171, %173 : vector<128x128xf32>
    %cst_72 = arith.constant 0.000000e+00 : bf16
    %175 = vector.broadcast %cst_72 : bf16 to vector<128x128xbf16>
    %176 = arith.cmpf ogt, %0, %175 : vector<128x128xbf16>
    %cst_73 = arith.constant -1.000000e+30 : f32
    %177 = vector.broadcast %cst_73 : f32 to vector<128x128xf32>
    %178 = arith.select %176, %174, %177 : vector<128x128xi1>, vector<128x128xf32>
    %cst_74 = arith.constant dense<0xFF800000> : vector<128xf32>
    %179 = vector.multi_reduction <maximumf>, %178, %cst_74 [1] : vector<128x128xf32> to vector<128xf32>
    %180 = vector.shape_cast %179 : vector<128xf32> to vector<128x1xf32>
    %181 = vector.broadcast %180 : vector<128x1xf32> to vector<128x128xf32>
    %182 = arith.subf %178, %181 : vector<128x128xf32>
    %183 = math.exp %182 : vector<128x128xf32>
    %184 = vector.extract_strided_slice %5 {offsets = [6, 0], sizes = [1, 128], strides = [1, 1]} : vector<8x128xbf16> to vector<1x128xbf16>
    %185 = vector.broadcast %184 : vector<1x128xbf16> to vector<128x128xbf16>
    %186 = arith.mulf %10, %185 : vector<128x128xbf16>
    %c0_75 = arith.constant 0 : index
    %c0_76 = arith.constant 0 : index
    %187 = vector.load %arg14[%c0_75, %c0_76] : memref<128x128xf32, #tpu.memory_space<vmem>>, vector<128x128xf32>
    %188 = arith.truncf %183 : vector<128x128xf32> to vector<128x128xbf16>
    %cst_77 = arith.constant dense<0.000000e+00> : vector<128x128xf32>
    %189 = tpu.matmul %188, %186, %cst_77 {dimension_numbers = #tpu.dot_dimension_numbers<[1], [0], [0], [1], [0, 0, 1, 1], [], []>} : vector<128x128xbf16>, vector<128x128xbf16>, vector<128x128xf32> -> vector<128x128xf32>
    %190 = arith.addf %187, %189 : vector<128x128xf32>
    %c0_78 = arith.constant 0 : index
    %c0_79 = arith.constant 0 : index
    %191 = vector.load %arg14[%c0_78, %c0_79] : memref<128x128xf32, #tpu.memory_space<vmem>>, vector<128x128xf32>
    tpu.vector_store %arg14[%c0_78, %c0_79], %190 {strides = array<i32>} : memref<128x128xf32, #tpu.memory_space<vmem>>, vector<128x128xf32>,
    %192 = vector.extract_strided_slice %12 {offsets = [0, 7], sizes = [128, 1], strides = [1, 1]} : vector<128x8xf32> to vector<128x1xf32>
    %193 = vector.extract_strided_slice %14 {offsets = [7, 0], sizes = [1, 128], strides = [1, 1]} : vector<8x128xf32> to vector<1x128xf32>
    %194 = vector.broadcast %192 : vector<128x1xf32> to vector<128x128xf32>
    %195 = vector.broadcast %193 : vector<1x128xf32> to vector<128x128xf32>
    %196 = arith.addf %194, %195 : vector<128x128xf32>
    %cst_80 = arith.constant 2.000000e-01 : f32
    %197 = vector.broadcast %cst_80 : f32 to vector<128x128xf32>
    %198 = arith.mulf %197, %196 : vector<128x128xf32>
    %199 = arith.maximumf %196, %198 : vector<128x128xf32>
    %cst_81 = arith.constant 0.000000e+00 : bf16
    %200 = vector.broadcast %cst_81 : bf16 to vector<128x128xbf16>
    %201 = arith.cmpf ogt, %0, %200 : vector<128x128xbf16>
    %cst_82 = arith.constant -1.000000e+30 : f32
    %202 = vector.broadcast %cst_82 : f32 to vector<128x128xf32>
    %203 = arith.select %201, %199, %202 : vector<128x128xi1>, vector<128x128xf32>
    %cst_83 = arith.constant dense<0xFF800000> : vector<128xf32>
    %204 = vector.multi_reduction <maximumf>, %203, %cst_83 [1] : vector<128x128xf32> to vector<128xf32>
    %205 = vector.shape_cast %204 : vector<128xf32> to vector<128x1xf32>
    %206 = vector.broadcast %205 : vector<128x1xf32> to vector<128x128xf32>
    %207 = arith.subf %203, %206 : vector<128x128xf32>
    %208 = math.exp %207 : vector<128x128xf32>
    %209 = vector.extract_strided_slice %5 {offsets = [7, 0], sizes = [1, 128], strides = [1, 1]} : vector<8x128xbf16> to vector<1x128xbf16>
    %210 = vector.broadcast %209 : vector<1x128xbf16> to vector<128x128xbf16>
    %211 = arith.mulf %10, %210 : vector<128x128xbf16>
    %c0_84 = arith.constant 0 : index
    %c0_85 = arith.constant 0 : index
    %212 = vector.load %arg14[%c0_84, %c0_85] : memref<128x128xf32, #tpu.memory_space<vmem>>, vector<128x128xf32>
    %213 = arith.truncf %208 : vector<128x128xf32> to vector<128x128xbf16>
    %cst_86 = arith.constant dense<0.000000e+00> : vector<128x128xf32>
    %214 = tpu.matmul %213, %211, %cst_86 {dimension_numbers = #tpu.dot_dimension_numbers<[1], [0], [0], [1], [0, 0, 1, 1], [], []>} : vector<128x128xbf16>, vector<128x128xbf16>, vector<128x128xf32> -> vector<128x128xf32>
    %215 = arith.addf %212, %214 : vector<128x128xf32>
    %c0_87 = arith.constant 0 : index
    %c0_88 = arith.constant 0 : index
    %216 = vector.load %arg14[%c0_87, %c0_88] : memref<128x128xf32, #tpu.memory_space<vmem>>, vector<128x128xf32>
    tpu.vector_store %arg14[%c0_87, %c0_88], %215 {strides = array<i32>} : memref<128x128xf32, #tpu.memory_space<vmem>>, vector<128x128xf32>,
    %c0_89 = arith.constant 0 : index
    %c0_90 = arith.constant 0 : index
    %217 = vector.load %arg14[%c0_89, %c0_90] : memref<128x128xf32, #tpu.memory_space<vmem>>, vector<128x128xf32>
    %218 = vector.extract_strided_slice %217 {offsets = [0, 0], sizes = [128, 64], strides = [1, 1]} : vector<128x128xf32> to vector<128x64xf32>
    %219 = vector.extract_strided_slice %217 {offsets = [0, 64], sizes = [128, 64], strides = [1, 1]} : vector<128x128xf32> to vector<128x64xf32>
    %220 = arith.divf %218, %219 : vector<128x64xf32>
    %221 = vector.broadcast %6 : vector<1x64xf32> to vector<128x64xf32>
    %222 = arith.addf %220, %221 : vector<128x64xf32>
    %cst_91 = arith.constant 0.000000e+00 : f32
    %223 = vector.broadcast %cst_91 : f32 to vector<128x64xf32>
    %224 = arith.maximumf %222, %223 : vector<128x64xf32>
    %225 = arith.truncf %224 : vector<128x64xf32> to vector<128x64xbf16>
    %c0_92 = arith.constant 0 : index
    %c0_93 = arith.constant 0 : index
    %226 = vector.load %arg13[%c0_92, %c0_93] : memref<128x64xbf16, #tpu.memory_space<vmem>>, vector<128x64xbf16>
    tpu.vector_store %arg13[%c0_92, %c0_93], %225 {strides = array<i32>} : memref<128x64xbf16, #tpu.memory_space<vmem>>, vector<128x64xbf16>,
    %c0_94 = arith.constant 0 : index
    %c0_95 = arith.constant 0 : index
    %227 = vector.load %arg13[%c0_94, %c0_95] : memref<128x64xbf16, #tpu.memory_space<vmem>>, vector<128x64xbf16>
    %c0_96 = arith.constant 0 : index
    %c0_97 = arith.constant 0 : index
    %228 = vector.load %arg7[%c0_96, %c0_97] : memref<64x128xbf16, #tpu.memory_space<vmem>>, vector<64x128xbf16>
    %c0_98 = arith.constant 0 : index
    %c0_99 = arith.constant 0 : index
    %229 = vector.load %arg10[%c0_98, %c0_99] : memref<1x128xf32, #tpu.memory_space<vmem>>, vector<1x128xf32>
    %c0_100 = arith.constant 0 : index
    %c0_101 = arith.constant 0 : index
    %230 = vector.load %arg8[%c0_100, %c0_101] : memref<128x16xbf16, #tpu.memory_space<vmem>>, vector<128x16xbf16>
    %c0_102 = arith.constant 0 : index
    %c0_103 = arith.constant 0 : index
    %231 = vector.load %arg9[%c0_102, %c0_103] : memref<8x128xbf16, #tpu.memory_space<vmem>>, vector<8x128xbf16>
    %c0_104 = arith.constant 0 : index
    %c0_105 = arith.constant 0 : index
    %232 = vector.load %arg11[%c0_104, %c0_105] : memref<1x64xf32, #tpu.memory_space<vmem>>, vector<1x64xf32>
    %cst_106 = arith.constant dense<0.000000e+00> : vector<128x128xf32>
    %233 = tpu.matmul %227, %228, %cst_106 {dimension_numbers = #tpu.dot_dimension_numbers<[1], [0], [0], [1], [0, 0, 1, 1], [], []>} : vector<128x64xbf16>, vector<64x128xbf16>, vector<128x128xf32> -> vector<128x128xf32>
    %234 = vector.broadcast %229 : vector<1x128xf32> to vector<128x128xf32>
    %235 = arith.addf %233, %234 : vector<128x128xf32>
    %236 = arith.truncf %235 : vector<128x128xf32> to vector<128x128xbf16>
    %cst_107 = arith.constant dense<0.000000e+00> : vector<128x16xf32>
    %237 = tpu.matmul %236, %230, %cst_107 {dimension_numbers = #tpu.dot_dimension_numbers<[1], [0], [0], [1], [0, 0, 1, 1], [], []>} : vector<128x128xbf16>, vector<128x16xbf16>, vector<128x16xf32> -> vector<128x16xf32>
    %238 = vector.extract_strided_slice %237 {offsets = [0, 0], sizes = [128, 8], strides = [1, 1]} : vector<128x16xf32> to vector<128x8xf32>
    %239 = vector.extract_strided_slice %237 {offsets = [0, 8], sizes = [128, 8], strides = [1, 1]} : vector<128x16xf32> to vector<128x8xf32>
    %240 = tpu.transpose %239, [1, 0] : vector<128x8xf32> -> vector<8x128xf32>
    %cst_108 = arith.constant 0.000000e+00 : f32
    %241 = vector.broadcast %cst_108 : f32 to vector<128x128xf32>
    %c0_109 = arith.constant 0 : index
    %c0_110 = arith.constant 0 : index
    %242 = vector.load %arg15[%c0_109, %c0_110] : memref<128x128xf32, #tpu.memory_space<vmem>>, vector<128x128xf32>
    tpu.vector_store %arg15[%c0_109, %c0_110], %241 {strides = array<i32>} : memref<128x128xf32, #tpu.memory_space<vmem>>, vector<128x128xf32>,
    %243 = vector.extract_strided_slice %238 {offsets = [0, 0], sizes = [128, 1], strides = [1, 1]} : vector<128x8xf32> to vector<128x1xf32>
    %244 = vector.extract_strided_slice %240 {offsets = [0, 0], sizes = [1, 128], strides = [1, 1]} : vector<8x128xf32> to vector<1x128xf32>
    %245 = vector.broadcast %243 : vector<128x1xf32> to vector<128x128xf32>
    %246 = vector.broadcast %244 : vector<1x128xf32> to vector<128x128xf32>
    %247 = arith.addf %245, %246 : vector<128x128xf32>
    %cst_111 = arith.constant 2.000000e-01 : f32
    %248 = vector.broadcast %cst_111 : f32 to vector<128x128xf32>
    %249 = arith.mulf %248, %247 : vector<128x128xf32>
    %250 = arith.maximumf %247, %249 : vector<128x128xf32>
    %cst_112 = arith.constant 0.000000e+00 : bf16
    %251 = vector.broadcast %cst_112 : bf16 to vector<128x128xbf16>
    %252 = arith.cmpf ogt, %0, %251 : vector<128x128xbf16>
    %cst_113 = arith.constant -1.000000e+30 : f32
    %253 = vector.broadcast %cst_113 : f32 to vector<128x128xf32>
    %254 = arith.select %252, %250, %253 : vector<128x128xi1>, vector<128x128xf32>
    %cst_114 = arith.constant dense<0xFF800000> : vector<128xf32>
    %255 = vector.multi_reduction <maximumf>, %254, %cst_114 [1] : vector<128x128xf32> to vector<128xf32>
    %256 = vector.shape_cast %255 : vector<128xf32> to vector<128x1xf32>
    %257 = vector.broadcast %256 : vector<128x1xf32> to vector<128x128xf32>
    %258 = arith.subf %254, %257 : vector<128x128xf32>
    %259 = math.exp %258 : vector<128x128xf32>
    %260 = vector.extract_strided_slice %231 {offsets = [0, 0], sizes = [1, 128], strides = [1, 1]} : vector<8x128xbf16> to vector<1x128xbf16>
    %261 = vector.broadcast %260 : vector<1x128xbf16> to vector<128x128xbf16>
    %262 = arith.mulf %236, %261 : vector<128x128xbf16>
    %c0_115 = arith.constant 0 : index
    %c0_116 = arith.constant 0 : index
    %263 = vector.load %arg15[%c0_115, %c0_116] : memref<128x128xf32, #tpu.memory_space<vmem>>, vector<128x128xf32>
    %264 = arith.truncf %259 : vector<128x128xf32> to vector<128x128xbf16>
    %cst_117 = arith.constant dense<0.000000e+00> : vector<128x128xf32>
    %265 = tpu.matmul %264, %262, %cst_117 {dimension_numbers = #tpu.dot_dimension_numbers<[1], [0], [0], [1], [0, 0, 1, 1], [], []>} : vector<128x128xbf16>, vector<128x128xbf16>, vector<128x128xf32> -> vector<128x128xf32>
    %266 = arith.addf %263, %265 : vector<128x128xf32>
    %c0_118 = arith.constant 0 : index
    %c0_119 = arith.constant 0 : index
    %267 = vector.load %arg15[%c0_118, %c0_119] : memref<128x128xf32, #tpu.memory_space<vmem>>, vector<128x128xf32>
    tpu.vector_store %arg15[%c0_118, %c0_119], %266 {strides = array<i32>} : memref<128x128xf32, #tpu.memory_space<vmem>>, vector<128x128xf32>,
    %268 = vector.extract_strided_slice %238 {offsets = [0, 1], sizes = [128, 1], strides = [1, 1]} : vector<128x8xf32> to vector<128x1xf32>
    %269 = vector.extract_strided_slice %240 {offsets = [1, 0], sizes = [1, 128], strides = [1, 1]} : vector<8x128xf32> to vector<1x128xf32>
    %270 = vector.broadcast %268 : vector<128x1xf32> to vector<128x128xf32>
    %271 = vector.broadcast %269 : vector<1x128xf32> to vector<128x128xf32>
    %272 = arith.addf %270, %271 : vector<128x128xf32>
    %cst_120 = arith.constant 2.000000e-01 : f32
    %273 = vector.broadcast %cst_120 : f32 to vector<128x128xf32>
    %274 = arith.mulf %273, %272 : vector<128x128xf32>
    %275 = arith.maximumf %272, %274 : vector<128x128xf32>
    %cst_121 = arith.constant 0.000000e+00 : bf16
    %276 = vector.broadcast %cst_121 : bf16 to vector<128x128xbf16>
    %277 = arith.cmpf ogt, %0, %276 : vector<128x128xbf16>
    %cst_122 = arith.constant -1.000000e+30 : f32
    %278 = vector.broadcast %cst_122 : f32 to vector<128x128xf32>
    %279 = arith.select %277, %275, %278 : vector<128x128xi1>, vector<128x128xf32>
    %cst_123 = arith.constant dense<0xFF800000> : vector<128xf32>
    %280 = vector.multi_reduction <maximumf>, %279, %cst_123 [1] : vector<128x128xf32> to vector<128xf32>
    %281 = vector.shape_cast %280 : vector<128xf32> to vector<128x1xf32>
    %282 = vector.broadcast %281 : vector<128x1xf32> to vector<128x128xf32>
    %283 = arith.subf %279, %282 : vector<128x128xf32>
    %284 = math.exp %283 : vector<128x128xf32>
    %285 = vector.extract_strided_slice %231 {offsets = [1, 0], sizes = [1, 128], strides = [1, 1]} : vector<8x128xbf16> to vector<1x128xbf16>
    %286 = vector.broadcast %285 : vector<1x128xbf16> to vector<128x128xbf16>
    %287 = arith.mulf %236, %286 : vector<128x128xbf16>
    %c0_124 = arith.constant 0 : index
    %c0_125 = arith.constant 0 : index
    %288 = vector.load %arg15[%c0_124, %c0_125] : memref<128x128xf32, #tpu.memory_space<vmem>>, vector<128x128xf32>
    %289 = arith.truncf %284 : vector<128x128xf32> to vector<128x128xbf16>
    %cst_126 = arith.constant dense<0.000000e+00> : vector<128x128xf32>
    %290 = tpu.matmul %289, %287, %cst_126 {dimension_numbers = #tpu.dot_dimension_numbers<[1], [0], [0], [1], [0, 0, 1, 1], [], []>} : vector<128x128xbf16>, vector<128x128xbf16>, vector<128x128xf32> -> vector<128x128xf32>
    %291 = arith.addf %288, %290 : vector<128x128xf32>
    %c0_127 = arith.constant 0 : index
    %c0_128 = arith.constant 0 : index
    %292 = vector.load %arg15[%c0_127, %c0_128] : memref<128x128xf32, #tpu.memory_space<vmem>>, vector<128x128xf32>
    tpu.vector_store %arg15[%c0_127, %c0_128], %291 {strides = array<i32>} : memref<128x128xf32, #tpu.memory_space<vmem>>, vector<128x128xf32>,
    %293 = vector.extract_strided_slice %238 {offsets = [0, 2], sizes = [128, 1], strides = [1, 1]} : vector<128x8xf32> to vector<128x1xf32>
    %294 = vector.extract_strided_slice %240 {offsets = [2, 0], sizes = [1, 128], strides = [1, 1]} : vector<8x128xf32> to vector<1x128xf32>
    %295 = vector.broadcast %293 : vector<128x1xf32> to vector<128x128xf32>
    %296 = vector.broadcast %294 : vector<1x128xf32> to vector<128x128xf32>
    %297 = arith.addf %295, %296 : vector<128x128xf32>
    %cst_129 = arith.constant 2.000000e-01 : f32
    %298 = vector.broadcast %cst_129 : f32 to vector<128x128xf32>
    %299 = arith.mulf %298, %297 : vector<128x128xf32>
    %300 = arith.maximumf %297, %299 : vector<128x128xf32>
    %cst_130 = arith.constant 0.000000e+00 : bf16
    %301 = vector.broadcast %cst_130 : bf16 to vector<128x128xbf16>
    %302 = arith.cmpf ogt, %0, %301 : vector<128x128xbf16>
    %cst_131 = arith.constant -1.000000e+30 : f32
    %303 = vector.broadcast %cst_131 : f32 to vector<128x128xf32>
    %304 = arith.select %302, %300, %303 : vector<128x128xi1>, vector<128x128xf32>
    %cst_132 = arith.constant dense<0xFF800000> : vector<128xf32>
    %305 = vector.multi_reduction <maximumf>, %304, %cst_132 [1] : vector<128x128xf32> to vector<128xf32>
    %306 = vector.shape_cast %305 : vector<128xf32> to vector<128x1xf32>
    %307 = vector.broadcast %306 : vector<128x1xf32> to vector<128x128xf32>
    %308 = arith.subf %304, %307 : vector<128x128xf32>
    %309 = math.exp %308 : vector<128x128xf32>
    %310 = vector.extract_strided_slice %231 {offsets = [2, 0], sizes = [1, 128], strides = [1, 1]} : vector<8x128xbf16> to vector<1x128xbf16>
    %311 = vector.broadcast %310 : vector<1x128xbf16> to vector<128x128xbf16>
    %312 = arith.mulf %236, %311 : vector<128x128xbf16>
    %c0_133 = arith.constant 0 : index
    %c0_134 = arith.constant 0 : index
    %313 = vector.load %arg15[%c0_133, %c0_134] : memref<128x128xf32, #tpu.memory_space<vmem>>, vector<128x128xf32>
    %314 = arith.truncf %309 : vector<128x128xf32> to vector<128x128xbf16>
    %cst_135 = arith.constant dense<0.000000e+00> : vector<128x128xf32>
    %315 = tpu.matmul %314, %312, %cst_135 {dimension_numbers = #tpu.dot_dimension_numbers<[1], [0], [0], [1], [0, 0, 1, 1], [], []>} : vector<128x128xbf16>, vector<128x128xbf16>, vector<128x128xf32> -> vector<128x128xf32>
    %316 = arith.addf %313, %315 : vector<128x128xf32>
    %c0_136 = arith.constant 0 : index
    %c0_137 = arith.constant 0 : index
    %317 = vector.load %arg15[%c0_136, %c0_137] : memref<128x128xf32, #tpu.memory_space<vmem>>, vector<128x128xf32>
    tpu.vector_store %arg15[%c0_136, %c0_137], %316 {strides = array<i32>} : memref<128x128xf32, #tpu.memory_space<vmem>>, vector<128x128xf32>,
    %318 = vector.extract_strided_slice %238 {offsets = [0, 3], sizes = [128, 1], strides = [1, 1]} : vector<128x8xf32> to vector<128x1xf32>
    %319 = vector.extract_strided_slice %240 {offsets = [3, 0], sizes = [1, 128], strides = [1, 1]} : vector<8x128xf32> to vector<1x128xf32>
    %320 = vector.broadcast %318 : vector<128x1xf32> to vector<128x128xf32>
    %321 = vector.broadcast %319 : vector<1x128xf32> to vector<128x128xf32>
    %322 = arith.addf %320, %321 : vector<128x128xf32>
    %cst_138 = arith.constant 2.000000e-01 : f32
    %323 = vector.broadcast %cst_138 : f32 to vector<128x128xf32>
    %324 = arith.mulf %323, %322 : vector<128x128xf32>
    %325 = arith.maximumf %322, %324 : vector<128x128xf32>
    %cst_139 = arith.constant 0.000000e+00 : bf16
    %326 = vector.broadcast %cst_139 : bf16 to vector<128x128xbf16>
    %327 = arith.cmpf ogt, %0, %326 : vector<128x128xbf16>
    %cst_140 = arith.constant -1.000000e+30 : f32
    %328 = vector.broadcast %cst_140 : f32 to vector<128x128xf32>
    %329 = arith.select %327, %325, %328 : vector<128x128xi1>, vector<128x128xf32>
    %cst_141 = arith.constant dense<0xFF800000> : vector<128xf32>
    %330 = vector.multi_reduction <maximumf>, %329, %cst_141 [1] : vector<128x128xf32> to vector<128xf32>
    %331 = vector.shape_cast %330 : vector<128xf32> to vector<128x1xf32>
    %332 = vector.broadcast %331 : vector<128x1xf32> to vector<128x128xf32>
    %333 = arith.subf %329, %332 : vector<128x128xf32>
    %334 = math.exp %333 : vector<128x128xf32>
    %335 = vector.extract_strided_slice %231 {offsets = [3, 0], sizes = [1, 128], strides = [1, 1]} : vector<8x128xbf16> to vector<1x128xbf16>
    %336 = vector.broadcast %335 : vector<1x128xbf16> to vector<128x128xbf16>
    %337 = arith.mulf %236, %336 : vector<128x128xbf16>
    %c0_142 = arith.constant 0 : index
    %c0_143 = arith.constant 0 : index
    %338 = vector.load %arg15[%c0_142, %c0_143] : memref<128x128xf32, #tpu.memory_space<vmem>>, vector<128x128xf32>
    %339 = arith.truncf %334 : vector<128x128xf32> to vector<128x128xbf16>
    %cst_144 = arith.constant dense<0.000000e+00> : vector<128x128xf32>
    %340 = tpu.matmul %339, %337, %cst_144 {dimension_numbers = #tpu.dot_dimension_numbers<[1], [0], [0], [1], [0, 0, 1, 1], [], []>} : vector<128x128xbf16>, vector<128x128xbf16>, vector<128x128xf32> -> vector<128x128xf32>
    %341 = arith.addf %338, %340 : vector<128x128xf32>
    %c0_145 = arith.constant 0 : index
    %c0_146 = arith.constant 0 : index
    %342 = vector.load %arg15[%c0_145, %c0_146] : memref<128x128xf32, #tpu.memory_space<vmem>>, vector<128x128xf32>
    tpu.vector_store %arg15[%c0_145, %c0_146], %341 {strides = array<i32>} : memref<128x128xf32, #tpu.memory_space<vmem>>, vector<128x128xf32>,
    %343 = vector.extract_strided_slice %238 {offsets = [0, 4], sizes = [128, 1], strides = [1, 1]} : vector<128x8xf32> to vector<128x1xf32>
    %344 = vector.extract_strided_slice %240 {offsets = [4, 0], sizes = [1, 128], strides = [1, 1]} : vector<8x128xf32> to vector<1x128xf32>
    %345 = vector.broadcast %343 : vector<128x1xf32> to vector<128x128xf32>
    %346 = vector.broadcast %344 : vector<1x128xf32> to vector<128x128xf32>
    %347 = arith.addf %345, %346 : vector<128x128xf32>
    %cst_147 = arith.constant 2.000000e-01 : f32
    %348 = vector.broadcast %cst_147 : f32 to vector<128x128xf32>
    %349 = arith.mulf %348, %347 : vector<128x128xf32>
    %350 = arith.maximumf %347, %349 : vector<128x128xf32>
    %cst_148 = arith.constant 0.000000e+00 : bf16
    %351 = vector.broadcast %cst_148 : bf16 to vector<128x128xbf16>
    %352 = arith.cmpf ogt, %0, %351 : vector<128x128xbf16>
    %cst_149 = arith.constant -1.000000e+30 : f32
    %353 = vector.broadcast %cst_149 : f32 to vector<128x128xf32>
    %354 = arith.select %352, %350, %353 : vector<128x128xi1>, vector<128x128xf32>
    %cst_150 = arith.constant dense<0xFF800000> : vector<128xf32>
    %355 = vector.multi_reduction <maximumf>, %354, %cst_150 [1] : vector<128x128xf32> to vector<128xf32>
    %356 = vector.shape_cast %355 : vector<128xf32> to vector<128x1xf32>
    %357 = vector.broadcast %356 : vector<128x1xf32> to vector<128x128xf32>
    %358 = arith.subf %354, %357 : vector<128x128xf32>
    %359 = math.exp %358 : vector<128x128xf32>
    %360 = vector.extract_strided_slice %231 {offsets = [4, 0], sizes = [1, 128], strides = [1, 1]} : vector<8x128xbf16> to vector<1x128xbf16>
    %361 = vector.broadcast %360 : vector<1x128xbf16> to vector<128x128xbf16>
    %362 = arith.mulf %236, %361 : vector<128x128xbf16>
    %c0_151 = arith.constant 0 : index
    %c0_152 = arith.constant 0 : index
    %363 = vector.load %arg15[%c0_151, %c0_152] : memref<128x128xf32, #tpu.memory_space<vmem>>, vector<128x128xf32>
    %364 = arith.truncf %359 : vector<128x128xf32> to vector<128x128xbf16>
    %cst_153 = arith.constant dense<0.000000e+00> : vector<128x128xf32>
    %365 = tpu.matmul %364, %362, %cst_153 {dimension_numbers = #tpu.dot_dimension_numbers<[1], [0], [0], [1], [0, 0, 1, 1], [], []>} : vector<128x128xbf16>, vector<128x128xbf16>, vector<128x128xf32> -> vector<128x128xf32>
    %366 = arith.addf %363, %365 : vector<128x128xf32>
    %c0_154 = arith.constant 0 : index
    %c0_155 = arith.constant 0 : index
    %367 = vector.load %arg15[%c0_154, %c0_155] : memref<128x128xf32, #tpu.memory_space<vmem>>, vector<128x128xf32>
    tpu.vector_store %arg15[%c0_154, %c0_155], %366 {strides = array<i32>} : memref<128x128xf32, #tpu.memory_space<vmem>>, vector<128x128xf32>,
    %368 = vector.extract_strided_slice %238 {offsets = [0, 5], sizes = [128, 1], strides = [1, 1]} : vector<128x8xf32> to vector<128x1xf32>
    %369 = vector.extract_strided_slice %240 {offsets = [5, 0], sizes = [1, 128], strides = [1, 1]} : vector<8x128xf32> to vector<1x128xf32>
    %370 = vector.broadcast %368 : vector<128x1xf32> to vector<128x128xf32>
    %371 = vector.broadcast %369 : vector<1x128xf32> to vector<128x128xf32>
    %372 = arith.addf %370, %371 : vector<128x128xf32>
    %cst_156 = arith.constant 2.000000e-01 : f32
    %373 = vector.broadcast %cst_156 : f32 to vector<128x128xf32>
    %374 = arith.mulf %373, %372 : vector<128x128xf32>
    %375 = arith.maximumf %372, %374 : vector<128x128xf32>
    %cst_157 = arith.constant 0.000000e+00 : bf16
    %376 = vector.broadcast %cst_157 : bf16 to vector<128x128xbf16>
    %377 = arith.cmpf ogt, %0, %376 : vector<128x128xbf16>
    %cst_158 = arith.constant -1.000000e+30 : f32
    %378 = vector.broadcast %cst_158 : f32 to vector<128x128xf32>
    %379 = arith.select %377, %375, %378 : vector<128x128xi1>, vector<128x128xf32>
    %cst_159 = arith.constant dense<0xFF800000> : vector<128xf32>
    %380 = vector.multi_reduction <maximumf>, %379, %cst_159 [1] : vector<128x128xf32> to vector<128xf32>
    %381 = vector.shape_cast %380 : vector<128xf32> to vector<128x1xf32>
    %382 = vector.broadcast %381 : vector<128x1xf32> to vector<128x128xf32>
    %383 = arith.subf %379, %382 : vector<128x128xf32>
    %384 = math.exp %383 : vector<128x128xf32>
    %385 = vector.extract_strided_slice %231 {offsets = [5, 0], sizes = [1, 128], strides = [1, 1]} : vector<8x128xbf16> to vector<1x128xbf16>
    %386 = vector.broadcast %385 : vector<1x128xbf16> to vector<128x128xbf16>
    %387 = arith.mulf %236, %386 : vector<128x128xbf16>
    %c0_160 = arith.constant 0 : index
    %c0_161 = arith.constant 0 : index
    %388 = vector.load %arg15[%c0_160, %c0_161] : memref<128x128xf32, #tpu.memory_space<vmem>>, vector<128x128xf32>
    %389 = arith.truncf %384 : vector<128x128xf32> to vector<128x128xbf16>
    %cst_162 = arith.constant dense<0.000000e+00> : vector<128x128xf32>
    %390 = tpu.matmul %389, %387, %cst_162 {dimension_numbers = #tpu.dot_dimension_numbers<[1], [0], [0], [1], [0, 0, 1, 1], [], []>} : vector<128x128xbf16>, vector<128x128xbf16>, vector<128x128xf32> -> vector<128x128xf32>
    %391 = arith.addf %388, %390 : vector<128x128xf32>
    %c0_163 = arith.constant 0 : index
    %c0_164 = arith.constant 0 : index
    %392 = vector.load %arg15[%c0_163, %c0_164] : memref<128x128xf32, #tpu.memory_space<vmem>>, vector<128x128xf32>
    tpu.vector_store %arg15[%c0_163, %c0_164], %391 {strides = array<i32>} : memref<128x128xf32, #tpu.memory_space<vmem>>, vector<128x128xf32>,
    %393 = vector.extract_strided_slice %238 {offsets = [0, 6], sizes = [128, 1], strides = [1, 1]} : vector<128x8xf32> to vector<128x1xf32>
    %394 = vector.extract_strided_slice %240 {offsets = [6, 0], sizes = [1, 128], strides = [1, 1]} : vector<8x128xf32> to vector<1x128xf32>
    %395 = vector.broadcast %393 : vector<128x1xf32> to vector<128x128xf32>
    %396 = vector.broadcast %394 : vector<1x128xf32> to vector<128x128xf32>
    %397 = arith.addf %395, %396 : vector<128x128xf32>
    %cst_165 = arith.constant 2.000000e-01 : f32
    %398 = vector.broadcast %cst_165 : f32 to vector<128x128xf32>
    %399 = arith.mulf %398, %397 : vector<128x128xf32>
    %400 = arith.maximumf %397, %399 : vector<128x128xf32>
    %cst_166 = arith.constant 0.000000e+00 : bf16
    %401 = vector.broadcast %cst_166 : bf16 to vector<128x128xbf16>
    %402 = arith.cmpf ogt, %0, %401 : vector<128x128xbf16>
    %cst_167 = arith.constant -1.000000e+30 : f32
    %403 = vector.broadcast %cst_167 : f32 to vector<128x128xf32>
    %404 = arith.select %402, %400, %403 : vector<128x128xi1>, vector<128x128xf32>
    %cst_168 = arith.constant dense<0xFF800000> : vector<128xf32>
    %405 = vector.multi_reduction <maximumf>, %404, %cst_168 [1] : vector<128x128xf32> to vector<128xf32>
    %406 = vector.shape_cast %405 : vector<128xf32> to vector<128x1xf32>
    %407 = vector.broadcast %406 : vector<128x1xf32> to vector<128x128xf32>
    %408 = arith.subf %404, %407 : vector<128x128xf32>
    %409 = math.exp %408 : vector<128x128xf32>
    %410 = vector.extract_strided_slice %231 {offsets = [6, 0], sizes = [1, 128], strides = [1, 1]} : vector<8x128xbf16> to vector<1x128xbf16>
    %411 = vector.broadcast %410 : vector<1x128xbf16> to vector<128x128xbf16>
    %412 = arith.mulf %236, %411 : vector<128x128xbf16>
    %c0_169 = arith.constant 0 : index
    %c0_170 = arith.constant 0 : index
    %413 = vector.load %arg15[%c0_169, %c0_170] : memref<128x128xf32, #tpu.memory_space<vmem>>, vector<128x128xf32>
    %414 = arith.truncf %409 : vector<128x128xf32> to vector<128x128xbf16>
    %cst_171 = arith.constant dense<0.000000e+00> : vector<128x128xf32>
    %415 = tpu.matmul %414, %412, %cst_171 {dimension_numbers = #tpu.dot_dimension_numbers<[1], [0], [0], [1], [0, 0, 1, 1], [], []>} : vector<128x128xbf16>, vector<128x128xbf16>, vector<128x128xf32> -> vector<128x128xf32>
    %416 = arith.addf %413, %415 : vector<128x128xf32>
    %c0_172 = arith.constant 0 : index
    %c0_173 = arith.constant 0 : index
    %417 = vector.load %arg15[%c0_172, %c0_173] : memref<128x128xf32, #tpu.memory_space<vmem>>, vector<128x128xf32>
    tpu.vector_store %arg15[%c0_172, %c0_173], %416 {strides = array<i32>} : memref<128x128xf32, #tpu.memory_space<vmem>>, vector<128x128xf32>,
    %418 = vector.extract_strided_slice %238 {offsets = [0, 7], sizes = [128, 1], strides = [1, 1]} : vector<128x8xf32> to vector<128x1xf32>
    %419 = vector.extract_strided_slice %240 {offsets = [7, 0], sizes = [1, 128], strides = [1, 1]} : vector<8x128xf32> to vector<1x128xf32>
    %420 = vector.broadcast %418 : vector<128x1xf32> to vector<128x128xf32>
    %421 = vector.broadcast %419 : vector<1x128xf32> to vector<128x128xf32>
    %422 = arith.addf %420, %421 : vector<128x128xf32>
    %cst_174 = arith.constant 2.000000e-01 : f32
    %423 = vector.broadcast %cst_174 : f32 to vector<128x128xf32>
    %424 = arith.mulf %423, %422 : vector<128x128xf32>
    %425 = arith.maximumf %422, %424 : vector<128x128xf32>
    %cst_175 = arith.constant 0.000000e+00 : bf16
    %426 = vector.broadcast %cst_175 : bf16 to vector<128x128xbf16>
    %427 = arith.cmpf ogt, %0, %426 : vector<128x128xbf16>
    %cst_176 = arith.constant -1.000000e+30 : f32
    %428 = vector.broadcast %cst_176 : f32 to vector<128x128xf32>
    %429 = arith.select %427, %425, %428 : vector<128x128xi1>, vector<128x128xf32>
    %cst_177 = arith.constant dense<0xFF800000> : vector<128xf32>
    %430 = vector.multi_reduction <maximumf>, %429, %cst_177 [1] : vector<128x128xf32> to vector<128xf32>
    %431 = vector.shape_cast %430 : vector<128xf32> to vector<128x1xf32>
    %432 = vector.broadcast %431 : vector<128x1xf32> to vector<128x128xf32>
    %433 = arith.subf %429, %432 : vector<128x128xf32>
    %434 = math.exp %433 : vector<128x128xf32>
    %435 = vector.extract_strided_slice %231 {offsets = [7, 0], sizes = [1, 128], strides = [1, 1]} : vector<8x128xbf16> to vector<1x128xbf16>
    %436 = vector.broadcast %435 : vector<1x128xbf16> to vector<128x128xbf16>
    %437 = arith.mulf %236, %436 : vector<128x128xbf16>
    %c0_178 = arith.constant 0 : index
    %c0_179 = arith.constant 0 : index
    %438 = vector.load %arg15[%c0_178, %c0_179] : memref<128x128xf32, #tpu.memory_space<vmem>>, vector<128x128xf32>
    %439 = arith.truncf %434 : vector<128x128xf32> to vector<128x128xbf16>
    %cst_180 = arith.constant dense<0.000000e+00> : vector<128x128xf32>
    %440 = tpu.matmul %439, %437, %cst_180 {dimension_numbers = #tpu.dot_dimension_numbers<[1], [0], [0], [1], [0, 0, 1, 1], [], []>} : vector<128x128xbf16>, vector<128x128xbf16>, vector<128x128xf32> -> vector<128x128xf32>
    %441 = arith.addf %438, %440 : vector<128x128xf32>
    %c0_181 = arith.constant 0 : index
    %c0_182 = arith.constant 0 : index
    %442 = vector.load %arg15[%c0_181, %c0_182] : memref<128x128xf32, #tpu.memory_space<vmem>>, vector<128x128xf32>
    tpu.vector_store %arg15[%c0_181, %c0_182], %441 {strides = array<i32>} : memref<128x128xf32, #tpu.memory_space<vmem>>, vector<128x128xf32>,
    %c0_183 = arith.constant 0 : index
    %c0_184 = arith.constant 0 : index
    %443 = vector.load %arg15[%c0_183, %c0_184] : memref<128x128xf32, #tpu.memory_space<vmem>>, vector<128x128xf32>
    %444 = vector.extract_strided_slice %443 {offsets = [0, 0], sizes = [128, 64], strides = [1, 1]} : vector<128x128xf32> to vector<128x64xf32>
    %445 = vector.extract_strided_slice %443 {offsets = [0, 64], sizes = [128, 64], strides = [1, 1]} : vector<128x128xf32> to vector<128x64xf32>
    %446 = arith.divf %444, %445 : vector<128x64xf32>
    %447 = vector.broadcast %232 : vector<1x64xf32> to vector<128x64xf32>
    %448 = arith.addf %446, %447 : vector<128x64xf32>
    %c0_185 = arith.constant 0 : index
    %c0_186 = arith.constant 0 : index
    %449 = vector.load %arg12[%c0_185, %c0_186] : memref<128x64xf32, #tpu.memory_space<vmem>>, vector<128x64xf32>
    tpu.vector_store %arg12[%c0_185, %c0_186], %448 {strides = array<i32>} : memref<128x64xf32, #tpu.memory_space<vmem>>, vector<128x64xf32>,
    return
  }
}

</mosaic_0001>

<llo_original>
// kernel: tpu_custom_call.1
$region0: #{tpu_custom_call.1}
  #allocation0 [shape = 'u32[]', space=smem, size = 0x4, offset = 0x4, fixed_abs, tag = 'smem constant byte address 0x4 - core index']
  #allocation1 [shape = 'u32[72,128]{1,0:T(1,128)}', space=vmem, size = 0x9000, scoped, tag = 'internal scratch']
  #allocation2 [shape = 'bf16[128,64]{1,0:T(8,128)(2,1)}', space=vmem, size = 0x8000, scoped, tag = 'scratch operand']
  #allocation3 [shape = 'f32[128,128]{1,0:T(8,128)}', space=vmem, size = 0x10000, scoped, tag = 'scratch operand']
  #allocation4 [shape = 'f32[128,128]{1,0:T(8,128)}', space=vmem, size = 0x10000, scoped, tag = 'scratch operand']
  %s0 = inlined_call_operand.vmem [shape: bf16[128,32], index: 0, kind: input, shape index: {}]
  %s1 = inlined_call_operand.vmem [shape: bf16[128,128], index: 1, kind: input, shape index: {}]
  %s2 = inlined_call_operand.vmem [shape: bf16[32,128], index: 2, kind: input, shape index: {}]
  %s3 = inlined_call_operand.vmem [shape: bf16[128,16], index: 3, kind: input, shape index: {}]
  %s4 = inlined_call_operand.vmem [shape: bf16[8,128], index: 4, kind: input, shape index: {}]
  %s5 = inlined_call_operand.vmem [shape: f32[1,128], index: 5, kind: input, shape index: {}]
  %s6 = inlined_call_operand.vmem [shape: f32[1,64], index: 6, kind: input, shape index: {}]
  %s7 = inlined_call_operand.vmem [shape: bf16[64,128], index: 7, kind: input, shape index: {}]
  %s8 = inlined_call_operand.vmem [shape: bf16[128,16], index: 8, kind: input, shape index: {}]
  %s9 = inlined_call_operand.vmem [shape: bf16[8,128], index: 9, kind: input, shape index: {}]
  %s10 = inlined_call_operand.vmem [shape: f32[1,128], index: 10, kind: input, shape index: {}]
  %s11 = inlined_call_operand.vmem [shape: f32[1,64], index: 11, kind: input, shape index: {}]
  %s12 = inlined_call_operand.vmem [shape: f32[128,64], index: 12, kind: output, shape index: {}]
  %s13 = sld [smem:[#allocation0]]
  $region58: #{tpu_custom_call.1} parent=0
    _
  %s15 = ssub.s32 1, %s13
  %s16 = scalar_select 0, %s15, %s13
  // Predicated region
  $region2: #{tpu_custom_call.1} parent=0 // pred_check
    _
  $region3: #{tpu_custom_call.1} parent=0 // pred_check_branch
    %18 = sbr.rel (0) target = $region5
  $region4: #{tpu_custom_call.1} parent=0 // pred_region
    _
  $region5: #{tpu_custom_call.1} parent=0 // pred_fallthru
    _
  // Predicated region
  $region6: #{tpu_custom_call.1} parent=0 // pred_check
    _
  $region7: #{tpu_custom_call.1} parent=0 // pred_check_branch
    %20 = sbr.rel (0) target = $region9
  $region8: #{tpu_custom_call.1} parent=0 // pred_region
    _
  $region9: #{tpu_custom_call.1} parent=0 // pred_fallthru
    _
  // Predicated region
  $region10: #{tpu_custom_call.1} parent=0 // pred_check
    _
  $region11: #{tpu_custom_call.1} parent=0 // pred_check_branch
    %22 = sbr.rel (0) target = $region13
  $region12: #{tpu_custom_call.1} parent=0 // pred_region
    _
  $region13: #{tpu_custom_call.1} parent=0 // pred_fallthru
    _
  // Predicated region
  $region14: #{tpu_custom_call.1} parent=0 // pred_check
    _
  $region15: #{tpu_custom_call.1} parent=0 // pred_check_branch
    %24 = sbr.rel (0) target = $region17
  $region16: #{tpu_custom_call.1} parent=0 // pred_region
    _
  $region17: #{tpu_custom_call.1} parent=0 // pred_fallthru
    _
  // Predicated region
  $region18: #{tpu_custom_call.1} parent=0 // pred_check
    _
  $region19: #{tpu_custom_call.1} parent=0 // pred_check_branch
    %26 = sbr.rel (0) target = $region21
  $region20: #{tpu_custom_call.1} parent=0 // pred_region
    _
  $region21: #{tpu_custom_call.1} parent=0 // pred_fallthru
    _
  // Predicated region
  $region22: #{tpu_custom_call.1} parent=0 // pred_check
    _
  $region23: #{tpu_custom_call.1} parent=0 // pred_check_branch
    %28 = sbr.rel (0) target = $region25
  $region24: #{tpu_custom_call.1} parent=0 // pred_region
    _
  $region25: #{tpu_custom_call.1} parent=0 // pred_fallthru
    _
  // Predicated region
  $region26: #{tpu_custom_call.1} parent=0 // pred_check
    _
  $region27: #{tpu_custom_call.1} parent=0 // pred_check_branch
    %30 = sbr.rel (0) target = $region29
  $region28: #{tpu_custom_call.1} parent=0 // pred_region
    _
  $region29: #{tpu_custom_call.1} parent=0 // pred_fallthru
    _
  // Predicated region
  $region30: #{tpu_custom_call.1} parent=0 // pred_check
    _
  $region31: #{tpu_custom_call.1} parent=0 // pred_check_branch
    %32 = sbr.rel (0) target = $region33
  $region32: #{tpu_custom_call.1} parent=0 // pred_region
    _
  $region33: #{tpu_custom_call.1} parent=0 // pred_fallthru
    _
  // Predicated region
  $region34: #{tpu_custom_call.1} parent=0 // pred_check
    _
  $region35: #{tpu_custom_call.1} parent=0 // pred_check_branch
    %34 = sbr.rel (0) target = $region37
  $region36: #{tpu_custom_call.1} parent=0 // pred_region
    _
  $region37: #{tpu_custom_call.1} parent=0 // pred_fallthru
    _
  // Predicated region
  $region38: #{tpu_custom_call.1} parent=0 // pred_check
    _
  $region39: #{tpu_custom_call.1} parent=0 // pred_check_branch
    %36 = sbr.rel (0) target = $region41
  $region40: #{tpu_custom_call.1} parent=0 // pred_region
    _
  $region41: #{tpu_custom_call.1} parent=0 // pred_fallthru
    _
  // Predicated region
  $region42: #{tpu_custom_call.1} parent=0 // pred_check
    _
  $region43: #{tpu_custom_call.1} parent=0 // pred_check_branch
    %38 = sbr.rel (0) target = $region45
  $region44: #{tpu_custom_call.1} parent=0 // pred_region
    _
  $region45: #{tpu_custom_call.1} parent=0 // pred_fallthru
    _
  // Predicated region
  $region46: #{tpu_custom_call.1} parent=0 // pred_check
    _
  $region47: #{tpu_custom_call.1} parent=0 // pred_check_branch
    %40 = sbr.rel (0) target = $region49
  $region48: #{tpu_custom_call.1} parent=0 // pred_region
    _
  $region49: #{tpu_custom_call.1} parent=0 // pred_fallthru
    _
  %v42 = vld [vmem:[%s1] sm:$0xf]
  %v43 = vld [vmem:[%s1 + $0x4] sm:$0xf]
  %v44 = vld [vmem:[%s1 + $0x8] sm:$0xf]
  %v45 = vld [vmem:[%s1 + $0xc] sm:$0xf]
  %v46 = vld [vmem:[%s1 + $0x10] sm:$0xf]
  %v47 = vld [vmem:[%s1 + $0x14] sm:$0xf]
  %v48 = vld [vmem:[%s1 + $0x18] sm:$0xf]
  %v49 = vld [vmem:[%s1 + $0x1c] sm:$0xf]
  %v50 = vld [vmem:[%s1 + $0x20] sm:$0xf]
  %v51 = vld [vmem:[%s1 + $0x24] sm:$0xf]
  %v52 = vld [vmem:[%s1 + $0x28] sm:$0xf]
  %v53 = vld [vmem:[%s1 + $0x2c] sm:$0xf]
  %v54 = vld [vmem:[%s1 + $0x30] sm:$0xf]
  %v55 = vld [vmem:[%s1 + $0x34] sm:$0xf]
  %v56 = vld [vmem:[%s1 + $0x38] sm:$0xf]
  %v57 = vld [vmem:[%s1 + $0x3c] sm:$0xf]
  %v58 = vld [vmem:[%s0] sm:$0xf]
  %v59 = vld [vmem:[%s0 + $0x4] sm:$0xf]
  %v60 = vld [vmem:[%s0 + $0x8] sm:$0xf]
  %v61 = vld [vmem:[%s0 + $0xc] sm:$0xf]
  %v62 = vld [vmem:[%s0 + $0x10] sm:$0xf]
  %v63 = vld [vmem:[%s0 + $0x14] sm:$0xf]
  %v64 = vld [vmem:[%s0 + $0x18] sm:$0xf]
  %v65 = vld [vmem:[%s0 + $0x1c] sm:$0xf]
  %v66 = vld [vmem:[%s0 + $0x20] sm:$0xf]
  %v67 = vld [vmem:[%s0 + $0x24] sm:$0xf]
  %v68 = vld [vmem:[%s0 + $0x28] sm:$0xf]
  %v69 = vld [vmem:[%s0 + $0x2c] sm:$0xf]
  %v70 = vld [vmem:[%s0 + $0x30] sm:$0xf]
  %v71 = vld [vmem:[%s0 + $0x34] sm:$0xf]
  %v72 = vld [vmem:[%s0 + $0x38] sm:$0xf]
  %v73 = vld [vmem:[%s0 + $0x3c] sm:$0xf]
  %v74 = vld [vmem:[%s2] sm:$0xf]
  %v75 = vld [vmem:[%s2 + $0x4] sm:$0xf]
  %v76 = vld [vmem:[%s2 + $0x8] sm:$0xf]
  %v77 = vld [vmem:[%s2 + $0xc] sm:$0xf]
  %v78 = vld [vmem:[%s5] sm:$0x1]
  %v79 = vld [vmem:[%s3] sm:$0xf]
  %v80 = vld [vmem:[%s3 + $0x4] sm:$0xf]
  %v81 = vld [vmem:[%s3 + $0x8] sm:$0xf]
  %v82 = vld [vmem:[%s3 + $0xc] sm:$0xf]
  %v83 = vld [vmem:[%s3 + $0x10] sm:$0xf]
  %v84 = vld [vmem:[%s3 + $0x14] sm:$0xf]
  %v85 = vld [vmem:[%s3 + $0x18] sm:$0xf]
  %v86 = vld [vmem:[%s3 + $0x1c] sm:$0xf]
  %v87 = vld [vmem:[%s3 + $0x20] sm:$0xf]
  %v88 = vld [vmem:[%s3 + $0x24] sm:$0xf]
  %v89 = vld [vmem:[%s3 + $0x28] sm:$0xf]
  %v90 = vld [vmem:[%s3 + $0x2c] sm:$0xf]
  %v91 = vld [vmem:[%s3 + $0x30] sm:$0xf]
  %v92 = vld [vmem:[%s3 + $0x34] sm:$0xf]
  %v93 = vld [vmem:[%s3 + $0x38] sm:$0xf]
  %v94 = vld [vmem:[%s3 + $0x3c] sm:$0xf]
  %v95 = vld [vmem:[%s4] sm:$0xf]
  %v96 = vld [vmem:[%s6] sm:$0x1]
  %v98 = vperm.slane %v78, 0
  %v116 = vunpack.c.l.b16 %v58
  %v117 = vunpack.c.l.b16 %v59
  %v118 = vunpack.c.l.b16 %v60
  %v119 = vunpack.c.l.b16 %v61
  %v120 = vunpack.c.l.b16 %v62
  %v121 = vunpack.c.l.b16 %v63
  %v122 = vunpack.c.l.b16 %v64
  %v123 = vunpack.c.l.b16 %v65
  %v124 = vunpack.c.l.b16 %v66
  %v125 = vunpack.c.l.b16 %v67
  %v126 = vunpack.c.l.b16 %v68
  %v127 = vunpack.c.l.b16 %v69
  %v128 = vunpack.c.l.b16 %v70
  %v129 = vunpack.c.l.b16 %v71
  %v130 = vunpack.c.l.b16 %v72
  %v131 = vunpack.c.l.b16 %v73
  %v132 = vpack.c.b16 %v117, %v116
  %v133 = vpack.c.b16 %v119, %v118
  %v134 = vpack.c.b16 %v121, %v120
  %v135 = vpack.c.b16 %v123, %v122
  %v136 = vpack.c.b16 %v125, %v124
  %v137 = vpack.c.b16 %v127, %v126
  %v138 = vpack.c.b16 %v129, %v128
  %v139 = vpack.c.b16 %v131, %v130
  %v144 = vunpack.c.l.b16 %v74
  %v145 = vunpack.c.l.b16 %v75
  %v146 = vunpack.c.l.b16 %v76
  %v147 = vunpack.c.l.b16 %v77
  %v148 = vpack.c.b16 %v145, %v144
  %v149 = vpack.c.b16 %v147, %v146
  %vm152 = vcmask 261120
  %v154 = vsel %vm152, %v132, 0
  %v157 = vsel %vm152, %v133, 0
  %v160 = vsel %vm152, %v134, 0
  %v163 = vsel %vm152, %v135, 0
  %v166 = vsel %vm152, %v136, 0
  %v169 = vsel %vm152, %v137, 0
  %v172 = vsel %vm152, %v138, 0
  %v175 = vsel %vm152, %v139, 0
  %177 = vmatpush.bf16.msra.mxu0 0
  %178 = vmatpush.bf16.msra.mxu0 0
  %179 = vmatpush.bf16.msra.mxu0 0
  %180 = vmatpush.bf16.msra.mxu0 0
  %181 = vmatpush.bf16.msra.mxu0 0
  %182 = vmatpush.bf16.msra.mxu0 0
  %183 = vmatpush.bf16.msra.mxu0 %v149
  %184 = vmatpush.bf16.msra.mxu0 %v148
  %185 = vmatmul.bf16.gmra.mxu0 %v154
  %v186 = vpop.f32.mrf.mxu0
  %v187 = vadd.f32 %v98, %v186
  %v188 = vpop.f32.mrf.mxu0
  %v189 = vadd.f32 %v98, %v188
  %190 = vmatmul.bf16.gmra.mxu0 %v157
  %v191 = vpop.f32.mrf.mxu0
  %v192 = vadd.f32 %v98, %v191
  %v193 = vpop.f32.mrf.mxu0
  %v194 = vadd.f32 %v98, %v193
  %195 = vmatmul.bf16.gmra.mxu0 %v160
  %v196 = vpop.f32.mrf.mxu0
  %v197 = vadd.f32 %v98, %v196
  %v198 = vpop.f32.mrf.mxu0
  %v199 = vadd.f32 %v98, %v198
  %200 = vmatmul.bf16.gmra.mxu0 %v163
  %v201 = vpop.f32.mrf.mxu0
  %v202 = vadd.f32 %v98, %v201
  %v203 = vpop.f32.mrf.mxu0
  %v204 = vadd.f32 %v98, %v203
  %205 = vmatmul.bf16.gmra.mxu0 %v166
  %v206 = vpop.f32.mrf.mxu0
  %v207 = vadd.f32 %v98, %v206
  %v208 = vpop.f32.mrf.mxu0
  %v209 = vadd.f32 %v98, %v208
  %210 = vmatmul.bf16.gmra.mxu0 %v169
  %v211 = vpop.f32.mrf.mxu0
  %v212 = vadd.f32 %v98, %v211
  %v213 = vpop.f32.mrf.mxu0
  %v214 = vadd.f32 %v98, %v213
  %215 = vmatmul.bf16.gmra.mxu0 %v172
  %v216 = vpop.f32.mrf.mxu0
  %v217 = vadd.f32 %v98, %v216
  %v218 = vpop.f32.mrf.mxu0
  %v219 = vadd.f32 %v98, %v218
  %220 = vmatmul.bf16.gmra.mxu0 %v175
  %v221 = vpop.f32.mrf.mxu0
  %v222 = vadd.f32 %v98, %v221
  %v223 = vpop.f32.mrf.mxu0
  %v224 = vadd.f32 %v98, %v223
  %225 = vdwg.mxu0
  %v226 = vpack.c.bf16 %v187, %v187
  %v227 = vpack.c.bf16 %v189, %v189
  %v228 = vpack.c.bf16 %v192, %v192
  %v229 = vpack.c.bf16 %v194, %v194
  %v230 = vpack.c.bf16 %v197, %v197
  %v231 = vpack.c.bf16 %v199, %v199
  %v232 = vpack.c.bf16 %v202, %v202
  %v233 = vpack.c.bf16 %v204, %v204
  %v234 = vpack.c.bf16 %v207, %v207
  %v235 = vpack.c.bf16 %v209, %v209
  %v236 = vpack.c.bf16 %v212, %v212
  %v237 = vpack.c.bf16 %v214, %v214
  %v238 = vpack.c.bf16 %v217, %v217
  %v239 = vpack.c.bf16 %v219, %v219
  %v240 = vpack.c.bf16 %v222, %v222
  %v241 = vpack.c.bf16 %v224, %v224
  %v258 = vunpack.c.l.b16 %v226
  %v259 = vunpack.c.l.b16 %v227
  %v260 = vunpack.c.l.b16 %v228
  %v261 = vunpack.c.l.b16 %v229
  %v262 = vunpack.c.l.b16 %v230
  %v263 = vunpack.c.l.b16 %v231
  %v264 = vunpack.c.l.b16 %v232
  %v265 = vunpack.c.l.b16 %v233
  %v266 = vunpack.c.l.b16 %v234
  %v267 = vunpack.c.l.b16 %v235
  %v268 = vunpack.c.l.b16 %v236
  %v269 = vunpack.c.l.b16 %v237
  %v270 = vunpack.c.l.b16 %v238
  %v271 = vunpack.c.l.b16 %v239
  %v272 = vunpack.c.l.b16 %v240
  %v273 = vunpack.c.l.b16 %v241
  %v274 = vpack.c.b16 %v259, %v258
  %v275 = vpack.c.b16 %v261, %v260
  %v276 = vpack.c.b16 %v263, %v262
  %v277 = vpack.c.b16 %v265, %v264
  %v278 = vpack.c.b16 %v267, %v266
  %v279 = vpack.c.b16 %v269, %v268
  %v280 = vpack.c.b16 %v271, %v270
  %v281 = vpack.c.b16 %v273, %v272
  %v306 = vunpack.c.l.b16 %v79
  %v307 = vunpack.c.l.b16 %v80
  %v308 = vunpack.c.l.b16 %v81
  %v309 = vunpack.c.l.b16 %v82
  %v310 = vunpack.c.l.b16 %v83
  %v311 = vunpack.c.l.b16 %v84
  %v312 = vunpack.c.l.b16 %v85
  %v313 = vunpack.c.l.b16 %v86
  %v314 = vunpack.c.l.b16 %v87
  %v315 = vunpack.c.l.b16 %v88
  %v316 = vunpack.c.l.b16 %v89
  %v317 = vunpack.c.l.b16 %v90
  %v318 = vunpack.c.l.b16 %v91
  %v319 = vunpack.c.l.b16 %v92
  %v320 = vunpack.c.l.b16 %v93
  %v321 = vunpack.c.l.b16 %v94
  %v322 = vpack.c.b16 %v307, %v306
  %v323 = vpack.c.b16 %v309, %v308
  %v324 = vpack.c.b16 %v311, %v310
  %v325 = vpack.c.b16 %v313, %v312
  %v326 = vpack.c.b16 %v315, %v314
  %v327 = vpack.c.b16 %v317, %v316
  %v328 = vpack.c.b16 %v319, %v318
  %v329 = vpack.c.b16 %v321, %v320
  %338 = vmatpush.bf16.msra.mxu0 %v329
  %339 = vmatpush.bf16.msra.mxu0 %v328
  %340 = vmatpush.bf16.msra.mxu0 %v327
  %341 = vmatpush.bf16.msra.mxu0 %v326
  %342 = vmatpush.bf16.msra.mxu0 %v325
  %343 = vmatpush.bf16.msra.mxu0 %v324
  %344 = vmatpush.bf16.msra.mxu0 %v323
  %345 = vmatpush.bf16.msra.mxu0 %v322
  %346 = vmatmul.bf16.gmra.mxu0 %v274
  %v347 = vpop.f32.mrf.mxu0
  %v348 = vadd.f32 0.0, %v347
  %v349 = vpop.f32.mrf.mxu0
  %v350 = vadd.f32 0.0, %v349
  %351 = vmatmul.bf16.gmra.mxu0 %v275
  %v352 = vpop.f32.mrf.mxu0
  %v353 = vadd.f32 0.0, %v352
  %v354 = vpop.f32.mrf.mxu0
  %v355 = vadd.f32 0.0, %v354
  %356 = vmatmul.bf16.gmra.mxu0 %v276
  %v357 = vpop.f32.mrf.mxu0
  %v358 = vadd.f32 0.0, %v357
  %v359 = vpop.f32.mrf.mxu0
  %v360 = vadd.f32 0.0, %v359
  %361 = vmatmul.bf16.gmra.mxu0 %v277
  %v362 = vpop.f32.mrf.mxu0
  %v363 = vadd.f32 0.0, %v362
  %v364 = vpop.f32.mrf.mxu0
  %v365 = vadd.f32 0.0, %v364
  %366 = vmatmul.bf16.gmra.mxu0 %v278
  %v367 = vpop.f32.mrf.mxu0
  %v368 = vadd.f32 0.0, %v367
  %v369 = vpop.f32.mrf.mxu0
  %v370 = vadd.f32 0.0, %v369
  %371 = vmatmul.bf16.gmra.mxu0 %v279
  %v372 = vpop.f32.mrf.mxu0
  %v373 = vadd.f32 0.0, %v372
  %v374 = vpop.f32.mrf.mxu0
  %v375 = vadd.f32 0.0, %v374
  %376 = vmatmul.bf16.gmra.mxu0 %v280
  %v377 = vpop.f32.mrf.mxu0
  %v378 = vadd.f32 0.0, %v377
  %v379 = vpop.f32.mrf.mxu0
  %v380 = vadd.f32 0.0, %v379
  %381 = vmatmul.bf16.gmra.mxu0 %v281
  %v382 = vpop.f32.mrf.mxu0
  %v383 = vadd.f32 0.0, %v382
  %v384 = vpop.f32.mrf.mxu0
  %v385 = vadd.f32 0.0, %v384
  %386 = vdwg.mxu0
  %403 = vrot.lane.b32.xlu0 %v348, 120
  %v404 = vpop.permute.xlu0 %403
  %405 = vrot.lane.b32.xlu0 %v350, 120
  %v406 = vpop.permute.xlu0 %405
  %407 = vrot.lane.b32.xlu0 %v353, 120
  %v408 = vpop.permute.xlu0 %407
  %409 = vrot.lane.b32.xlu0 %v355, 120
  %v410 = vpop.permute.xlu0 %409
  %411 = vrot.lane.b32.xlu0 %v358, 120
  %v412 = vpop.permute.xlu0 %411
  %413 = vrot.lane.b32.xlu0 %v360, 120
  %v414 = vpop.permute.xlu0 %413
  %415 = vrot.lane.b32.xlu0 %v363, 120
  %v416 = vpop.permute.xlu0 %415
  %417 = vrot.lane.b32.xlu0 %v365, 120
  %v418 = vpop.permute.xlu0 %417
  %419 = vrot.lane.b32.xlu0 %v368, 120
  %v420 = vpop.permute.xlu0 %419
  %421 = vrot.lane.b32.xlu0 %v370, 120
  %v422 = vpop.permute.xlu0 %421
  %423 = vrot.lane.b32.xlu0 %v373, 120
  %v424 = vpop.permute.xlu0 %423
  %425 = vrot.lane.b32.xlu0 %v375, 120
  %v426 = vpop.permute.xlu0 %425
  %427 = vrot.lane.b32.xlu0 %v378, 120
  %v428 = vpop.permute.xlu0 %427
  %429 = vrot.lane.b32.xlu0 %v380, 120
  %v430 = vpop.permute.xlu0 %429
  %431 = vrot.lane.b32.xlu0 %v383, 120
  %v432 = vpop.permute.xlu0 %431
  %433 = vrot.lane.b32.xlu0 %v385, 120
  %v434 = vpop.permute.xlu0 %433
  %451 = vxpose.xlu0.b32.start [1/16] %v404, 128
  %452 = vxpose.xlu0.b32.cont [2/16] %v406, 128
  %453 = vxpose.xlu0.b32.cont [3/16] %v408, 128
  %454 = vxpose.xlu0.b32.cont [4/16] %v410, 128
  %455 = vxpose.xlu0.b32.cont [5/16] %v412, 128
  %456 = vxpose.xlu0.b32.cont [6/16] %v414, 128
  %457 = vxpose.xlu0.b32.cont [7/16] %v416, 128
  %458 = vxpose.xlu0.b32.cont [8/16] %v418, 128
  %459 = vxpose.xlu0.b32.cont [9/16] %v420, 128
  %460 = vxpose.xlu0.b32.cont [10/16] %v422, 128
  %461 = vxpose.xlu0.b32.cont [11/16] %v424, 128
  %462 = vxpose.xlu0.b32.cont [12/16] %v426, 128
  %463 = vxpose.xlu0.b32.cont [13/16] %v428, 128
  %464 = vxpose.xlu0.b32.cont [14/16] %v430, 128
  %465 = vxpose.xlu0.b32.cont [15/16] %v432, 128
  %466 = vxpose.xlu0.b32.end [16/16] %v434, 128
  %v467 = vpop.trf.xlu0
  %v468 = vpop.trf.xlu0
  %v469 = vpop.trf.xlu0
  %v470 = vpop.trf.xlu0
  %v471 = vpop.trf.xlu0
  %v472 = vpop.trf.xlu0
  %v473 = vpop.trf.xlu0
  %v474 = vpop.trf.xlu0
  %v475 = vpop.trf.xlu0
  %v476 = vpop.trf.xlu0
  %v477 = vpop.trf.xlu0
  %v478 = vpop.trf.xlu0
  %v479 = vpop.trf.xlu0
  %v480 = vpop.trf.xlu0
  %v481 = vpop.trf.xlu0
  %v482 = vpop.trf.xlu0
  %483 = vst [vmem:[#allocation3] sm:$0xff] 0.0
  %484 = vst [vmem:[#allocation3 + $0x8] sm:$0xff] 0.0
  %485 = vst [vmem:[#allocation3 + $0x10] sm:$0xff] 0.0
  %486 = vst [vmem:[#allocation3 + $0x18] sm:$0xff] 0.0
  %487 = vst [vmem:[#allocation3 + $0x20] sm:$0xff] 0.0
  %488 = vst [vmem:[#allocation3 + $0x28] sm:$0xff] 0.0
  %489 = vst [vmem:[#allocation3 + $0x30] sm:$0xff] 0.0
  %490 = vst [vmem:[#allocation3 + $0x38] sm:$0xff] 0.0
  %491 = vst [vmem:[#allocation3 + $0x40] sm:$0xff] 0.0
  %492 = vst [vmem:[#allocation3 + $0x48] sm:$0xff] 0.0
  %493 = vst [vmem:[#allocation3 + $0x50] sm:$0xff] 0.0
  %494 = vst [vmem:[#allocation3 + $0x58] sm:$0xff] 0.0
  %495 = vst [vmem:[#allocation3 + $0x60] sm:$0xff] 0.0
  %496 = vst [vmem:[#allocation3 + $0x68] sm:$0xff] 0.0
  %497 = vst [vmem:[#allocation3 + $0x70] sm:$0xff] 0.0
  %498 = vst [vmem:[#allocation3 + $0x78] sm:$0xff] 0.0
  %499 = vset.pattern.permute.xlu0 0
  %500 = vperm.xlu0 %499, %v348
  %v501 = vpop.permute.xlu0 %500
  %503 = vset.pattern.permute.xlu0 0
  %504 = vperm.xlu0 %503, %v350
  %v505 = vpop.permute.xlu0 %504
  %507 = vset.pattern.permute.xlu0 0
  %508 = vperm.xlu0 %507, %v353
  %v509 = vpop.permute.xlu0 %508
  %511 = vset.pattern.permute.xlu0 0
  %512 = vperm.xlu0 %511, %v355
  %v513 = vpop.permute.xlu0 %512
  %515 = vset.pattern.permute.xlu0 0
  %516 = vperm.xlu0 %515, %v358
  %v517 = vpop.permute.xlu0 %516
  %519 = vset.pattern.permute.xlu0 0
  %520 = vperm.xlu0 %519, %v360
  %v521 = vpop.permute.xlu0 %520
  %523 = vset.pattern.permute.xlu0 0
  %524 = vperm.xlu0 %523, %v363
  %v525 = vpop.permute.xlu0 %524
  %527 = vset.pattern.permute.xlu0 0
  %528 = vperm.xlu0 %527, %v365
  %v529 = vpop.permute.xlu0 %528
  %531 = vset.pattern.permute.xlu0 0
  %532 = vperm.xlu0 %531, %v368
  %v533 = vpop.permute.xlu0 %532
  %535 = vset.pattern.permute.xlu0 0
  %536 = vperm.xlu0 %535, %v370
  %v537 = vpop.permute.xlu0 %536
  %539 = vset.pattern.permute.xlu0 0
  %540 = vperm.xlu0 %539, %v373
  %v541 = vpop.permute.xlu0 %540
  %543 = vset.pattern.permute.xlu0 0
  %544 = vperm.xlu0 %543, %v375
  %v545 = vpop.permute.xlu0 %544
  %547 = vset.pattern.permute.xlu0 0
  %548 = vperm.xlu0 %547, %v378
  %v549 = vpop.permute.xlu0 %548
  %551 = vset.pattern.permute.xlu0 0
  %552 = vperm.xlu0 %551, %v380
  %v553 = vpop.permute.xlu0 %552
  %555 = vset.pattern.permute.xlu0 0
  %556 = vperm.xlu0 %555, %v383
  %v557 = vpop.permute.xlu0 %556
  %559 = vset.pattern.permute.xlu0 0
  %560 = vperm.xlu0 %559, %v385
  %v561 = vpop.permute.xlu0 %560
  %v563 = vperm.slane %v467, 0
  %v564 = vadd.f32 %v501, %v563
  %v565 = vadd.f32 %v505, %v563
  %v566 = vadd.f32 %v509, %v563
  %v567 = vadd.f32 %v513, %v563
  %v568 = vadd.f32 %v517, %v563
  %v569 = vadd.f32 %v521, %v563
  %v570 = vadd.f32 %v525, %v563
  %v571 = vadd.f32 %v529, %v563
  %v572 = vadd.f32 %v533, %v563
  %v573 = vadd.f32 %v537, %v563
  %v574 = vadd.f32 %v541, %v563
  %v575 = vadd.f32 %v545, %v563
  %v576 = vadd.f32 %v549, %v563
  %v577 = vadd.f32 %v553, %v563
  %v578 = vadd.f32 %v557, %v563
  %v579 = vadd.f32 %v561, %v563
  %v580 = vmul.f32 %v564, 0.2
  %v581 = vmul.f32 %v565, 0.2
  %v582 = vmul.f32 %v566, 0.2
  %v583 = vmul.f32 %v567, 0.2
  %v584 = vmul.f32 %v568, 0.2
  %v585 = vmul.f32 %v569, 0.2
  %v586 = vmul.f32 %v570, 0.2
  %v587 = vmul.f32 %v571, 0.2
  %v588 = vmul.f32 %v572, 0.2
  %v589 = vmul.f32 %v573, 0.2
  %v590 = vmul.f32 %v574, 0.2
  %v591 = vmul.f32 %v575, 0.2
  %v592 = vmul.f32 %v576, 0.2
  %v593 = vmul.f32 %v577, 0.2
  %v594 = vmul.f32 %v578, 0.2
  %v595 = vmul.f32 %v579, 0.2
  %v596 = vmax.f32 %v564, %v580
  %v597 = vmax.f32 %v565, %v581
  %v598 = vmax.f32 %v566, %v582
  %v599 = vmax.f32 %v567, %v583
  %v600 = vmax.f32 %v568, %v584
  %v601 = vmax.f32 %v569, %v585
  %v602 = vmax.f32 %v570, %v586
  %v603 = vmax.f32 %v571, %v587
  %v604 = vmax.f32 %v572, %v588
  %v605 = vmax.f32 %v573, %v589
  %v606 = vmax.f32 %v574, %v590
  %v607 = vmax.f32 %v575, %v591
  %v608 = vmax.f32 %v576, %v592
  %v609 = vmax.f32 %v577, %v593
  %v610 = vmax.f32 %v578, %v594
  %v611 = vmax.f32 %v579, %v595
  %v612 = vunpack.c.l.bf16 %v42
  %v613 = vunpack.c.l.bf16 %v43
  %v614 = vunpack.c.l.bf16 %v44
  %v615 = vunpack.c.l.bf16 %v45
  %v616 = vunpack.c.l.bf16 %v46
  %v617 = vunpack.c.l.bf16 %v47
  %v618 = vunpack.c.l.bf16 %v48
  %v619 = vunpack.c.l.bf16 %v49
  %v620 = vunpack.c.l.bf16 %v50
  %v621 = vunpack.c.l.bf16 %v51
  %v622 = vunpack.c.l.bf16 %v52
  %v623 = vunpack.c.l.bf16 %v53
  %v624 = vunpack.c.l.bf16 %v54
  %v625 = vunpack.c.l.bf16 %v55
  %v626 = vunpack.c.l.bf16 %v56
  %v627 = vunpack.c.l.bf16 %v57
  %vm628 = vcmp.gt.f32.partialorder %v612, 0.0
  %vm629 = vcmp.gt.f32.partialorder %v613, 0.0
  %vm630 = vcmp.gt.f32.partialorder %v614, 0.0
  %vm631 = vcmp.gt.f32.partialorder %v615, 0.0
  %vm632 = vcmp.gt.f32.partialorder %v616, 0.0
  %vm633 = vcmp.gt.f32.partialorder %v617, 0.0
  %vm634 = vcmp.gt.f32.partialorder %v618, 0.0
  %vm635 = vcmp.gt.f32.partialorder %v619, 0.0
  %vm636 = vcmp.gt.f32.partialorder %v620, 0.0
  %vm637 = vcmp.gt.f32.partialorder %v621, 0.0
  %vm638 = vcmp.gt.f32.partialorder %v622, 0.0
  %vm639 = vcmp.gt.f32.partialorder %v623, 0.0
  %vm640 = vcmp.gt.f32.partialorder %v624, 0.0
  %vm641 = vcmp.gt.f32.partialorder %v625, 0.0
  %vm642 = vcmp.gt.f32.partialorder %v626, 0.0
  %vm643 = vcmp.gt.f32.partialorder %v627, 0.0
  %v644 = vsel %vm628, %v596, -1e+30
  %v645 = vsel %vm629, %v597, -1e+30
  %v646 = vsel %vm630, %v598, -1e+30
  %v647 = vsel %vm631, %v599, -1e+30
  %v648 = vsel %vm632, %v600, -1e+30
  %v649 = vsel %vm633, %v601, -1e+30
  %v650 = vsel %vm634, %v602, -1e+30
  %v651 = vsel %vm635, %v603, -1e+30
  %v652 = vsel %vm636, %v604, -1e+30
  %v653 = vsel %vm637, %v605, -1e+30
  %v654 = vsel %vm638, %v606, -1e+30
  %v655 = vsel %vm639, %v607, -1e+30
  %v656 = vsel %vm640, %v608, -1e+30
  %v657 = vsel %vm641, %v609, -1e+30
  %v658 = vsel %vm642, %v610, -1e+30
  %v659 = vsel %vm643, %v611, -1e+30
  %660 = vmax.xlane.f32.xlu0 %v644
  %v661 = vpop.xlane.xlu0 %660
  %662 = vmax.xlane.f32.xlu0 %v645
  %v663 = vpop.xlane.xlu0 %662
  %664 = vmax.xlane.f32.xlu0 %v646
  %v665 = vpop.xlane.xlu0 %664
  %666 = vmax.xlane.f32.xlu0 %v647
  %v667 = vpop.xlane.xlu0 %666
  %668 = vmax.xlane.f32.xlu0 %v648
  %v669 = vpop.xlane.xlu0 %668
  %670 = vmax.xlane.f32.xlu0 %v649
  %v671 = vpop.xlane.xlu0 %670
  %672 = vmax.xlane.f32.xlu0 %v650
  %v673 = vpop.xlane.xlu0 %672
  %674 = vmax.xlane.f32.xlu0 %v651
  %v675 = vpop.xlane.xlu0 %674
  %676 = vmax.xlane.f32.xlu0 %v652
  %v677 = vpop.xlane.xlu0 %676
  %678 = vmax.xlane.f32.xlu0 %v653
  %v679 = vpop.xlane.xlu0 %678
  %680 = vmax.xlane.f32.xlu0 %v654
  %v681 = vpop.xlane.xlu0 %680
  %682 = vmax.xlane.f32.xlu0 %v655
  %v683 = vpop.xlane.xlu0 %682
  %684 = vmax.xlane.f32.xlu0 %v656
  %v685 = vpop.xlane.xlu0 %684
  %686 = vmax.xlane.f32.xlu0 %v657
  %v687 = vpop.xlane.xlu0 %686
  %688 = vmax.xlane.f32.xlu0 %v658
  %v689 = vpop.xlane.xlu0 %688
  %690 = vmax.xlane.f32.xlu0 %v659
  %v691 = vpop.xlane.xlu0 %690
  %v692 = vsub.f32 %v644, %v661
  %v693 = vsub.f32 %v645, %v663
  %v694 = vsub.f32 %v646, %v665
  %v695 = vsub.f32 %v647, %v667
  %v696 = vsub.f32 %v648, %v669
  %v697 = vsub.f32 %v649, %v671
  %v698 = vsub.f32 %v650, %v673
  %v699 = vsub.f32 %v651, %v675
  %v700 = vsub.f32 %v652, %v677
  %v701 = vsub.f32 %v653, %v679
  %v702 = vsub.f32 %v654, %v681
  %v703 = vsub.f32 %v655, %v683
  %v704 = vsub.f32 %v656, %v685
  %v705 = vsub.f32 %v657, %v687
  %v706 = vsub.f32 %v658, %v689
  %v707 = vsub.f32 %v659, %v691
  %v708 = vmul.f32 %v692, 1.442695
  %v709 = vpow.pop %v708
  %v710 = vmul.f32 %v693, 1.442695
  %v711 = vpow.pop %v710
  %v712 = vmul.f32 %v694, 1.442695
  %v713 = vpow.pop %v712
  %v714 = vmul.f32 %v695, 1.442695
  %v715 = vpow.pop %v714
  %v716 = vmul.f32 %v696, 1.442695
  %v717 = vpow.pop %v716
  %v718 = vmul.f32 %v697, 1.442695
  %v719 = vpow.pop %v718
  %v720 = vmul.f32 %v698, 1.442695
  %v721 = vpow.pop %v720
  %v722 = vmul.f32 %v699, 1.442695
  %v723 = vpow.pop %v722
  %v724 = vmul.f32 %v700, 1.442695
  %v725 = vpow.pop %v724
  %v726 = vmul.f32 %v701, 1.442695
  %v727 = vpow.pop %v726
  %v728 = vmul.f32 %v702, 1.442695
  %v729 = vpow.pop %v728
  %v730 = vmul.f32 %v703, 1.442695
  %v731 = vpow.pop %v730
  %v732 = vmul.f32 %v704, 1.442695
  %v733 = vpow.pop %v732
  %v734 = vmul.f32 %v705, 1.442695
  %v735 = vpow.pop %v734
  %v736 = vmul.f32 %v706, 1.442695
  %v737 = vpow.pop %v736
  %v738 = vmul.f32 %v707, 1.442695
  %v739 = vpow.pop %v738
  %v741 = vpack.i.b16 %v95, %v95
  %v743 = vperm.slane %v741, 0
  %v744 = vunpack.c.l.bf16 %v226
  %v745 = vunpack.c.l.bf16 %v227
  %v746 = vunpack.c.l.bf16 %v228
  %v747 = vunpack.c.l.bf16 %v229
  %v748 = vunpack.c.l.bf16 %v230
  %v749 = vunpack.c.l.bf16 %v231
  %v750 = vunpack.c.l.bf16 %v232
  %v751 = vunpack.c.l.bf16 %v233
  %v752 = vunpack.c.l.bf16 %v234
  %v753 = vunpack.c.l.bf16 %v235
  %v754 = vunpack.c.l.bf16 %v236
  %v755 = vunpack.c.l.bf16 %v237
  %v756 = vunpack.c.l.bf16 %v238
  %v757 = vunpack.c.l.bf16 %v239
  %v758 = vunpack.c.l.bf16 %v240
  %v759 = vunpack.c.l.bf16 %v241
  %v760 = vunpack.c.l.bf16 %v743
  %v761 = vmul.f32 %v744, %v760
  %v762 = vmul.f32 %v745, %v760
  %v763 = vmul.f32 %v746, %v760
  %v764 = vmul.f32 %v747, %v760
  %v765 = vmul.f32 %v748, %v760
  %v766 = vmul.f32 %v749, %v760
  %v767 = vmul.f32 %v750, %v760
  %v768 = vmul.f32 %v751, %v760
  %v769 = vmul.f32 %v752, %v760
  %v770 = vmul.f32 %v753, %v760
  %v771 = vmul.f32 %v754, %v760
  %v772 = vmul.f32 %v755, %v760
  %v773 = vmul.f32 %v756, %v760
  %v774 = vmul.f32 %v757, %v760
  %v775 = vmul.f32 %v758, %v760
  %v776 = vmul.f32 %v759, %v760
  %v777 = vpack.c.bf16 %v762, %v761
  %v778 = vpack.c.bf16 %v764, %v763
  %v779 = vpack.c.bf16 %v766, %v765
  %v780 = vpack.c.bf16 %v768, %v767
  %v781 = vpack.c.bf16 %v770, %v769
  %v782 = vpack.c.bf16 %v772, %v771
  %v783 = vpack.c.bf16 %v774, %v773
  %v784 = vpack.c.bf16 %v776, %v775
  %v785 = vld [vmem:[#allocation3] sm:$0xff]
  %v786 = vld [vmem:[#allocation3 + $0x8] sm:$0xff]
  %v787 = vld [vmem:[#allocation3 + $0x10] sm:$0xff]
  %v788 = vld [vmem:[#allocation3 + $0x18] sm:$0xff]
  %v789 = vld [vmem:[#allocation3 + $0x20] sm:$0xff]
  %v790 = vld [vmem:[#allocation3 + $0x28] sm:$0xff]
  %v791 = vld [vmem:[#allocation3 + $0x30] sm:$0xff]
  %v792 = vld [vmem:[#allocation3 + $0x38] sm:$0xff]
  %v793 = vld [vmem:[#allocation3 + $0x40] sm:$0xff]
  %v794 = vld [vmem:[#allocation3 + $0x48] sm:$0xff]
  %v795 = vld [vmem:[#allocation3 + $0x50] sm:$0xff]
  %v796 = vld [vmem:[#allocation3 + $0x58] sm:$0xff]
  %v797 = vld [vmem:[#allocation3 + $0x60] sm:$0xff]
  %v798 = vld [vmem:[#allocation3 + $0x68] sm:$0xff]
  %v799 = vld [vmem:[#allocation3 + $0x70] sm:$0xff]
  %v800 = vld [vmem:[#allocation3 + $0x78] sm:$0xff]
  %v801 = vpack.c.bf16 %v711, %v709
  %v802 = vpack.c.bf16 %v715, %v713
  %v803 = vpack.c.bf16 %v719, %v717
  %v804 = vpack.c.bf16 %v723, %v721
  %v805 = vpack.c.bf16 %v727, %v725
  %v806 = vpack.c.bf16 %v731, %v729
  %v807 = vpack.c.bf16 %v735, %v733
  %v808 = vpack.c.bf16 %v739, %v737
  %809 = vmatpush.bf16.msra.mxu0 %v784
  %810 = vmatpush.bf16.msra.mxu0 %v783
  %811 = vmatpush.bf16.msra.mxu0 %v782
  %812 = vmatpush.bf16.msra.mxu0 %v781
  %813 = vmatpush.bf16.msra.mxu0 %v780
  %814 = vmatpush.bf16.msra.mxu0 %v779
  %815 = vmatpush.bf16.msra.mxu0 %v778
  %816 = vmatpush.bf16.msra.mxu0 %v777
  %817 = vmatmul.bf16.gmra.mxu0 %v801
  %v818 = vpop.f32.mrf.mxu0
  %v819 = vadd.f32 0.0, %v818
  %v820 = vpop.f32.mrf.mxu0
  %v821 = vadd.f32 0.0, %v820
  %822 = vmatmul.bf16.gmra.mxu0 %v802
  %v823 = vpop.f32.mrf.mxu0
  %v824 = vadd.f32 0.0, %v823
  %v825 = vpop.f32.mrf.mxu0
  %v826 = vadd.f32 0.0, %v825
  %827 = vmatmul.bf16.gmra.mxu0 %v803
  %v828 = vpop.f32.mrf.mxu0
  %v829 = vadd.f32 0.0, %v828
  %v830 = vpop.f32.mrf.mxu0
  %v831 = vadd.f32 0.0, %v830
  %832 = vmatmul.bf16.gmra.mxu0 %v804
  %v833 = vpop.f32.mrf.mxu0
  %v834 = vadd.f32 0.0, %v833
  %v835 = vpop.f32.mrf.mxu0
  %v836 = vadd.f32 0.0, %v835
  %837 = vmatmul.bf16.gmra.mxu0 %v805
  %v838 = vpop.f32.mrf.mxu0
  %v839 = vadd.f32 0.0, %v838
  %v840 = vpop.f32.mrf.mxu0
  %v841 = vadd.f32 0.0, %v840
  %842 = vmatmul.bf16.gmra.mxu0 %v806
  %v843 = vpop.f32.mrf.mxu0
  %v844 = vadd.f32 0.0, %v843
  %v845 = vpop.f32.mrf.mxu0
  %v846 = vadd.f32 0.0, %v845
  %847 = vmatmul.bf16.gmra.mxu0 %v807
  %v848 = vpop.f32.mrf.mxu0
  %v849 = vadd.f32 0.0, %v848
  %v850 = vpop.f32.mrf.mxu0
  %v851 = vadd.f32 0.0, %v850
  %852 = vmatmul.bf16.gmra.mxu0 %v808
  %v853 = vpop.f32.mrf.mxu0
  %v854 = vadd.f32 0.0, %v853
  %v855 = vpop.f32.mrf.mxu0
  %v856 = vadd.f32 0.0, %v855
  %857 = vdwg.mxu0
  %v858 = vadd.f32 %v785, %v819
  %v859 = vadd.f32 %v786, %v821
  %v860 = vadd.f32 %v787, %v824
  %v861 = vadd.f32 %v788, %v826
  %v862 = vadd.f32 %v789, %v829
  %v863 = vadd.f32 %v790, %v831
  %v864 = vadd.f32 %v791, %v834
  %v865 = vadd.f32 %v792, %v836
  %v866 = vadd.f32 %v793, %v839
  %v867 = vadd.f32 %v794, %v841
  %v868 = vadd.f32 %v795, %v844
  %v869 = vadd.f32 %v796, %v846
  %v870 = vadd.f32 %v797, %v849
  %v871 = vadd.f32 %v798, %v851
  %v872 = vadd.f32 %v799, %v854
  %v873 = vadd.f32 %v800, %v856
  %874 = vst [vmem:[#allocation3] sm:$0xff] %v858
  %875 = vst [vmem:[#allocation3 + $0x8] sm:$0xff] %v859
  %876 = vst [vmem:[#allocation3 + $0x10] sm:$0xff] %v860
  %877 = vst [vmem:[#allocation3 + $0x18] sm:$0xff] %v861
  %878 = vst [vmem:[#allocation3 + $0x20] sm:$0xff] %v862
  %879 = vst [vmem:[#allocation3 + $0x28] sm:$0xff] %v863
  %880 = vst [vmem:[#allocation3 + $0x30] sm:$0xff] %v864
  %881 = vst [vmem:[#allocation3 + $0x38] sm:$0xff] %v865
  %882 = vst [vmem:[#allocation3 + $0x40] sm:$0xff] %v866
  %883 = vst [vmem:[#allocation3 + $0x48] sm:$0xff] %v867
  %884 = vst [vmem:[#allocation3 + $0x50] sm:$0xff] %v868
  %885 = vst [vmem:[#allocation3 + $0x58] sm:$0xff] %v869
  %886 = vst [vmem:[#allocation3 + $0x60] sm:$0xff] %v870
  %887 = vst [vmem:[#allocation3 + $0x68] sm:$0xff] %v871
  %888 = vst [vmem:[#allocation3 + $0x70] sm:$0xff] %v872
  %889 = vst [vmem:[#allocation3 + $0x78] sm:$0xff] %v873
  %890 = vset.pattern.permute.xlu0 1
  %891 = vperm.xlu0 %890, %v348
  %v892 = vpop.permute.xlu0 %891
  %894 = vset.pattern.permute.xlu0 1
  %895 = vperm.xlu0 %894, %v350
  %v896 = vpop.permute.xlu0 %895
  %898 = vset.pattern.permute.xlu0 1
  %899 = vperm.xlu0 %898, %v353
  %v900 = vpop.permute.xlu0 %899
  %902 = vset.pattern.permute.xlu0 1
  %903 = vperm.xlu0 %902, %v355
  %v904 = vpop.permute.xlu0 %903
  %906 = vset.pattern.permute.xlu0 1
  %907 = vperm.xlu0 %906, %v358
  %v908 = vpop.permute.xlu0 %907
  %910 = vset.pattern.permute.xlu0 1
  %911 = vperm.xlu0 %910, %v360
  %v912 = vpop.permute.xlu0 %911
  %914 = vset.pattern.permute.xlu0 1
  %915 = vperm.xlu0 %914, %v363
  %v916 = vpop.permute.xlu0 %915
  %918 = vset.pattern.permute.xlu0 1
  %919 = vperm.xlu0 %918, %v365
  %v920 = vpop.permute.xlu0 %919
  %922 = vset.pattern.permute.xlu0 1
  %923 = vperm.xlu0 %922, %v368
  %v924 = vpop.permute.xlu0 %923
  %926 = vset.pattern.permute.xlu0 1
  %927 = vperm.xlu0 %926, %v370
  %v928 = vpop.permute.xlu0 %927
  %930 = vset.pattern.permute.xlu0 1
  %931 = vperm.xlu0 %930, %v373
  %v932 = vpop.permute.xlu0 %931
  %934 = vset.pattern.permute.xlu0 1
  %935 = vperm.xlu0 %934, %v375
  %v936 = vpop.permute.xlu0 %935
  %938 = vset.pattern.permute.xlu0 1
  %939 = vperm.xlu0 %938, %v378
  %v940 = vpop.permute.xlu0 %939
  %942 = vset.pattern.permute.xlu0 1
  %943 = vperm.xlu0 %942, %v380
  %v944 = vpop.permute.xlu0 %943
  %946 = vset.pattern.permute.xlu0 1
  %947 = vperm.xlu0 %946, %v383
  %v948 = vpop.permute.xlu0 %947
  %950 = vset.pattern.permute.xlu0 1
  %951 = vperm.xlu0 %950, %v385
  %v952 = vpop.permute.xlu0 %951
  %v954 = vperm.slane %v467, 1
  %v955 = vadd.f32 %v892, %v954
  %v956 = vadd.f32 %v896, %v954
  %v957 = vadd.f32 %v900, %v954
  %v958 = vadd.f32 %v904, %v954
  %v959 = vadd.f32 %v908, %v954
  %v960 = vadd.f32 %v912, %v954
  %v961 = vadd.f32 %v916, %v954
  %v962 = vadd.f32 %v920, %v954
  %v963 = vadd.f32 %v924, %v954
  %v964 = vadd.f32 %v928, %v954
  %v965 = vadd.f32 %v932, %v954
  %v966 = vadd.f32 %v936, %v954
  %v967 = vadd.f32 %v940, %v954
  %v968 = vadd.f32 %v944, %v954
  %v969 = vadd.f32 %v948, %v954
  %v970 = vadd.f32 %v952, %v954
  %v971 = vmul.f32 %v955, 0.2
  %v972 = vmul.f32 %v956, 0.2
  %v973 = vmul.f32 %v957, 0.2
  %v974 = vmul.f32 %v958, 0.2
  %v975 = vmul.f32 %v959, 0.2
  %v976 = vmul.f32 %v960, 0.2
  %v977 = vmul.f32 %v961, 0.2
  %v978 = vmul.f32 %v962, 0.2
  %v979 = vmul.f32 %v963, 0.2
  %v980 = vmul.f32 %v964, 0.2
  %v981 = vmul.f32 %v965, 0.2
  %v982 = vmul.f32 %v966, 0.2
  %v983 = vmul.f32 %v967, 0.2
  %v984 = vmul.f32 %v968, 0.2
  %v985 = vmul.f32 %v969, 0.2
  %v986 = vmul.f32 %v970, 0.2
  %v987 = vmax.f32 %v955, %v971
  %v988 = vmax.f32 %v956, %v972
  %v989 = vmax.f32 %v957, %v973
  %v990 = vmax.f32 %v958, %v974
  %v991 = vmax.f32 %v959, %v975
  %v992 = vmax.f32 %v960, %v976
  %v993 = vmax.f32 %v961, %v977
  %v994 = vmax.f32 %v962, %v978
  %v995 = vmax.f32 %v963, %v979
  %v996 = vmax.f32 %v964, %v980
  %v997 = vmax.f32 %v965, %v981
  %v998 = vmax.f32 %v966, %v982
  %v999 = vmax.f32 %v967, %v983
  %v1000 = vmax.f32 %v968, %v984
  %v1001 = vmax.f32 %v969, %v985
  %v1002 = vmax.f32 %v970, %v986
  %v1003 = vsel %vm628, %v987, -1e+30
  %v1004 = vsel %vm629, %v988, -1e+30
  %v1005 = vsel %vm630, %v989, -1e+30
  %v1006 = vsel %vm631, %v990, -1e+30
  %v1007 = vsel %vm632, %v991, -1e+30
  %v1008 = vsel %vm633, %v992, -1e+30
  %v1009 = vsel %vm634, %v993, -1e+30
  %v1010 = vsel %vm635, %v994, -1e+30
  %v1011 = vsel %vm636, %v995, -1e+30
  %v1012 = vsel %vm637, %v996, -1e+30
  %v1013 = vsel %vm638, %v997, -1e+30
  %v1014 = vsel %vm639, %v998, -1e+30
  %v1015 = vsel %vm640, %v999, -1e+30
  %v1016 = vsel %vm641, %v1000, -1e+30
  %v1017 = vsel %vm642, %v1001, -1e+30
  %v1018 = vsel %vm643, %v1002, -1e+30
  %1019 = vmax.xlane.f32.xlu0 %v1003
  %v1020 = vpop.xlane.xlu0 %1019
  %1021 = vmax.xlane.f32.xlu0 %v1004
  %v1022 = vpop.xlane.xlu0 %1021
  %1023 = vmax.xlane.f32.xlu0 %v1005
  %v1024 = vpop.xlane.xlu0 %1023
  %1025 = vmax.xlane.f32.xlu0 %v1006
  %v1026 = vpop.xlane.xlu0 %1025
  %1027 = vmax.xlane.f32.xlu0 %v1007
  %v1028 = vpop.xlane.xlu0 %1027
  %1029 = vmax.xlane.f32.xlu0 %v1008
  %v1030 = vpop.xlane.xlu0 %1029
  %1031 = vmax.xlane.f32.xlu0 %v1009
  %v1032 = vpop.xlane.xlu0 %1031
  %1033 = vmax.xlane.f32.xlu0 %v1010
  %v1034 = vpop.xlane.xlu0 %1033
  %1035 = vmax.xlane.f32.xlu0 %v1011
  %v1036 = vpop.xlane.xlu0 %1035
  %1037 = vmax.xlane.f32.xlu0 %v1012
  %v1038 = vpop.xlane.xlu0 %1037
  %1039 = vmax.xlane.f32.xlu0 %v1013
  %v1040 = vpop.xlane.xlu0 %1039
  %1041 = vmax.xlane.f32.xlu0 %v1014
  %v1042 = vpop.xlane.xlu0 %1041
  %1043 = vmax.xlane.f32.xlu0 %v1015
  %v1044 = vpop.xlane.xlu0 %1043
  %1045 = vmax.xlane.f32.xlu0 %v1016
  %v1046 = vpop.xlane.xlu0 %1045
  %1047 = vmax.xlane.f32.xlu0 %v1017
  %v1048 = vpop.xlane.xlu0 %1047
  %1049 = vmax.xlane.f32.xlu0 %v1018
  %v1050 = vpop.xlane.xlu0 %1049
  %v1051 = vsub.f32 %v1003, %v1020
  %v1052 = vsub.f32 %v1004, %v1022
  %v1053 = vsub.f32 %v1005, %v1024
  %v1054 = vsub.f32 %v1006, %v1026
  %v1055 = vsub.f32 %v1007, %v1028
  %v1056 = vsub.f32 %v1008, %v1030
  %v1057 = vsub.f32 %v1009, %v1032
  %v1058 = vsub.f32 %v1010, %v1034
  %v1059 = vsub.f32 %v1011, %v1036
  %v1060 = vsub.f32 %v1012, %v1038
  %v1061 = vsub.f32 %v1013, %v1040
  %v1062 = vsub.f32 %v1014, %v1042
  %v1063 = vsub.f32 %v1015, %v1044
  %v1064 = vsub.f32 %v1016, %v1046
  %v1065 = vsub.f32 %v1017, %v1048
  %v1066 = vsub.f32 %v1018, %v1050
  %v1067 = vmul.f32 %v1051, 1.442695
  %v1068 = vpow.pop %v1067
  %v1069 = vmul.f32 %v1052, 1.442695
  %v1070 = vpow.pop %v1069
  %v1071 = vmul.f32 %v1053, 1.442695
  %v1072 = vpow.pop %v1071
  %v1073 = vmul.f32 %v1054, 1.442695
  %v1074 = vpow.pop %v1073
  %v1075 = vmul.f32 %v1055, 1.442695
  %v1076 = vpow.pop %v1075
  %v1077 = vmul.f32 %v1056, 1.442695
  %v1078 = vpow.pop %v1077
  %v1079 = vmul.f32 %v1057, 1.442695
  %v1080 = vpow.pop %v1079
  %v1081 = vmul.f32 %v1058, 1.442695
  %v1082 = vpow.pop %v1081
  %v1083 = vmul.f32 %v1059, 1.442695
  %v1084 = vpow.pop %v1083
  %v1085 = vmul.f32 %v1060, 1.442695
  %v1086 = vpow.pop %v1085
  %v1087 = vmul.f32 %v1061, 1.442695
  %v1088 = vpow.pop %v1087
  %v1089 = vmul.f32 %v1062, 1.442695
  %v1090 = vpow.pop %v1089
  %v1091 = vmul.f32 %v1063, 1.442695
  %v1092 = vpow.pop %v1091
  %v1093 = vmul.f32 %v1064, 1.442695
  %v1094 = vpow.pop %v1093
  %v1095 = vmul.f32 %v1065, 1.442695
  %v1096 = vpow.pop %v1095
  %v1097 = vmul.f32 %v1066, 1.442695
  %v1098 = vpow.pop %v1097
  %v1099 = vshrl.u32 %v95, 16
  %v1100 = vpack.i.b16 %v1099, %v1099
  %v1102 = vperm.slane %v1100, 0
  %v1103 = vunpack.c.l.bf16 %v1102
  %v1104 = vmul.f32 %v744, %v1103
  %v1105 = vmul.f32 %v745, %v1103
  %v1106 = vmul.f32 %v746, %v1103
  %v1107 = vmul.f32 %v747, %v1103
  %v1108 = vmul.f32 %v748, %v1103
  %v1109 = vmul.f32 %v749, %v1103
  %v1110 = vmul.f32 %v750, %v1103
  %v1111 = vmul.f32 %v751, %v1103
  %v1112 = vmul.f32 %v752, %v1103
  %v1113 = vmul.f32 %v753, %v1103
  %v1114 = vmul.f32 %v754, %v1103
  %v1115 = vmul.f32 %v755, %v1103
  %v1116 = vmul.f32 %v756, %v1103
  %v1117 = vmul.f32 %v757, %v1103
  %v1118 = vmul.f32 %v758, %v1103
  %v1119 = vmul.f32 %v759, %v1103
  %v1120 = vpack.c.bf16 %v1105, %v1104
  %v1121 = vpack.c.bf16 %v1107, %v1106
  %v1122 = vpack.c.bf16 %v1109, %v1108
  %v1123 = vpack.c.bf16 %v1111, %v1110
  %v1124 = vpack.c.bf16 %v1113, %v1112
  %v1125 = vpack.c.bf16 %v1115, %v1114
  %v1126 = vpack.c.bf16 %v1117, %v1116
  %v1127 = vpack.c.bf16 %v1119, %v1118
  %v1128 = vld [vmem:[#allocation3] sm:$0xff]
  %v1129 = vld [vmem:[#allocation3 + $0x8] sm:$0xff]
  %v1130 = vld [vmem:[#allocation3 + $0x10] sm:$0xff]
  %v1131 = vld [vmem:[#allocation3 + $0x18] sm:$0xff]
  %v1132 = vld [vmem:[#allocation3 + $0x20] sm:$0xff]
  %v1133 = vld [vmem:[#allocation3 + $0x28] sm:$0xff]
  %v1134 = vld [vmem:[#allocation3 + $0x30] sm:$0xff]
  %v1135 = vld [vmem:[#allocation3 + $0x38] sm:$0xff]
  %v1136 = vld [vmem:[#allocation3 + $0x40] sm:$0xff]
  %v1137 = vld [vmem:[#allocation3 + $0x48] sm:$0xff]
  %v1138 = vld [vmem:[#allocation3 + $0x50] sm:$0xff]
  %v1139 = vld [vmem:[#allocation3 + $0x58] sm:$0xff]
  %v1140 = vld [vmem:[#allocation3 + $0x60] sm:$0xff]
  %v1141 = vld [vmem:[#allocation3 + $0x68] sm:$0xff]
  %v1142 = vld [vmem:[#allocation3 + $0x70] sm:$0xff]
  %v1143 = vld [vmem:[#allocation3 + $0x78] sm:$0xff]
  %v1144 = vpack.c.bf16 %v1070, %v1068
  %v1145 = vpack.c.bf16 %v1074, %v1072
  %v1146 = vpack.c.bf16 %v1078, %v1076
  %v1147 = vpack.c.bf16 %v1082, %v1080
  %v1148 = vpack.c.bf16 %v1086, %v1084
  %v1149 = vpack.c.bf16 %v1090, %v1088
  %v1150 = vpack.c.bf16 %v1094, %v1092
  %v1151 = vpack.c.bf16 %v1098, %v1096
  %1152 = vmatpush.bf16.msra.mxu0 %v1127
  %1153 = vmatpush.bf16.msra.mxu0 %v1126
  %1154 = vmatpush.bf16.msra.mxu0 %v1125
  %1155 = vmatpush.bf16.msra.mxu0 %v1124
  %1156 = vmatpush.bf16.msra.mxu0 %v1123
  %1157 = vmatpush.bf16.msra.mxu0 %v1122
  %1158 = vmatpush.bf16.msra.mxu0 %v1121
  %1159 = vmatpush.bf16.msra.mxu0 %v1120
  %1160 = vmatmul.bf16.gmra.mxu0 %v1144
  %v1161 = vpop.f32.mrf.mxu0
  %v1162 = vadd.f32 0.0, %v1161
  %v1163 = vpop.f32.mrf.mxu0
  %v1164 = vadd.f32 0.0, %v1163
  %1165 = vmatmul.bf16.gmra.mxu0 %v1145
  %v1166 = vpop.f32.mrf.mxu0
  %v1167 = vadd.f32 0.0, %v1166
  %v1168 = vpop.f32.mrf.mxu0
  %v1169 = vadd.f32 0.0, %v1168
  %1170 = vmatmul.bf16.gmra.mxu0 %v1146
  %v1171 = vpop.f32.mrf.mxu0
  %v1172 = vadd.f32 0.0, %v1171
  %v1173 = vpop.f32.mrf.mxu0
  %v1174 = vadd.f32 0.0, %v1173
  %1175 = vmatmul.bf16.gmra.mxu0 %v1147
  %v1176 = vpop.f32.mrf.mxu0
  %v1177 = vadd.f32 0.0, %v1176
  %v1178 = vpop.f32.mrf.mxu0
  %v1179 = vadd.f32 0.0, %v1178
  %1180 = vmatmul.bf16.gmra.mxu0 %v1148
  %v1181 = vpop.f32.mrf.mxu0
  %v1182 = vadd.f32 0.0, %v1181
  %v1183 = vpop.f32.mrf.mxu0
  %v1184 = vadd.f32 0.0, %v1183
  %1185 = vmatmul.bf16.gmra.mxu0 %v1149
  %v1186 = vpop.f32.mrf.mxu0
  %v1187 = vadd.f32 0.0, %v1186
  %v1188 = vpop.f32.mrf.mxu0
  %v1189 = vadd.f32 0.0, %v1188
  %1190 = vmatmul.bf16.gmra.mxu0 %v1150
  %v1191 = vpop.f32.mrf.mxu0
  %v1192 = vadd.f32 0.0, %v1191
  %v1193 = vpop.f32.mrf.mxu0
  %v1194 = vadd.f32 0.0, %v1193
  %1195 = vmatmul.bf16.gmra.mxu0 %v1151
  %v1196 = vpop.f32.mrf.mxu0
  %v1197 = vadd.f32 0.0, %v1196
  %v1198 = vpop.f32.mrf.mxu0
  %v1199 = vadd.f32 0.0, %v1198
  %1200 = vdwg.mxu0
  %v1201 = vadd.f32 %v1128, %v1162
  %v1202 = vadd.f32 %v1129, %v1164
  %v1203 = vadd.f32 %v1130, %v1167
  %v1204 = vadd.f32 %v1131, %v1169
  %v1205 = vadd.f32 %v1132, %v1172
  %v1206 = vadd.f32 %v1133, %v1174
  %v1207 = vadd.f32 %v1134, %v1177
  %v1208 = vadd.f32 %v1135, %v1179
  %v1209 = vadd.f32 %v1136, %v1182
  %v1210 = vadd.f32 %v1137, %v1184
  %v1211 = vadd.f32 %v1138, %v1187
  %v1212 = vadd.f32 %v1139, %v1189
  %v1213 = vadd.f32 %v1140, %v1192
  %v1214 = vadd.f32 %v1141, %v1194
  %v1215 = vadd.f32 %v1142, %v1197
  %v1216 = vadd.f32 %v1143, %v1199
  %1217 = vst [vmem:[#allocation3] sm:$0xff] %v1201
  %1218 = vst [vmem:[#allocation3 + $0x8] sm:$0xff] %v1202
  %1219 = vst [vmem:[#allocation3 + $0x10] sm:$0xff] %v1203
  %1220 = vst [vmem:[#allocation3 + $0x18] sm:$0xff] %v1204
  %1221 = vst [vmem:[#allocation3 + $0x20] sm:$0xff] %v1205
  %1222 = vst [vmem:[#allocation3 + $0x28] sm:$0xff] %v1206
  %1223 = vst [vmem:[#allocation3 + $0x30] sm:$0xff] %v1207
  %1224 = vst [vmem:[#allocation3 + $0x38] sm:$0xff] %v1208
  %1225 = vst [vmem:[#allocation3 + $0x40] sm:$0xff] %v1209
  %1226 = vst [vmem:[#allocation3 + $0x48] sm:$0xff] %v1210
  %1227 = vst [vmem:[#allocation3 + $0x50] sm:$0xff] %v1211
  %1228 = vst [vmem:[#allocation3 + $0x58] sm:$0xff] %v1212
  %1229 = vst [vmem:[#allocation3 + $0x60] sm:$0xff] %v1213
  %1230 = vst [vmem:[#allocation3 + $0x68] sm:$0xff] %v1214
  %1231 = vst [vmem:[#allocation3 + $0x70] sm:$0xff] %v1215
  %1232 = vst [vmem:[#allocation3 + $0x78] sm:$0xff] %v1216
  %1233 = vset.pattern.permute.xlu0 2
  %1234 = vperm.xlu0 %1233, %v348
  %v1235 = vpop.permute.xlu0 %1234
  %1237 = vset.pattern.permute.xlu0 2
  %1238 = vperm.xlu0 %1237, %v350
  %v1239 = vpop.permute.xlu0 %1238
  %1241 = vset.pattern.permute.xlu0 2
  %1242 = vperm.xlu0 %1241, %v353
  %v1243 = vpop.permute.xlu0 %1242
  %1245 = vset.pattern.permute.xlu0 2
  %1246 = vperm.xlu0 %1245, %v355
  %v1247 = vpop.permute.xlu0 %1246
  %1249 = vset.pattern.permute.xlu0 2
  %1250 = vperm.xlu0 %1249, %v358
  %v1251 = vpop.permute.xlu0 %1250
  %1253 = vset.pattern.permute.xlu0 2
  %1254 = vperm.xlu0 %1253, %v360
  %v1255 = vpop.permute.xlu0 %1254
  %1257 = vset.pattern.permute.xlu0 2
  %1258 = vperm.xlu0 %1257, %v363
  %v1259 = vpop.permute.xlu0 %1258
  %1261 = vset.pattern.permute.xlu0 2
  %1262 = vperm.xlu0 %1261, %v365
  %v1263 = vpop.permute.xlu0 %1262
  %1265 = vset.pattern.permute.xlu0 2
  %1266 = vperm.xlu0 %1265, %v368
  %v1267 = vpop.permute.xlu0 %1266
  %1269 = vset.pattern.permute.xlu0 2
  %1270 = vperm.xlu0 %1269, %v370
  %v1271 = vpop.permute.xlu0 %1270
  %1273 = vset.pattern.permute.xlu0 2
  %1274 = vperm.xlu0 %1273, %v373
  %v1275 = vpop.permute.xlu0 %1274
  %1277 = vset.pattern.permute.xlu0 2
  %1278 = vperm.xlu0 %1277, %v375
  %v1279 = vpop.permute.xlu0 %1278
  %1281 = vset.pattern.permute.xlu0 2
  %1282 = vperm.xlu0 %1281, %v378
  %v1283 = vpop.permute.xlu0 %1282
  %1285 = vset.pattern.permute.xlu0 2
  %1286 = vperm.xlu0 %1285, %v380
  %v1287 = vpop.permute.xlu0 %1286
  %1289 = vset.pattern.permute.xlu0 2
  %1290 = vperm.xlu0 %1289, %v383
  %v1291 = vpop.permute.xlu0 %1290
  %1293 = vset.pattern.permute.xlu0 2
  %1294 = vperm.xlu0 %1293, %v385
  %v1295 = vpop.permute.xlu0 %1294
  %v1297 = vperm.slane %v467, 2
  %v1298 = vadd.f32 %v1235, %v1297
  %v1299 = vadd.f32 %v1239, %v1297
  %v1300 = vadd.f32 %v1243, %v1297
  %v1301 = vadd.f32 %v1247, %v1297
  %v1302 = vadd.f32 %v1251, %v1297
  %v1303 = vadd.f32 %v1255, %v1297
  %v1304 = vadd.f32 %v1259, %v1297
  %v1305 = vadd.f32 %v1263, %v1297
  %v1306 = vadd.f32 %v1267, %v1297
  %v1307 = vadd.f32 %v1271, %v1297
  %v1308 = vadd.f32 %v1275, %v1297
  %v1309 = vadd.f32 %v1279, %v1297
  %v1310 = vadd.f32 %v1283, %v1297
  %v1311 = vadd.f32 %v1287, %v1297
  %v1312 = vadd.f32 %v1291, %v1297
  %v1313 = vadd.f32 %v1295, %v1297
  %v1314 = vmul.f32 %v1298, 0.2
  %v1315 = vmul.f32 %v1299, 0.2
  %v1316 = vmul.f32 %v1300, 0.2
  %v1317 = vmul.f32 %v1301, 0.2
  %v1318 = vmul.f32 %v1302, 0.2
  %v1319 = vmul.f32 %v1303, 0.2
  %v1320 = vmul.f32 %v1304, 0.2
  %v1321 = vmul.f32 %v1305, 0.2
  %v1322 = vmul.f32 %v1306, 0.2
  %v1323 = vmul.f32 %v1307, 0.2
  %v1324 = vmul.f32 %v1308, 0.2
  %v1325 = vmul.f32 %v1309, 0.2
  %v1326 = vmul.f32 %v1310, 0.2
  %v1327 = vmul.f32 %v1311, 0.2
  %v1328 = vmul.f32 %v1312, 0.2
  %v1329 = vmul.f32 %v1313, 0.2
  %v1330 = vmax.f32 %v1298, %v1314
  %v1331 = vmax.f32 %v1299, %v1315
  %v1332 = vmax.f32 %v1300, %v1316
  %v1333 = vmax.f32 %v1301, %v1317
  %v1334 = vmax.f32 %v1302, %v1318
  %v1335 = vmax.f32 %v1303, %v1319
  %v1336 = vmax.f32 %v1304, %v1320
  %v1337 = vmax.f32 %v1305, %v1321
  %v1338 = vmax.f32 %v1306, %v1322
  %v1339 = vmax.f32 %v1307, %v1323
  %v1340 = vmax.f32 %v1308, %v1324
  %v1341 = vmax.f32 %v1309, %v1325
  %v1342 = vmax.f32 %v1310, %v1326
  %v1343 = vmax.f32 %v1311, %v1327
  %v1344 = vmax.f32 %v1312, %v1328
  %v1345 = vmax.f32 %v1313, %v1329
  %v1346 = vsel %vm628, %v1330, -1e+30
  %v1347 = vsel %vm629, %v1331, -1e+30
  %v1348 = vsel %vm630, %v1332, -1e+30
  %v1349 = vsel %vm631, %v1333, -1e+30
  %v1350 = vsel %vm632, %v1334, -1e+30
  %v1351 = vsel %vm633, %v1335, -1e+30
  %v1352 = vsel %vm634, %v1336, -1e+30
  %v1353 = vsel %vm635, %v1337, -1e+30
  %v1354 = vsel %vm636, %v1338, -1e+30
  %v1355 = vsel %vm637, %v1339, -1e+30
  %v1356 = vsel %vm638, %v1340, -1e+30
  %v1357 = vsel %vm639, %v1341, -1e+30
  %v1358 = vsel %vm640, %v1342, -1e+30
  %v1359 = vsel %vm641, %v1343, -1e+30
  %v1360 = vsel %vm642, %v1344, -1e+30
  %v1361 = vsel %vm643, %v1345, -1e+30
  %1362 = vmax.xlane.f32.xlu0 %v1346
  %v1363 = vpop.xlane.xlu0 %1362
  %1364 = vmax.xlane.f32.xlu0 %v1347
  %v1365 = vpop.xlane.xlu0 %1364
  %1366 = vmax.xlane.f32.xlu0 %v1348
  %v1367 = vpop.xlane.xlu0 %1366
  %1368 = vmax.xlane.f32.xlu0 %v1349
  %v1369 = vpop.xlane.xlu0 %1368
  %1370 = vmax.xlane.f32.xlu0 %v1350
  %v1371 = vpop.xlane.xlu0 %1370
  %1372 = vmax.xlane.f32.xlu0 %v1351
  %v1373 = vpop.xlane.xlu0 %1372
  %1374 = vmax.xlane.f32.xlu0 %v1352
  %v1375 = vpop.xlane.xlu0 %1374
  %1376 = vmax.xlane.f32.xlu0 %v1353
  %v1377 = vpop.xlane.xlu0 %1376
  %1378 = vmax.xlane.f32.xlu0 %v1354
  %v1379 = vpop.xlane.xlu0 %1378
  %1380 = vmax.xlane.f32.xlu0 %v1355
  %v1381 = vpop.xlane.xlu0 %1380
  %1382 = vmax.xlane.f32.xlu0 %v1356
  %v1383 = vpop.xlane.xlu0 %1382
  %1384 = vmax.xlane.f32.xlu0 %v1357
  %v1385 = vpop.xlane.xlu0 %1384
  %1386 = vmax.xlane.f32.xlu0 %v1358
  %v1387 = vpop.xlane.xlu0 %1386
  %1388 = vmax.xlane.f32.xlu0 %v1359
  %v1389 = vpop.xlane.xlu0 %1388
  %1390 = vmax.xlane.f32.xlu0 %v1360
  %v1391 = vpop.xlane.xlu0 %1390
  %1392 = vmax.xlane.f32.xlu0 %v1361
  %v1393 = vpop.xlane.xlu0 %1392
  %v1394 = vsub.f32 %v1346, %v1363
  %v1395 = vsub.f32 %v1347, %v1365
  %v1396 = vsub.f32 %v1348, %v1367
  %v1397 = vsub.f32 %v1349, %v1369
  %v1398 = vsub.f32 %v1350, %v1371
  %v1399 = vsub.f32 %v1351, %v1373
  %v1400 = vsub.f32 %v1352, %v1375
  %v1401 = vsub.f32 %v1353, %v1377
  %v1402 = vsub.f32 %v1354, %v1379
  %v1403 = vsub.f32 %v1355, %v1381
  %v1404 = vsub.f32 %v1356, %v1383
  %v1405 = vsub.f32 %v1357, %v1385
  %v1406 = vsub.f32 %v1358, %v1387
  %v1407 = vsub.f32 %v1359, %v1389
  %v1408 = vsub.f32 %v1360, %v1391
  %v1409 = vsub.f32 %v1361, %v1393
  %v1410 = vmul.f32 %v1394, 1.442695
  %v1411 = vpow.pop %v1410
  %v1412 = vmul.f32 %v1395, 1.442695
  %v1413 = vpow.pop %v1412
  %v1414 = vmul.f32 %v1396, 1.442695
  %v1415 = vpow.pop %v1414
  %v1416 = vmul.f32 %v1397, 1.442695
  %v1417 = vpow.pop %v1416
  %v1418 = vmul.f32 %v1398, 1.442695
  %v1419 = vpow.pop %v1418
  %v1420 = vmul.f32 %v1399, 1.442695
  %v1421 = vpow.pop %v1420
  %v1422 = vmul.f32 %v1400, 1.442695
  %v1423 = vpow.pop %v1422
  %v1424 = vmul.f32 %v1401, 1.442695
  %v1425 = vpow.pop %v1424
  %v1426 = vmul.f32 %v1402, 1.442695
  %v1427 = vpow.pop %v1426
  %v1428 = vmul.f32 %v1403, 1.442695
  %v1429 = vpow.pop %v1428
  %v1430 = vmul.f32 %v1404, 1.442695
  %v1431 = vpow.pop %v1430
  %v1432 = vmul.f32 %v1405, 1.442695
  %v1433 = vpow.pop %v1432
  %v1434 = vmul.f32 %v1406, 1.442695
  %v1435 = vpow.pop %v1434
  %v1436 = vmul.f32 %v1407, 1.442695
  %v1437 = vpow.pop %v1436
  %v1438 = vmul.f32 %v1408, 1.442695
  %v1439 = vpow.pop %v1438
  %v1440 = vmul.f32 %v1409, 1.442695
  %v1441 = vpow.pop %v1440
  %v1442 = vperm.slane %v741, 1
  %v1443 = vunpack.c.l.bf16 %v1442
  %v1444 = vmul.f32 %v744, %v1443
  %v1445 = vmul.f32 %v745, %v1443
  %v1446 = vmul.f32 %v746, %v1443
  %v1447 = vmul.f32 %v747, %v1443
  %v1448 = vmul.f32 %v748, %v1443
  %v1449 = vmul.f32 %v749, %v1443
  %v1450 = vmul.f32 %v750, %v1443
  %v1451 = vmul.f32 %v751, %v1443
  %v1452 = vmul.f32 %v752, %v1443
  %v1453 = vmul.f32 %v753, %v1443
  %v1454 = vmul.f32 %v754, %v1443
  %v1455 = vmul.f32 %v755, %v1443
  %v1456 = vmul.f32 %v756, %v1443
  %v1457 = vmul.f32 %v757, %v1443
  %v1458 = vmul.f32 %v758, %v1443
  %v1459 = vmul.f32 %v759, %v1443
  %v1460 = vpack.c.bf16 %v1445, %v1444
  %v1461 = vpack.c.bf16 %v1447, %v1446
  %v1462 = vpack.c.bf16 %v1449, %v1448
  %v1463 = vpack.c.bf16 %v1451, %v1450
  %v1464 = vpack.c.bf16 %v1453, %v1452
  %v1465 = vpack.c.bf16 %v1455, %v1454
  %v1466 = vpack.c.bf16 %v1457, %v1456
  %v1467 = vpack.c.bf16 %v1459, %v1458
  %v1468 = vld [vmem:[#allocation3] sm:$0xff]
  %v1469 = vld [vmem:[#allocation3 + $0x8] sm:$0xff]
  %v1470 = vld [vmem:[#allocation3 + $0x10] sm:$0xff]
  %v1471 = vld [vmem:[#allocation3 + $0x18] sm:$0xff]
  %v1472 = vld [vmem:[#allocation3 + $0x20] sm:$0xff]
  %v1473 = vld [vmem:[#allocation3 + $0x28] sm:$0xff]
  %v1474 = vld [vmem:[#allocation3 + $0x30] sm:$0xff]
  %v1475 = vld [vmem:[#allocation3 + $0x38] sm:$0xff]
  %v1476 = vld [vmem:[#allocation3 + $0x40] sm:$0xff]
  %v1477 = vld [vmem:[#allocation3 + $0x48] sm:$0xff]
  %v1478 = vld [vmem:[#allocation3 + $0x50] sm:$0xff]
  %v1479 = vld [vmem:[#allocation3 + $0x58] sm:$0xff]
  %v1480 = vld [vmem:[#allocation3 + $0x60] sm:$0xff]
  %v1481 = vld [vmem:[#allocation3 + $0x68] sm:$0xff]
  %v1482 = vld [vmem:[#allocation3 + $0x70] sm:$0xff]
  %v1483 = vld [vmem:[#allocation3 + $0x78] sm:$0xff]
  %v1484 = vpack.c.bf16 %v1413, %v1411
  %v1485 = vpack.c.bf16 %v1417, %v1415
  %v1486 = vpack.c.bf16 %v1421, %v1419
  %v1487 = vpack.c.bf16 %v1425, %v1423
  %v1488 = vpack.c.bf16 %v1429, %v1427
  %v1489 = vpack.c.bf16 %v1433, %v1431
  %v1490 = vpack.c.bf16 %v1437, %v1435
  %v1491 = vpack.c.bf16 %v1441, %v1439
  %1492 = vmatpush.bf16.msra.mxu0 %v1467
  %1493 = vmatpush.bf16.msra.mxu0 %v1466
  %1494 = vmatpush.bf16.msra.mxu0 %v1465
  %1495 = vmatpush.bf16.msra.mxu0 %v1464
  %1496 = vmatpush.bf16.msra.mxu0 %v1463
  %1497 = vmatpush.bf16.msra.mxu0 %v1462
  %1498 = vmatpush.bf16.msra.mxu0 %v1461
  %1499 = vmatpush.bf16.msra.mxu0 %v1460
  %1500 = vmatmul.bf16.gmra.mxu0 %v1484
  %v1501 = vpop.f32.mrf.mxu0
  %v1502 = vadd.f32 0.0, %v1501
  %v1503 = vpop.f32.mrf.mxu0
  %v1504 = vadd.f32 0.0, %v1503
  %1505 = vmatmul.bf16.gmra.mxu0 %v1485
  %v1506 = vpop.f32.mrf.mxu0
  %v1507 = vadd.f32 0.0, %v1506
  %v1508 = vpop.f32.mrf.mxu0
  %v1509 = vadd.f32 0.0, %v1508
  %1510 = vmatmul.bf16.gmra.mxu0 %v1486
  %v1511 = vpop.f32.mrf.mxu0
  %v1512 = vadd.f32 0.0, %v1511
  %v1513 = vpop.f32.mrf.mxu0
  %v1514 = vadd.f32 0.0, %v1513
  %1515 = vmatmul.bf16.gmra.mxu0 %v1487
  %v1516 = vpop.f32.mrf.mxu0
  %v1517 = vadd.f32 0.0, %v1516
  %v1518 = vpop.f32.mrf.mxu0
  %v1519 = vadd.f32 0.0, %v1518
  %1520 = vmatmul.bf16.gmra.mxu0 %v1488
  %v1521 = vpop.f32.mrf.mxu0
  %v1522 = vadd.f32 0.0, %v1521
  %v1523 = vpop.f32.mrf.mxu0
  %v1524 = vadd.f32 0.0, %v1523
  %1525 = vmatmul.bf16.gmra.mxu0 %v1489
  %v1526 = vpop.f32.mrf.mxu0
  %v1527 = vadd.f32 0.0, %v1526
  %v1528 = vpop.f32.mrf.mxu0
  %v1529 = vadd.f32 0.0, %v1528
  %1530 = vmatmul.bf16.gmra.mxu0 %v1490
  %v1531 = vpop.f32.mrf.mxu0
  %v1532 = vadd.f32 0.0, %v1531
  %v1533 = vpop.f32.mrf.mxu0
  %v1534 = vadd.f32 0.0, %v1533
  %1535 = vmatmul.bf16.gmra.mxu0 %v1491
  %v1536 = vpop.f32.mrf.mxu0
  %v1537 = vadd.f32 0.0, %v1536
  %v1538 = vpop.f32.mrf.mxu0
  %v1539 = vadd.f32 0.0, %v1538
  %1540 = vdwg.mxu0
  %v1541 = vadd.f32 %v1468, %v1502
  %v1542 = vadd.f32 %v1469, %v1504
  %v1543 = vadd.f32 %v1470, %v1507
  %v1544 = vadd.f32 %v1471, %v1509
  %v1545 = vadd.f32 %v1472, %v1512
  %v1546 = vadd.f32 %v1473, %v1514
  %v1547 = vadd.f32 %v1474, %v1517
  %v1548 = vadd.f32 %v1475, %v1519
  %v1549 = vadd.f32 %v1476, %v1522
  %v1550 = vadd.f32 %v1477, %v1524
  %v1551 = vadd.f32 %v1478, %v1527
  %v1552 = vadd.f32 %v1479, %v1529
  %v1553 = vadd.f32 %v1480, %v1532
  %v1554 = vadd.f32 %v1481, %v1534
  %v1555 = vadd.f32 %v1482, %v1537
  %v1556 = vadd.f32 %v1483, %v1539
  %1557 = vst [vmem:[#allocation3] sm:$0xff] %v1541
  %1558 = vst [vmem:[#allocation3 + $0x8] sm:$0xff] %v1542
  %1559 = vst [vmem:[#allocation3 + $0x10] sm:$0xff] %v1543
  %1560 = vst [vmem:[#allocation3 + $0x18] sm:$0xff] %v1544
  %1561 = vst [vmem:[#allocation3 + $0x20] sm:$0xff] %v1545
  %1562 = vst [vmem:[#allocation3 + $0x28] sm:$0xff] %v1546
  %1563 = vst [vmem:[#allocation3 + $0x30] sm:$0xff] %v1547
  %1564 = vst [vmem:[#allocation3 + $0x38] sm:$0xff] %v1548
  %1565 = vst [vmem:[#allocation3 + $0x40] sm:$0xff] %v1549
  %1566 = vst [vmem:[#allocation3 + $0x48] sm:$0xff] %v1550
  %1567 = vst [vmem:[#allocation3 + $0x50] sm:$0xff] %v1551
  %1568 = vst [vmem:[#allocation3 + $0x58] sm:$0xff] %v1552
  %1569 = vst [vmem:[#allocation3 + $0x60] sm:$0xff] %v1553
  %1570 = vst [vmem:[#allocation3 + $0x68] sm:$0xff] %v1554
  %1571 = vst [vmem:[#allocation3 + $0x70] sm:$0xff] %v1555
  %1572 = vst [vmem:[#allocation3 + $0x78] sm:$0xff] %v1556
  %1573 = vset.pattern.permute.xlu0 3
  %1574 = vperm.xlu0 %1573, %v348
  %v1575 = vpop.permute.xlu0 %1574
  %1577 = vset.pattern.permute.xlu0 3
  %1578 = vperm.xlu0 %1577, %v350
  %v1579 = vpop.permute.xlu0 %1578
  %1581 = vset.pattern.permute.xlu0 3
  %1582 = vperm.xlu0 %1581, %v353
  %v1583 = vpop.permute.xlu0 %1582
  %1585 = vset.pattern.permute.xlu0 3
  %1586 = vperm.xlu0 %1585, %v355
  %v1587 = vpop.permute.xlu0 %1586
  %1589 = vset.pattern.permute.xlu0 3
  %1590 = vperm.xlu0 %1589, %v358
  %v1591 = vpop.permute.xlu0 %1590
  %1593 = vset.pattern.permute.xlu0 3
  %1594 = vperm.xlu0 %1593, %v360
  %v1595 = vpop.permute.xlu0 %1594
  %1597 = vset.pattern.permute.xlu0 3
  %1598 = vperm.xlu0 %1597, %v363
  %v1599 = vpop.permute.xlu0 %1598
  %1601 = vset.pattern.permute.xlu0 3
  %1602 = vperm.xlu0 %1601, %v365
  %v1603 = vpop.permute.xlu0 %1602
  %1605 = vset.pattern.permute.xlu0 3
  %1606 = vperm.xlu0 %1605, %v368
  %v1607 = vpop.permute.xlu0 %1606
  %1609 = vset.pattern.permute.xlu0 3
  %1610 = vperm.xlu0 %1609, %v370
  %v1611 = vpop.permute.xlu0 %1610
  %1613 = vset.pattern.permute.xlu0 3
  %1614 = vperm.xlu0 %1613, %v373
  %v1615 = vpop.permute.xlu0 %1614
  %1617 = vset.pattern.permute.xlu0 3
  %1618 = vperm.xlu0 %1617, %v375
  %v1619 = vpop.permute.xlu0 %1618
  %1621 = vset.pattern.permute.xlu0 3
  %1622 = vperm.xlu0 %1621, %v378
  %v1623 = vpop.permute.xlu0 %1622
  %1625 = vset.pattern.permute.xlu0 3
  %1626 = vperm.xlu0 %1625, %v380
  %v1627 = vpop.permute.xlu0 %1626
  %1629 = vset.pattern.permute.xlu0 3
  %1630 = vperm.xlu0 %1629, %v383
  %v1631 = vpop.permute.xlu0 %1630
  %1633 = vset.pattern.permute.xlu0 3
  %1634 = vperm.xlu0 %1633, %v385
  %v1635 = vpop.permute.xlu0 %1634
  %v1637 = vperm.slane %v467, 3
  %v1638 = vadd.f32 %v1575, %v1637
  %v1639 = vadd.f32 %v1579, %v1637
  %v1640 = vadd.f32 %v1583, %v1637
  %v1641 = vadd.f32 %v1587, %v1637
  %v1642 = vadd.f32 %v1591, %v1637
  %v1643 = vadd.f32 %v1595, %v1637
  %v1644 = vadd.f32 %v1599, %v1637
  %v1645 = vadd.f32 %v1603, %v1637
  %v1646 = vadd.f32 %v1607, %v1637
  %v1647 = vadd.f32 %v1611, %v1637
  %v1648 = vadd.f32 %v1615, %v1637
  %v1649 = vadd.f32 %v1619, %v1637
  %v1650 = vadd.f32 %v1623, %v1637
  %v1651 = vadd.f32 %v1627, %v1637
  %v1652 = vadd.f32 %v1631, %v1637
  %v1653 = vadd.f32 %v1635, %v1637
  %v1654 = vmul.f32 %v1638, 0.2
  %v1655 = vmul.f32 %v1639, 0.2
  %v1656 = vmul.f32 %v1640, 0.2
  %v1657 = vmul.f32 %v1641, 0.2
  %v1658 = vmul.f32 %v1642, 0.2
  %v1659 = vmul.f32 %v1643, 0.2
  %v1660 = vmul.f32 %v1644, 0.2
  %v1661 = vmul.f32 %v1645, 0.2
  %v1662 = vmul.f32 %v1646, 0.2
  %v1663 = vmul.f32 %v1647, 0.2
  %v1664 = vmul.f32 %v1648, 0.2
  %v1665 = vmul.f32 %v1649, 0.2
  %v1666 = vmul.f32 %v1650, 0.2
  %v1667 = vmul.f32 %v1651, 0.2
  %v1668 = vmul.f32 %v1652, 0.2
  %v1669 = vmul.f32 %v1653, 0.2
  %v1670 = vmax.f32 %v1638, %v1654
  %v1671 = vmax.f32 %v1639, %v1655
  %v1672 = vmax.f32 %v1640, %v1656
  %v1673 = vmax.f32 %v1641, %v1657
  %v1674 = vmax.f32 %v1642, %v1658
  %v1675 = vmax.f32 %v1643, %v1659
  %v1676 = vmax.f32 %v1644, %v1660
  %v1677 = vmax.f32 %v1645, %v1661
  %v1678 = vmax.f32 %v1646, %v1662
  %v1679 = vmax.f32 %v1647, %v1663
  %v1680 = vmax.f32 %v1648, %v1664
  %v1681 = vmax.f32 %v1649, %v1665
  %v1682 = vmax.f32 %v1650, %v1666
  %v1683 = vmax.f32 %v1651, %v1667
  %v1684 = vmax.f32 %v1652, %v1668
  %v1685 = vmax.f32 %v1653, %v1669
  %v1686 = vsel %vm628, %v1670, -1e+30
  %v1687 = vsel %vm629, %v1671, -1e+30
  %v1688 = vsel %vm630, %v1672, -1e+30
  %v1689 = vsel %vm631, %v1673, -1e+30
  %v1690 = vsel %vm632, %v1674, -1e+30
  %v1691 = vsel %vm633, %v1675, -1e+30
  %v1692 = vsel %vm634, %v1676, -1e+30
  %v1693 = vsel %vm635, %v1677, -1e+30
  %v1694 = vsel %vm636, %v1678, -1e+30
  %v1695 = vsel %vm637, %v1679, -1e+30
  %v1696 = vsel %vm638, %v1680, -1e+30
  %v1697 = vsel %vm639, %v1681, -1e+30
  %v1698 = vsel %vm640, %v1682, -1e+30
  %v1699 = vsel %vm641, %v1683, -1e+30
  %v1700 = vsel %vm642, %v1684, -1e+30
  %v1701 = vsel %vm643, %v1685, -1e+30
  %1702 = vmax.xlane.f32.xlu0 %v1686
  %v1703 = vpop.xlane.xlu0 %1702
  %1704 = vmax.xlane.f32.xlu0 %v1687
  %v1705 = vpop.xlane.xlu0 %1704
  %1706 = vmax.xlane.f32.xlu0 %v1688
  %v1707 = vpop.xlane.xlu0 %1706
  %1708 = vmax.xlane.f32.xlu0 %v1689
  %v1709 = vpop.xlane.xlu0 %1708
  %1710 = vmax.xlane.f32.xlu0 %v1690
  %v1711 = vpop.xlane.xlu0 %1710
  %1712 = vmax.xlane.f32.xlu0 %v1691
  %v1713 = vpop.xlane.xlu0 %1712
  %1714 = vmax.xlane.f32.xlu0 %v1692
  %v1715 = vpop.xlane.xlu0 %1714
  %1716 = vmax.xlane.f32.xlu0 %v1693
  %v1717 = vpop.xlane.xlu0 %1716
  %1718 = vmax.xlane.f32.xlu0 %v1694
  %v1719 = vpop.xlane.xlu0 %1718
  %1720 = vmax.xlane.f32.xlu0 %v1695
  %v1721 = vpop.xlane.xlu0 %1720
  %1722 = vmax.xlane.f32.xlu0 %v1696
  %v1723 = vpop.xlane.xlu0 %1722
  %1724 = vmax.xlane.f32.xlu0 %v1697
  %v1725 = vpop.xlane.xlu0 %1724
  %1726 = vmax.xlane.f32.xlu0 %v1698
  %v1727 = vpop.xlane.xlu0 %1726
  %1728 = vmax.xlane.f32.xlu0 %v1699
  %v1729 = vpop.xlane.xlu0 %1728
  %1730 = vmax.xlane.f32.xlu0 %v1700
  %v1731 = vpop.xlane.xlu0 %1730
  %1732 = vmax.xlane.f32.xlu0 %v1701
  %v1733 = vpop.xlane.xlu0 %1732
  %v1734 = vsub.f32 %v1686, %v1703
  %v1735 = vsub.f32 %v1687, %v1705
  %v1736 = vsub.f32 %v1688, %v1707
  %v1737 = vsub.f32 %v1689, %v1709
  %v1738 = vsub.f32 %v1690, %v1711
  %v1739 = vsub.f32 %v1691, %v1713
  %v1740 = vsub.f32 %v1692, %v1715
  %v1741 = vsub.f32 %v1693, %v1717
  %v1742 = vsub.f32 %v1694, %v1719
  %v1743 = vsub.f32 %v1695, %v1721
  %v1744 = vsub.f32 %v1696, %v1723
  %v1745 = vsub.f32 %v1697, %v1725
  %v1746 = vsub.f32 %v1698, %v1727
  %v1747 = vsub.f32 %v1699, %v1729
  %v1748 = vsub.f32 %v1700, %v1731
  %v1749 = vsub.f32 %v1701, %v1733
  %v1750 = vmul.f32 %v1734, 1.442695
  %v1751 = vpow.pop %v1750
  %v1752 = vmul.f32 %v1735, 1.442695
  %v1753 = vpow.pop %v1752
  %v1754 = vmul.f32 %v1736, 1.442695
  %v1755 = vpow.pop %v1754
  %v1756 = vmul.f32 %v1737, 1.442695
  %v1757 = vpow.pop %v1756
  %v1758 = vmul.f32 %v1738, 1.442695
  %v1759 = vpow.pop %v1758
  %v1760 = vmul.f32 %v1739, 1.442695
  %v1761 = vpow.pop %v1760
  %v1762 = vmul.f32 %v1740, 1.442695
  %v1763 = vpow.pop %v1762
  %v1764 = vmul.f32 %v1741, 1.442695
  %v1765 = vpow.pop %v1764
  %v1766 = vmul.f32 %v1742, 1.442695
  %v1767 = vpow.pop %v1766
  %v1768 = vmul.f32 %v1743, 1.442695
  %v1769 = vpow.pop %v1768
  %v1770 = vmul.f32 %v1744, 1.442695
  %v1771 = vpow.pop %v1770
  %v1772 = vmul.f32 %v1745, 1.442695
  %v1773 = vpow.pop %v1772
  %v1774 = vmul.f32 %v1746, 1.442695
  %v1775 = vpow.pop %v1774
  %v1776 = vmul.f32 %v1747, 1.442695
  %v1777 = vpow.pop %v1776
  %v1778 = vmul.f32 %v1748, 1.442695
  %v1779 = vpow.pop %v1778
  %v1780 = vmul.f32 %v1749, 1.442695
  %v1781 = vpow.pop %v1780
  %v1782 = vperm.slane %v1100, 1
  %v1783 = vunpack.c.l.bf16 %v1782
  %v1784 = vmul.f32 %v744, %v1783
  %v1785 = vmul.f32 %v745, %v1783
  %v1786 = vmul.f32 %v746, %v1783
  %v1787 = vmul.f32 %v747, %v1783
  %v1788 = vmul.f32 %v748, %v1783
  %v1789 = vmul.f32 %v749, %v1783
  %v1790 = vmul.f32 %v750, %v1783
  %v1791 = vmul.f32 %v751, %v1783
  %v1792 = vmul.f32 %v752, %v1783
  %v1793 = vmul.f32 %v753, %v1783
  %v1794 = vmul.f32 %v754, %v1783
  %v1795 = vmul.f32 %v755, %v1783
  %v1796 = vmul.f32 %v756, %v1783
  %v1797 = vmul.f32 %v757, %v1783
  %v1798 = vmul.f32 %v758, %v1783
  %v1799 = vmul.f32 %v759, %v1783
  %v1800 = vpack.c.bf16 %v1785, %v1784
  %v1801 = vpack.c.bf16 %v1787, %v1786
  %v1802 = vpack.c.bf16 %v1789, %v1788
  %v1803 = vpack.c.bf16 %v1791, %v1790
  %v1804 = vpack.c.bf16 %v1793, %v1792
  %v1805 = vpack.c.bf16 %v1795, %v1794
  %v1806 = vpack.c.bf16 %v1797, %v1796
  %v1807 = vpack.c.bf16 %v1799, %v1798
  %v1808 = vld [vmem:[#allocation3] sm:$0xff]
  %v1809 = vld [vmem:[#allocation3 + $0x8] sm:$0xff]
  %v1810 = vld [vmem:[#allocation3 + $0x10] sm:$0xff]
  %v1811 = vld [vmem:[#allocation3 + $0x18] sm:$0xff]
  %v1812 = vld [vmem:[#allocation3 + $0x20] sm:$0xff]
  %v1813 = vld [vmem:[#allocation3 + $0x28] sm:$0xff]
  %v1814 = vld [vmem:[#allocation3 + $0x30] sm:$0xff]
  %v1815 = vld [vmem:[#allocation3 + $0x38] sm:$0xff]
  %v1816 = vld [vmem:[#allocation3 + $0x40] sm:$0xff]
  %v1817 = vld [vmem:[#allocation3 + $0x48] sm:$0xff]
  %v1818 = vld [vmem:[#allocation3 + $0x50] sm:$0xff]
  %v1819 = vld [vmem:[#allocation3 + $0x58] sm:$0xff]
  %v1820 = vld [vmem:[#allocation3 + $0x60] sm:$0xff]
  %v1821 = vld [vmem:[#allocation3 + $0x68] sm:$0xff]
  %v1822 = vld [vmem:[#allocation3 + $0x70] sm:$0xff]
  %v1823 = vld [vmem:[#allocation3 + $0x78] sm:$0xff]
  %v1824 = vpack.c.bf16 %v1753, %v1751
  %v1825 = vpack.c.bf16 %v1757, %v1755
  %v1826 = vpack.c.bf16 %v1761, %v1759
  %v1827 = vpack.c.bf16 %v1765, %v1763
  %v1828 = vpack.c.bf16 %v1769, %v1767
  %v1829 = vpack.c.bf16 %v1773, %v1771
  %v1830 = vpack.c.bf16 %v1777, %v1775
  %v1831 = vpack.c.bf16 %v1781, %v1779
  %1832 = vmatpush.bf16.msra.mxu0 %v1807
  %1833 = vmatpush.bf16.msra.mxu0 %v1806
  %1834 = vmatpush.bf16.msra.mxu0 %v1805
  %1835 = vmatpush.bf16.msra.mxu0 %v1804
  %1836 = vmatpush.bf16.msra.mxu0 %v1803
  %1837 = vmatpush.bf16.msra.mxu0 %v1802
  %1838 = vmatpush.bf16.msra.mxu0 %v1801
  %1839 = vmatpush.bf16.msra.mxu0 %v1800
  %1840 = vmatmul.bf16.gmra.mxu0 %v1824
  %v1841 = vpop.f32.mrf.mxu0
  %v1842 = vadd.f32 0.0, %v1841
  %v1843 = vpop.f32.mrf.mxu0
  %v1844 = vadd.f32 0.0, %v1843
  %1845 = vmatmul.bf16.gmra.mxu0 %v1825
  %v1846 = vpop.f32.mrf.mxu0
  %v1847 = vadd.f32 0.0, %v1846
  %v1848 = vpop.f32.mrf.mxu0
  %v1849 = vadd.f32 0.0, %v1848
  %1850 = vmatmul.bf16.gmra.mxu0 %v1826
  %v1851 = vpop.f32.mrf.mxu0
  %v1852 = vadd.f32 0.0, %v1851
  %v1853 = vpop.f32.mrf.mxu0
  %v1854 = vadd.f32 0.0, %v1853
  %1855 = vmatmul.bf16.gmra.mxu0 %v1827
  %v1856 = vpop.f32.mrf.mxu0
  %v1857 = vadd.f32 0.0, %v1856
  %v1858 = vpop.f32.mrf.mxu0
  %v1859 = vadd.f32 0.0, %v1858
  %1860 = vmatmul.bf16.gmra.mxu0 %v1828
  %v1861 = vpop.f32.mrf.mxu0
  %v1862 = vadd.f32 0.0, %v1861
  %v1863 = vpop.f32.mrf.mxu0
  %v1864 = vadd.f32 0.0, %v1863
  %1865 = vmatmul.bf16.gmra.mxu0 %v1829
  %v1866 = vpop.f32.mrf.mxu0
  %v1867 = vadd.f32 0.0, %v1866
  %v1868 = vpop.f32.mrf.mxu0
  %v1869 = vadd.f32 0.0, %v1868
  %1870 = vmatmul.bf16.gmra.mxu0 %v1830
  %v1871 = vpop.f32.mrf.mxu0
  %v1872 = vadd.f32 0.0, %v1871
  %v1873 = vpop.f32.mrf.mxu0
  %v1874 = vadd.f32 0.0, %v1873
  %1875 = vmatmul.bf16.gmra.mxu0 %v1831
  %v1876 = vpop.f32.mrf.mxu0
  %v1877 = vadd.f32 0.0, %v1876
  %v1878 = vpop.f32.mrf.mxu0
  %v1879 = vadd.f32 0.0, %v1878
  %1880 = vdwg.mxu0
  %v1881 = vadd.f32 %v1808, %v1842
  %v1882 = vadd.f32 %v1809, %v1844
  %v1883 = vadd.f32 %v1810, %v1847
  %v1884 = vadd.f32 %v1811, %v1849
  %v1885 = vadd.f32 %v1812, %v1852
  %v1886 = vadd.f32 %v1813, %v1854
  %v1887 = vadd.f32 %v1814, %v1857
  %v1888 = vadd.f32 %v1815, %v1859
  %v1889 = vadd.f32 %v1816, %v1862
  %v1890 = vadd.f32 %v1817, %v1864
  %v1891 = vadd.f32 %v1818, %v1867
  %v1892 = vadd.f32 %v1819, %v1869
  %v1893 = vadd.f32 %v1820, %v1872
  %v1894 = vadd.f32 %v1821, %v1874
  %v1895 = vadd.f32 %v1822, %v1877
  %v1896 = vadd.f32 %v1823, %v1879
  %1897 = vst [vmem:[#allocation3] sm:$0xff] %v1881
  %1898 = vst [vmem:[#allocation3 + $0x8] sm:$0xff] %v1882
  %1899 = vst [vmem:[#allocation3 + $0x10] sm:$0xff] %v1883
  %1900 = vst [vmem:[#allocation3 + $0x18] sm:$0xff] %v1884
  %1901 = vst [vmem:[#allocation3 + $0x20] sm:$0xff] %v1885
  %1902 = vst [vmem:[#allocation3 + $0x28] sm:$0xff] %v1886
  %1903 = vst [vmem:[#allocation3 + $0x30] sm:$0xff] %v1887
  %1904 = vst [vmem:[#allocation3 + $0x38] sm:$0xff] %v1888
  %1905 = vst [vmem:[#allocation3 + $0x40] sm:$0xff] %v1889
  %1906 = vst [vmem:[#allocation3 + $0x48] sm:$0xff] %v1890
  %1907 = vst [vmem:[#allocation3 + $0x50] sm:$0xff] %v1891
  %1908 = vst [vmem:[#allocation3 + $0x58] sm:$0xff] %v1892
  %1909 = vst [vmem:[#allocation3 + $0x60] sm:$0xff] %v1893
  %1910 = vst [vmem:[#allocation3 + $0x68] sm:$0xff] %v1894
  %1911 = vst [vmem:[#allocation3 + $0x70] sm:$0xff] %v1895
  %1912 = vst [vmem:[#allocation3 + $0x78] sm:$0xff] %v1896
  %1913 = vset.pattern.permute.xlu0 4
  %1914 = vperm.xlu0 %1913, %v348
  %v1915 = vpop.permute.xlu0 %1914
  %1917 = vset.pattern.permute.xlu0 4
  %1918 = vperm.xlu0 %1917, %v350
  %v1919 = vpop.permute.xlu0 %1918
  %1921 = vset.pattern.permute.xlu0 4
  %1922 = vperm.xlu0 %1921, %v353
  %v1923 = vpop.permute.xlu0 %1922
  %1925 = vset.pattern.permute.xlu0 4
  %1926 = vperm.xlu0 %1925, %v355
  %v1927 = vpop.permute.xlu0 %1926
  %1929 = vset.pattern.permute.xlu0 4
  %1930 = vperm.xlu0 %1929, %v358
  %v1931 = vpop.permute.xlu0 %1930
  %1933 = vset.pattern.permute.xlu0 4
  %1934 = vperm.xlu0 %1933, %v360
  %v1935 = vpop.permute.xlu0 %1934
  %1937 = vset.pattern.permute.xlu0 4
  %1938 = vperm.xlu0 %1937, %v363
  %v1939 = vpop.permute.xlu0 %1938
  %1941 = vset.pattern.permute.xlu0 4
  %1942 = vperm.xlu0 %1941, %v365
  %v1943 = vpop.permute.xlu0 %1942
  %1945 = vset.pattern.permute.xlu0 4
  %1946 = vperm.xlu0 %1945, %v368
  %v1947 = vpop.permute.xlu0 %1946
  %1949 = vset.pattern.permute.xlu0 4
  %1950 = vperm.xlu0 %1949, %v370
  %v1951 = vpop.permute.xlu0 %1950
  %1953 = vset.pattern.permute.xlu0 4
  %1954 = vperm.xlu0 %1953, %v373
  %v1955 = vpop.permute.xlu0 %1954
  %1957 = vset.pattern.permute.xlu0 4
  %1958 = vperm.xlu0 %1957, %v375
  %v1959 = vpop.permute.xlu0 %1958
  %1961 = vset.pattern.permute.xlu0 4
  %1962 = vperm.xlu0 %1961, %v378
  %v1963 = vpop.permute.xlu0 %1962
  %1965 = vset.pattern.permute.xlu0 4
  %1966 = vperm.xlu0 %1965, %v380
  %v1967 = vpop.permute.xlu0 %1966
  %1969 = vset.pattern.permute.xlu0 4
  %1970 = vperm.xlu0 %1969, %v383
  %v1971 = vpop.permute.xlu0 %1970
  %1973 = vset.pattern.permute.xlu0 4
  %1974 = vperm.xlu0 %1973, %v385
  %v1975 = vpop.permute.xlu0 %1974
  %v1977 = vperm.slane %v467, 4
  %v1978 = vadd.f32 %v1915, %v1977
  %v1979 = vadd.f32 %v1919, %v1977
  %v1980 = vadd.f32 %v1923, %v1977
  %v1981 = vadd.f32 %v1927, %v1977
  %v1982 = vadd.f32 %v1931, %v1977
  %v1983 = vadd.f32 %v1935, %v1977
  %v1984 = vadd.f32 %v1939, %v1977
  %v1985 = vadd.f32 %v1943, %v1977
  %v1986 = vadd.f32 %v1947, %v1977
  %v1987 = vadd.f32 %v1951, %v1977
  %v1988 = vadd.f32 %v1955, %v1977
  %v1989 = vadd.f32 %v1959, %v1977
  %v1990 = vadd.f32 %v1963, %v1977
  %v1991 = vadd.f32 %v1967, %v1977
  %v1992 = vadd.f32 %v1971, %v1977
  %v1993 = vadd.f32 %v1975, %v1977
  %v1994 = vmul.f32 %v1978, 0.2
  %v1995 = vmul.f32 %v1979, 0.2
  %v1996 = vmul.f32 %v1980, 0.2
  %v1997 = vmul.f32 %v1981, 0.2
  %v1998 = vmul.f32 %v1982, 0.2
  %v1999 = vmul.f32 %v1983, 0.2
  %v2000 = vmul.f32 %v1984, 0.2
  %v2001 = vmul.f32 %v1985, 0.2
  %v2002 = vmul.f32 %v1986, 0.2
  %v2003 = vmul.f32 %v1987, 0.2
  %v2004 = vmul.f32 %v1988, 0.2
  %v2005 = vmul.f32 %v1989, 0.2
  %v2006 = vmul.f32 %v1990, 0.2
  %v2007 = vmul.f32 %v1991, 0.2
  %v2008 = vmul.f32 %v1992, 0.2
  %v2009 = vmul.f32 %v1993, 0.2
  %v2010 = vmax.f32 %v1978, %v1994
  %v2011 = vmax.f32 %v1979, %v1995
  %v2012 = vmax.f32 %v1980, %v1996
  %v2013 = vmax.f32 %v1981, %v1997
  %v2014 = vmax.f32 %v1982, %v1998
  %v2015 = vmax.f32 %v1983, %v1999
  %v2016 = vmax.f32 %v1984, %v2000
  %v2017 = vmax.f32 %v1985, %v2001
  %v2018 = vmax.f32 %v1986, %v2002
  %v2019 = vmax.f32 %v1987, %v2003
  %v2020 = vmax.f32 %v1988, %v2004
  %v2021 = vmax.f32 %v1989, %v2005
  %v2022 = vmax.f32 %v1990, %v2006
  %v2023 = vmax.f32 %v1991, %v2007
  %v2024 = vmax.f32 %v1992, %v2008
  %v2025 = vmax.f32 %v1993, %v2009
  %v2026 = vsel %vm628, %v2010, -1e+30
  %v2027 = vsel %vm629, %v2011, -1e+30
  %v2028 = vsel %vm630, %v2012, -1e+30
  %v2029 = vsel %vm631, %v2013, -1e+30
  %v2030 = vsel %vm632, %v2014, -1e+30
  %v2031 = vsel %vm633, %v2015, -1e+30
  %v2032 = vsel %vm634, %v2016, -1e+30
  %v2033 = vsel %vm635, %v2017, -1e+30
  %v2034 = vsel %vm636, %v2018, -1e+30
  %v2035 = vsel %vm637, %v2019, -1e+30
  %v2036 = vsel %vm638, %v2020, -1e+30
  %v2037 = vsel %vm639, %v2021, -1e+30
  %v2038 = vsel %vm640, %v2022, -1e+30
  %v2039 = vsel %vm641, %v2023, -1e+30
  %v2040 = vsel %vm642, %v2024, -1e+30
  %v2041 = vsel %vm643, %v2025, -1e+30
  %2042 = vmax.xlane.f32.xlu0 %v2026
  %v2043 = vpop.xlane.xlu0 %2042
  %2044 = vmax.xlane.f32.xlu0 %v2027
  %v2045 = vpop.xlane.xlu0 %2044
  %2046 = vmax.xlane.f32.xlu0 %v2028
  %v2047 = vpop.xlane.xlu0 %2046
  %2048 = vmax.xlane.f32.xlu0 %v2029
  %v2049 = vpop.xlane.xlu0 %2048
  %2050 = vmax.xlane.f32.xlu0 %v2030
  %v2051 = vpop.xlane.xlu0 %2050
  %2052 = vmax.xlane.f32.xlu0 %v2031
  %v2053 = vpop.xlane.xlu0 %2052
  %2054 = vmax.xlane.f32.xlu0 %v2032
  %v2055 = vpop.xlane.xlu0 %2054
  %2056 = vmax.xlane.f32.xlu0 %v2033
  %v2057 = vpop.xlane.xlu0 %2056
  %2058 = vmax.xlane.f32.xlu0 %v2034
  %v2059 = vpop.xlane.xlu0 %2058
  %2060 = vmax.xlane.f32.xlu0 %v2035
  %v2061 = vpop.xlane.xlu0 %2060
  %2062 = vmax.xlane.f32.xlu0 %v2036
  %v2063 = vpop.xlane.xlu0 %2062
  %2064 = vmax.xlane.f32.xlu0 %v2037
  %v2065 = vpop.xlane.xlu0 %2064
  %2066 = vmax.xlane.f32.xlu0 %v2038
  %v2067 = vpop.xlane.xlu0 %2066
  %2068 = vmax.xlane.f32.xlu0 %v2039
  %v2069 = vpop.xlane.xlu0 %2068
  %2070 = vmax.xlane.f32.xlu0 %v2040
  %v2071 = vpop.xlane.xlu0 %2070
  %2072 = vmax.xlane.f32.xlu0 %v2041
  %v2073 = vpop.xlane.xlu0 %2072
  %v2074 = vsub.f32 %v2026, %v2043
  %v2075 = vsub.f32 %v2027, %v2045
  %v2076 = vsub.f32 %v2028, %v2047
  %v2077 = vsub.f32 %v2029, %v2049
  %v2078 = vsub.f32 %v2030, %v2051
  %v2079 = vsub.f32 %v2031, %v2053
  %v2080 = vsub.f32 %v2032, %v2055
  %v2081 = vsub.f32 %v2033, %v2057
  %v2082 = vsub.f32 %v2034, %v2059
  %v2083 = vsub.f32 %v2035, %v2061
  %v2084 = vsub.f32 %v2036, %v2063
  %v2085 = vsub.f32 %v2037, %v2065
  %v2086 = vsub.f32 %v2038, %v2067
  %v2087 = vsub.f32 %v2039, %v2069
  %v2088 = vsub.f32 %v2040, %v2071
  %v2089 = vsub.f32 %v2041, %v2073
  %v2090 = vmul.f32 %v2074, 1.442695
  %v2091 = vpow.pop %v2090
  %v2092 = vmul.f32 %v2075, 1.442695
  %v2093 = vpow.pop %v2092
  %v2094 = vmul.f32 %v2076, 1.442695
  %v2095 = vpow.pop %v2094
  %v2096 = vmul.f32 %v2077, 1.442695
  %v2097 = vpow.pop %v2096
  %v2098 = vmul.f32 %v2078, 1.442695
  %v2099 = vpow.pop %v2098
  %v2100 = vmul.f32 %v2079, 1.442695
  %v2101 = vpow.pop %v2100
  %v2102 = vmul.f32 %v2080, 1.442695
  %v2103 = vpow.pop %v2102
  %v2104 = vmul.f32 %v2081, 1.442695
  %v2105 = vpow.pop %v2104
  %v2106 = vmul.f32 %v2082, 1.442695
  %v2107 = vpow.pop %v2106
  %v2108 = vmul.f32 %v2083, 1.442695
  %v2109 = vpow.pop %v2108
  %v2110 = vmul.f32 %v2084, 1.442695
  %v2111 = vpow.pop %v2110
  %v2112 = vmul.f32 %v2085, 1.442695
  %v2113 = vpow.pop %v2112
  %v2114 = vmul.f32 %v2086, 1.442695
  %v2115 = vpow.pop %v2114
  %v2116 = vmul.f32 %v2087, 1.442695
  %v2117 = vpow.pop %v2116
  %v2118 = vmul.f32 %v2088, 1.442695
  %v2119 = vpow.pop %v2118
  %v2120 = vmul.f32 %v2089, 1.442695
  %v2121 = vpow.pop %v2120
  %v2122 = vperm.slane %v741, 2
  %v2123 = vunpack.c.l.bf16 %v2122
  %v2124 = vmul.f32 %v744, %v2123
  %v2125 = vmul.f32 %v745, %v2123
  %v2126 = vmul.f32 %v746, %v2123
  %v2127 = vmul.f32 %v747, %v2123
  %v2128 = vmul.f32 %v748, %v2123
  %v2129 = vmul.f32 %v749, %v2123
  %v2130 = vmul.f32 %v750, %v2123
  %v2131 = vmul.f32 %v751, %v2123
  %v2132 = vmul.f32 %v752, %v2123
  %v2133 = vmul.f32 %v753, %v2123
  %v2134 = vmul.f32 %v754, %v2123
  %v2135 = vmul.f32 %v755, %v2123
  %v2136 = vmul.f32 %v756, %v2123
  %v2137 = vmul.f32 %v757, %v2123
  %v2138 = vmul.f32 %v758, %v2123
  %v2139 = vmul.f32 %v759, %v2123
  %v2140 = vpack.c.bf16 %v2125, %v2124
  %v2141 = vpack.c.bf16 %v2127, %v2126
  %v2142 = vpack.c.bf16 %v2129, %v2128
  %v2143 = vpack.c.bf16 %v2131, %v2130
  %v2144 = vpack.c.bf16 %v2133, %v2132
  %v2145 = vpack.c.bf16 %v2135, %v2134
  %v2146 = vpack.c.bf16 %v2137, %v2136
  %v2147 = vpack.c.bf16 %v2139, %v2138
  %v2148 = vld [vmem:[#allocation3] sm:$0xff]
  %v2149 = vld [vmem:[#allocation3 + $0x8] sm:$0xff]
  %v2150 = vld [vmem:[#allocation3 + $0x10] sm:$0xff]
  %v2151 = vld [vmem:[#allocation3 + $0x18] sm:$0xff]
  %v2152 = vld [vmem:[#allocation3 + $0x20] sm:$0xff]
  %v2153 = vld [vmem:[#allocation3 + $0x28] sm:$0xff]
  %v2154 = vld [vmem:[#allocation3 + $0x30] sm:$0xff]
  %v2155 = vld [vmem:[#allocation3 + $0x38] sm:$0xff]
  %v2156 = vld [vmem:[#allocation3 + $0x40] sm:$0xff]
  %v2157 = vld [vmem:[#allocation3 + $0x48] sm:$0xff]
  %v2158 = vld [vmem:[#allocation3 + $0x50] sm:$0xff]
  %v2159 = vld [vmem:[#allocation3 + $0x58] sm:$0xff]
  %v2160 = vld [vmem:[#allocation3 + $0x60] sm:$0xff]
  %v2161 = vld [vmem:[#allocation3 + $0x68] sm:$0xff]
  %v2162 = vld [vmem:[#allocation3 + $0x70] sm:$0xff]
  %v2163 = vld [vmem:[#allocation3 + $0x78] sm:$0xff]
  %v2164 = vpack.c.bf16 %v2093, %v2091
  %v2165 = vpack.c.bf16 %v2097, %v2095
  %v2166 = vpack.c.bf16 %v2101, %v2099
  %v2167 = vpack.c.bf16 %v2105, %v2103
  %v2168 = vpack.c.bf16 %v2109, %v2107
  %v2169 = vpack.c.bf16 %v2113, %v2111
  %v2170 = vpack.c.bf16 %v2117, %v2115
  %v2171 = vpack.c.bf16 %v2121, %v2119
  %2172 = vmatpush.bf16.msra.mxu0 %v2147
  %2173 = vmatpush.bf16.msra.mxu0 %v2146
  %2174 = vmatpush.bf16.msra.mxu0 %v2145
  %2175 = vmatpush.bf16.msra.mxu0 %v2144
  %2176 = vmatpush.bf16.msra.mxu0 %v2143
  %2177 = vmatpush.bf16.msra.mxu0 %v2142
  %2178 = vmatpush.bf16.msra.mxu0 %v2141
  %2179 = vmatpush.bf16.msra.mxu0 %v2140
  %2180 = vmatmul.bf16.gmra.mxu0 %v2164
  %v2181 = vpop.f32.mrf.mxu0
  %v2182 = vadd.f32 0.0, %v2181
  %v2183 = vpop.f32.mrf.mxu0
  %v2184 = vadd.f32 0.0, %v2183
  %2185 = vmatmul.bf16.gmra.mxu0 %v2165
  %v2186 = vpop.f32.mrf.mxu0
  %v2187 = vadd.f32 0.0, %v2186
  %v2188 = vpop.f32.mrf.mxu0
  %v2189 = vadd.f32 0.0, %v2188
  %2190 = vmatmul.bf16.gmra.mxu0 %v2166
  %v2191 = vpop.f32.mrf.mxu0
  %v2192 = vadd.f32 0.0, %v2191
  %v2193 = vpop.f32.mrf.mxu0
  %v2194 = vadd.f32 0.0, %v2193
  %2195 = vmatmul.bf16.gmra.mxu0 %v2167
  %v2196 = vpop.f32.mrf.mxu0
  %v2197 = vadd.f32 0.0, %v2196
  %v2198 = vpop.f32.mrf.mxu0
  %v2199 = vadd.f32 0.0, %v2198
  %2200 = vmatmul.bf16.gmra.mxu0 %v2168
  %v2201 = vpop.f32.mrf.mxu0
  %v2202 = vadd.f32 0.0, %v2201
  %v2203 = vpop.f32.mrf.mxu0
  %v2204 = vadd.f32 0.0, %v2203
  %2205 = vmatmul.bf16.gmra.mxu0 %v2169
  %v2206 = vpop.f32.mrf.mxu0
  %v2207 = vadd.f32 0.0, %v2206
  %v2208 = vpop.f32.mrf.mxu0
  %v2209 = vadd.f32 0.0, %v2208
  %2210 = vmatmul.bf16.gmra.mxu0 %v2170
  %v2211 = vpop.f32.mrf.mxu0
  %v2212 = vadd.f32 0.0, %v2211
  %v2213 = vpop.f32.mrf.mxu0
  %v2214 = vadd.f32 0.0, %v2213
  %2215 = vmatmul.bf16.gmra.mxu0 %v2171
  %v2216 = vpop.f32.mrf.mxu0
  %v2217 = vadd.f32 0.0, %v2216
  %v2218 = vpop.f32.mrf.mxu0
  %v2219 = vadd.f32 0.0, %v2218
  %2220 = vdwg.mxu0
  %v2221 = vadd.f32 %v2148, %v2182
  %v2222 = vadd.f32 %v2149, %v2184
  %v2223 = vadd.f32 %v2150, %v2187
  %v2224 = vadd.f32 %v2151, %v2189
  %v2225 = vadd.f32 %v2152, %v2192
  %v2226 = vadd.f32 %v2153, %v2194
  %v2227 = vadd.f32 %v2154, %v2197
  %v2228 = vadd.f32 %v2155, %v2199
  %v2229 = vadd.f32 %v2156, %v2202
  %v2230 = vadd.f32 %v2157, %v2204
  %v2231 = vadd.f32 %v2158, %v2207
  %v2232 = vadd.f32 %v2159, %v2209
  %v2233 = vadd.f32 %v2160, %v2212
  %v2234 = vadd.f32 %v2161, %v2214
  %v2235 = vadd.f32 %v2162, %v2217
  %v2236 = vadd.f32 %v2163, %v2219
  %2237 = vst [vmem:[#allocation3] sm:$0xff] %v2221
  %2238 = vst [vmem:[#allocation3 + $0x8] sm:$0xff] %v2222
  %2239 = vst [vmem:[#allocation3 + $0x10] sm:$0xff] %v2223
  %2240 = vst [vmem:[#allocation3 + $0x18] sm:$0xff] %v2224
  %2241 = vst [vmem:[#allocation3 + $0x20] sm:$0xff] %v2225
  %2242 = vst [vmem:[#allocation3 + $0x28] sm:$0xff] %v2226
  %2243 = vst [vmem:[#allocation3 + $0x30] sm:$0xff] %v2227
  %2244 = vst [vmem:[#allocation3 + $0x38] sm:$0xff] %v2228
  %2245 = vst [vmem:[#allocation3 + $0x40] sm:$0xff] %v2229
  %2246 = vst [vmem:[#allocation3 + $0x48] sm:$0xff] %v2230
  %2247 = vst [vmem:[#allocation3 + $0x50] sm:$0xff] %v2231
  %2248 = vst [vmem:[#allocation3 + $0x58] sm:$0xff] %v2232
  %2249 = vst [vmem:[#allocation3 + $0x60] sm:$0xff] %v2233
  %2250 = vst [vmem:[#allocation3 + $0x68] sm:$0xff] %v2234
  %2251 = vst [vmem:[#allocation3 + $0x70] sm:$0xff] %v2235
  %2252 = vst [vmem:[#allocation3 + $0x78] sm:$0xff] %v2236
  %2253 = vset.pattern.permute.xlu0 5
  %2254 = vperm.xlu0 %2253, %v348
  %v2255 = vpop.permute.xlu0 %2254
  %2257 = vset.pattern.permute.xlu0 5
  %2258 = vperm.xlu0 %2257, %v350
  %v2259 = vpop.permute.xlu0 %2258
  %2261 = vset.pattern.permute.xlu0 5
  %2262 = vperm.xlu0 %2261, %v353
  %v2263 = vpop.permute.xlu0 %2262
  %2265 = vset.pattern.permute.xlu0 5
  %2266 = vperm.xlu0 %2265, %v355
  %v2267 = vpop.permute.xlu0 %2266
  %2269 = vset.pattern.permute.xlu0 5
  %2270 = vperm.xlu0 %2269, %v358
  %v2271 = vpop.permute.xlu0 %2270
  %2273 = vset.pattern.permute.xlu0 5
  %2274 = vperm.xlu0 %2273, %v360
  %v2275 = vpop.permute.xlu0 %2274
  %2277 = vset.pattern.permute.xlu0 5
  %2278 = vperm.xlu0 %2277, %v363
  %v2279 = vpop.permute.xlu0 %2278
  %2281 = vset.pattern.permute.xlu0 5
  %2282 = vperm.xlu0 %2281, %v365
  %v2283 = vpop.permute.xlu0 %2282
  %2285 = vset.pattern.permute.xlu0 5
  %2286 = vperm.xlu0 %2285, %v368
  %v2287 = vpop.permute.xlu0 %2286
  %2289 = vset.pattern.permute.xlu0 5
  %2290 = vperm.xlu0 %2289, %v370
  %v2291 = vpop.permute.xlu0 %2290
  %2293 = vset.pattern.permute.xlu0 5
  %2294 = vperm.xlu0 %2293, %v373
  %v2295 = vpop.permute.xlu0 %2294
  %2297 = vset.pattern.permute.xlu0 5
  %2298 = vperm.xlu0 %2297, %v375
  %v2299 = vpop.permute.xlu0 %2298
  %2301 = vset.pattern.permute.xlu0 5
  %2302 = vperm.xlu0 %2301, %v378
  %v2303 = vpop.permute.xlu0 %2302
  %2305 = vset.pattern.permute.xlu0 5
  %2306 = vperm.xlu0 %2305, %v380
  %v2307 = vpop.permute.xlu0 %2306
  %2309 = vset.pattern.permute.xlu0 5
  %2310 = vperm.xlu0 %2309, %v383
  %v2311 = vpop.permute.xlu0 %2310
  %2313 = vset.pattern.permute.xlu0 5
  %2314 = vperm.xlu0 %2313, %v385
  %v2315 = vpop.permute.xlu0 %2314
  %v2317 = vperm.slane %v467, 5
  %v2318 = vadd.f32 %v2255, %v2317
  %v2319 = vadd.f32 %v2259, %v2317
  %v2320 = vadd.f32 %v2263, %v2317
  %v2321 = vadd.f32 %v2267, %v2317
  %v2322 = vadd.f32 %v2271, %v2317
  %v2323 = vadd.f32 %v2275, %v2317
  %v2324 = vadd.f32 %v2279, %v2317
  %v2325 = vadd.f32 %v2283, %v2317
  %v2326 = vadd.f32 %v2287, %v2317
  %v2327 = vadd.f32 %v2291, %v2317
  %v2328 = vadd.f32 %v2295, %v2317
  %v2329 = vadd.f32 %v2299, %v2317
  %v2330 = vadd.f32 %v2303, %v2317
  %v2331 = vadd.f32 %v2307, %v2317
  %v2332 = vadd.f32 %v2311, %v2317
  %v2333 = vadd.f32 %v2315, %v2317
  %v2334 = vmul.f32 %v2318, 0.2
  %v2335 = vmul.f32 %v2319, 0.2
  %v2336 = vmul.f32 %v2320, 0.2
  %v2337 = vmul.f32 %v2321, 0.2
  %v2338 = vmul.f32 %v2322, 0.2
  %v2339 = vmul.f32 %v2323, 0.2
  %v2340 = vmul.f32 %v2324, 0.2
  %v2341 = vmul.f32 %v2325, 0.2
  %v2342 = vmul.f32 %v2326, 0.2
  %v2343 = vmul.f32 %v2327, 0.2
  %v2344 = vmul.f32 %v2328, 0.2
  %v2345 = vmul.f32 %v2329, 0.2
  %v2346 = vmul.f32 %v2330, 0.2
  %v2347 = vmul.f32 %v2331, 0.2
  %v2348 = vmul.f32 %v2332, 0.2
  %v2349 = vmul.f32 %v2333, 0.2
  %v2350 = vmax.f32 %v2318, %v2334
  %v2351 = vmax.f32 %v2319, %v2335
  %v2352 = vmax.f32 %v2320, %v2336
  %v2353 = vmax.f32 %v2321, %v2337
  %v2354 = vmax.f32 %v2322, %v2338
  %v2355 = vmax.f32 %v2323, %v2339
  %v2356 = vmax.f32 %v2324, %v2340
  %v2357 = vmax.f32 %v2325, %v2341
  %v2358 = vmax.f32 %v2326, %v2342
  %v2359 = vmax.f32 %v2327, %v2343
  %v2360 = vmax.f32 %v2328, %v2344
  %v2361 = vmax.f32 %v2329, %v2345
  %v2362 = vmax.f32 %v2330, %v2346
  %v2363 = vmax.f32 %v2331, %v2347
  %v2364 = vmax.f32 %v2332, %v2348
  %v2365 = vmax.f32 %v2333, %v2349
  %v2366 = vsel %vm628, %v2350, -1e+30
  %v2367 = vsel %vm629, %v2351, -1e+30
  %v2368 = vsel %vm630, %v2352, -1e+30
  %v2369 = vsel %vm631, %v2353, -1e+30
  %v2370 = vsel %vm632, %v2354, -1e+30
  %v2371 = vsel %vm633, %v2355, -1e+30
  %v2372 = vsel %vm634, %v2356, -1e+30
  %v2373 = vsel %vm635, %v2357, -1e+30
  %v2374 = vsel %vm636, %v2358, -1e+30
  %v2375 = vsel %vm637, %v2359, -1e+30
  %v2376 = vsel %vm638, %v2360, -1e+30
  %v2377 = vsel %vm639, %v2361, -1e+30
  %v2378 = vsel %vm640, %v2362, -1e+30
  %v2379 = vsel %vm641, %v2363, -1e+30
  %v2380 = vsel %vm642, %v2364, -1e+30
  %v2381 = vsel %vm643, %v2365, -1e+30
  %2382 = vmax.xlane.f32.xlu0 %v2366
  %v2383 = vpop.xlane.xlu0 %2382
  %2384 = vmax.xlane.f32.xlu0 %v2367
  %v2385 = vpop.xlane.xlu0 %2384
  %2386 = vmax.xlane.f32.xlu0 %v2368
  %v2387 = vpop.xlane.xlu0 %2386
  %2388 = vmax.xlane.f32.xlu0 %v2369
  %v2389 = vpop.xlane.xlu0 %2388
  %2390 = vmax.xlane.f32.xlu0 %v2370
  %v2391 = vpop.xlane.xlu0 %2390
  %2392 = vmax.xlane.f32.xlu0 %v2371
  %v2393 = vpop.xlane.xlu0 %2392
  %2394 = vmax.xlane.f32.xlu0 %v2372
  %v2395 = vpop.xlane.xlu0 %2394
  %2396 = vmax.xlane.f32.xlu0 %v2373
  %v2397 = vpop.xlane.xlu0 %2396
  %2398 = vmax.xlane.f32.xlu0 %v2374
  %v2399 = vpop.xlane.xlu0 %2398
  %2400 = vmax.xlane.f32.xlu0 %v2375
  %v2401 = vpop.xlane.xlu0 %2400
  %2402 = vmax.xlane.f32.xlu0 %v2376
  %v2403 = vpop.xlane.xlu0 %2402
  %2404 = vmax.xlane.f32.xlu0 %v2377
  %v2405 = vpop.xlane.xlu0 %2404
  %2406 = vmax.xlane.f32.xlu0 %v2378
  %v2407 = vpop.xlane.xlu0 %2406
  %2408 = vmax.xlane.f32.xlu0 %v2379
  %v2409 = vpop.xlane.xlu0 %2408
  %2410 = vmax.xlane.f32.xlu0 %v2380
  %v2411 = vpop.xlane.xlu0 %2410
  %2412 = vmax.xlane.f32.xlu0 %v2381
  %v2413 = vpop.xlane.xlu0 %2412
  %v2414 = vsub.f32 %v2366, %v2383
  %v2415 = vsub.f32 %v2367, %v2385
  %v2416 = vsub.f32 %v2368, %v2387
  %v2417 = vsub.f32 %v2369, %v2389
  %v2418 = vsub.f32 %v2370, %v2391
  %v2419 = vsub.f32 %v2371, %v2393
  %v2420 = vsub.f32 %v2372, %v2395
  %v2421 = vsub.f32 %v2373, %v2397
  %v2422 = vsub.f32 %v2374, %v2399
  %v2423 = vsub.f32 %v2375, %v2401
  %v2424 = vsub.f32 %v2376, %v2403
  %v2425 = vsub.f32 %v2377, %v2405
  %v2426 = vsub.f32 %v2378, %v2407
  %v2427 = vsub.f32 %v2379, %v2409
  %v2428 = vsub.f32 %v2380, %v2411
  %v2429 = vsub.f32 %v2381, %v2413
  %v2430 = vmul.f32 %v2414, 1.442695
  %v2431 = vpow.pop %v2430
  %v2432 = vmul.f32 %v2415, 1.442695
  %v2433 = vpow.pop %v2432
  %v2434 = vmul.f32 %v2416, 1.442695
  %v2435 = vpow.pop %v2434
  %v2436 = vmul.f32 %v2417, 1.442695
  %v2437 = vpow.pop %v2436
  %v2438 = vmul.f32 %v2418, 1.442695
  %v2439 = vpow.pop %v2438
  %v2440 = vmul.f32 %v2419, 1.442695
  %v2441 = vpow.pop %v2440
  %v2442 = vmul.f32 %v2420, 1.442695
  %v2443 = vpow.pop %v2442
  %v2444 = vmul.f32 %v2421, 1.442695
  %v2445 = vpow.pop %v2444
  %v2446 = vmul.f32 %v2422, 1.442695
  %v2447 = vpow.pop %v2446
  %v2448 = vmul.f32 %v2423, 1.442695
  %v2449 = vpow.pop %v2448
  %v2450 = vmul.f32 %v2424, 1.442695
  %v2451 = vpow.pop %v2450
  %v2452 = vmul.f32 %v2425, 1.442695
  %v2453 = vpow.pop %v2452
  %v2454 = vmul.f32 %v2426, 1.442695
  %v2455 = vpow.pop %v2454
  %v2456 = vmul.f32 %v2427, 1.442695
  %v2457 = vpow.pop %v2456
  %v2458 = vmul.f32 %v2428, 1.442695
  %v2459 = vpow.pop %v2458
  %v2460 = vmul.f32 %v2429, 1.442695
  %v2461 = vpow.pop %v2460
  %v2462 = vperm.slane %v1100, 2
  %v2463 = vunpack.c.l.bf16 %v2462
  %v2464 = vmul.f32 %v744, %v2463
  %v2465 = vmul.f32 %v745, %v2463
  %v2466 = vmul.f32 %v746, %v2463
  %v2467 = vmul.f32 %v747, %v2463
  %v2468 = vmul.f32 %v748, %v2463
  %v2469 = vmul.f32 %v749, %v2463
  %v2470 = vmul.f32 %v750, %v2463
  %v2471 = vmul.f32 %v751, %v2463
  %v2472 = vmul.f32 %v752, %v2463
  %v2473 = vmul.f32 %v753, %v2463
  %v2474 = vmul.f32 %v754, %v2463
  %v2475 = vmul.f32 %v755, %v2463
  %v2476 = vmul.f32 %v756, %v2463
  %v2477 = vmul.f32 %v757, %v2463
  %v2478 = vmul.f32 %v758, %v2463
  %v2479 = vmul.f32 %v759, %v2463
  %v2480 = vpack.c.bf16 %v2465, %v2464
  %v2481 = vpack.c.bf16 %v2467, %v2466
  %v2482 = vpack.c.bf16 %v2469, %v2468
  %v2483 = vpack.c.bf16 %v2471, %v2470
  %v2484 = vpack.c.bf16 %v2473, %v2472
  %v2485 = vpack.c.bf16 %v2475, %v2474
  %v2486 = vpack.c.bf16 %v2477, %v2476
  %v2487 = vpack.c.bf16 %v2479, %v2478
  %v2488 = vld [vmem:[#allocation3] sm:$0xff]
  %v2489 = vld [vmem:[#allocation3 + $0x8] sm:$0xff]
  %v2490 = vld [vmem:[#allocation3 + $0x10] sm:$0xff]
  %v2491 = vld [vmem:[#allocation3 + $0x18] sm:$0xff]
  %v2492 = vld [vmem:[#allocation3 + $0x20] sm:$0xff]
  %v2493 = vld [vmem:[#allocation3 + $0x28] sm:$0xff]
  %v2494 = vld [vmem:[#allocation3 + $0x30] sm:$0xff]
  %v2495 = vld [vmem:[#allocation3 + $0x38] sm:$0xff]
  %v2496 = vld [vmem:[#allocation3 + $0x40] sm:$0xff]
  %v2497 = vld [vmem:[#allocation3 + $0x48] sm:$0xff]
  %v2498 = vld [vmem:[#allocation3 + $0x50] sm:$0xff]
  %v2499 = vld [vmem:[#allocation3 + $0x58] sm:$0xff]
  %v2500 = vld [vmem:[#allocation3 + $0x60] sm:$0xff]
  %v2501 = vld [vmem:[#allocation3 + $0x68] sm:$0xff]
  %v2502 = vld [vmem:[#allocation3 + $0x70] sm:$0xff]
  %v2503 = vld [vmem:[#allocation3 + $0x78] sm:$0xff]
  %v2504 = vpack.c.bf16 %v2433, %v2431
  %v2505 = vpack.c.bf16 %v2437, %v2435
  %v2506 = vpack.c.bf16 %v2441, %v2439
  %v2507 = vpack.c.bf16 %v2445, %v2443
  %v2508 = vpack.c.bf16 %v2449, %v2447
  %v2509 = vpack.c.bf16 %v2453, %v2451
  %v2510 = vpack.c.bf16 %v2457, %v2455
  %v2511 = vpack.c.bf16 %v2461, %v2459
  %2512 = vmatpush.bf16.msra.mxu0 %v2487
  %2513 = vmatpush.bf16.msra.mxu0 %v2486
  %2514 = vmatpush.bf16.msra.mxu0 %v2485
  %2515 = vmatpush.bf16.msra.mxu0 %v2484
  %2516 = vmatpush.bf16.msra.mxu0 %v2483
  %2517 = vmatpush.bf16.msra.mxu0 %v2482
  %2518 = vmatpush.bf16.msra.mxu0 %v2481
  %2519 = vmatpush.bf16.msra.mxu0 %v2480
  %2520 = vmatmul.bf16.gmra.mxu0 %v2504
  %v2521 = vpop.f32.mrf.mxu0
  %v2522 = vadd.f32 0.0, %v2521
  %v2523 = vpop.f32.mrf.mxu0
  %v2524 = vadd.f32 0.0, %v2523
  %2525 = vmatmul.bf16.gmra.mxu0 %v2505
  %v2526 = vpop.f32.mrf.mxu0
  %v2527 = vadd.f32 0.0, %v2526
  %v2528 = vpop.f32.mrf.mxu0
  %v2529 = vadd.f32 0.0, %v2528
  %2530 = vmatmul.bf16.gmra.mxu0 %v2506
  %v2531 = vpop.f32.mrf.mxu0
  %v2532 = vadd.f32 0.0, %v2531
  %v2533 = vpop.f32.mrf.mxu0
  %v2534 = vadd.f32 0.0, %v2533
  %2535 = vmatmul.bf16.gmra.mxu0 %v2507
  %v2536 = vpop.f32.mrf.mxu0
  %v2537 = vadd.f32 0.0, %v2536
  %v2538 = vpop.f32.mrf.mxu0
  %v2539 = vadd.f32 0.0, %v2538
  %2540 = vmatmul.bf16.gmra.mxu0 %v2508
  %v2541 = vpop.f32.mrf.mxu0
  %v2542 = vadd.f32 0.0, %v2541
  %v2543 = vpop.f32.mrf.mxu0
  %v2544 = vadd.f32 0.0, %v2543
  %2545 = vmatmul.bf16.gmra.mxu0 %v2509
  %v2546 = vpop.f32.mrf.mxu0
  %v2547 = vadd.f32 0.0, %v2546
  %v2548 = vpop.f32.mrf.mxu0
  %v2549 = vadd.f32 0.0, %v2548
  %2550 = vmatmul.bf16.gmra.mxu0 %v2510
  %v2551 = vpop.f32.mrf.mxu0
  %v2552 = vadd.f32 0.0, %v2551
  %v2553 = vpop.f32.mrf.mxu0
  %v2554 = vadd.f32 0.0, %v2553
  %2555 = vmatmul.bf16.gmra.mxu0 %v2511
  %v2556 = vpop.f32.mrf.mxu0
  %v2557 = vadd.f32 0.0, %v2556
  %v2558 = vpop.f32.mrf.mxu0
  %v2559 = vadd.f32 0.0, %v2558
  %2560 = vdwg.mxu0
  %v2561 = vadd.f32 %v2488, %v2522
  %v2562 = vadd.f32 %v2489, %v2524
  %v2563 = vadd.f32 %v2490, %v2527
  %v2564 = vadd.f32 %v2491, %v2529
  %v2565 = vadd.f32 %v2492, %v2532
  %v2566 = vadd.f32 %v2493, %v2534
  %v2567 = vadd.f32 %v2494, %v2537
  %v2568 = vadd.f32 %v2495, %v2539
  %v2569 = vadd.f32 %v2496, %v2542
  %v2570 = vadd.f32 %v2497, %v2544
  %v2571 = vadd.f32 %v2498, %v2547
  %v2572 = vadd.f32 %v2499, %v2549
  %v2573 = vadd.f32 %v2500, %v2552
  %v2574 = vadd.f32 %v2501, %v2554
  %v2575 = vadd.f32 %v2502, %v2557
  %v2576 = vadd.f32 %v2503, %v2559
  %2577 = vst [vmem:[#allocation3] sm:$0xff] %v2561
  %2578 = vst [vmem:[#allocation3 + $0x8] sm:$0xff] %v2562
  %2579 = vst [vmem:[#allocation3 + $0x10] sm:$0xff] %v2563
  %2580 = vst [vmem:[#allocation3 + $0x18] sm:$0xff] %v2564
  %2581 = vst [vmem:[#allocation3 + $0x20] sm:$0xff] %v2565
  %2582 = vst [vmem:[#allocation3 + $0x28] sm:$0xff] %v2566
  %2583 = vst [vmem:[#allocation3 + $0x30] sm:$0xff] %v2567
  %2584 = vst [vmem:[#allocation3 + $0x38] sm:$0xff] %v2568
  %2585 = vst [vmem:[#allocation3 + $0x40] sm:$0xff] %v2569
  %2586 = vst [vmem:[#allocation3 + $0x48] sm:$0xff] %v2570
  %2587 = vst [vmem:[#allocation3 + $0x50] sm:$0xff] %v2571
  %2588 = vst [vmem:[#allocation3 + $0x58] sm:$0xff] %v2572
  %2589 = vst [vmem:[#allocation3 + $0x60] sm:$0xff] %v2573
  %2590 = vst [vmem:[#allocation3 + $0x68] sm:$0xff] %v2574
  %2591 = vst [vmem:[#allocation3 + $0x70] sm:$0xff] %v2575
  %2592 = vst [vmem:[#allocation3 + $0x78] sm:$0xff] %v2576
  %2593 = vset.pattern.permute.xlu0 6
  %2594 = vperm.xlu0 %2593, %v348
  %v2595 = vpop.permute.xlu0 %2594
  %2597 = vset.pattern.permute.xlu0 6
  %2598 = vperm.xlu0 %2597, %v350
  %v2599 = vpop.permute.xlu0 %2598
  %2601 = vset.pattern.permute.xlu0 6
  %2602 = vperm.xlu0 %2601, %v353
  %v2603 = vpop.permute.xlu0 %2602
  %2605 = vset.pattern.permute.xlu0 6
  %2606 = vperm.xlu0 %2605, %v355
  %v2607 = vpop.permute.xlu0 %2606
  %2609 = vset.pattern.permute.xlu0 6
  %2610 = vperm.xlu0 %2609, %v358
  %v2611 = vpop.permute.xlu0 %2610
  %2613 = vset.pattern.permute.xlu0 6
  %2614 = vperm.xlu0 %2613, %v360
  %v2615 = vpop.permute.xlu0 %2614
  %2617 = vset.pattern.permute.xlu0 6
  %2618 = vperm.xlu0 %2617, %v363
  %v2619 = vpop.permute.xlu0 %2618
  %2621 = vset.pattern.permute.xlu0 6
  %2622 = vperm.xlu0 %2621, %v365
  %v2623 = vpop.permute.xlu0 %2622
  %2625 = vset.pattern.permute.xlu0 6
  %2626 = vperm.xlu0 %2625, %v368
  %v2627 = vpop.permute.xlu0 %2626
  %2629 = vset.pattern.permute.xlu0 6
  %2630 = vperm.xlu0 %2629, %v370
  %v2631 = vpop.permute.xlu0 %2630
  %2633 = vset.pattern.permute.xlu0 6
  %2634 = vperm.xlu0 %2633, %v373
  %v2635 = vpop.permute.xlu0 %2634
  %2637 = vset.pattern.permute.xlu0 6
  %2638 = vperm.xlu0 %2637, %v375
  %v2639 = vpop.permute.xlu0 %2638
  %2641 = vset.pattern.permute.xlu0 6
  %2642 = vperm.xlu0 %2641, %v378
  %v2643 = vpop.permute.xlu0 %2642
  %2645 = vset.pattern.permute.xlu0 6
  %2646 = vperm.xlu0 %2645, %v380
  %v2647 = vpop.permute.xlu0 %2646
  %2649 = vset.pattern.permute.xlu0 6
  %2650 = vperm.xlu0 %2649, %v383
  %v2651 = vpop.permute.xlu0 %2650
  %2653 = vset.pattern.permute.xlu0 6
  %2654 = vperm.xlu0 %2653, %v385
  %v2655 = vpop.permute.xlu0 %2654
  %v2657 = vperm.slane %v467, 6
  %v2658 = vadd.f32 %v2595, %v2657
  %v2659 = vadd.f32 %v2599, %v2657
  %v2660 = vadd.f32 %v2603, %v2657
  %v2661 = vadd.f32 %v2607, %v2657
  %v2662 = vadd.f32 %v2611, %v2657
  %v2663 = vadd.f32 %v2615, %v2657
  %v2664 = vadd.f32 %v2619, %v2657
  %v2665 = vadd.f32 %v2623, %v2657
  %v2666 = vadd.f32 %v2627, %v2657
  %v2667 = vadd.f32 %v2631, %v2657
  %v2668 = vadd.f32 %v2635, %v2657
  %v2669 = vadd.f32 %v2639, %v2657
  %v2670 = vadd.f32 %v2643, %v2657
  %v2671 = vadd.f32 %v2647, %v2657
  %v2672 = vadd.f32 %v2651, %v2657
  %v2673 = vadd.f32 %v2655, %v2657
  %v2674 = vmul.f32 %v2658, 0.2
  %v2675 = vmul.f32 %v2659, 0.2
  %v2676 = vmul.f32 %v2660, 0.2
  %v2677 = vmul.f32 %v2661, 0.2
  %v2678 = vmul.f32 %v2662, 0.2
  %v2679 = vmul.f32 %v2663, 0.2
  %v2680 = vmul.f32 %v2664, 0.2
  %v2681 = vmul.f32 %v2665, 0.2
  %v2682 = vmul.f32 %v2666, 0.2
  %v2683 = vmul.f32 %v2667, 0.2
  %v2684 = vmul.f32 %v2668, 0.2
  %v2685 = vmul.f32 %v2669, 0.2
  %v2686 = vmul.f32 %v2670, 0.2
  %v2687 = vmul.f32 %v2671, 0.2
  %v2688 = vmul.f32 %v2672, 0.2
  %v2689 = vmul.f32 %v2673, 0.2
  %v2690 = vmax.f32 %v2658, %v2674
  %v2691 = vmax.f32 %v2659, %v2675
  %v2692 = vmax.f32 %v2660, %v2676
  %v2693 = vmax.f32 %v2661, %v2677
  %v2694 = vmax.f32 %v2662, %v2678
  %v2695 = vmax.f32 %v2663, %v2679
  %v2696 = vmax.f32 %v2664, %v2680
  %v2697 = vmax.f32 %v2665, %v2681
  %v2698 = vmax.f32 %v2666, %v2682
  %v2699 = vmax.f32 %v2667, %v2683
  %v2700 = vmax.f32 %v2668, %v2684
  %v2701 = vmax.f32 %v2669, %v2685
  %v2702 = vmax.f32 %v2670, %v2686
  %v2703 = vmax.f32 %v2671, %v2687
  %v2704 = vmax.f32 %v2672, %v2688
  %v2705 = vmax.f32 %v2673, %v2689
  %v2706 = vsel %vm628, %v2690, -1e+30
  %v2707 = vsel %vm629, %v2691, -1e+30
  %v2708 = vsel %vm630, %v2692, -1e+30
  %v2709 = vsel %vm631, %v2693, -1e+30
  %v2710 = vsel %vm632, %v2694, -1e+30
  %v2711 = vsel %vm633, %v2695, -1e+30
  %v2712 = vsel %vm634, %v2696, -1e+30
  %v2713 = vsel %vm635, %v2697, -1e+30
  %v2714 = vsel %vm636, %v2698, -1e+30
  %v2715 = vsel %vm637, %v2699, -1e+30
  %v2716 = vsel %vm638, %v2700, -1e+30
  %v2717 = vsel %vm639, %v2701, -1e+30
  %v2718 = vsel %vm640, %v2702, -1e+30
  %v2719 = vsel %vm641, %v2703, -1e+30
  %v2720 = vsel %vm642, %v2704, -1e+30
  %v2721 = vsel %vm643, %v2705, -1e+30
  %2722 = vmax.xlane.f32.xlu0 %v2706
  %v2723 = vpop.xlane.xlu0 %2722
  %2724 = vmax.xlane.f32.xlu0 %v2707
  %v2725 = vpop.xlane.xlu0 %2724
  %2726 = vmax.xlane.f32.xlu0 %v2708
  %v2727 = vpop.xlane.xlu0 %2726
  %2728 = vmax.xlane.f32.xlu0 %v2709
  %v2729 = vpop.xlane.xlu0 %2728
  %2730 = vmax.xlane.f32.xlu0 %v2710
  %v2731 = vpop.xlane.xlu0 %2730
  %2732 = vmax.xlane.f32.xlu0 %v2711
  %v2733 = vpop.xlane.xlu0 %2732
  %2734 = vmax.xlane.f32.xlu0 %v2712
  %v2735 = vpop.xlane.xlu0 %2734
  %2736 = vmax.xlane.f32.xlu0 %v2713
  %v2737 = vpop.xlane.xlu0 %2736
  %2738 = vmax.xlane.f32.xlu0 %v2714
  %v2739 = vpop.xlane.xlu0 %2738
  %2740 = vmax.xlane.f32.xlu0 %v2715
  %v2741 = vpop.xlane.xlu0 %2740
  %2742 = vmax.xlane.f32.xlu0 %v2716
  %v2743 = vpop.xlane.xlu0 %2742
  %2744 = vmax.xlane.f32.xlu0 %v2717
  %v2745 = vpop.xlane.xlu0 %2744
  %2746 = vmax.xlane.f32.xlu0 %v2718
  %v2747 = vpop.xlane.xlu0 %2746
  %2748 = vmax.xlane.f32.xlu0 %v2719
  %v2749 = vpop.xlane.xlu0 %2748
  %2750 = vmax.xlane.f32.xlu0 %v2720
  %v2751 = vpop.xlane.xlu0 %2750
  %2752 = vmax.xlane.f32.xlu0 %v2721
  %v2753 = vpop.xlane.xlu0 %2752
  %v2754 = vsub.f32 %v2706, %v2723
  %v2755 = vsub.f32 %v2707, %v2725
  %v2756 = vsub.f32 %v2708, %v2727
  %v2757 = vsub.f32 %v2709, %v2729
  %v2758 = vsub.f32 %v2710, %v2731
  %v2759 = vsub.f32 %v2711, %v2733
  %v2760 = vsub.f32 %v2712, %v2735
  %v2761 = vsub.f32 %v2713, %v2737
  %v2762 = vsub.f32 %v2714, %v2739
  %v2763 = vsub.f32 %v2715, %v2741
  %v2764 = vsub.f32 %v2716, %v2743
  %v2765 = vsub.f32 %v2717, %v2745
  %v2766 = vsub.f32 %v2718, %v2747
  %v2767 = vsub.f32 %v2719, %v2749
  %v2768 = vsub.f32 %v2720, %v2751
  %v2769 = vsub.f32 %v2721, %v2753
  %v2770 = vmul.f32 %v2754, 1.442695
  %v2771 = vpow.pop %v2770
  %v2772 = vmul.f32 %v2755, 1.442695
  %v2773 = vpow.pop %v2772
  %v2774 = vmul.f32 %v2756, 1.442695
  %v2775 = vpow.pop %v2774
  %v2776 = vmul.f32 %v2757, 1.442695
  %v2777 = vpow.pop %v2776
  %v2778 = vmul.f32 %v2758, 1.442695
  %v2779 = vpow.pop %v2778
  %v2780 = vmul.f32 %v2759, 1.442695
  %v2781 = vpow.pop %v2780
  %v2782 = vmul.f32 %v2760, 1.442695
  %v2783 = vpow.pop %v2782
  %v2784 = vmul.f32 %v2761, 1.442695
  %v2785 = vpow.pop %v2784
  %v2786 = vmul.f32 %v2762, 1.442695
  %v2787 = vpow.pop %v2786
  %v2788 = vmul.f32 %v2763, 1.442695
  %v2789 = vpow.pop %v2788
  %v2790 = vmul.f32 %v2764, 1.442695
  %v2791 = vpow.pop %v2790
  %v2792 = vmul.f32 %v2765, 1.442695
  %v2793 = vpow.pop %v2792
  %v2794 = vmul.f32 %v2766, 1.442695
  %v2795 = vpow.pop %v2794
  %v2796 = vmul.f32 %v2767, 1.442695
  %v2797 = vpow.pop %v2796
  %v2798 = vmul.f32 %v2768, 1.442695
  %v2799 = vpow.pop %v2798
  %v2800 = vmul.f32 %v2769, 1.442695
  %v2801 = vpow.pop %v2800
  %v2802 = vperm.slane %v741, 3
  %v2803 = vunpack.c.l.bf16 %v2802
  %v2804 = vmul.f32 %v744, %v2803
  %v2805 = vmul.f32 %v745, %v2803
  %v2806 = vmul.f32 %v746, %v2803
  %v2807 = vmul.f32 %v747, %v2803
  %v2808 = vmul.f32 %v748, %v2803
  %v2809 = vmul.f32 %v749, %v2803
  %v2810 = vmul.f32 %v750, %v2803
  %v2811 = vmul.f32 %v751, %v2803
  %v2812 = vmul.f32 %v752, %v2803
  %v2813 = vmul.f32 %v753, %v2803
  %v2814 = vmul.f32 %v754, %v2803
  %v2815 = vmul.f32 %v755, %v2803
  %v2816 = vmul.f32 %v756, %v2803
  %v2817 = vmul.f32 %v757, %v2803
  %v2818 = vmul.f32 %v758, %v2803
  %v2819 = vmul.f32 %v759, %v2803
  %v2820 = vpack.c.bf16 %v2805, %v2804
  %v2821 = vpack.c.bf16 %v2807, %v2806
  %v2822 = vpack.c.bf16 %v2809, %v2808
  %v2823 = vpack.c.bf16 %v2811, %v2810
  %v2824 = vpack.c.bf16 %v2813, %v2812
  %v2825 = vpack.c.bf16 %v2815, %v2814
  %v2826 = vpack.c.bf16 %v2817, %v2816
  %v2827 = vpack.c.bf16 %v2819, %v2818
  %v2828 = vld [vmem:[#allocation3] sm:$0xff]
  %v2829 = vld [vmem:[#allocation3 + $0x8] sm:$0xff]
  %v2830 = vld [vmem:[#allocation3 + $0x10] sm:$0xff]
  %v2831 = vld [vmem:[#allocation3 + $0x18] sm:$0xff]
  %v2832 = vld [vmem:[#allocation3 + $0x20] sm:$0xff]
  %v2833 = vld [vmem:[#allocation3 + $0x28] sm:$0xff]
  %v2834 = vld [vmem:[#allocation3 + $0x30] sm:$0xff]
  %v2835 = vld [vmem:[#allocation3 + $0x38] sm:$0xff]
  %v2836 = vld [vmem:[#allocation3 + $0x40] sm:$0xff]
  %v2837 = vld [vmem:[#allocation3 + $0x48] sm:$0xff]
  %v2838 = vld [vmem:[#allocation3 + $0x50] sm:$0xff]
  %v2839 = vld [vmem:[#allocation3 + $0x58] sm:$0xff]
  %v2840 = vld [vmem:[#allocation3 + $0x60] sm:$0xff]
  %v2841 = vld [vmem:[#allocation3 + $0x68] sm:$0xff]
  %v2842 = vld [vmem:[#allocation3 + $0x70] sm:$0xff]
  %v2843 = vld [vmem:[#allocation3 + $0x78] sm:$0xff]
  %v2844 = vpack.c.bf16 %v2773, %v2771
  %v2845 = vpack.c.bf16 %v2777, %v2775
  %v2846 = vpack.c.bf16 %v2781, %v2779
  %v2847 = vpack.c.bf16 %v2785, %v2783
  %v2848 = vpack.c.bf16 %v2789, %v2787
  %v2849 = vpack.c.bf16 %v2793, %v2791
  %v2850 = vpack.c.bf16 %v2797, %v2795
  %v2851 = vpack.c.bf16 %v2801, %v2799
  %2852 = vmatpush.bf16.msra.mxu0 %v2827
  %2853 = vmatpush.bf16.msra.mxu0 %v2826
  %2854 = vmatpush.bf16.msra.mxu0 %v2825
  %2855 = vmatpush.bf16.msra.mxu0 %v2824
  %2856 = vmatpush.bf16.msra.mxu0 %v2823
  %2857 = vmatpush.bf16.msra.mxu0 %v2822
  %2858 = vmatpush.bf16.msra.mxu0 %v2821
  %2859 = vmatpush.bf16.msra.mxu0 %v2820
  %2860 = vmatmul.bf16.gmra.mxu0 %v2844
  %v2861 = vpop.f32.mrf.mxu0
  %v2862 = vadd.f32 0.0, %v2861
  %v2863 = vpop.f32.mrf.mxu0
  %v2864 = vadd.f32 0.0, %v2863
  %2865 = vmatmul.bf16.gmra.mxu0 %v2845
  %v2866 = vpop.f32.mrf.mxu0
  %v2867 = vadd.f32 0.0, %v2866
  %v2868 = vpop.f32.mrf.mxu0
  %v2869 = vadd.f32 0.0, %v2868
  %2870 = vmatmul.bf16.gmra.mxu0 %v2846
  %v2871 = vpop.f32.mrf.mxu0
  %v2872 = vadd.f32 0.0, %v2871
  %v2873 = vpop.f32.mrf.mxu0
  %v2874 = vadd.f32 0.0, %v2873
  %2875 = vmatmul.bf16.gmra.mxu0 %v2847
  %v2876 = vpop.f32.mrf.mxu0
  %v2877 = vadd.f32 0.0, %v2876
  %v2878 = vpop.f32.mrf.mxu0
  %v2879 = vadd.f32 0.0, %v2878
  %2880 = vmatmul.bf16.gmra.mxu0 %v2848
  %v2881 = vpop.f32.mrf.mxu0
  %v2882 = vadd.f32 0.0, %v2881
  %v2883 = vpop.f32.mrf.mxu0
  %v2884 = vadd.f32 0.0, %v2883
  %2885 = vmatmul.bf16.gmra.mxu0 %v2849
  %v2886 = vpop.f32.mrf.mxu0
  %v2887 = vadd.f32 0.0, %v2886
  %v2888 = vpop.f32.mrf.mxu0
  %v2889 = vadd.f32 0.0, %v2888
  %2890 = vmatmul.bf16.gmra.mxu0 %v2850
  %v2891 = vpop.f32.mrf.mxu0
  %v2892 = vadd.f32 0.0, %v2891
  %v2893 = vpop.f32.mrf.mxu0
  %v2894 = vadd.f32 0.0, %v2893
  %2895 = vmatmul.bf16.gmra.mxu0 %v2851
  %v2896 = vpop.f32.mrf.mxu0
  %v2897 = vadd.f32 0.0, %v2896
  %v2898 = vpop.f32.mrf.mxu0
  %v2899 = vadd.f32 0.0, %v2898
  %2900 = vdwg.mxu0
  %v2901 = vadd.f32 %v2828, %v2862
  %v2902 = vadd.f32 %v2829, %v2864
  %v2903 = vadd.f32 %v2830, %v2867
  %v2904 = vadd.f32 %v2831, %v2869
  %v2905 = vadd.f32 %v2832, %v2872
  %v2906 = vadd.f32 %v2833, %v2874
  %v2907 = vadd.f32 %v2834, %v2877
  %v2908 = vadd.f32 %v2835, %v2879
  %v2909 = vadd.f32 %v2836, %v2882
  %v2910 = vadd.f32 %v2837, %v2884
  %v2911 = vadd.f32 %v2838, %v2887
  %v2912 = vadd.f32 %v2839, %v2889
  %v2913 = vadd.f32 %v2840, %v2892
  %v2914 = vadd.f32 %v2841, %v2894
  %v2915 = vadd.f32 %v2842, %v2897
  %v2916 = vadd.f32 %v2843, %v2899
  %2917 = vst [vmem:[#allocation3] sm:$0xff] %v2901
  %2918 = vst [vmem:[#allocation3 + $0x8] sm:$0xff] %v2902
  %2919 = vst [vmem:[#allocation3 + $0x10] sm:$0xff] %v2903
  %2920 = vst [vmem:[#allocation3 + $0x18] sm:$0xff] %v2904
  %2921 = vst [vmem:[#allocation3 + $0x20] sm:$0xff] %v2905
  %2922 = vst [vmem:[#allocation3 + $0x28] sm:$0xff] %v2906
  %2923 = vst [vmem:[#allocation3 + $0x30] sm:$0xff] %v2907
  %2924 = vst [vmem:[#allocation3 + $0x38] sm:$0xff] %v2908
  %2925 = vst [vmem:[#allocation3 + $0x40] sm:$0xff] %v2909
  %2926 = vst [vmem:[#allocation3 + $0x48] sm:$0xff] %v2910
  %2927 = vst [vmem:[#allocation3 + $0x50] sm:$0xff] %v2911
  %2928 = vst [vmem:[#allocation3 + $0x58] sm:$0xff] %v2912
  %2929 = vst [vmem:[#allocation3 + $0x60] sm:$0xff] %v2913
  %2930 = vst [vmem:[#allocation3 + $0x68] sm:$0xff] %v2914
  %2931 = vst [vmem:[#allocation3 + $0x70] sm:$0xff] %v2915
  %2932 = vst [vmem:[#allocation3 + $0x78] sm:$0xff] %v2916
  %2933 = vset.pattern.permute.xlu0 7
  %2934 = vperm.xlu0 %2933, %v348
  %v2935 = vpop.permute.xlu0 %2934
  %2937 = vset.pattern.permute.xlu0 7
  %2938 = vperm.xlu0 %2937, %v350
  %v2939 = vpop.permute.xlu0 %2938
  %2941 = vset.pattern.permute.xlu0 7
  %2942 = vperm.xlu0 %2941, %v353
  %v2943 = vpop.permute.xlu0 %2942
  %2945 = vset.pattern.permute.xlu0 7
  %2946 = vperm.xlu0 %2945, %v355
  %v2947 = vpop.permute.xlu0 %2946
  %2949 = vset.pattern.permute.xlu0 7
  %2950 = vperm.xlu0 %2949, %v358
  %v2951 = vpop.permute.xlu0 %2950
  %2953 = vset.pattern.permute.xlu0 7
  %2954 = vperm.xlu0 %2953, %v360
  %v2955 = vpop.permute.xlu0 %2954
  %2957 = vset.pattern.permute.xlu0 7
  %2958 = vperm.xlu0 %2957, %v363
  %v2959 = vpop.permute.xlu0 %2958
  %2961 = vset.pattern.permute.xlu0 7
  %2962 = vperm.xlu0 %2961, %v365
  %v2963 = vpop.permute.xlu0 %2962
  %2965 = vset.pattern.permute.xlu0 7
  %2966 = vperm.xlu0 %2965, %v368
  %v2967 = vpop.permute.xlu0 %2966
  %2969 = vset.pattern.permute.xlu0 7
  %2970 = vperm.xlu0 %2969, %v370
  %v2971 = vpop.permute.xlu0 %2970
  %2973 = vset.pattern.permute.xlu0 7
  %2974 = vperm.xlu0 %2973, %v373
  %v2975 = vpop.permute.xlu0 %2974
  %2977 = vset.pattern.permute.xlu0 7
  %2978 = vperm.xlu0 %2977, %v375
  %v2979 = vpop.permute.xlu0 %2978
  %2981 = vset.pattern.permute.xlu0 7
  %2982 = vperm.xlu0 %2981, %v378
  %v2983 = vpop.permute.xlu0 %2982
  %2985 = vset.pattern.permute.xlu0 7
  %2986 = vperm.xlu0 %2985, %v380
  %v2987 = vpop.permute.xlu0 %2986
  %2989 = vset.pattern.permute.xlu0 7
  %2990 = vperm.xlu0 %2989, %v383
  %v2991 = vpop.permute.xlu0 %2990
  %2993 = vset.pattern.permute.xlu0 7
  %2994 = vperm.xlu0 %2993, %v385
  %v2995 = vpop.permute.xlu0 %2994
  %v2997 = vperm.slane %v467, 7
  %v2998 = vadd.f32 %v2935, %v2997
  %v2999 = vadd.f32 %v2939, %v2997
  %v3000 = vadd.f32 %v2943, %v2997
  %v3001 = vadd.f32 %v2947, %v2997
  %v3002 = vadd.f32 %v2951, %v2997
  %v3003 = vadd.f32 %v2955, %v2997
  %v3004 = vadd.f32 %v2959, %v2997
  %v3005 = vadd.f32 %v2963, %v2997
  %v3006 = vadd.f32 %v2967, %v2997
  %v3007 = vadd.f32 %v2971, %v2997
  %v3008 = vadd.f32 %v2975, %v2997
  %v3009 = vadd.f32 %v2979, %v2997
  %v3010 = vadd.f32 %v2983, %v2997
  %v3011 = vadd.f32 %v2987, %v2997
  %v3012 = vadd.f32 %v2991, %v2997
  %v3013 = vadd.f32 %v2995, %v2997
  %v3014 = vmul.f32 %v2998, 0.2
  %v3015 = vmul.f32 %v2999, 0.2
  %v3016 = vmul.f32 %v3000, 0.2
  %v3017 = vmul.f32 %v3001, 0.2
  %v3018 = vmul.f32 %v3002, 0.2
  %v3019 = vmul.f32 %v3003, 0.2
  %v3020 = vmul.f32 %v3004, 0.2
  %v3021 = vmul.f32 %v3005, 0.2
  %v3022 = vmul.f32 %v3006, 0.2
  %v3023 = vmul.f32 %v3007, 0.2
  %v3024 = vmul.f32 %v3008, 0.2
  %v3025 = vmul.f32 %v3009, 0.2
  %v3026 = vmul.f32 %v3010, 0.2
  %v3027 = vmul.f32 %v3011, 0.2
  %v3028 = vmul.f32 %v3012, 0.2
  %v3029 = vmul.f32 %v3013, 0.2
  %v3030 = vmax.f32 %v2998, %v3014
  %v3031 = vmax.f32 %v2999, %v3015
  %v3032 = vmax.f32 %v3000, %v3016
  %v3033 = vmax.f32 %v3001, %v3017
  %v3034 = vmax.f32 %v3002, %v3018
  %v3035 = vmax.f32 %v3003, %v3019
  %v3036 = vmax.f32 %v3004, %v3020
  %v3037 = vmax.f32 %v3005, %v3021
  %v3038 = vmax.f32 %v3006, %v3022
  %v3039 = vmax.f32 %v3007, %v3023
  %v3040 = vmax.f32 %v3008, %v3024
  %v3041 = vmax.f32 %v3009, %v3025
  %v3042 = vmax.f32 %v3010, %v3026
  %v3043 = vmax.f32 %v3011, %v3027
  %v3044 = vmax.f32 %v3012, %v3028
  %v3045 = vmax.f32 %v3013, %v3029
  %v3046 = vsel %vm628, %v3030, -1e+30
  %v3047 = vsel %vm629, %v3031, -1e+30
  %v3048 = vsel %vm630, %v3032, -1e+30
  %v3049 = vsel %vm631, %v3033, -1e+30
  %v3050 = vsel %vm632, %v3034, -1e+30
  %v3051 = vsel %vm633, %v3035, -1e+30
  %v3052 = vsel %vm634, %v3036, -1e+30
  %v3053 = vsel %vm635, %v3037, -1e+30
  %v3054 = vsel %vm636, %v3038, -1e+30
  %v3055 = vsel %vm637, %v3039, -1e+30
  %v3056 = vsel %vm638, %v3040, -1e+30
  %v3057 = vsel %vm639, %v3041, -1e+30
  %v3058 = vsel %vm640, %v3042, -1e+30
  %v3059 = vsel %vm641, %v3043, -1e+30
  %v3060 = vsel %vm642, %v3044, -1e+30
  %v3061 = vsel %vm643, %v3045, -1e+30
  %3062 = vmax.xlane.f32.xlu0 %v3046
  %v3063 = vpop.xlane.xlu0 %3062
  %3064 = vmax.xlane.f32.xlu0 %v3047
  %v3065 = vpop.xlane.xlu0 %3064
  %3066 = vmax.xlane.f32.xlu0 %v3048
  %v3067 = vpop.xlane.xlu0 %3066
  %3068 = vmax.xlane.f32.xlu0 %v3049
  %v3069 = vpop.xlane.xlu0 %3068
  %3070 = vmax.xlane.f32.xlu0 %v3050
  %v3071 = vpop.xlane.xlu0 %3070
  %3072 = vmax.xlane.f32.xlu0 %v3051
  %v3073 = vpop.xlane.xlu0 %3072
  %3074 = vmax.xlane.f32.xlu0 %v3052
  %v3075 = vpop.xlane.xlu0 %3074
  %3076 = vmax.xlane.f32.xlu0 %v3053
  %v3077 = vpop.xlane.xlu0 %3076
  %3078 = vmax.xlane.f32.xlu0 %v3054
  %v3079 = vpop.xlane.xlu0 %3078
  %3080 = vmax.xlane.f32.xlu0 %v3055
  %v3081 = vpop.xlane.xlu0 %3080
  %3082 = vmax.xlane.f32.xlu0 %v3056
  %v3083 = vpop.xlane.xlu0 %3082
  %3084 = vmax.xlane.f32.xlu0 %v3057
  %v3085 = vpop.xlane.xlu0 %3084
  %3086 = vmax.xlane.f32.xlu0 %v3058
  %v3087 = vpop.xlane.xlu0 %3086
  %3088 = vmax.xlane.f32.xlu0 %v3059
  %v3089 = vpop.xlane.xlu0 %3088
  %3090 = vmax.xlane.f32.xlu0 %v3060
  %v3091 = vpop.xlane.xlu0 %3090
  %3092 = vmax.xlane.f32.xlu0 %v3061
  %v3093 = vpop.xlane.xlu0 %3092
  %v3094 = vsub.f32 %v3046, %v3063
  %v3095 = vsub.f32 %v3047, %v3065
  %v3096 = vsub.f32 %v3048, %v3067
  %v3097 = vsub.f32 %v3049, %v3069
  %v3098 = vsub.f32 %v3050, %v3071
  %v3099 = vsub.f32 %v3051, %v3073
  %v3100 = vsub.f32 %v3052, %v3075
  %v3101 = vsub.f32 %v3053, %v3077
  %v3102 = vsub.f32 %v3054, %v3079
  %v3103 = vsub.f32 %v3055, %v3081
  %v3104 = vsub.f32 %v3056, %v3083
  %v3105 = vsub.f32 %v3057, %v3085
  %v3106 = vsub.f32 %v3058, %v3087
  %v3107 = vsub.f32 %v3059, %v3089
  %v3108 = vsub.f32 %v3060, %v3091
  %v3109 = vsub.f32 %v3061, %v3093
  %v3110 = vmul.f32 %v3094, 1.442695
  %v3111 = vpow.pop %v3110
  %v3112 = vmul.f32 %v3095, 1.442695
  %v3113 = vpow.pop %v3112
  %v3114 = vmul.f32 %v3096, 1.442695
  %v3115 = vpow.pop %v3114
  %v3116 = vmul.f32 %v3097, 1.442695
  %v3117 = vpow.pop %v3116
  %v3118 = vmul.f32 %v3098, 1.442695
  %v3119 = vpow.pop %v3118
  %v3120 = vmul.f32 %v3099, 1.442695
  %v3121 = vpow.pop %v3120
  %v3122 = vmul.f32 %v3100, 1.442695
  %v3123 = vpow.pop %v3122
  %v3124 = vmul.f32 %v3101, 1.442695
  %v3125 = vpow.pop %v3124
  %v3126 = vmul.f32 %v3102, 1.442695
  %v3127 = vpow.pop %v3126
  %v3128 = vmul.f32 %v3103, 1.442695
  %v3129 = vpow.pop %v3128
  %v3130 = vmul.f32 %v3104, 1.442695
  %v3131 = vpow.pop %v3130
  %v3132 = vmul.f32 %v3105, 1.442695
  %v3133 = vpow.pop %v3132
  %v3134 = vmul.f32 %v3106, 1.442695
  %v3135 = vpow.pop %v3134
  %v3136 = vmul.f32 %v3107, 1.442695
  %v3137 = vpow.pop %v3136
  %v3138 = vmul.f32 %v3108, 1.442695
  %v3139 = vpow.pop %v3138
  %v3140 = vmul.f32 %v3109, 1.442695
  %v3141 = vpow.pop %v3140
  %v3142 = vperm.slane %v1100, 3
  %v3143 = vunpack.c.l.bf16 %v3142
  %v3144 = vmul.f32 %v744, %v3143
  %v3145 = vmul.f32 %v745, %v3143
  %v3146 = vmul.f32 %v746, %v3143
  %v3147 = vmul.f32 %v747, %v3143
  %v3148 = vmul.f32 %v748, %v3143
  %v3149 = vmul.f32 %v749, %v3143
  %v3150 = vmul.f32 %v750, %v3143
  %v3151 = vmul.f32 %v751, %v3143
  %v3152 = vmul.f32 %v752, %v3143
  %v3153 = vmul.f32 %v753, %v3143
  %v3154 = vmul.f32 %v754, %v3143
  %v3155 = vmul.f32 %v755, %v3143
  %v3156 = vmul.f32 %v756, %v3143
  %v3157 = vmul.f32 %v757, %v3143
  %v3158 = vmul.f32 %v758, %v3143
  %v3159 = vmul.f32 %v759, %v3143
  %v3160 = vpack.c.bf16 %v3145, %v3144
  %v3161 = vpack.c.bf16 %v3147, %v3146
  %v3162 = vpack.c.bf16 %v3149, %v3148
  %v3163 = vpack.c.bf16 %v3151, %v3150
  %v3164 = vpack.c.bf16 %v3153, %v3152
  %v3165 = vpack.c.bf16 %v3155, %v3154
  %v3166 = vpack.c.bf16 %v3157, %v3156
  %v3167 = vpack.c.bf16 %v3159, %v3158
  %v3168 = vld [vmem:[#allocation3] sm:$0xff]
  %v3169 = vld [vmem:[#allocation3 + $0x8] sm:$0xff]
  %v3170 = vld [vmem:[#allocation3 + $0x10] sm:$0xff]
  %v3171 = vld [vmem:[#allocation3 + $0x18] sm:$0xff]
  %v3172 = vld [vmem:[#allocation3 + $0x20] sm:$0xff]
  %v3173 = vld [vmem:[#allocation3 + $0x28] sm:$0xff]
  %v3174 = vld [vmem:[#allocation3 + $0x30] sm:$0xff]
  %v3175 = vld [vmem:[#allocation3 + $0x38] sm:$0xff]
  %v3176 = vld [vmem:[#allocation3 + $0x40] sm:$0xff]
  %v3177 = vld [vmem:[#allocation3 + $0x48] sm:$0xff]
  %v3178 = vld [vmem:[#allocation3 + $0x50] sm:$0xff]
  %v3179 = vld [vmem:[#allocation3 + $0x58] sm:$0xff]
  %v3180 = vld [vmem:[#allocation3 + $0x60] sm:$0xff]
  %v3181 = vld [vmem:[#allocation3 + $0x68] sm:$0xff]
  %v3182 = vld [vmem:[#allocation3 + $0x70] sm:$0xff]
  %v3183 = vld [vmem:[#allocation3 + $0x78] sm:$0xff]
  %v3184 = vpack.c.bf16 %v3113, %v3111
  %v3185 = vpack.c.bf16 %v3117, %v3115
  %v3186 = vpack.c.bf16 %v3121, %v3119
  %v3187 = vpack.c.bf16 %v3125, %v3123
  %v3188 = vpack.c.bf16 %v3129, %v3127
  %v3189 = vpack.c.bf16 %v3133, %v3131
  %v3190 = vpack.c.bf16 %v3137, %v3135
  %v3191 = vpack.c.bf16 %v3141, %v3139
  %3192 = vmatpush.bf16.msra.mxu0 %v3167
  %3193 = vmatpush.bf16.msra.mxu0 %v3166
  %3194 = vmatpush.bf16.msra.mxu0 %v3165
  %3195 = vmatpush.bf16.msra.mxu0 %v3164
  %3196 = vmatpush.bf16.msra.mxu0 %v3163
  %3197 = vmatpush.bf16.msra.mxu0 %v3162
  %3198 = vmatpush.bf16.msra.mxu0 %v3161
  %3199 = vmatpush.bf16.msra.mxu0 %v3160
  %3200 = vmatmul.bf16.gmra.mxu0 %v3184
  %v3201 = vpop.f32.mrf.mxu0
  %v3202 = vadd.f32 0.0, %v3201
  %v3203 = vpop.f32.mrf.mxu0
  %v3204 = vadd.f32 0.0, %v3203
  %3205 = vmatmul.bf16.gmra.mxu0 %v3185
  %v3206 = vpop.f32.mrf.mxu0
  %v3207 = vadd.f32 0.0, %v3206
  %v3208 = vpop.f32.mrf.mxu0
  %v3209 = vadd.f32 0.0, %v3208
  %3210 = vmatmul.bf16.gmra.mxu0 %v3186
  %v3211 = vpop.f32.mrf.mxu0
  %v3212 = vadd.f32 0.0, %v3211
  %v3213 = vpop.f32.mrf.mxu0
  %v3214 = vadd.f32 0.0, %v3213
  %3215 = vmatmul.bf16.gmra.mxu0 %v3187
  %v3216 = vpop.f32.mrf.mxu0
  %v3217 = vadd.f32 0.0, %v3216
  %v3218 = vpop.f32.mrf.mxu0
  %v3219 = vadd.f32 0.0, %v3218
  %3220 = vmatmul.bf16.gmra.mxu0 %v3188
  %v3221 = vpop.f32.mrf.mxu0
  %v3222 = vadd.f32 0.0, %v3221
  %v3223 = vpop.f32.mrf.mxu0
  %v3224 = vadd.f32 0.0, %v3223
  %3225 = vmatmul.bf16.gmra.mxu0 %v3189
  %v3226 = vpop.f32.mrf.mxu0
  %v3227 = vadd.f32 0.0, %v3226
  %v3228 = vpop.f32.mrf.mxu0
  %v3229 = vadd.f32 0.0, %v3228
  %3230 = vmatmul.bf16.gmra.mxu0 %v3190
  %v3231 = vpop.f32.mrf.mxu0
  %v3232 = vadd.f32 0.0, %v3231
  %v3233 = vpop.f32.mrf.mxu0
  %v3234 = vadd.f32 0.0, %v3233
  %3235 = vmatmul.bf16.gmra.mxu0 %v3191
  %v3236 = vpop.f32.mrf.mxu0
  %v3237 = vadd.f32 0.0, %v3236
  %v3238 = vpop.f32.mrf.mxu0
  %v3239 = vadd.f32 0.0, %v3238
  %3240 = vdwg.mxu0
  %v3241 = vadd.f32 %v3168, %v3202
  %v3242 = vadd.f32 %v3169, %v3204
  %v3243 = vadd.f32 %v3170, %v3207
  %v3244 = vadd.f32 %v3171, %v3209
  %v3245 = vadd.f32 %v3172, %v3212
  %v3246 = vadd.f32 %v3173, %v3214
  %v3247 = vadd.f32 %v3174, %v3217
  %v3248 = vadd.f32 %v3175, %v3219
  %v3249 = vadd.f32 %v3176, %v3222
  %v3250 = vadd.f32 %v3177, %v3224
  %v3251 = vadd.f32 %v3178, %v3227
  %v3252 = vadd.f32 %v3179, %v3229
  %v3253 = vadd.f32 %v3180, %v3232
  %v3254 = vadd.f32 %v3181, %v3234
  %v3255 = vadd.f32 %v3182, %v3237
  %v3256 = vadd.f32 %v3183, %v3239
  %3257 = vst [vmem:[#allocation3] sm:$0xff] %v3241
  %3258 = vst [vmem:[#allocation3 + $0x8] sm:$0xff] %v3242
  %3259 = vst [vmem:[#allocation3 + $0x10] sm:$0xff] %v3243
  %3260 = vst [vmem:[#allocation3 + $0x18] sm:$0xff] %v3244
  %3261 = vst [vmem:[#allocation3 + $0x20] sm:$0xff] %v3245
  %3262 = vst [vmem:[#allocation3 + $0x28] sm:$0xff] %v3246
  %3263 = vst [vmem:[#allocation3 + $0x30] sm:$0xff] %v3247
  %3264 = vst [vmem:[#allocation3 + $0x38] sm:$0xff] %v3248
  %3265 = vst [vmem:[#allocation3 + $0x40] sm:$0xff] %v3249
  %3266 = vst [vmem:[#allocation3 + $0x48] sm:$0xff] %v3250
  %3267 = vst [vmem:[#allocation3 + $0x50] sm:$0xff] %v3251
  %3268 = vst [vmem:[#allocation3 + $0x58] sm:$0xff] %v3252
  %3269 = vst [vmem:[#allocation3 + $0x60] sm:$0xff] %v3253
  %3270 = vst [vmem:[#allocation3 + $0x68] sm:$0xff] %v3254
  %3271 = vst [vmem:[#allocation3 + $0x70] sm:$0xff] %v3255
  %3272 = vst [vmem:[#allocation3 + $0x78] sm:$0xff] %v3256
  %v3273 = vld [vmem:[#allocation3] sm:$0xff]
  %v3274 = vld [vmem:[#allocation3 + $0x8] sm:$0xff]
  %v3275 = vld [vmem:[#allocation3 + $0x10] sm:$0xff]
  %v3276 = vld [vmem:[#allocation3 + $0x18] sm:$0xff]
  %v3277 = vld [vmem:[#allocation3 + $0x20] sm:$0xff]
  %v3278 = vld [vmem:[#allocation3 + $0x28] sm:$0xff]
  %v3279 = vld [vmem:[#allocation3 + $0x30] sm:$0xff]
  %v3280 = vld [vmem:[#allocation3 + $0x38] sm:$0xff]
  %v3281 = vld [vmem:[#allocation3 + $0x40] sm:$0xff]
  %v3282 = vld [vmem:[#allocation3 + $0x48] sm:$0xff]
  %v3283 = vld [vmem:[#allocation3 + $0x50] sm:$0xff]
  %v3284 = vld [vmem:[#allocation3 + $0x58] sm:$0xff]
  %v3285 = vld [vmem:[#allocation3 + $0x60] sm:$0xff]
  %v3286 = vld [vmem:[#allocation3 + $0x68] sm:$0xff]
  %v3287 = vld [vmem:[#allocation3 + $0x70] sm:$0xff]
  %v3288 = vld [vmem:[#allocation3 + $0x78] sm:$0xff]
  %3305 = vrot.lane.b32.xlu0 %v3273, 64
  %v3306 = vpop.permute.xlu0 %3305
  %3307 = vrot.lane.b32.xlu0 %v3274, 64
  %v3308 = vpop.permute.xlu0 %3307
  %3309 = vrot.lane.b32.xlu0 %v3275, 64
  %v3310 = vpop.permute.xlu0 %3309
  %3311 = vrot.lane.b32.xlu0 %v3276, 64
  %v3312 = vpop.permute.xlu0 %3311
  %3313 = vrot.lane.b32.xlu0 %v3277, 64
  %v3314 = vpop.permute.xlu0 %3313
  %3315 = vrot.lane.b32.xlu0 %v3278, 64
  %v3316 = vpop.permute.xlu0 %3315
  %3317 = vrot.lane.b32.xlu0 %v3279, 64
  %v3318 = vpop.permute.xlu0 %3317
  %3319 = vrot.lane.b32.xlu0 %v3280, 64
  %v3320 = vpop.permute.xlu0 %3319
  %3321 = vrot.lane.b32.xlu0 %v3281, 64
  %v3322 = vpop.permute.xlu0 %3321
  %3323 = vrot.lane.b32.xlu0 %v3282, 64
  %v3324 = vpop.permute.xlu0 %3323
  %3325 = vrot.lane.b32.xlu0 %v3283, 64
  %v3326 = vpop.permute.xlu0 %3325
  %3327 = vrot.lane.b32.xlu0 %v3284, 64
  %v3328 = vpop.permute.xlu0 %3327
  %3329 = vrot.lane.b32.xlu0 %v3285, 64
  %v3330 = vpop.permute.xlu0 %3329
  %3331 = vrot.lane.b32.xlu0 %v3286, 64
  %v3332 = vpop.permute.xlu0 %3331
  %3333 = vrot.lane.b32.xlu0 %v3287, 64
  %v3334 = vpop.permute.xlu0 %3333
  %3335 = vrot.lane.b32.xlu0 %v3288, 64
  %v3336 = vpop.permute.xlu0 %3335
  %v3353 = vrcp.pop %v3306
  %v3354 = vmul.f32 %v3306, %v3353
  %v3355 = vsub.f32 1.0, %v3354
  %v3356 = vmul.f32 %v3353, %v3355
  %v3357 = vadd.f32 %v3353, %v3356
  %vm3358 = vweird.f32 %v3306
  %vm3359 = vweird.f32 %v3353
  %vm3360 = vmor %vm3358, %vm3359
  %v3361 = vsel %vm3360, %v3353, %v3357
  %v3362 = vand.u32 2147483647, %v3306
  %vm3363 = vcmp.eq.f32.partialorder %v3362, 8.507059e+37
  %v3364 = vand.u32 %v3306, 2147483648
  %v3365 = vor.u32 1.1754944e-38, %v3364
  %v3366 = vsel %vm3363, %v3365, %v3361
  %v3367 = vmul.f32 %v3273, %v3366
  %v3368 = vrcp.pop %v3308
  %v3369 = vmul.f32 %v3308, %v3368
  %v3370 = vsub.f32 1.0, %v3369
  %v3371 = vmul.f32 %v3368, %v3370
  %v3372 = vadd.f32 %v3368, %v3371
  %vm3373 = vweird.f32 %v3308
  %vm3374 = vweird.f32 %v3368
  %vm3375 = vmor %vm3373, %vm3374
  %v3376 = vsel %vm3375, %v3368, %v3372
  %v3377 = vand.u32 2147483647, %v3308
  %vm3378 = vcmp.eq.f32.partialorder %v3377, 8.507059e+37
  %v3379 = vand.u32 %v3308, 2147483648
  %v3380 = vor.u32 1.1754944e-38, %v3379
  %v3381 = vsel %vm3378, %v3380, %v3376
  %v3382 = vmul.f32 %v3274, %v3381
  %v3383 = vrcp.pop %v3310
  %v3384 = vmul.f32 %v3310, %v3383
  %v3385 = vsub.f32 1.0, %v3384
  %v3386 = vmul.f32 %v3383, %v3385
  %v3387 = vadd.f32 %v3383, %v3386
  %vm3388 = vweird.f32 %v3310
  %vm3389 = vweird.f32 %v3383
  %vm3390 = vmor %vm3388, %vm3389
  %v3391 = vsel %vm3390, %v3383, %v3387
  %v3392 = vand.u32 2147483647, %v3310
  %vm3393 = vcmp.eq.f32.partialorder %v3392, 8.507059e+37
  %v3394 = vand.u32 %v3310, 2147483648
  %v3395 = vor.u32 1.1754944e-38, %v3394
  %v3396 = vsel %vm3393, %v3395, %v3391
  %v3397 = vmul.f32 %v3275, %v3396
  %v3398 = vrcp.pop %v3312
  %v3399 = vmul.f32 %v3312, %v3398
  %v3400 = vsub.f32 1.0, %v3399
  %v3401 = vmul.f32 %v3398, %v3400
  %v3402 = vadd.f32 %v3398, %v3401
  %vm3403 = vweird.f32 %v3312
  %vm3404 = vweird.f32 %v3398
  %vm3405 = vmor %vm3403, %vm3404
  %v3406 = vsel %vm3405, %v3398, %v3402
  %v3407 = vand.u32 2147483647, %v3312
  %vm3408 = vcmp.eq.f32.partialorder %v3407, 8.507059e+37
  %v3409 = vand.u32 %v3312, 2147483648
  %v3410 = vor.u32 1.1754944e-38, %v3409
  %v3411 = vsel %vm3408, %v3410, %v3406
  %v3412 = vmul.f32 %v3276, %v3411
  %v3413 = vrcp.pop %v3314
  %v3414 = vmul.f32 %v3314, %v3413
  %v3415 = vsub.f32 1.0, %v3414
  %v3416 = vmul.f32 %v3413, %v3415
  %v3417 = vadd.f32 %v3413, %v3416
  %vm3418 = vweird.f32 %v3314
  %vm3419 = vweird.f32 %v3413
  %vm3420 = vmor %vm3418, %vm3419
  %v3421 = vsel %vm3420, %v3413, %v3417
  %v3422 = vand.u32 2147483647, %v3314
  %vm3423 = vcmp.eq.f32.partialorder %v3422, 8.507059e+37
  %v3424 = vand.u32 %v3314, 2147483648
  %v3425 = vor.u32 1.1754944e-38, %v3424
  %v3426 = vsel %vm3423, %v3425, %v3421
  %v3427 = vmul.f32 %v3277, %v3426
  %v3428 = vrcp.pop %v3316
  %v3429 = vmul.f32 %v3316, %v3428
  %v3430 = vsub.f32 1.0, %v3429
  %v3431 = vmul.f32 %v3428, %v3430
  %v3432 = vadd.f32 %v3428, %v3431
  %vm3433 = vweird.f32 %v3316
  %vm3434 = vweird.f32 %v3428
  %vm3435 = vmor %vm3433, %vm3434
  %v3436 = vsel %vm3435, %v3428, %v3432
  %v3437 = vand.u32 2147483647, %v3316
  %vm3438 = vcmp.eq.f32.partialorder %v3437, 8.507059e+37
  %v3439 = vand.u32 %v3316, 2147483648
  %v3440 = vor.u32 1.1754944e-38, %v3439
  %v3441 = vsel %vm3438, %v3440, %v3436
  %v3442 = vmul.f32 %v3278, %v3441
  %v3443 = vrcp.pop %v3318
  %v3444 = vmul.f32 %v3318, %v3443
  %v3445 = vsub.f32 1.0, %v3444
  %v3446 = vmul.f32 %v3443, %v3445
  %v3447 = vadd.f32 %v3443, %v3446
  %vm3448 = vweird.f32 %v3318
  %vm3449 = vweird.f32 %v3443
  %vm3450 = vmor %vm3448, %vm3449
  %v3451 = vsel %vm3450, %v3443, %v3447
  %v3452 = vand.u32 2147483647, %v3318
  %vm3453 = vcmp.eq.f32.partialorder %v3452, 8.507059e+37
  %v3454 = vand.u32 %v3318, 2147483648
  %v3455 = vor.u32 1.1754944e-38, %v3454
  %v3456 = vsel %vm3453, %v3455, %v3451
  %v3457 = vmul.f32 %v3279, %v3456
  %v3458 = vrcp.pop %v3320
  %v3459 = vmul.f32 %v3320, %v3458
  %v3460 = vsub.f32 1.0, %v3459
  %v3461 = vmul.f32 %v3458, %v3460
  %v3462 = vadd.f32 %v3458, %v3461
  %vm3463 = vweird.f32 %v3320
  %vm3464 = vweird.f32 %v3458
  %vm3465 = vmor %vm3463, %vm3464
  %v3466 = vsel %vm3465, %v3458, %v3462
  %v3467 = vand.u32 2147483647, %v3320
  %vm3468 = vcmp.eq.f32.partialorder %v3467, 8.507059e+37
  %v3469 = vand.u32 %v3320, 2147483648
  %v3470 = vor.u32 1.1754944e-38, %v3469
  %v3471 = vsel %vm3468, %v3470, %v3466
  %v3472 = vmul.f32 %v3280, %v3471
  %v3473 = vrcp.pop %v3322
  %v3474 = vmul.f32 %v3322, %v3473
  %v3475 = vsub.f32 1.0, %v3474
  %v3476 = vmul.f32 %v3473, %v3475
  %v3477 = vadd.f32 %v3473, %v3476
  %vm3478 = vweird.f32 %v3322
  %vm3479 = vweird.f32 %v3473
  %vm3480 = vmor %vm3478, %vm3479
  %v3481 = vsel %vm3480, %v3473, %v3477
  %v3482 = vand.u32 2147483647, %v3322
  %vm3483 = vcmp.eq.f32.partialorder %v3482, 8.507059e+37
  %v3484 = vand.u32 %v3322, 2147483648
  %v3485 = vor.u32 1.1754944e-38, %v3484
  %v3486 = vsel %vm3483, %v3485, %v3481
  %v3487 = vmul.f32 %v3281, %v3486
  %v3488 = vrcp.pop %v3324
  %v3489 = vmul.f32 %v3324, %v3488
  %v3490 = vsub.f32 1.0, %v3489
  %v3491 = vmul.f32 %v3488, %v3490
  %v3492 = vadd.f32 %v3488, %v3491
  %vm3493 = vweird.f32 %v3324
  %vm3494 = vweird.f32 %v3488
  %vm3495 = vmor %vm3493, %vm3494
  %v3496 = vsel %vm3495, %v3488, %v3492
  %v3497 = vand.u32 2147483647, %v3324
  %vm3498 = vcmp.eq.f32.partialorder %v3497, 8.507059e+37
  %v3499 = vand.u32 %v3324, 2147483648
  %v3500 = vor.u32 1.1754944e-38, %v3499
  %v3501 = vsel %vm3498, %v3500, %v3496
  %v3502 = vmul.f32 %v3282, %v3501
  %v3503 = vrcp.pop %v3326
  %v3504 = vmul.f32 %v3326, %v3503
  %v3505 = vsub.f32 1.0, %v3504
  %v3506 = vmul.f32 %v3503, %v3505
  %v3507 = vadd.f32 %v3503, %v3506
  %vm3508 = vweird.f32 %v3326
  %vm3509 = vweird.f32 %v3503
  %vm3510 = vmor %vm3508, %vm3509
  %v3511 = vsel %vm3510, %v3503, %v3507
  %v3512 = vand.u32 2147483647, %v3326
  %vm3513 = vcmp.eq.f32.partialorder %v3512, 8.507059e+37
  %v3514 = vand.u32 %v3326, 2147483648
  %v3515 = vor.u32 1.1754944e-38, %v3514
  %v3516 = vsel %vm3513, %v3515, %v3511
  %v3517 = vmul.f32 %v3283, %v3516
  %v3518 = vrcp.pop %v3328
  %v3519 = vmul.f32 %v3328, %v3518
  %v3520 = vsub.f32 1.0, %v3519
  %v3521 = vmul.f32 %v3518, %v3520
  %v3522 = vadd.f32 %v3518, %v3521
  %vm3523 = vweird.f32 %v3328
  %vm3524 = vweird.f32 %v3518
  %vm3525 = vmor %vm3523, %vm3524
  %v3526 = vsel %vm3525, %v3518, %v3522
  %v3527 = vand.u32 2147483647, %v3328
  %vm3528 = vcmp.eq.f32.partialorder %v3527, 8.507059e+37
  %v3529 = vand.u32 %v3328, 2147483648
  %v3530 = vor.u32 1.1754944e-38, %v3529
  %v3531 = vsel %vm3528, %v3530, %v3526
  %v3532 = vmul.f32 %v3284, %v3531
  %v3533 = vrcp.pop %v3330
  %v3534 = vmul.f32 %v3330, %v3533
  %v3535 = vsub.f32 1.0, %v3534
  %v3536 = vmul.f32 %v3533, %v3535
  %v3537 = vadd.f32 %v3533, %v3536
  %vm3538 = vweird.f32 %v3330
  %vm3539 = vweird.f32 %v3533
  %vm3540 = vmor %vm3538, %vm3539
  %v3541 = vsel %vm3540, %v3533, %v3537
  %v3542 = vand.u32 2147483647, %v3330
  %vm3543 = vcmp.eq.f32.partialorder %v3542, 8.507059e+37
  %v3544 = vand.u32 %v3330, 2147483648
  %v3545 = vor.u32 1.1754944e-38, %v3544
  %v3546 = vsel %vm3543, %v3545, %v3541
  %v3547 = vmul.f32 %v3285, %v3546
  %v3548 = vrcp.pop %v3332
  %v3549 = vmul.f32 %v3332, %v3548
  %v3550 = vsub.f32 1.0, %v3549
  %v3551 = vmul.f32 %v3548, %v3550
  %v3552 = vadd.f32 %v3548, %v3551
  %vm3553 = vweird.f32 %v3332
  %vm3554 = vweird.f32 %v3548
  %vm3555 = vmor %vm3553, %vm3554
  %v3556 = vsel %vm3555, %v3548, %v3552
  %v3557 = vand.u32 2147483647, %v3332
  %vm3558 = vcmp.eq.f32.partialorder %v3557, 8.507059e+37
  %v3559 = vand.u32 %v3332, 2147483648
  %v3560 = vor.u32 1.1754944e-38, %v3559
  %v3561 = vsel %vm3558, %v3560, %v3556
  %v3562 = vmul.f32 %v3286, %v3561
  %v3563 = vrcp.pop %v3334
  %v3564 = vmul.f32 %v3334, %v3563
  %v3565 = vsub.f32 1.0, %v3564
  %v3566 = vmul.f32 %v3563, %v3565
  %v3567 = vadd.f32 %v3563, %v3566
  %vm3568 = vweird.f32 %v3334
  %vm3569 = vweird.f32 %v3563
  %vm3570 = vmor %vm3568, %vm3569
  %v3571 = vsel %vm3570, %v3563, %v3567
  %v3572 = vand.u32 2147483647, %v3334
  %vm3573 = vcmp.eq.f32.partialorder %v3572, 8.507059e+37
  %v3574 = vand.u32 %v3334, 2147483648
  %v3575 = vor.u32 1.1754944e-38, %v3574
  %v3576 = vsel %vm3573, %v3575, %v3571
  %v3577 = vmul.f32 %v3287, %v3576
  %v3578 = vrcp.pop %v3336
  %v3579 = vmul.f32 %v3336, %v3578
  %v3580 = vsub.f32 1.0, %v3579
  %v3581 = vmul.f32 %v3578, %v3580
  %v3582 = vadd.f32 %v3578, %v3581
  %vm3583 = vweird.f32 %v3336
  %vm3584 = vweird.f32 %v3578
  %vm3585 = vmor %vm3583, %vm3584
  %v3586 = vsel %vm3585, %v3578, %v3582
  %v3587 = vand.u32 2147483647, %v3336
  %vm3588 = vcmp.eq.f32.partialorder %v3587, 8.507059e+37
  %v3589 = vand.u32 %v3336, 2147483648
  %v3590 = vor.u32 1.1754944e-38, %v3589
  %v3591 = vsel %vm3588, %v3590, %v3586
  %v3592 = vmul.f32 %v3288, %v3591
  %v3594 = vperm.slane %v96, 0
  %v3596 = vadd.f32 %v3367, %v3594
  %v3597 = vadd.f32 %v3382, %v3594
  %v3598 = vadd.f32 %v3397, %v3594
  %v3599 = vadd.f32 %v3412, %v3594
  %v3600 = vadd.f32 %v3427, %v3594
  %v3601 = vadd.f32 %v3442, %v3594
  %v3602 = vadd.f32 %v3457, %v3594
  %v3603 = vadd.f32 %v3472, %v3594
  %v3604 = vadd.f32 %v3487, %v3594
  %v3605 = vadd.f32 %v3502, %v3594
  %v3606 = vadd.f32 %v3517, %v3594
  %v3607 = vadd.f32 %v3532, %v3594
  %v3608 = vadd.f32 %v3547, %v3594
  %v3609 = vadd.f32 %v3562, %v3594
  %v3610 = vadd.f32 %v3577, %v3594
  %v3611 = vadd.f32 %v3592, %v3594
  %v3612 = vmax.f32 %v3596, 0.0
  %v3613 = vmax.f32 %v3597, 0.0
  %v3614 = vmax.f32 %v3598, 0.0
  %v3615 = vmax.f32 %v3599, 0.0
  %v3616 = vmax.f32 %v3600, 0.0
  %v3617 = vmax.f32 %v3601, 0.0
  %v3618 = vmax.f32 %v3602, 0.0
  %v3619 = vmax.f32 %v3603, 0.0
  %v3620 = vmax.f32 %v3604, 0.0
  %v3621 = vmax.f32 %v3605, 0.0
  %v3622 = vmax.f32 %v3606, 0.0
  %v3623 = vmax.f32 %v3607, 0.0
  %v3624 = vmax.f32 %v3608, 0.0
  %v3625 = vmax.f32 %v3609, 0.0
  %v3626 = vmax.f32 %v3610, 0.0
  %v3627 = vmax.f32 %v3611, 0.0
  %v3628 = vpack.c.bf16 %v3612, %v3612
  %v3629 = vpack.c.bf16 %v3613, %v3613
  %v3630 = vpack.c.bf16 %v3614, %v3614
  %v3631 = vpack.c.bf16 %v3615, %v3615
  %v3632 = vpack.c.bf16 %v3616, %v3616
  %v3633 = vpack.c.bf16 %v3617, %v3617
  %v3634 = vpack.c.bf16 %v3618, %v3618
  %v3635 = vpack.c.bf16 %v3619, %v3619
  %v3636 = vpack.c.bf16 %v3620, %v3620
  %v3637 = vpack.c.bf16 %v3621, %v3621
  %v3638 = vpack.c.bf16 %v3622, %v3622
  %v3639 = vpack.c.bf16 %v3623, %v3623
  %v3640 = vpack.c.bf16 %v3624, %v3624
  %v3641 = vpack.c.bf16 %v3625, %v3625
  %v3642 = vpack.c.bf16 %v3626, %v3626
  %v3643 = vpack.c.bf16 %v3627, %v3627
  %vm3644 = vcmask 519168
  %3645 = vst.msk [vmem:[#allocation2] sm:$0xf] %vm3644, %v3628
  %3646 = vst.msk [vmem:[#allocation2 + $0x4] sm:$0xf] %vm3644, %v3629
  %3647 = vst.msk [vmem:[#allocation2 + $0x8] sm:$0xf] %vm3644, %v3630
  %3648 = vst.msk [vmem:[#allocation2 + $0xc] sm:$0xf] %vm3644, %v3631
  %3649 = vst.msk [vmem:[#allocation2 + $0x10] sm:$0xf] %vm3644, %v3632
  %3650 = vst.msk [vmem:[#allocation2 + $0x14] sm:$0xf] %vm3644, %v3633
  %3651 = vst.msk [vmem:[#allocation2 + $0x18] sm:$0xf] %vm3644, %v3634
  %3652 = vst.msk [vmem:[#allocation2 + $0x1c] sm:$0xf] %vm3644, %v3635
  %3653 = vst.msk [vmem:[#allocation2 + $0x20] sm:$0xf] %vm3644, %v3636
  %3654 = vst.msk [vmem:[#allocation2 + $0x24] sm:$0xf] %vm3644, %v3637
  %3655 = vst.msk [vmem:[#allocation2 + $0x28] sm:$0xf] %vm3644, %v3638
  %3656 = vst.msk [vmem:[#allocation2 + $0x2c] sm:$0xf] %vm3644, %v3639
  %3657 = vst.msk [vmem:[#allocation2 + $0x30] sm:$0xf] %vm3644, %v3640
  %3658 = vst.msk [vmem:[#allocation2 + $0x34] sm:$0xf] %vm3644, %v3641
  %3659 = vst.msk [vmem:[#allocation2 + $0x38] sm:$0xf] %vm3644, %v3642
  %3660 = vst.msk [vmem:[#allocation2 + $0x3c] sm:$0xf] %vm3644, %v3643
  %v3661 = vld [vmem:[#allocation2] sm:$0xf]
  %v3662 = vld [vmem:[#allocation2 + $0x4] sm:$0xf]
  %v3663 = vld [vmem:[#allocation2 + $0x8] sm:$0xf]
  %v3664 = vld [vmem:[#allocation2 + $0xc] sm:$0xf]
  %v3665 = vld [vmem:[#allocation2 + $0x10] sm:$0xf]
  %v3666 = vld [vmem:[#allocation2 + $0x14] sm:$0xf]
  %v3667 = vld [vmem:[#allocation2 + $0x18] sm:$0xf]
  %v3668 = vld [vmem:[#allocation2 + $0x1c] sm:$0xf]
  %v3669 = vld [vmem:[#allocation2 + $0x20] sm:$0xf]
  %v3670 = vld [vmem:[#allocation2 + $0x24] sm:$0xf]
  %v3671 = vld [vmem:[#allocation2 + $0x28] sm:$0xf]
  %v3672 = vld [vmem:[#allocation2 + $0x2c] sm:$0xf]
  %v3673 = vld [vmem:[#allocation2 + $0x30] sm:$0xf]
  %v3674 = vld [vmem:[#allocation2 + $0x34] sm:$0xf]
  %v3675 = vld [vmem:[#allocation2 + $0x38] sm:$0xf]
  %v3676 = vld [vmem:[#allocation2 + $0x3c] sm:$0xf]
  %v3677 = vld [vmem:[%s7] sm:$0xf]
  %v3678 = vld [vmem:[%s7 + $0x4] sm:$0xf]
  %v3679 = vld [vmem:[%s7 + $0x8] sm:$0xf]
  %v3680 = vld [vmem:[%s7 + $0xc] sm:$0xf]
  %v3681 = vld [vmem:[%s7 + $0x10] sm:$0xf]
  %v3682 = vld [vmem:[%s7 + $0x14] sm:$0xf]
  %v3683 = vld [vmem:[%s7 + $0x18] sm:$0xf]
  %v3684 = vld [vmem:[%s7 + $0x1c] sm:$0xf]
  %v3685 = vld [vmem:[%s10] sm:$0x1]
  %v3686 = vld [vmem:[%s8] sm:$0xf]
  %v3687 = vld [vmem:[%s8 + $0x4] sm:$0xf]
  %v3688 = vld [vmem:[%s8 + $0x8] sm:$0xf]
  %v3689 = vld [vmem:[%s8 + $0xc] sm:$0xf]
  %v3690 = vld [vmem:[%s8 + $0x10] sm:$0xf]
  %v3691 = vld [vmem:[%s8 + $0x14] sm:$0xf]
  %v3692 = vld [vmem:[%s8 + $0x18] sm:$0xf]
  %v3693 = vld [vmem:[%s8 + $0x1c] sm:$0xf]
  %v3694 = vld [vmem:[%s8 + $0x20] sm:$0xf]
  %v3695 = vld [vmem:[%s8 + $0x24] sm:$0xf]
  %v3696 = vld [vmem:[%s8 + $0x28] sm:$0xf]
  %v3697 = vld [vmem:[%s8 + $0x2c] sm:$0xf]
  %v3698 = vld [vmem:[%s8 + $0x30] sm:$0xf]
  %v3699 = vld [vmem:[%s8 + $0x34] sm:$0xf]
  %v3700 = vld [vmem:[%s8 + $0x38] sm:$0xf]
  %v3701 = vld [vmem:[%s8 + $0x3c] sm:$0xf]
  %v3702 = vld [vmem:[%s9] sm:$0xf]
  %v3703 = vld [vmem:[%s11] sm:$0x1]
  %v3705 = vperm.slane %v3685, 0
  %v3723 = vunpack.c.l.b16 %v3661
  %v3724 = vunpack.c.l.b16 %v3662
  %v3725 = vunpack.c.l.b16 %v3663
  %v3726 = vunpack.c.l.b16 %v3664
  %v3727 = vunpack.c.l.b16 %v3665
  %v3728 = vunpack.c.l.b16 %v3666
  %v3729 = vunpack.c.l.b16 %v3667
  %v3730 = vunpack.c.l.b16 %v3668
  %v3731 = vunpack.c.l.b16 %v3669
  %v3732 = vunpack.c.l.b16 %v3670
  %v3733 = vunpack.c.l.b16 %v3671
  %v3734 = vunpack.c.l.b16 %v3672
  %v3735 = vunpack.c.l.b16 %v3673
  %v3736 = vunpack.c.l.b16 %v3674
  %v3737 = vunpack.c.l.b16 %v3675
  %v3738 = vunpack.c.l.b16 %v3676
  %v3739 = vpack.c.b16 %v3724, %v3723
  %v3740 = vpack.c.b16 %v3726, %v3725
  %v3741 = vpack.c.b16 %v3728, %v3727
  %v3742 = vpack.c.b16 %v3730, %v3729
  %v3743 = vpack.c.b16 %v3732, %v3731
  %v3744 = vpack.c.b16 %v3734, %v3733
  %v3745 = vpack.c.b16 %v3736, %v3735
  %v3746 = vpack.c.b16 %v3738, %v3737
  %v3755 = vunpack.c.l.b16 %v3677
  %v3756 = vunpack.c.l.b16 %v3678
  %v3757 = vunpack.c.l.b16 %v3679
  %v3758 = vunpack.c.l.b16 %v3680
  %v3759 = vunpack.c.l.b16 %v3681
  %v3760 = vunpack.c.l.b16 %v3682
  %v3761 = vunpack.c.l.b16 %v3683
  %v3762 = vunpack.c.l.b16 %v3684
  %v3763 = vpack.c.b16 %v3756, %v3755
  %v3764 = vpack.c.b16 %v3758, %v3757
  %v3765 = vpack.c.b16 %v3760, %v3759
  %v3766 = vpack.c.b16 %v3762, %v3761
  %vm3771 = vcmask 523264
  %v3773 = vsel %vm3771, %v3739, 0
  %v3776 = vsel %vm3771, %v3740, 0
  %v3779 = vsel %vm3771, %v3741, 0
  %v3782 = vsel %vm3771, %v3742, 0
  %v3785 = vsel %vm3771, %v3743, 0
  %v3788 = vsel %vm3771, %v3744, 0
  %v3791 = vsel %vm3771, %v3745, 0
  %v3794 = vsel %vm3771, %v3746, 0
  %3796 = vmatpush.bf16.msra.mxu0 0
  %3797 = vmatpush.bf16.msra.mxu0 0
  %3798 = vmatpush.bf16.msra.mxu0 0
  %3799 = vmatpush.bf16.msra.mxu0 0
  %3800 = vmatpush.bf16.msra.mxu0 %v3766
  %3801 = vmatpush.bf16.msra.mxu0 %v3765
  %3802 = vmatpush.bf16.msra.mxu0 %v3764
  %3803 = vmatpush.bf16.msra.mxu0 %v3763
  %3804 = vmatmul.bf16.gmra.mxu0 %v3773
  %v3805 = vpop.f32.mrf.mxu0
  %v3806 = vadd.f32 %v3705, %v3805
  %v3807 = vpop.f32.mrf.mxu0
  %v3808 = vadd.f32 %v3705, %v3807
  %3809 = vmatmul.bf16.gmra.mxu0 %v3776
  %v3810 = vpop.f32.mrf.mxu0
  %v3811 = vadd.f32 %v3705, %v3810
  %v3812 = vpop.f32.mrf.mxu0
  %v3813 = vadd.f32 %v3705, %v3812
  %3814 = vmatmul.bf16.gmra.mxu0 %v3779
  %v3815 = vpop.f32.mrf.mxu0
  %v3816 = vadd.f32 %v3705, %v3815
  %v3817 = vpop.f32.mrf.mxu0
  %v3818 = vadd.f32 %v3705, %v3817
  %3819 = vmatmul.bf16.gmra.mxu0 %v3782
  %v3820 = vpop.f32.mrf.mxu0
  %v3821 = vadd.f32 %v3705, %v3820
  %v3822 = vpop.f32.mrf.mxu0
  %v3823 = vadd.f32 %v3705, %v3822
  %3824 = vmatmul.bf16.gmra.mxu0 %v3785
  %v3825 = vpop.f32.mrf.mxu0
  %v3826 = vadd.f32 %v3705, %v3825
  %v3827 = vpop.f32.mrf.mxu0
  %v3828 = vadd.f32 %v3705, %v3827
  %3829 = vmatmul.bf16.gmra.mxu0 %v3788
  %v3830 = vpop.f32.mrf.mxu0
  %v3831 = vadd.f32 %v3705, %v3830
  %v3832 = vpop.f32.mrf.mxu0
  %v3833 = vadd.f32 %v3705, %v3832
  %3834 = vmatmul.bf16.gmra.mxu0 %v3791
  %v3835 = vpop.f32.mrf.mxu0
  %v3836 = vadd.f32 %v3705, %v3835
  %v3837 = vpop.f32.mrf.mxu0
  %v3838 = vadd.f32 %v3705, %v3837
  %3839 = vmatmul.bf16.gmra.mxu0 %v3794
  %v3840 = vpop.f32.mrf.mxu0
  %v3841 = vadd.f32 %v3705, %v3840
  %v3842 = vpop.f32.mrf.mxu0
  %v3843 = vadd.f32 %v3705, %v3842
  %3844 = vdwg.mxu0
  %v3845 = vpack.c.bf16 %v3806, %v3806
  %v3846 = vpack.c.bf16 %v3808, %v3808
  %v3847 = vpack.c.bf16 %v3811, %v3811
  %v3848 = vpack.c.bf16 %v3813, %v3813
  %v3849 = vpack.c.bf16 %v3816, %v3816
  %v3850 = vpack.c.bf16 %v3818, %v3818
  %v3851 = vpack.c.bf16 %v3821, %v3821
  %v3852 = vpack.c.bf16 %v3823, %v3823
  %v3853 = vpack.c.bf16 %v3826, %v3826
  %v3854 = vpack.c.bf16 %v3828, %v3828
  %v3855 = vpack.c.bf16 %v3831, %v3831
  %v3856 = vpack.c.bf16 %v3833, %v3833
  %v3857 = vpack.c.bf16 %v3836, %v3836
  %v3858 = vpack.c.bf16 %v3838, %v3838
  %v3859 = vpack.c.bf16 %v3841, %v3841
  %v3860 = vpack.c.bf16 %v3843, %v3843
  %v3877 = vunpack.c.l.b16 %v3845
  %v3878 = vunpack.c.l.b16 %v3846
  %v3879 = vunpack.c.l.b16 %v3847
  %v3880 = vunpack.c.l.b16 %v3848
  %v3881 = vunpack.c.l.b16 %v3849
  %v3882 = vunpack.c.l.b16 %v3850
  %v3883 = vunpack.c.l.b16 %v3851
  %v3884 = vunpack.c.l.b16 %v3852
  %v3885 = vunpack.c.l.b16 %v3853
  %v3886 = vunpack.c.l.b16 %v3854
  %v3887 = vunpack.c.l.b16 %v3855
  %v3888 = vunpack.c.l.b16 %v3856
  %v3889 = vunpack.c.l.b16 %v3857
  %v3890 = vunpack.c.l.b16 %v3858
  %v3891 = vunpack.c.l.b16 %v3859
  %v3892 = vunpack.c.l.b16 %v3860
  %v3893 = vpack.c.b16 %v3878, %v3877
  %v3894 = vpack.c.b16 %v3880, %v3879
  %v3895 = vpack.c.b16 %v3882, %v3881
  %v3896 = vpack.c.b16 %v3884, %v3883
  %v3897 = vpack.c.b16 %v3886, %v3885
  %v3898 = vpack.c.b16 %v3888, %v3887
  %v3899 = vpack.c.b16 %v3890, %v3889
  %v3900 = vpack.c.b16 %v3892, %v3891
  %v3925 = vunpack.c.l.b16 %v3686
  %v3926 = vunpack.c.l.b16 %v3687
  %v3927 = vunpack.c.l.b16 %v3688
  %v3928 = vunpack.c.l.b16 %v3689
  %v3929 = vunpack.c.l.b16 %v3690
  %v3930 = vunpack.c.l.b16 %v3691
  %v3931 = vunpack.c.l.b16 %v3692
  %v3932 = vunpack.c.l.b16 %v3693
  %v3933 = vunpack.c.l.b16 %v3694
  %v3934 = vunpack.c.l.b16 %v3695
  %v3935 = vunpack.c.l.b16 %v3696
  %v3936 = vunpack.c.l.b16 %v3697
  %v3937 = vunpack.c.l.b16 %v3698
  %v3938 = vunpack.c.l.b16 %v3699
  %v3939 = vunpack.c.l.b16 %v3700
  %v3940 = vunpack.c.l.b16 %v3701
  %v3941 = vpack.c.b16 %v3926, %v3925
  %v3942 = vpack.c.b16 %v3928, %v3927
  %v3943 = vpack.c.b16 %v3930, %v3929
  %v3944 = vpack.c.b16 %v3932, %v3931
  %v3945 = vpack.c.b16 %v3934, %v3933
  %v3946 = vpack.c.b16 %v3936, %v3935
  %v3947 = vpack.c.b16 %v3938, %v3937
  %v3948 = vpack.c.b16 %v3940, %v3939
  %3957 = vmatpush.bf16.msra.mxu0 %v3948
  %3958 = vmatpush.bf16.msra.mxu0 %v3947
  %3959 = vmatpush.bf16.msra.mxu0 %v3946
  %3960 = vmatpush.bf16.msra.mxu0 %v3945
  %3961 = vmatpush.bf16.msra.mxu0 %v3944
  %3962 = vmatpush.bf16.msra.mxu0 %v3943
  %3963 = vmatpush.bf16.msra.mxu0 %v3942
  %3964 = vmatpush.bf16.msra.mxu0 %v3941
  %3965 = vmatmul.bf16.gmra.mxu0 %v3893
  %v3966 = vpop.f32.mrf.mxu0
  %v3967 = vadd.f32 0.0, %v3966
  %v3968 = vpop.f32.mrf.mxu0
  %v3969 = vadd.f32 0.0, %v3968
  %3970 = vmatmul.bf16.gmra.mxu0 %v3894
  %v3971 = vpop.f32.mrf.mxu0
  %v3972 = vadd.f32 0.0, %v3971
  %v3973 = vpop.f32.mrf.mxu0
  %v3974 = vadd.f32 0.0, %v3973
  %3975 = vmatmul.bf16.gmra.mxu0 %v3895
  %v3976 = vpop.f32.mrf.mxu0
  %v3977 = vadd.f32 0.0, %v3976
  %v3978 = vpop.f32.mrf.mxu0
  %v3979 = vadd.f32 0.0, %v3978
  %3980 = vmatmul.bf16.gmra.mxu0 %v3896
  %v3981 = vpop.f32.mrf.mxu0
  %v3982 = vadd.f32 0.0, %v3981
  %v3983 = vpop.f32.mrf.mxu0
  %v3984 = vadd.f32 0.0, %v3983
  %3985 = vmatmul.bf16.gmra.mxu0 %v3897
  %v3986 = vpop.f32.mrf.mxu0
  %v3987 = vadd.f32 0.0, %v3986
  %v3988 = vpop.f32.mrf.mxu0
  %v3989 = vadd.f32 0.0, %v3988
  %3990 = vmatmul.bf16.gmra.mxu0 %v3898
  %v3991 = vpop.f32.mrf.mxu0
  %v3992 = vadd.f32 0.0, %v3991
  %v3993 = vpop.f32.mrf.mxu0
  %v3994 = vadd.f32 0.0, %v3993
  %3995 = vmatmul.bf16.gmra.mxu0 %v3899
  %v3996 = vpop.f32.mrf.mxu0
  %v3997 = vadd.f32 0.0, %v3996
  %v3998 = vpop.f32.mrf.mxu0
  %v3999 = vadd.f32 0.0, %v3998
  %4000 = vmatmul.bf16.gmra.mxu0 %v3900
  %v4001 = vpop.f32.mrf.mxu0
  %v4002 = vadd.f32 0.0, %v4001
  %v4003 = vpop.f32.mrf.mxu0
  %v4004 = vadd.f32 0.0, %v4003
  %4005 = vdwg.mxu0
  %4022 = vrot.lane.b32.xlu0 %v3967, 120
  %v4023 = vpop.permute.xlu0 %4022
  %4024 = vrot.lane.b32.xlu0 %v3969, 120
  %v4025 = vpop.permute.xlu0 %4024
  %4026 = vrot.lane.b32.xlu0 %v3972, 120
  %v4027 = vpop.permute.xlu0 %4026
  %4028 = vrot.lane.b32.xlu0 %v3974, 120
  %v4029 = vpop.permute.xlu0 %4028
  %4030 = vrot.lane.b32.xlu0 %v3977, 120
  %v4031 = vpop.permute.xlu0 %4030
  %4032 = vrot.lane.b32.xlu0 %v3979, 120
  %v4033 = vpop.permute.xlu0 %4032
  %4034 = vrot.lane.b32.xlu0 %v3982, 120
  %v4035 = vpop.permute.xlu0 %4034
  %4036 = vrot.lane.b32.xlu0 %v3984, 120
  %v4037 = vpop.permute.xlu0 %4036
  %4038 = vrot.lane.b32.xlu0 %v3987, 120
  %v4039 = vpop.permute.xlu0 %4038
  %4040 = vrot.lane.b32.xlu0 %v3989, 120
  %v4041 = vpop.permute.xlu0 %4040
  %4042 = vrot.lane.b32.xlu0 %v3992, 120
  %v4043 = vpop.permute.xlu0 %4042
  %4044 = vrot.lane.b32.xlu0 %v3994, 120
  %v4045 = vpop.permute.xlu0 %4044
  %4046 = vrot.lane.b32.xlu0 %v3997, 120
  %v4047 = vpop.permute.xlu0 %4046
  %4048 = vrot.lane.b32.xlu0 %v3999, 120
  %v4049 = vpop.permute.xlu0 %4048
  %4050 = vrot.lane.b32.xlu0 %v4002, 120
  %v4051 = vpop.permute.xlu0 %4050
  %4052 = vrot.lane.b32.xlu0 %v4004, 120
  %v4053 = vpop.permute.xlu0 %4052
  %4070 = vxpose.xlu0.b32.start [1/16] %v4023, 128
  %4071 = vxpose.xlu0.b32.cont [2/16] %v4025, 128
  %4072 = vxpose.xlu0.b32.cont [3/16] %v4027, 128
  %4073 = vxpose.xlu0.b32.cont [4/16] %v4029, 128
  %4074 = vxpose.xlu0.b32.cont [5/16] %v4031, 128
  %4075 = vxpose.xlu0.b32.cont [6/16] %v4033, 128
  %4076 = vxpose.xlu0.b32.cont [7/16] %v4035, 128
  %4077 = vxpose.xlu0.b32.cont [8/16] %v4037, 128
  %4078 = vxpose.xlu0.b32.cont [9/16] %v4039, 128
  %4079 = vxpose.xlu0.b32.cont [10/16] %v4041, 128
  %4080 = vxpose.xlu0.b32.cont [11/16] %v4043, 128
  %4081 = vxpose.xlu0.b32.cont [12/16] %v4045, 128
  %4082 = vxpose.xlu0.b32.cont [13/16] %v4047, 128
  %4083 = vxpose.xlu0.b32.cont [14/16] %v4049, 128
  %4084 = vxpose.xlu0.b32.cont [15/16] %v4051, 128
  %4085 = vxpose.xlu0.b32.end [16/16] %v4053, 128
  %v4086 = vpop.trf.xlu0
  %v4087 = vpop.trf.xlu0
  %v4088 = vpop.trf.xlu0
  %v4089 = vpop.trf.xlu0
  %v4090 = vpop.trf.xlu0
  %v4091 = vpop.trf.xlu0
  %v4092 = vpop.trf.xlu0
  %v4093 = vpop.trf.xlu0
  %v4094 = vpop.trf.xlu0
  %v4095 = vpop.trf.xlu0
  %v4096 = vpop.trf.xlu0
  %v4097 = vpop.trf.xlu0
  %v4098 = vpop.trf.xlu0
  %v4099 = vpop.trf.xlu0
  %v4100 = vpop.trf.xlu0
  %v4101 = vpop.trf.xlu0
  %4102 = vst [vmem:[#allocation4] sm:$0xff] 0.0
  %4103 = vst [vmem:[#allocation4 + $0x8] sm:$0xff] 0.0
  %4104 = vst [vmem:[#allocation4 + $0x10] sm:$0xff] 0.0
  %4105 = vst [vmem:[#allocation4 + $0x18] sm:$0xff] 0.0
  %4106 = vst [vmem:[#allocation4 + $0x20] sm:$0xff] 0.0
  %4107 = vst [vmem:[#allocation4 + $0x28] sm:$0xff] 0.0
  %4108 = vst [vmem:[#allocation4 + $0x30] sm:$0xff] 0.0
  %4109 = vst [vmem:[#allocation4 + $0x38] sm:$0xff] 0.0
  %4110 = vst [vmem:[#allocation4 + $0x40] sm:$0xff] 0.0
  %4111 = vst [vmem:[#allocation4 + $0x48] sm:$0xff] 0.0
  %4112 = vst [vmem:[#allocation4 + $0x50] sm:$0xff] 0.0
  %4113 = vst [vmem:[#allocation4 + $0x58] sm:$0xff] 0.0
  %4114 = vst [vmem:[#allocation4 + $0x60] sm:$0xff] 0.0
  %4115 = vst [vmem:[#allocation4 + $0x68] sm:$0xff] 0.0
  %4116 = vst [vmem:[#allocation4 + $0x70] sm:$0xff] 0.0
  %4117 = vst [vmem:[#allocation4 + $0x78] sm:$0xff] 0.0
  %4118 = vset.pattern.permute.xlu0 0
  %4119 = vperm.xlu0 %4118, %v3967
  %v4120 = vpop.permute.xlu0 %4119
  %4122 = vset.pattern.permute.xlu0 0
  %4123 = vperm.xlu0 %4122, %v3969
  %v4124 = vpop.permute.xlu0 %4123
  %4126 = vset.pattern.permute.xlu0 0
  %4127 = vperm.xlu0 %4126, %v3972
  %v4128 = vpop.permute.xlu0 %4127
  %4130 = vset.pattern.permute.xlu0 0
  %4131 = vperm.xlu0 %4130, %v3974
  %v4132 = vpop.permute.xlu0 %4131
  %4134 = vset.pattern.permute.xlu0 0
  %4135 = vperm.xlu0 %4134, %v3977
  %v4136 = vpop.permute.xlu0 %4135
  %4138 = vset.pattern.permute.xlu0 0
  %4139 = vperm.xlu0 %4138, %v3979
  %v4140 = vpop.permute.xlu0 %4139
  %4142 = vset.pattern.permute.xlu0 0
  %4143 = vperm.xlu0 %4142, %v3982
  %v4144 = vpop.permute.xlu0 %4143
  %4146 = vset.pattern.permute.xlu0 0
  %4147 = vperm.xlu0 %4146, %v3984
  %v4148 = vpop.permute.xlu0 %4147
  %4150 = vset.pattern.permute.xlu0 0
  %4151 = vperm.xlu0 %4150, %v3987
  %v4152 = vpop.permute.xlu0 %4151
  %4154 = vset.pattern.permute.xlu0 0
  %4155 = vperm.xlu0 %4154, %v3989
  %v4156 = vpop.permute.xlu0 %4155
  %4158 = vset.pattern.permute.xlu0 0
  %4159 = vperm.xlu0 %4158, %v3992
  %v4160 = vpop.permute.xlu0 %4159
  %4162 = vset.pattern.permute.xlu0 0
  %4163 = vperm.xlu0 %4162, %v3994
  %v4164 = vpop.permute.xlu0 %4163
  %4166 = vset.pattern.permute.xlu0 0
  %4167 = vperm.xlu0 %4166, %v3997
  %v4168 = vpop.permute.xlu0 %4167
  %4170 = vset.pattern.permute.xlu0 0
  %4171 = vperm.xlu0 %4170, %v3999
  %v4172 = vpop.permute.xlu0 %4171
  %4174 = vset.pattern.permute.xlu0 0
  %4175 = vperm.xlu0 %4174, %v4002
  %v4176 = vpop.permute.xlu0 %4175
  %4178 = vset.pattern.permute.xlu0 0
  %4179 = vperm.xlu0 %4178, %v4004
  %v4180 = vpop.permute.xlu0 %4179
  %v4182 = vperm.slane %v4086, 0
  %v4183 = vadd.f32 %v4120, %v4182
  %v4184 = vadd.f32 %v4124, %v4182
  %v4185 = vadd.f32 %v4128, %v4182
  %v4186 = vadd.f32 %v4132, %v4182
  %v4187 = vadd.f32 %v4136, %v4182
  %v4188 = vadd.f32 %v4140, %v4182
  %v4189 = vadd.f32 %v4144, %v4182
  %v4190 = vadd.f32 %v4148, %v4182
  %v4191 = vadd.f32 %v4152, %v4182
  %v4192 = vadd.f32 %v4156, %v4182
  %v4193 = vadd.f32 %v4160, %v4182
  %v4194 = vadd.f32 %v4164, %v4182
  %v4195 = vadd.f32 %v4168, %v4182
  %v4196 = vadd.f32 %v4172, %v4182
  %v4197 = vadd.f32 %v4176, %v4182
  %v4198 = vadd.f32 %v4180, %v4182
  %v4199 = vmul.f32 %v4183, 0.2
  %v4200 = vmul.f32 %v4184, 0.2
  %v4201 = vmul.f32 %v4185, 0.2
  %v4202 = vmul.f32 %v4186, 0.2
  %v4203 = vmul.f32 %v4187, 0.2
  %v4204 = vmul.f32 %v4188, 0.2
  %v4205 = vmul.f32 %v4189, 0.2
  %v4206 = vmul.f32 %v4190, 0.2
  %v4207 = vmul.f32 %v4191, 0.2
  %v4208 = vmul.f32 %v4192, 0.2
  %v4209 = vmul.f32 %v4193, 0.2
  %v4210 = vmul.f32 %v4194, 0.2
  %v4211 = vmul.f32 %v4195, 0.2
  %v4212 = vmul.f32 %v4196, 0.2
  %v4213 = vmul.f32 %v4197, 0.2
  %v4214 = vmul.f32 %v4198, 0.2
  %v4215 = vmax.f32 %v4183, %v4199
  %v4216 = vmax.f32 %v4184, %v4200
  %v4217 = vmax.f32 %v4185, %v4201
  %v4218 = vmax.f32 %v4186, %v4202
  %v4219 = vmax.f32 %v4187, %v4203
  %v4220 = vmax.f32 %v4188, %v4204
  %v4221 = vmax.f32 %v4189, %v4205
  %v4222 = vmax.f32 %v4190, %v4206
  %v4223 = vmax.f32 %v4191, %v4207
  %v4224 = vmax.f32 %v4192, %v4208
  %v4225 = vmax.f32 %v4193, %v4209
  %v4226 = vmax.f32 %v4194, %v4210
  %v4227 = vmax.f32 %v4195, %v4211
  %v4228 = vmax.f32 %v4196, %v4212
  %v4229 = vmax.f32 %v4197, %v4213
  %v4230 = vmax.f32 %v4198, %v4214
  %v4231 = vsel %vm628, %v4215, -1e+30
  %v4232 = vsel %vm629, %v4216, -1e+30
  %v4233 = vsel %vm630, %v4217, -1e+30
  %v4234 = vsel %vm631, %v4218, -1e+30
  %v4235 = vsel %vm632, %v4219, -1e+30
  %v4236 = vsel %vm633, %v4220, -1e+30
  %v4237 = vsel %vm634, %v4221, -1e+30
  %v4238 = vsel %vm635, %v4222, -1e+30
  %v4239 = vsel %vm636, %v4223, -1e+30
  %v4240 = vsel %vm637, %v4224, -1e+30
  %v4241 = vsel %vm638, %v4225, -1e+30
  %v4242 = vsel %vm639, %v4226, -1e+30
  %v4243 = vsel %vm640, %v4227, -1e+30
  %v4244 = vsel %vm641, %v4228, -1e+30
  %v4245 = vsel %vm642, %v4229, -1e+30
  %v4246 = vsel %vm643, %v4230, -1e+30
  %4247 = vmax.xlane.f32.xlu0 %v4231
  %v4248 = vpop.xlane.xlu0 %4247
  %4249 = vmax.xlane.f32.xlu0 %v4232
  %v4250 = vpop.xlane.xlu0 %4249
  %4251 = vmax.xlane.f32.xlu0 %v4233
  %v4252 = vpop.xlane.xlu0 %4251
  %4253 = vmax.xlane.f32.xlu0 %v4234
  %v4254 = vpop.xlane.xlu0 %4253
  %4255 = vmax.xlane.f32.xlu0 %v4235
  %v4256 = vpop.xlane.xlu0 %4255
  %4257 = vmax.xlane.f32.xlu0 %v4236
  %v4258 = vpop.xlane.xlu0 %4257
  %4259 = vmax.xlane.f32.xlu0 %v4237
  %v4260 = vpop.xlane.xlu0 %4259
  %4261 = vmax.xlane.f32.xlu0 %v4238
  %v4262 = vpop.xlane.xlu0 %4261
  %4263 = vmax.xlane.f32.xlu0 %v4239
  %v4264 = vpop.xlane.xlu0 %4263
  %4265 = vmax.xlane.f32.xlu0 %v4240
  %v4266 = vpop.xlane.xlu0 %4265
  %4267 = vmax.xlane.f32.xlu0 %v4241
  %v4268 = vpop.xlane.xlu0 %4267
  %4269 = vmax.xlane.f32.xlu0 %v4242
  %v4270 = vpop.xlane.xlu0 %4269
  %4271 = vmax.xlane.f32.xlu0 %v4243
  %v4272 = vpop.xlane.xlu0 %4271
  %4273 = vmax.xlane.f32.xlu0 %v4244
  %v4274 = vpop.xlane.xlu0 %4273
  %4275 = vmax.xlane.f32.xlu0 %v4245
  %v4276 = vpop.xlane.xlu0 %4275
  %4277 = vmax.xlane.f32.xlu0 %v4246
  %v4278 = vpop.xlane.xlu0 %4277
  %v4279 = vsub.f32 %v4231, %v4248
  %v4280 = vsub.f32 %v4232, %v4250
  %v4281 = vsub.f32 %v4233, %v4252
  %v4282 = vsub.f32 %v4234, %v4254
  %v4283 = vsub.f32 %v4235, %v4256
  %v4284 = vsub.f32 %v4236, %v4258
  %v4285 = vsub.f32 %v4237, %v4260
  %v4286 = vsub.f32 %v4238, %v4262
  %v4287 = vsub.f32 %v4239, %v4264
  %v4288 = vsub.f32 %v4240, %v4266
  %v4289 = vsub.f32 %v4241, %v4268
  %v4290 = vsub.f32 %v4242, %v4270
  %v4291 = vsub.f32 %v4243, %v4272
  %v4292 = vsub.f32 %v4244, %v4274
  %v4293 = vsub.f32 %v4245, %v4276
  %v4294 = vsub.f32 %v4246, %v4278
  %v4295 = vmul.f32 %v4279, 1.442695
  %v4296 = vpow.pop %v4295
  %v4297 = vmul.f32 %v4280, 1.442695
  %v4298 = vpow.pop %v4297
  %v4299 = vmul.f32 %v4281, 1.442695
  %v4300 = vpow.pop %v4299
  %v4301 = vmul.f32 %v4282, 1.442695
  %v4302 = vpow.pop %v4301
  %v4303 = vmul.f32 %v4283, 1.442695
  %v4304 = vpow.pop %v4303
  %v4305 = vmul.f32 %v4284, 1.442695
  %v4306 = vpow.pop %v4305
  %v4307 = vmul.f32 %v4285, 1.442695
  %v4308 = vpow.pop %v4307
  %v4309 = vmul.f32 %v4286, 1.442695
  %v4310 = vpow.pop %v4309
  %v4311 = vmul.f32 %v4287, 1.442695
  %v4312 = vpow.pop %v4311
  %v4313 = vmul.f32 %v4288, 1.442695
  %v4314 = vpow.pop %v4313
  %v4315 = vmul.f32 %v4289, 1.442695
  %v4316 = vpow.pop %v4315
  %v4317 = vmul.f32 %v4290, 1.442695
  %v4318 = vpow.pop %v4317
  %v4319 = vmul.f32 %v4291, 1.442695
  %v4320 = vpow.pop %v4319
  %v4321 = vmul.f32 %v4292, 1.442695
  %v4322 = vpow.pop %v4321
  %v4323 = vmul.f32 %v4293, 1.442695
  %v4324 = vpow.pop %v4323
  %v4325 = vmul.f32 %v4294, 1.442695
  %v4326 = vpow.pop %v4325
  %v4328 = vpack.i.b16 %v3702, %v3702
  %v4330 = vperm.slane %v4328, 0
  %v4331 = vunpack.c.l.bf16 %v3845
  %v4332 = vunpack.c.l.bf16 %v3846
  %v4333 = vunpack.c.l.bf16 %v3847
  %v4334 = vunpack.c.l.bf16 %v3848
  %v4335 = vunpack.c.l.bf16 %v3849
  %v4336 = vunpack.c.l.bf16 %v3850
  %v4337 = vunpack.c.l.bf16 %v3851
  %v4338 = vunpack.c.l.bf16 %v3852
  %v4339 = vunpack.c.l.bf16 %v3853
  %v4340 = vunpack.c.l.bf16 %v3854
  %v4341 = vunpack.c.l.bf16 %v3855
  %v4342 = vunpack.c.l.bf16 %v3856
  %v4343 = vunpack.c.l.bf16 %v3857
  %v4344 = vunpack.c.l.bf16 %v3858
  %v4345 = vunpack.c.l.bf16 %v3859
  %v4346 = vunpack.c.l.bf16 %v3860
  %v4347 = vunpack.c.l.bf16 %v4330
  %v4348 = vmul.f32 %v4331, %v4347
  %v4349 = vmul.f32 %v4332, %v4347
  %v4350 = vmul.f32 %v4333, %v4347
  %v4351 = vmul.f32 %v4334, %v4347
  %v4352 = vmul.f32 %v4335, %v4347
  %v4353 = vmul.f32 %v4336, %v4347
  %v4354 = vmul.f32 %v4337, %v4347
  %v4355 = vmul.f32 %v4338, %v4347
  %v4356 = vmul.f32 %v4339, %v4347
  %v4357 = vmul.f32 %v4340, %v4347
  %v4358 = vmul.f32 %v4341, %v4347
  %v4359 = vmul.f32 %v4342, %v4347
  %v4360 = vmul.f32 %v4343, %v4347
  %v4361 = vmul.f32 %v4344, %v4347
  %v4362 = vmul.f32 %v4345, %v4347
  %v4363 = vmul.f32 %v4346, %v4347
  %v4364 = vpack.c.bf16 %v4349, %v4348
  %v4365 = vpack.c.bf16 %v4351, %v4350
  %v4366 = vpack.c.bf16 %v4353, %v4352
  %v4367 = vpack.c.bf16 %v4355, %v4354
  %v4368 = vpack.c.bf16 %v4357, %v4356
  %v4369 = vpack.c.bf16 %v4359, %v4358
  %v4370 = vpack.c.bf16 %v4361, %v4360
  %v4371 = vpack.c.bf16 %v4363, %v4362
  %v4372 = vld [vmem:[#allocation4] sm:$0xff]
  %v4373 = vld [vmem:[#allocation4 + $0x8] sm:$0xff]
  %v4374 = vld [vmem:[#allocation4 + $0x10] sm:$0xff]
  %v4375 = vld [vmem:[#allocation4 + $0x18] sm:$0xff]
  %v4376 = vld [vmem:[#allocation4 + $0x20] sm:$0xff]
  %v4377 = vld [vmem:[#allocation4 + $0x28] sm:$0xff]
  %v4378 = vld [vmem:[#allocation4 + $0x30] sm:$0xff]
  %v4379 = vld [vmem:[#allocation4 + $0x38] sm:$0xff]
  %v4380 = vld [vmem:[#allocation4 + $0x40] sm:$0xff]
  %v4381 = vld [vmem:[#allocation4 + $0x48] sm:$0xff]
  %v4382 = vld [vmem:[#allocation4 + $0x50] sm:$0xff]
  %v4383 = vld [vmem:[#allocation4 + $0x58] sm:$0xff]
  %v4384 = vld [vmem:[#allocation4 + $0x60] sm:$0xff]
  %v4385 = vld [vmem:[#allocation4 + $0x68] sm:$0xff]
  %v4386 = vld [vmem:[#allocation4 + $0x70] sm:$0xff]
  %v4387 = vld [vmem:[#allocation4 + $0x78] sm:$0xff]
  %v4388 = vpack.c.bf16 %v4298, %v4296
  %v4389 = vpack.c.bf16 %v4302, %v4300
  %v4390 = vpack.c.bf16 %v4306, %v4304
  %v4391 = vpack.c.bf16 %v4310, %v4308
  %v4392 = vpack.c.bf16 %v4314, %v4312
  %v4393 = vpack.c.bf16 %v4318, %v4316
  %v4394 = vpack.c.bf16 %v4322, %v4320
  %v4395 = vpack.c.bf16 %v4326, %v4324
  %4396 = vmatpush.bf16.msra.mxu0 %v4371
  %4397 = vmatpush.bf16.msra.mxu0 %v4370
  %4398 = vmatpush.bf16.msra.mxu0 %v4369
  %4399 = vmatpush.bf16.msra.mxu0 %v4368
  %4400 = vmatpush.bf16.msra.mxu0 %v4367
  %4401 = vmatpush.bf16.msra.mxu0 %v4366
  %4402 = vmatpush.bf16.msra.mxu0 %v4365
  %4403 = vmatpush.bf16.msra.mxu0 %v4364
  %4404 = vmatmul.bf16.gmra.mxu0 %v4388
  %v4405 = vpop.f32.mrf.mxu0
  %v4406 = vadd.f32 0.0, %v4405
  %v4407 = vpop.f32.mrf.mxu0
  %v4408 = vadd.f32 0.0, %v4407
  %4409 = vmatmul.bf16.gmra.mxu0 %v4389
  %v4410 = vpop.f32.mrf.mxu0
  %v4411 = vadd.f32 0.0, %v4410
  %v4412 = vpop.f32.mrf.mxu0
  %v4413 = vadd.f32 0.0, %v4412
  %4414 = vmatmul.bf16.gmra.mxu0 %v4390
  %v4415 = vpop.f32.mrf.mxu0
  %v4416 = vadd.f32 0.0, %v4415
  %v4417 = vpop.f32.mrf.mxu0
  %v4418 = vadd.f32 0.0, %v4417
  %4419 = vmatmul.bf16.gmra.mxu0 %v4391
  %v4420 = vpop.f32.mrf.mxu0
  %v4421 = vadd.f32 0.0, %v4420
  %v4422 = vpop.f32.mrf.mxu0
  %v4423 = vadd.f32 0.0, %v4422
  %4424 = vmatmul.bf16.gmra.mxu0 %v4392
  %v4425 = vpop.f32.mrf.mxu0
  %v4426 = vadd.f32 0.0, %v4425
  %v4427 = vpop.f32.mrf.mxu0
  %v4428 = vadd.f32 0.0, %v4427
  %4429 = vmatmul.bf16.gmra.mxu0 %v4393
  %v4430 = vpop.f32.mrf.mxu0
  %v4431 = vadd.f32 0.0, %v4430
  %v4432 = vpop.f32.mrf.mxu0
  %v4433 = vadd.f32 0.0, %v4432
  %4434 = vmatmul.bf16.gmra.mxu0 %v4394
  %v4435 = vpop.f32.mrf.mxu0
  %v4436 = vadd.f32 0.0, %v4435
  %v4437 = vpop.f32.mrf.mxu0
  %v4438 = vadd.f32 0.0, %v4437
  %4439 = vmatmul.bf16.gmra.mxu0 %v4395
  %v4440 = vpop.f32.mrf.mxu0
  %v4441 = vadd.f32 0.0, %v4440
  %v4442 = vpop.f32.mrf.mxu0
  %v4443 = vadd.f32 0.0, %v4442
  %4444 = vdwg.mxu0
  %v4445 = vadd.f32 %v4372, %v4406
  %v4446 = vadd.f32 %v4373, %v4408
  %v4447 = vadd.f32 %v4374, %v4411
  %v4448 = vadd.f32 %v4375, %v4413
  %v4449 = vadd.f32 %v4376, %v4416
  %v4450 = vadd.f32 %v4377, %v4418
  %v4451 = vadd.f32 %v4378, %v4421
  %v4452 = vadd.f32 %v4379, %v4423
  %v4453 = vadd.f32 %v4380, %v4426
  %v4454 = vadd.f32 %v4381, %v4428
  %v4455 = vadd.f32 %v4382, %v4431
  %v4456 = vadd.f32 %v4383, %v4433
  %v4457 = vadd.f32 %v4384, %v4436
  %v4458 = vadd.f32 %v4385, %v4438
  %v4459 = vadd.f32 %v4386, %v4441
  %v4460 = vadd.f32 %v4387, %v4443
  %4461 = vst [vmem:[#allocation4] sm:$0xff] %v4445
  %4462 = vst [vmem:[#allocation4 + $0x8] sm:$0xff] %v4446
  %4463 = vst [vmem:[#allocation4 + $0x10] sm:$0xff] %v4447
  %4464 = vst [vmem:[#allocation4 + $0x18] sm:$0xff] %v4448
  %4465 = vst [vmem:[#allocation4 + $0x20] sm:$0xff] %v4449
  %4466 = vst [vmem:[#allocation4 + $0x28] sm:$0xff] %v4450
  %4467 = vst [vmem:[#allocation4 + $0x30] sm:$0xff] %v4451
  %4468 = vst [vmem:[#allocation4 + $0x38] sm:$0xff] %v4452
  %4469 = vst [vmem:[#allocation4 + $0x40] sm:$0xff] %v4453
  %4470 = vst [vmem:[#allocation4 + $0x48] sm:$0xff] %v4454
  %4471 = vst [vmem:[#allocation4 + $0x50] sm:$0xff] %v4455
  %4472 = vst [vmem:[#allocation4 + $0x58] sm:$0xff] %v4456
  %4473 = vst [vmem:[#allocation4 + $0x60] sm:$0xff] %v4457
  %4474 = vst [vmem:[#allocation4 + $0x68] sm:$0xff] %v4458
  %4475 = vst [vmem:[#allocation4 + $0x70] sm:$0xff] %v4459
  %4476 = vst [vmem:[#allocation4 + $0x78] sm:$0xff] %v4460
  %4477 = vset.pattern.permute.xlu0 1
  %4478 = vperm.xlu0 %4477, %v3967
  %v4479 = vpop.permute.xlu0 %4478
  %4481 = vset.pattern.permute.xlu0 1
  %4482 = vperm.xlu0 %4481, %v3969
  %v4483 = vpop.permute.xlu0 %4482
  %4485 = vset.pattern.permute.xlu0 1
  %4486 = vperm.xlu0 %4485, %v3972
  %v4487 = vpop.permute.xlu0 %4486
  %4489 = vset.pattern.permute.xlu0 1
  %4490 = vperm.xlu0 %4489, %v3974
  %v4491 = vpop.permute.xlu0 %4490
  %4493 = vset.pattern.permute.xlu0 1
  %4494 = vperm.xlu0 %4493, %v3977
  %v4495 = vpop.permute.xlu0 %4494
  %4497 = vset.pattern.permute.xlu0 1
  %4498 = vperm.xlu0 %4497, %v3979
  %v4499 = vpop.permute.xlu0 %4498
  %4501 = vset.pattern.permute.xlu0 1
  %4502 = vperm.xlu0 %4501, %v3982
  %v4503 = vpop.permute.xlu0 %4502
  %4505 = vset.pattern.permute.xlu0 1
  %4506 = vperm.xlu0 %4505, %v3984
  %v4507 = vpop.permute.xlu0 %4506
  %4509 = vset.pattern.permute.xlu0 1
  %4510 = vperm.xlu0 %4509, %v3987
  %v4511 = vpop.permute.xlu0 %4510
  %4513 = vset.pattern.permute.xlu0 1
  %4514 = vperm.xlu0 %4513, %v3989
  %v4515 = vpop.permute.xlu0 %4514
  %4517 = vset.pattern.permute.xlu0 1
  %4518 = vperm.xlu0 %4517, %v3992
  %v4519 = vpop.permute.xlu0 %4518
  %4521 = vset.pattern.permute.xlu0 1
  %4522 = vperm.xlu0 %4521, %v3994
  %v4523 = vpop.permute.xlu0 %4522
  %4525 = vset.pattern.permute.xlu0 1
  %4526 = vperm.xlu0 %4525, %v3997
  %v4527 = vpop.permute.xlu0 %4526
  %4529 = vset.pattern.permute.xlu0 1
  %4530 = vperm.xlu0 %4529, %v3999
  %v4531 = vpop.permute.xlu0 %4530
  %4533 = vset.pattern.permute.xlu0 1
  %4534 = vperm.xlu0 %4533, %v4002
  %v4535 = vpop.permute.xlu0 %4534
  %4537 = vset.pattern.permute.xlu0 1
  %4538 = vperm.xlu0 %4537, %v4004
  %v4539 = vpop.permute.xlu0 %4538
  %v4541 = vperm.slane %v4086, 1
  %v4542 = vadd.f32 %v4479, %v4541
  %v4543 = vadd.f32 %v4483, %v4541
  %v4544 = vadd.f32 %v4487, %v4541
  %v4545 = vadd.f32 %v4491, %v4541
  %v4546 = vadd.f32 %v4495, %v4541
  %v4547 = vadd.f32 %v4499, %v4541
  %v4548 = vadd.f32 %v4503, %v4541
  %v4549 = vadd.f32 %v4507, %v4541
  %v4550 = vadd.f32 %v4511, %v4541
  %v4551 = vadd.f32 %v4515, %v4541
  %v4552 = vadd.f32 %v4519, %v4541
  %v4553 = vadd.f32 %v4523, %v4541
  %v4554 = vadd.f32 %v4527, %v4541
  %v4555 = vadd.f32 %v4531, %v4541
  %v4556 = vadd.f32 %v4535, %v4541
  %v4557 = vadd.f32 %v4539, %v4541
  %v4558 = vmul.f32 %v4542, 0.2
  %v4559 = vmul.f32 %v4543, 0.2
  %v4560 = vmul.f32 %v4544, 0.2
  %v4561 = vmul.f32 %v4545, 0.2
  %v4562 = vmul.f32 %v4546, 0.2
  %v4563 = vmul.f32 %v4547, 0.2
  %v4564 = vmul.f32 %v4548, 0.2
  %v4565 = vmul.f32 %v4549, 0.2
  %v4566 = vmul.f32 %v4550, 0.2
  %v4567 = vmul.f32 %v4551, 0.2
  %v4568 = vmul.f32 %v4552, 0.2
  %v4569 = vmul.f32 %v4553, 0.2
  %v4570 = vmul.f32 %v4554, 0.2
  %v4571 = vmul.f32 %v4555, 0.2
  %v4572 = vmul.f32 %v4556, 0.2
  %v4573 = vmul.f32 %v4557, 0.2
  %v4574 = vmax.f32 %v4542, %v4558
  %v4575 = vmax.f32 %v4543, %v4559
  %v4576 = vmax.f32 %v4544, %v4560
  %v4577 = vmax.f32 %v4545, %v4561
  %v4578 = vmax.f32 %v4546, %v4562
  %v4579 = vmax.f32 %v4547, %v4563
  %v4580 = vmax.f32 %v4548, %v4564
  %v4581 = vmax.f32 %v4549, %v4565
  %v4582 = vmax.f32 %v4550, %v4566
  %v4583 = vmax.f32 %v4551, %v4567
  %v4584 = vmax.f32 %v4552, %v4568
  %v4585 = vmax.f32 %v4553, %v4569
  %v4586 = vmax.f32 %v4554, %v4570
  %v4587 = vmax.f32 %v4555, %v4571
  %v4588 = vmax.f32 %v4556, %v4572
  %v4589 = vmax.f32 %v4557, %v4573
  %v4590 = vsel %vm628, %v4574, -1e+30
  %v4591 = vsel %vm629, %v4575, -1e+30
  %v4592 = vsel %vm630, %v4576, -1e+30
  %v4593 = vsel %vm631, %v4577, -1e+30
  %v4594 = vsel %vm632, %v4578, -1e+30
  %v4595 = vsel %vm633, %v4579, -1e+30
  %v4596 = vsel %vm634, %v4580, -1e+30
  %v4597 = vsel %vm635, %v4581, -1e+30
  %v4598 = vsel %vm636, %v4582, -1e+30
  %v4599 = vsel %vm637, %v4583, -1e+30
  %v4600 = vsel %vm638, %v4584, -1e+30
  %v4601 = vsel %vm639, %v4585, -1e+30
  %v4602 = vsel %vm640, %v4586, -1e+30
  %v4603 = vsel %vm641, %v4587, -1e+30
  %v4604 = vsel %vm642, %v4588, -1e+30
  %v4605 = vsel %vm643, %v4589, -1e+30
  %4606 = vmax.xlane.f32.xlu0 %v4590
  %v4607 = vpop.xlane.xlu0 %4606
  %4608 = vmax.xlane.f32.xlu0 %v4591
  %v4609 = vpop.xlane.xlu0 %4608
  %4610 = vmax.xlane.f32.xlu0 %v4592
  %v4611 = vpop.xlane.xlu0 %4610
  %4612 = vmax.xlane.f32.xlu0 %v4593
  %v4613 = vpop.xlane.xlu0 %4612
  %4614 = vmax.xlane.f32.xlu0 %v4594
  %v4615 = vpop.xlane.xlu0 %4614
  %4616 = vmax.xlane.f32.xlu0 %v4595
  %v4617 = vpop.xlane.xlu0 %4616
  %4618 = vmax.xlane.f32.xlu0 %v4596
  %v4619 = vpop.xlane.xlu0 %4618
  %4620 = vmax.xlane.f32.xlu0 %v4597
  %v4621 = vpop.xlane.xlu0 %4620
  %4622 = vmax.xlane.f32.xlu0 %v4598
  %v4623 = vpop.xlane.xlu0 %4622
  %4624 = vmax.xlane.f32.xlu0 %v4599
  %v4625 = vpop.xlane.xlu0 %4624
  %4626 = vmax.xlane.f32.xlu0 %v4600
  %v4627 = vpop.xlane.xlu0 %4626
  %4628 = vmax.xlane.f32.xlu0 %v4601
  %v4629 = vpop.xlane.xlu0 %4628
  %4630 = vmax.xlane.f32.xlu0 %v4602
  %v4631 = vpop.xlane.xlu0 %4630
  %4632 = vmax.xlane.f32.xlu0 %v4603
  %v4633 = vpop.xlane.xlu0 %4632
  %4634 = vmax.xlane.f32.xlu0 %v4604
  %v4635 = vpop.xlane.xlu0 %4634
  %4636 = vmax.xlane.f32.xlu0 %v4605
  %v4637 = vpop.xlane.xlu0 %4636
  %v4638 = vsub.f32 %v4590, %v4607
  %v4639 = vsub.f32 %v4591, %v4609
  %v4640 = vsub.f32 %v4592, %v4611
  %v4641 = vsub.f32 %v4593, %v4613
  %v4642 = vsub.f32 %v4594, %v4615
  %v4643 = vsub.f32 %v4595, %v4617
  %v4644 = vsub.f32 %v4596, %v4619
  %v4645 = vsub.f32 %v4597, %v4621
  %v4646 = vsub.f32 %v4598, %v4623
  %v4647 = vsub.f32 %v4599, %v4625
  %v4648 = vsub.f32 %v4600, %v4627
  %v4649 = vsub.f32 %v4601, %v4629
  %v4650 = vsub.f32 %v4602, %v4631
  %v4651 = vsub.f32 %v4603, %v4633
  %v4652 = vsub.f32 %v4604, %v4635
  %v4653 = vsub.f32 %v4605, %v4637
  %v4654 = vmul.f32 %v4638, 1.442695
  %v4655 = vpow.pop %v4654
  %v4656 = vmul.f32 %v4639, 1.442695
  %v4657 = vpow.pop %v4656
  %v4658 = vmul.f32 %v4640, 1.442695
  %v4659 = vpow.pop %v4658
  %v4660 = vmul.f32 %v4641, 1.442695
  %v4661 = vpow.pop %v4660
  %v4662 = vmul.f32 %v4642, 1.442695
  %v4663 = vpow.pop %v4662
  %v4664 = vmul.f32 %v4643, 1.442695
  %v4665 = vpow.pop %v4664
  %v4666 = vmul.f32 %v4644, 1.442695
  %v4667 = vpow.pop %v4666
  %v4668 = vmul.f32 %v4645, 1.442695
  %v4669 = vpow.pop %v4668
  %v4670 = vmul.f32 %v4646, 1.442695
  %v4671 = vpow.pop %v4670
  %v4672 = vmul.f32 %v4647, 1.442695
  %v4673 = vpow.pop %v4672
  %v4674 = vmul.f32 %v4648, 1.442695
  %v4675 = vpow.pop %v4674
  %v4676 = vmul.f32 %v4649, 1.442695
  %v4677 = vpow.pop %v4676
  %v4678 = vmul.f32 %v4650, 1.442695
  %v4679 = vpow.pop %v4678
  %v4680 = vmul.f32 %v4651, 1.442695
  %v4681 = vpow.pop %v4680
  %v4682 = vmul.f32 %v4652, 1.442695
  %v4683 = vpow.pop %v4682
  %v4684 = vmul.f32 %v4653, 1.442695
  %v4685 = vpow.pop %v4684
  %v4686 = vshrl.u32 %v3702, 16
  %v4687 = vpack.i.b16 %v4686, %v4686
  %v4689 = vperm.slane %v4687, 0
  %v4690 = vunpack.c.l.bf16 %v4689
  %v4691 = vmul.f32 %v4331, %v4690
  %v4692 = vmul.f32 %v4332, %v4690
  %v4693 = vmul.f32 %v4333, %v4690
  %v4694 = vmul.f32 %v4334, %v4690
  %v4695 = vmul.f32 %v4335, %v4690
  %v4696 = vmul.f32 %v4336, %v4690
  %v4697 = vmul.f32 %v4337, %v4690
  %v4698 = vmul.f32 %v4338, %v4690
  %v4699 = vmul.f32 %v4339, %v4690
  %v4700 = vmul.f32 %v4340, %v4690
  %v4701 = vmul.f32 %v4341, %v4690
  %v4702 = vmul.f32 %v4342, %v4690
  %v4703 = vmul.f32 %v4343, %v4690
  %v4704 = vmul.f32 %v4344, %v4690
  %v4705 = vmul.f32 %v4345, %v4690
  %v4706 = vmul.f32 %v4346, %v4690
  %v4707 = vpack.c.bf16 %v4692, %v4691
  %v4708 = vpack.c.bf16 %v4694, %v4693
  %v4709 = vpack.c.bf16 %v4696, %v4695
  %v4710 = vpack.c.bf16 %v4698, %v4697
  %v4711 = vpack.c.bf16 %v4700, %v4699
  %v4712 = vpack.c.bf16 %v4702, %v4701
  %v4713 = vpack.c.bf16 %v4704, %v4703
  %v4714 = vpack.c.bf16 %v4706, %v4705
  %v4715 = vld [vmem:[#allocation4] sm:$0xff]
  %v4716 = vld [vmem:[#allocation4 + $0x8] sm:$0xff]
  %v4717 = vld [vmem:[#allocation4 + $0x10] sm:$0xff]
  %v4718 = vld [vmem:[#allocation4 + $0x18] sm:$0xff]
  %v4719 = vld [vmem:[#allocation4 + $0x20] sm:$0xff]
  %v4720 = vld [vmem:[#allocation4 + $0x28] sm:$0xff]
  %v4721 = vld [vmem:[#allocation4 + $0x30] sm:$0xff]
  %v4722 = vld [vmem:[#allocation4 + $0x38] sm:$0xff]
  %v4723 = vld [vmem:[#allocation4 + $0x40] sm:$0xff]
  %v4724 = vld [vmem:[#allocation4 + $0x48] sm:$0xff]
  %v4725 = vld [vmem:[#allocation4 + $0x50] sm:$0xff]
  %v4726 = vld [vmem:[#allocation4 + $0x58] sm:$0xff]
  %v4727 = vld [vmem:[#allocation4 + $0x60] sm:$0xff]
  %v4728 = vld [vmem:[#allocation4 + $0x68] sm:$0xff]
  %v4729 = vld [vmem:[#allocation4 + $0x70] sm:$0xff]
  %v4730 = vld [vmem:[#allocation4 + $0x78] sm:$0xff]
  %v4731 = vpack.c.bf16 %v4657, %v4655
  %v4732 = vpack.c.bf16 %v4661, %v4659
  %v4733 = vpack.c.bf16 %v4665, %v4663
  %v4734 = vpack.c.bf16 %v4669, %v4667
  %v4735 = vpack.c.bf16 %v4673, %v4671
  %v4736 = vpack.c.bf16 %v4677, %v4675
  %v4737 = vpack.c.bf16 %v4681, %v4679
  %v4738 = vpack.c.bf16 %v4685, %v4683
  %4739 = vmatpush.bf16.msra.mxu0 %v4714
  %4740 = vmatpush.bf16.msra.mxu0 %v4713
  %4741 = vmatpush.bf16.msra.mxu0 %v4712
  %4742 = vmatpush.bf16.msra.mxu0 %v4711
  %4743 = vmatpush.bf16.msra.mxu0 %v4710
  %4744 = vmatpush.bf16.msra.mxu0 %v4709
  %4745 = vmatpush.bf16.msra.mxu0 %v4708
  %4746 = vmatpush.bf16.msra.mxu0 %v4707
  %4747 = vmatmul.bf16.gmra.mxu0 %v4731
  %v4748 = vpop.f32.mrf.mxu0
  %v4749 = vadd.f32 0.0, %v4748
  %v4750 = vpop.f32.mrf.mxu0
  %v4751 = vadd.f32 0.0, %v4750
  %4752 = vmatmul.bf16.gmra.mxu0 %v4732
  %v4753 = vpop.f32.mrf.mxu0
  %v4754 = vadd.f32 0.0, %v4753
  %v4755 = vpop.f32.mrf.mxu0
  %v4756 = vadd.f32 0.0, %v4755
  %4757 = vmatmul.bf16.gmra.mxu0 %v4733
  %v4758 = vpop.f32.mrf.mxu0
  %v4759 = vadd.f32 0.0, %v4758
  %v4760 = vpop.f32.mrf.mxu0
  %v4761 = vadd.f32 0.0, %v4760
  %4762 = vmatmul.bf16.gmra.mxu0 %v4734
  %v4763 = vpop.f32.mrf.mxu0
  %v4764 = vadd.f32 0.0, %v4763
  %v4765 = vpop.f32.mrf.mxu0
  %v4766 = vadd.f32 0.0, %v4765
  %4767 = vmatmul.bf16.gmra.mxu0 %v4735
  %v4768 = vpop.f32.mrf.mxu0
  %v4769 = vadd.f32 0.0, %v4768
  %v4770 = vpop.f32.mrf.mxu0
  %v4771 = vadd.f32 0.0, %v4770
  %4772 = vmatmul.bf16.gmra.mxu0 %v4736
  %v4773 = vpop.f32.mrf.mxu0
  %v4774 = vadd.f32 0.0, %v4773
  %v4775 = vpop.f32.mrf.mxu0
  %v4776 = vadd.f32 0.0, %v4775
  %4777 = vmatmul.bf16.gmra.mxu0 %v4737
  %v4778 = vpop.f32.mrf.mxu0
  %v4779 = vadd.f32 0.0, %v4778
  %v4780 = vpop.f32.mrf.mxu0
  %v4781 = vadd.f32 0.0, %v4780
  %4782 = vmatmul.bf16.gmra.mxu0 %v4738
  %v4783 = vpop.f32.mrf.mxu0
  %v4784 = vadd.f32 0.0, %v4783
  %v4785 = vpop.f32.mrf.mxu0
  %v4786 = vadd.f32 0.0, %v4785
  %4787 = vdwg.mxu0
  %v4788 = vadd.f32 %v4715, %v4749
  %v4789 = vadd.f32 %v4716, %v4751
  %v4790 = vadd.f32 %v4717, %v4754
  %v4791 = vadd.f32 %v4718, %v4756
  %v4792 = vadd.f32 %v4719, %v4759
  %v4793 = vadd.f32 %v4720, %v4761
  %v4794 = vadd.f32 %v4721, %v4764
  %v4795 = vadd.f32 %v4722, %v4766
  %v4796 = vadd.f32 %v4723, %v4769
  %v4797 = vadd.f32 %v4724, %v4771
  %v4798 = vadd.f32 %v4725, %v4774
  %v4799 = vadd.f32 %v4726, %v4776
  %v4800 = vadd.f32 %v4727, %v4779
  %v4801 = vadd.f32 %v4728, %v4781
  %v4802 = vadd.f32 %v4729, %v4784
  %v4803 = vadd.f32 %v4730, %v4786
  %4804 = vst [vmem:[#allocation4] sm:$0xff] %v4788
  %4805 = vst [vmem:[#allocation4 + $0x8] sm:$0xff] %v4789
  %4806 = vst [vmem:[#allocation4 + $0x10] sm:$0xff] %v4790
  %4807 = vst [vmem:[#allocation4 + $0x18] sm:$0xff] %v4791
  %4808 = vst [vmem:[#allocation4 + $0x20] sm:$0xff] %v4792
  %4809 = vst [vmem:[#allocation4 + $0x28] sm:$0xff] %v4793
  %4810 = vst [vmem:[#allocation4 + $0x30] sm:$0xff] %v4794
  %4811 = vst [vmem:[#allocation4 + $0x38] sm:$0xff] %v4795
  %4812 = vst [vmem:[#allocation4 + $0x40] sm:$0xff] %v4796
  %4813 = vst [vmem:[#allocation4 + $0x48] sm:$0xff] %v4797
  %4814 = vst [vmem:[#allocation4 + $0x50] sm:$0xff] %v4798
  %4815 = vst [vmem:[#allocation4 + $0x58] sm:$0xff] %v4799
  %4816 = vst [vmem:[#allocation4 + $0x60] sm:$0xff] %v4800
  %4817 = vst [vmem:[#allocation4 + $0x68] sm:$0xff] %v4801
  %4818 = vst [vmem:[#allocation4 + $0x70] sm:$0xff] %v4802
  %4819 = vst [vmem:[#allocation4 + $0x78] sm:$0xff] %v4803
  %4820 = vset.pattern.permute.xlu0 2
  %4821 = vperm.xlu0 %4820, %v3967
  %v4822 = vpop.permute.xlu0 %4821
  %4824 = vset.pattern.permute.xlu0 2
  %4825 = vperm.xlu0 %4824, %v3969
  %v4826 = vpop.permute.xlu0 %4825
  %4828 = vset.pattern.permute.xlu0 2
  %4829 = vperm.xlu0 %4828, %v3972
  %v4830 = vpop.permute.xlu0 %4829
  %4832 = vset.pattern.permute.xlu0 2
  %4833 = vperm.xlu0 %4832, %v3974
  %v4834 = vpop.permute.xlu0 %4833
  %4836 = vset.pattern.permute.xlu0 2
  %4837 = vperm.xlu0 %4836, %v3977
  %v4838 = vpop.permute.xlu0 %4837
  %4840 = vset.pattern.permute.xlu0 2
  %4841 = vperm.xlu0 %4840, %v3979
  %v4842 = vpop.permute.xlu0 %4841
  %4844 = vset.pattern.permute.xlu0 2
  %4845 = vperm.xlu0 %4844, %v3982
  %v4846 = vpop.permute.xlu0 %4845
  %4848 = vset.pattern.permute.xlu0 2
  %4849 = vperm.xlu0 %4848, %v3984
  %v4850 = vpop.permute.xlu0 %4849
  %4852 = vset.pattern.permute.xlu0 2
  %4853 = vperm.xlu0 %4852, %v3987
  %v4854 = vpop.permute.xlu0 %4853
  %4856 = vset.pattern.permute.xlu0 2
  %4857 = vperm.xlu0 %4856, %v3989
  %v4858 = vpop.permute.xlu0 %4857
  %4860 = vset.pattern.permute.xlu0 2
  %4861 = vperm.xlu0 %4860, %v3992
  %v4862 = vpop.permute.xlu0 %4861
  %4864 = vset.pattern.permute.xlu0 2
  %4865 = vperm.xlu0 %4864, %v3994
  %v4866 = vpop.permute.xlu0 %4865
  %4868 = vset.pattern.permute.xlu0 2
  %4869 = vperm.xlu0 %4868, %v3997
  %v4870 = vpop.permute.xlu0 %4869
  %4872 = vset.pattern.permute.xlu0 2
  %4873 = vperm.xlu0 %4872, %v3999
  %v4874 = vpop.permute.xlu0 %4873
  %4876 = vset.pattern.permute.xlu0 2
  %4877 = vperm.xlu0 %4876, %v4002
  %v4878 = vpop.permute.xlu0 %4877
  %4880 = vset.pattern.permute.xlu0 2
  %4881 = vperm.xlu0 %4880, %v4004
  %v4882 = vpop.permute.xlu0 %4881
  %v4884 = vperm.slane %v4086, 2
  %v4885 = vadd.f32 %v4822, %v4884
  %v4886 = vadd.f32 %v4826, %v4884
  %v4887 = vadd.f32 %v4830, %v4884
  %v4888 = vadd.f32 %v4834, %v4884
  %v4889 = vadd.f32 %v4838, %v4884
  %v4890 = vadd.f32 %v4842, %v4884
  %v4891 = vadd.f32 %v4846, %v4884
  %v4892 = vadd.f32 %v4850, %v4884
  %v4893 = vadd.f32 %v4854, %v4884
  %v4894 = vadd.f32 %v4858, %v4884
  %v4895 = vadd.f32 %v4862, %v4884
  %v4896 = vadd.f32 %v4866, %v4884
  %v4897 = vadd.f32 %v4870, %v4884
  %v4898 = vadd.f32 %v4874, %v4884
  %v4899 = vadd.f32 %v4878, %v4884
  %v4900 = vadd.f32 %v4882, %v4884
  %v4901 = vmul.f32 %v4885, 0.2
  %v4902 = vmul.f32 %v4886, 0.2
  %v4903 = vmul.f32 %v4887, 0.2
  %v4904 = vmul.f32 %v4888, 0.2
  %v4905 = vmul.f32 %v4889, 0.2
  %v4906 = vmul.f32 %v4890, 0.2
  %v4907 = vmul.f32 %v4891, 0.2
  %v4908 = vmul.f32 %v4892, 0.2
  %v4909 = vmul.f32 %v4893, 0.2
  %v4910 = vmul.f32 %v4894, 0.2
  %v4911 = vmul.f32 %v4895, 0.2
  %v4912 = vmul.f32 %v4896, 0.2
  %v4913 = vmul.f32 %v4897, 0.2
  %v4914 = vmul.f32 %v4898, 0.2
  %v4915 = vmul.f32 %v4899, 0.2
  %v4916 = vmul.f32 %v4900, 0.2
  %v4917 = vmax.f32 %v4885, %v4901
  %v4918 = vmax.f32 %v4886, %v4902
  %v4919 = vmax.f32 %v4887, %v4903
  %v4920 = vmax.f32 %v4888, %v4904
  %v4921 = vmax.f32 %v4889, %v4905
  %v4922 = vmax.f32 %v4890, %v4906
  %v4923 = vmax.f32 %v4891, %v4907
  %v4924 = vmax.f32 %v4892, %v4908
  %v4925 = vmax.f32 %v4893, %v4909
  %v4926 = vmax.f32 %v4894, %v4910
  %v4927 = vmax.f32 %v4895, %v4911
  %v4928 = vmax.f32 %v4896, %v4912
  %v4929 = vmax.f32 %v4897, %v4913
  %v4930 = vmax.f32 %v4898, %v4914
  %v4931 = vmax.f32 %v4899, %v4915
  %v4932 = vmax.f32 %v4900, %v4916
  %v4933 = vsel %vm628, %v4917, -1e+30
  %v4934 = vsel %vm629, %v4918, -1e+30
  %v4935 = vsel %vm630, %v4919, -1e+30
  %v4936 = vsel %vm631, %v4920, -1e+30
  %v4937 = vsel %vm632, %v4921, -1e+30
  %v4938 = vsel %vm633, %v4922, -1e+30
  %v4939 = vsel %vm634, %v4923, -1e+30
  %v4940 = vsel %vm635, %v4924, -1e+30
  %v4941 = vsel %vm636, %v4925, -1e+30
  %v4942 = vsel %vm637, %v4926, -1e+30
  %v4943 = vsel %vm638, %v4927, -1e+30
  %v4944 = vsel %vm639, %v4928, -1e+30
  %v4945 = vsel %vm640, %v4929, -1e+30
  %v4946 = vsel %vm641, %v4930, -1e+30
  %v4947 = vsel %vm642, %v4931, -1e+30
  %v4948 = vsel %vm643, %v4932, -1e+30
  %4949 = vmax.xlane.f32.xlu0 %v4933
  %v4950 = vpop.xlane.xlu0 %4949
  %4951 = vmax.xlane.f32.xlu0 %v4934
  %v4952 = vpop.xlane.xlu0 %4951
  %4953 = vmax.xlane.f32.xlu0 %v4935
  %v4954 = vpop.xlane.xlu0 %4953
  %4955 = vmax.xlane.f32.xlu0 %v4936
  %v4956 = vpop.xlane.xlu0 %4955
  %4957 = vmax.xlane.f32.xlu0 %v4937
  %v4958 = vpop.xlane.xlu0 %4957
  %4959 = vmax.xlane.f32.xlu0 %v4938
  %v4960 = vpop.xlane.xlu0 %4959
  %4961 = vmax.xlane.f32.xlu0 %v4939
  %v4962 = vpop.xlane.xlu0 %4961
  %4963 = vmax.xlane.f32.xlu0 %v4940
  %v4964 = vpop.xlane.xlu0 %4963
  %4965 = vmax.xlane.f32.xlu0 %v4941
  %v4966 = vpop.xlane.xlu0 %4965
  %4967 = vmax.xlane.f32.xlu0 %v4942
  %v4968 = vpop.xlane.xlu0 %4967
  %4969 = vmax.xlane.f32.xlu0 %v4943
  %v4970 = vpop.xlane.xlu0 %4969
  %4971 = vmax.xlane.f32.xlu0 %v4944
  %v4972 = vpop.xlane.xlu0 %4971
  %4973 = vmax.xlane.f32.xlu0 %v4945
  %v4974 = vpop.xlane.xlu0 %4973
  %4975 = vmax.xlane.f32.xlu0 %v4946
  %v4976 = vpop.xlane.xlu0 %4975
  %4977 = vmax.xlane.f32.xlu0 %v4947
  %v4978 = vpop.xlane.xlu0 %4977
  %4979 = vmax.xlane.f32.xlu0 %v4948
  %v4980 = vpop.xlane.xlu0 %4979
  %v4981 = vsub.f32 %v4933, %v4950
  %v4982 = vsub.f32 %v4934, %v4952
  %v4983 = vsub.f32 %v4935, %v4954
  %v4984 = vsub.f32 %v4936, %v4956
  %v4985 = vsub.f32 %v4937, %v4958
  %v4986 = vsub.f32 %v4938, %v4960
  %v4987 = vsub.f32 %v4939, %v4962
  %v4988 = vsub.f32 %v4940, %v4964
  %v4989 = vsub.f32 %v4941, %v4966
  %v4990 = vsub.f32 %v4942, %v4968
  %v4991 = vsub.f32 %v4943, %v4970
  %v4992 = vsub.f32 %v4944, %v4972
  %v4993 = vsub.f32 %v4945, %v4974
  %v4994 = vsub.f32 %v4946, %v4976
  %v4995 = vsub.f32 %v4947, %v4978
  %v4996 = vsub.f32 %v4948, %v4980
  %v4997 = vmul.f32 %v4981, 1.442695
  %v4998 = vpow.pop %v4997
  %v4999 = vmul.f32 %v4982, 1.442695
  %v5000 = vpow.pop %v4999
  %v5001 = vmul.f32 %v4983, 1.442695
  %v5002 = vpow.pop %v5001
  %v5003 = vmul.f32 %v4984, 1.442695
  %v5004 = vpow.pop %v5003
  %v5005 = vmul.f32 %v4985, 1.442695
  %v5006 = vpow.pop %v5005
  %v5007 = vmul.f32 %v4986, 1.442695
  %v5008 = vpow.pop %v5007
  %v5009 = vmul.f32 %v4987, 1.442695
  %v5010 = vpow.pop %v5009
  %v5011 = vmul.f32 %v4988, 1.442695
  %v5012 = vpow.pop %v5011
  %v5013 = vmul.f32 %v4989, 1.442695
  %v5014 = vpow.pop %v5013
  %v5015 = vmul.f32 %v4990, 1.442695
  %v5016 = vpow.pop %v5015
  %v5017 = vmul.f32 %v4991, 1.442695
  %v5018 = vpow.pop %v5017
  %v5019 = vmul.f32 %v4992, 1.442695
  %v5020 = vpow.pop %v5019
  %v5021 = vmul.f32 %v4993, 1.442695
  %v5022 = vpow.pop %v5021
  %v5023 = vmul.f32 %v4994, 1.442695
  %v5024 = vpow.pop %v5023
  %v5025 = vmul.f32 %v4995, 1.442695
  %v5026 = vpow.pop %v5025
  %v5027 = vmul.f32 %v4996, 1.442695
  %v5028 = vpow.pop %v5027
  %v5029 = vperm.slane %v4328, 1
  %v5030 = vunpack.c.l.bf16 %v5029
  %v5031 = vmul.f32 %v4331, %v5030
  %v5032 = vmul.f32 %v4332, %v5030
  %v5033 = vmul.f32 %v4333, %v5030
  %v5034 = vmul.f32 %v4334, %v5030
  %v5035 = vmul.f32 %v4335, %v5030
  %v5036 = vmul.f32 %v4336, %v5030
  %v5037 = vmul.f32 %v4337, %v5030
  %v5038 = vmul.f32 %v4338, %v5030
  %v5039 = vmul.f32 %v4339, %v5030
  %v5040 = vmul.f32 %v4340, %v5030
  %v5041 = vmul.f32 %v4341, %v5030
  %v5042 = vmul.f32 %v4342, %v5030
  %v5043 = vmul.f32 %v4343, %v5030
  %v5044 = vmul.f32 %v4344, %v5030
  %v5045 = vmul.f32 %v4345, %v5030
  %v5046 = vmul.f32 %v4346, %v5030
  %v5047 = vpack.c.bf16 %v5032, %v5031
  %v5048 = vpack.c.bf16 %v5034, %v5033
  %v5049 = vpack.c.bf16 %v5036, %v5035
  %v5050 = vpack.c.bf16 %v5038, %v5037
  %v5051 = vpack.c.bf16 %v5040, %v5039
  %v5052 = vpack.c.bf16 %v5042, %v5041
  %v5053 = vpack.c.bf16 %v5044, %v5043
  %v5054 = vpack.c.bf16 %v5046, %v5045
  %v5055 = vld [vmem:[#allocation4] sm:$0xff]
  %v5056 = vld [vmem:[#allocation4 + $0x8] sm:$0xff]
  %v5057 = vld [vmem:[#allocation4 + $0x10] sm:$0xff]
  %v5058 = vld [vmem:[#allocation4 + $0x18] sm:$0xff]
  %v5059 = vld [vmem:[#allocation4 + $0x20] sm:$0xff]
  %v5060 = vld [vmem:[#allocation4 + $0x28] sm:$0xff]
  %v5061 = vld [vmem:[#allocation4 + $0x30] sm:$0xff]
  %v5062 = vld [vmem:[#allocation4 + $0x38] sm:$0xff]
  %v5063 = vld [vmem:[#allocation4 + $0x40] sm:$0xff]
  %v5064 = vld [vmem:[#allocation4 + $0x48] sm:$0xff]
  %v5065 = vld [vmem:[#allocation4 + $0x50] sm:$0xff]
  %v5066 = vld [vmem:[#allocation4 + $0x58] sm:$0xff]
  %v5067 = vld [vmem:[#allocation4 + $0x60] sm:$0xff]
  %v5068 = vld [vmem:[#allocation4 + $0x68] sm:$0xff]
  %v5069 = vld [vmem:[#allocation4 + $0x70] sm:$0xff]
  %v5070 = vld [vmem:[#allocation4 + $0x78] sm:$0xff]
  %v5071 = vpack.c.bf16 %v5000, %v4998
  %v5072 = vpack.c.bf16 %v5004, %v5002
  %v5073 = vpack.c.bf16 %v5008, %v5006
  %v5074 = vpack.c.bf16 %v5012, %v5010
  %v5075 = vpack.c.bf16 %v5016, %v5014
  %v5076 = vpack.c.bf16 %v5020, %v5018
  %v5077 = vpack.c.bf16 %v5024, %v5022
  %v5078 = vpack.c.bf16 %v5028, %v5026
  %5079 = vmatpush.bf16.msra.mxu0 %v5054
  %5080 = vmatpush.bf16.msra.mxu0 %v5053
  %5081 = vmatpush.bf16.msra.mxu0 %v5052
  %5082 = vmatpush.bf16.msra.mxu0 %v5051
  %5083 = vmatpush.bf16.msra.mxu0 %v5050
  %5084 = vmatpush.bf16.msra.mxu0 %v5049
  %5085 = vmatpush.bf16.msra.mxu0 %v5048
  %5086 = vmatpush.bf16.msra.mxu0 %v5047
  %5087 = vmatmul.bf16.gmra.mxu0 %v5071
  %v5088 = vpop.f32.mrf.mxu0
  %v5089 = vadd.f32 0.0, %v5088
  %v5090 = vpop.f32.mrf.mxu0
  %v5091 = vadd.f32 0.0, %v5090
  %5092 = vmatmul.bf16.gmra.mxu0 %v5072
  %v5093 = vpop.f32.mrf.mxu0
  %v5094 = vadd.f32 0.0, %v5093
  %v5095 = vpop.f32.mrf.mxu0
  %v5096 = vadd.f32 0.0, %v5095
  %5097 = vmatmul.bf16.gmra.mxu0 %v5073
  %v5098 = vpop.f32.mrf.mxu0
  %v5099 = vadd.f32 0.0, %v5098
  %v5100 = vpop.f32.mrf.mxu0
  %v5101 = vadd.f32 0.0, %v5100
  %5102 = vmatmul.bf16.gmra.mxu0 %v5074
  %v5103 = vpop.f32.mrf.mxu0
  %v5104 = vadd.f32 0.0, %v5103
  %v5105 = vpop.f32.mrf.mxu0
  %v5106 = vadd.f32 0.0, %v5105
  %5107 = vmatmul.bf16.gmra.mxu0 %v5075
  %v5108 = vpop.f32.mrf.mxu0
  %v5109 = vadd.f32 0.0, %v5108
  %v5110 = vpop.f32.mrf.mxu0
  %v5111 = vadd.f32 0.0, %v5110
  %5112 = vmatmul.bf16.gmra.mxu0 %v5076
  %v5113 = vpop.f32.mrf.mxu0
  %v5114 = vadd.f32 0.0, %v5113
  %v5115 = vpop.f32.mrf.mxu0
  %v5116 = vadd.f32 0.0, %v5115
  %5117 = vmatmul.bf16.gmra.mxu0 %v5077
  %v5118 = vpop.f32.mrf.mxu0
  %v5119 = vadd.f32 0.0, %v5118
  %v5120 = vpop.f32.mrf.mxu0
  %v5121 = vadd.f32 0.0, %v5120
  %5122 = vmatmul.bf16.gmra.mxu0 %v5078
  %v5123 = vpop.f32.mrf.mxu0
  %v5124 = vadd.f32 0.0, %v5123
  %v5125 = vpop.f32.mrf.mxu0
  %v5126 = vadd.f32 0.0, %v5125
  %5127 = vdwg.mxu0
  %v5128 = vadd.f32 %v5055, %v5089
  %v5129 = vadd.f32 %v5056, %v5091
  %v5130 = vadd.f32 %v5057, %v5094
  %v5131 = vadd.f32 %v5058, %v5096
  %v5132 = vadd.f32 %v5059, %v5099
  %v5133 = vadd.f32 %v5060, %v5101
  %v5134 = vadd.f32 %v5061, %v5104
  %v5135 = vadd.f32 %v5062, %v5106
  %v5136 = vadd.f32 %v5063, %v5109
  %v5137 = vadd.f32 %v5064, %v5111
  %v5138 = vadd.f32 %v5065, %v5114
  %v5139 = vadd.f32 %v5066, %v5116
  %v5140 = vadd.f32 %v5067, %v5119
  %v5141 = vadd.f32 %v5068, %v5121
  %v5142 = vadd.f32 %v5069, %v5124
  %v5143 = vadd.f32 %v5070, %v5126
  %5144 = vst [vmem:[#allocation4] sm:$0xff] %v5128
  %5145 = vst [vmem:[#allocation4 + $0x8] sm:$0xff] %v5129
  %5146 = vst [vmem:[#allocation4 + $0x10] sm:$0xff] %v5130
  %5147 = vst [vmem:[#allocation4 + $0x18] sm:$0xff] %v5131
  %5148 = vst [vmem:[#allocation4 + $0x20] sm:$0xff] %v5132
  %5149 = vst [vmem:[#allocation4 + $0x28] sm:$0xff] %v5133
  %5150 = vst [vmem:[#allocation4 + $0x30] sm:$0xff] %v5134
  %5151 = vst [vmem:[#allocation4 + $0x38] sm:$0xff] %v5135
  %5152 = vst [vmem:[#allocation4 + $0x40] sm:$0xff] %v5136
  %5153 = vst [vmem:[#allocation4 + $0x48] sm:$0xff] %v5137
  %5154 = vst [vmem:[#allocation4 + $0x50] sm:$0xff] %v5138
  %5155 = vst [vmem:[#allocation4 + $0x58] sm:$0xff] %v5139
  %5156 = vst [vmem:[#allocation4 + $0x60] sm:$0xff] %v5140
  %5157 = vst [vmem:[#allocation4 + $0x68] sm:$0xff] %v5141
  %5158 = vst [vmem:[#allocation4 + $0x70] sm:$0xff] %v5142
  %5159 = vst [vmem:[#allocation4 + $0x78] sm:$0xff] %v5143
  %5160 = vset.pattern.permute.xlu0 3
  %5161 = vperm.xlu0 %5160, %v3967
  %v5162 = vpop.permute.xlu0 %5161
  %5164 = vset.pattern.permute.xlu0 3
  %5165 = vperm.xlu0 %5164, %v3969
  %v5166 = vpop.permute.xlu0 %5165
  %5168 = vset.pattern.permute.xlu0 3
  %5169 = vperm.xlu0 %5168, %v3972
  %v5170 = vpop.permute.xlu0 %5169
  %5172 = vset.pattern.permute.xlu0 3
  %5173 = vperm.xlu0 %5172, %v3974
  %v5174 = vpop.permute.xlu0 %5173
  %5176 = vset.pattern.permute.xlu0 3
  %5177 = vperm.xlu0 %5176, %v3977
  %v5178 = vpop.permute.xlu0 %5177
  %5180 = vset.pattern.permute.xlu0 3
  %5181 = vperm.xlu0 %5180, %v3979
  %v5182 = vpop.permute.xlu0 %5181
  %5184 = vset.pattern.permute.xlu0 3
  %5185 = vperm.xlu0 %5184, %v3982
  %v5186 = vpop.permute.xlu0 %5185
  %5188 = vset.pattern.permute.xlu0 3
  %5189 = vperm.xlu0 %5188, %v3984
  %v5190 = vpop.permute.xlu0 %5189
  %5192 = vset.pattern.permute.xlu0 3
  %5193 = vperm.xlu0 %5192, %v3987
  %v5194 = vpop.permute.xlu0 %5193
  %5196 = vset.pattern.permute.xlu0 3
  %5197 = vperm.xlu0 %5196, %v3989
  %v5198 = vpop.permute.xlu0 %5197
  %5200 = vset.pattern.permute.xlu0 3
  %5201 = vperm.xlu0 %5200, %v3992
  %v5202 = vpop.permute.xlu0 %5201
  %5204 = vset.pattern.permute.xlu0 3
  %5205 = vperm.xlu0 %5204, %v3994
  %v5206 = vpop.permute.xlu0 %5205
  %5208 = vset.pattern.permute.xlu0 3
  %5209 = vperm.xlu0 %5208, %v3997
  %v5210 = vpop.permute.xlu0 %5209
  %5212 = vset.pattern.permute.xlu0 3
  %5213 = vperm.xlu0 %5212, %v3999
  %v5214 = vpop.permute.xlu0 %5213
  %5216 = vset.pattern.permute.xlu0 3
  %5217 = vperm.xlu0 %5216, %v4002
  %v5218 = vpop.permute.xlu0 %5217
  %5220 = vset.pattern.permute.xlu0 3
  %5221 = vperm.xlu0 %5220, %v4004
  %v5222 = vpop.permute.xlu0 %5221
  %v5224 = vperm.slane %v4086, 3
  %v5225 = vadd.f32 %v5162, %v5224
  %v5226 = vadd.f32 %v5166, %v5224
  %v5227 = vadd.f32 %v5170, %v5224
  %v5228 = vadd.f32 %v5174, %v5224
  %v5229 = vadd.f32 %v5178, %v5224
  %v5230 = vadd.f32 %v5182, %v5224
  %v5231 = vadd.f32 %v5186, %v5224
  %v5232 = vadd.f32 %v5190, %v5224
  %v5233 = vadd.f32 %v5194, %v5224
  %v5234 = vadd.f32 %v5198, %v5224
  %v5235 = vadd.f32 %v5202, %v5224
  %v5236 = vadd.f32 %v5206, %v5224
  %v5237 = vadd.f32 %v5210, %v5224
  %v5238 = vadd.f32 %v5214, %v5224
  %v5239 = vadd.f32 %v5218, %v5224
  %v5240 = vadd.f32 %v5222, %v5224
  %v5241 = vmul.f32 %v5225, 0.2
  %v5242 = vmul.f32 %v5226, 0.2
  %v5243 = vmul.f32 %v5227, 0.2
  %v5244 = vmul.f32 %v5228, 0.2
  %v5245 = vmul.f32 %v5229, 0.2
  %v5246 = vmul.f32 %v5230, 0.2
  %v5247 = vmul.f32 %v5231, 0.2
  %v5248 = vmul.f32 %v5232, 0.2
  %v5249 = vmul.f32 %v5233, 0.2
  %v5250 = vmul.f32 %v5234, 0.2
  %v5251 = vmul.f32 %v5235, 0.2
  %v5252 = vmul.f32 %v5236, 0.2
  %v5253 = vmul.f32 %v5237, 0.2
  %v5254 = vmul.f32 %v5238, 0.2
  %v5255 = vmul.f32 %v5239, 0.2
  %v5256 = vmul.f32 %v5240, 0.2
  %v5257 = vmax.f32 %v5225, %v5241
  %v5258 = vmax.f32 %v5226, %v5242
  %v5259 = vmax.f32 %v5227, %v5243
  %v5260 = vmax.f32 %v5228, %v5244
  %v5261 = vmax.f32 %v5229, %v5245
  %v5262 = vmax.f32 %v5230, %v5246
  %v5263 = vmax.f32 %v5231, %v5247
  %v5264 = vmax.f32 %v5232, %v5248
  %v5265 = vmax.f32 %v5233, %v5249
  %v5266 = vmax.f32 %v5234, %v5250
  %v5267 = vmax.f32 %v5235, %v5251
  %v5268 = vmax.f32 %v5236, %v5252
  %v5269 = vmax.f32 %v5237, %v5253
  %v5270 = vmax.f32 %v5238, %v5254
  %v5271 = vmax.f32 %v5239, %v5255
  %v5272 = vmax.f32 %v5240, %v5256
  %v5273 = vsel %vm628, %v5257, -1e+30
  %v5274 = vsel %vm629, %v5258, -1e+30
  %v5275 = vsel %vm630, %v5259, -1e+30
  %v5276 = vsel %vm631, %v5260, -1e+30
  %v5277 = vsel %vm632, %v5261, -1e+30
  %v5278 = vsel %vm633, %v5262, -1e+30
  %v5279 = vsel %vm634, %v5263, -1e+30
  %v5280 = vsel %vm635, %v5264, -1e+30
  %v5281 = vsel %vm636, %v5265, -1e+30
  %v5282 = vsel %vm637, %v5266, -1e+30
  %v5283 = vsel %vm638, %v5267, -1e+30
  %v5284 = vsel %vm639, %v5268, -1e+30
  %v5285 = vsel %vm640, %v5269, -1e+30
  %v5286 = vsel %vm641, %v5270, -1e+30
  %v5287 = vsel %vm642, %v5271, -1e+30
  %v5288 = vsel %vm643, %v5272, -1e+30
  %5289 = vmax.xlane.f32.xlu0 %v5273
  %v5290 = vpop.xlane.xlu0 %5289
  %5291 = vmax.xlane.f32.xlu0 %v5274
  %v5292 = vpop.xlane.xlu0 %5291
  %5293 = vmax.xlane.f32.xlu0 %v5275
  %v5294 = vpop.xlane.xlu0 %5293
  %5295 = vmax.xlane.f32.xlu0 %v5276
  %v5296 = vpop.xlane.xlu0 %5295
  %5297 = vmax.xlane.f32.xlu0 %v5277
  %v5298 = vpop.xlane.xlu0 %5297
  %5299 = vmax.xlane.f32.xlu0 %v5278
  %v5300 = vpop.xlane.xlu0 %5299
  %5301 = vmax.xlane.f32.xlu0 %v5279
  %v5302 = vpop.xlane.xlu0 %5301
  %5303 = vmax.xlane.f32.xlu0 %v5280
  %v5304 = vpop.xlane.xlu0 %5303
  %5305 = vmax.xlane.f32.xlu0 %v5281
  %v5306 = vpop.xlane.xlu0 %5305
  %5307 = vmax.xlane.f32.xlu0 %v5282
  %v5308 = vpop.xlane.xlu0 %5307
  %5309 = vmax.xlane.f32.xlu0 %v5283
  %v5310 = vpop.xlane.xlu0 %5309
  %5311 = vmax.xlane.f32.xlu0 %v5284
  %v5312 = vpop.xlane.xlu0 %5311
  %5313 = vmax.xlane.f32.xlu0 %v5285
  %v5314 = vpop.xlane.xlu0 %5313
  %5315 = vmax.xlane.f32.xlu0 %v5286
  %v5316 = vpop.xlane.xlu0 %5315
  %5317 = vmax.xlane.f32.xlu0 %v5287
  %v5318 = vpop.xlane.xlu0 %5317
  %5319 = vmax.xlane.f32.xlu0 %v5288
  %v5320 = vpop.xlane.xlu0 %5319
  %v5321 = vsub.f32 %v5273, %v5290
  %v5322 = vsub.f32 %v5274, %v5292
  %v5323 = vsub.f32 %v5275, %v5294
  %v5324 = vsub.f32 %v5276, %v5296
  %v5325 = vsub.f32 %v5277, %v5298
  %v5326 = vsub.f32 %v5278, %v5300
  %v5327 = vsub.f32 %v5279, %v5302
  %v5328 = vsub.f32 %v5280, %v5304
  %v5329 = vsub.f32 %v5281, %v5306
  %v5330 = vsub.f32 %v5282, %v5308
  %v5331 = vsub.f32 %v5283, %v5310
  %v5332 = vsub.f32 %v5284, %v5312
  %v5333 = vsub.f32 %v5285, %v5314
  %v5334 = vsub.f32 %v5286, %v5316
  %v5335 = vsub.f32 %v5287, %v5318
  %v5336 = vsub.f32 %v5288, %v5320
  %v5337 = vmul.f32 %v5321, 1.442695
  %v5338 = vpow.pop %v5337
  %v5339 = vmul.f32 %v5322, 1.442695
  %v5340 = vpow.pop %v5339
  %v5341 = vmul.f32 %v5323, 1.442695
  %v5342 = vpow.pop %v5341
  %v5343 = vmul.f32 %v5324, 1.442695
  %v5344 = vpow.pop %v5343
  %v5345 = vmul.f32 %v5325, 1.442695
  %v5346 = vpow.pop %v5345
  %v5347 = vmul.f32 %v5326, 1.442695
  %v5348 = vpow.pop %v5347
  %v5349 = vmul.f32 %v5327, 1.442695
  %v5350 = vpow.pop %v5349
  %v5351 = vmul.f32 %v5328, 1.442695
  %v5352 = vpow.pop %v5351
  %v5353 = vmul.f32 %v5329, 1.442695
  %v5354 = vpow.pop %v5353
  %v5355 = vmul.f32 %v5330, 1.442695
  %v5356 = vpow.pop %v5355
  %v5357 = vmul.f32 %v5331, 1.442695
  %v5358 = vpow.pop %v5357
  %v5359 = vmul.f32 %v5332, 1.442695
  %v5360 = vpow.pop %v5359
  %v5361 = vmul.f32 %v5333, 1.442695
  %v5362 = vpow.pop %v5361
  %v5363 = vmul.f32 %v5334, 1.442695
  %v5364 = vpow.pop %v5363
  %v5365 = vmul.f32 %v5335, 1.442695
  %v5366 = vpow.pop %v5365
  %v5367 = vmul.f32 %v5336, 1.442695
  %v5368 = vpow.pop %v5367
  %v5369 = vperm.slane %v4687, 1
  %v5370 = vunpack.c.l.bf16 %v5369
  %v5371 = vmul.f32 %v4331, %v5370
  %v5372 = vmul.f32 %v4332, %v5370
  %v5373 = vmul.f32 %v4333, %v5370
  %v5374 = vmul.f32 %v4334, %v5370
  %v5375 = vmul.f32 %v4335, %v5370
  %v5376 = vmul.f32 %v4336, %v5370
  %v5377 = vmul.f32 %v4337, %v5370
  %v5378 = vmul.f32 %v4338, %v5370
  %v5379 = vmul.f32 %v4339, %v5370
  %v5380 = vmul.f32 %v4340, %v5370
  %v5381 = vmul.f32 %v4341, %v5370
  %v5382 = vmul.f32 %v4342, %v5370
  %v5383 = vmul.f32 %v4343, %v5370
  %v5384 = vmul.f32 %v4344, %v5370
  %v5385 = vmul.f32 %v4345, %v5370
  %v5386 = vmul.f32 %v4346, %v5370
  %v5387 = vpack.c.bf16 %v5372, %v5371
  %v5388 = vpack.c.bf16 %v5374, %v5373
  %v5389 = vpack.c.bf16 %v5376, %v5375
  %v5390 = vpack.c.bf16 %v5378, %v5377
  %v5391 = vpack.c.bf16 %v5380, %v5379
  %v5392 = vpack.c.bf16 %v5382, %v5381
  %v5393 = vpack.c.bf16 %v5384, %v5383
  %v5394 = vpack.c.bf16 %v5386, %v5385
  %v5395 = vld [vmem:[#allocation4] sm:$0xff]
  %v5396 = vld [vmem:[#allocation4 + $0x8] sm:$0xff]
  %v5397 = vld [vmem:[#allocation4 + $0x10] sm:$0xff]
  %v5398 = vld [vmem:[#allocation4 + $0x18] sm:$0xff]
  %v5399 = vld [vmem:[#allocation4 + $0x20] sm:$0xff]
  %v5400 = vld [vmem:[#allocation4 + $0x28] sm:$0xff]
  %v5401 = vld [vmem:[#allocation4 + $0x30] sm:$0xff]
  %v5402 = vld [vmem:[#allocation4 + $0x38] sm:$0xff]
  %v5403 = vld [vmem:[#allocation4 + $0x40] sm:$0xff]
  %v5404 = vld [vmem:[#allocation4 + $0x48] sm:$0xff]
  %v5405 = vld [vmem:[#allocation4 + $0x50] sm:$0xff]
  %v5406 = vld [vmem:[#allocation4 + $0x58] sm:$0xff]
  %v5407 = vld [vmem:[#allocation4 + $0x60] sm:$0xff]
  %v5408 = vld [vmem:[#allocation4 + $0x68] sm:$0xff]
  %v5409 = vld [vmem:[#allocation4 + $0x70] sm:$0xff]
  %v5410 = vld [vmem:[#allocation4 + $0x78] sm:$0xff]
  %v5411 = vpack.c.bf16 %v5340, %v5338
  %v5412 = vpack.c.bf16 %v5344, %v5342
  %v5413 = vpack.c.bf16 %v5348, %v5346
  %v5414 = vpack.c.bf16 %v5352, %v5350
  %v5415 = vpack.c.bf16 %v5356, %v5354
  %v5416 = vpack.c.bf16 %v5360, %v5358
  %v5417 = vpack.c.bf16 %v5364, %v5362
  %v5418 = vpack.c.bf16 %v5368, %v5366
  %5419 = vmatpush.bf16.msra.mxu0 %v5394
  %5420 = vmatpush.bf16.msra.mxu0 %v5393
  %5421 = vmatpush.bf16.msra.mxu0 %v5392
  %5422 = vmatpush.bf16.msra.mxu0 %v5391
  %5423 = vmatpush.bf16.msra.mxu0 %v5390
  %5424 = vmatpush.bf16.msra.mxu0 %v5389
  %5425 = vmatpush.bf16.msra.mxu0 %v5388
  %5426 = vmatpush.bf16.msra.mxu0 %v5387
  %5427 = vmatmul.bf16.gmra.mxu0 %v5411
  %v5428 = vpop.f32.mrf.mxu0
  %v5429 = vadd.f32 0.0, %v5428
  %v5430 = vpop.f32.mrf.mxu0
  %v5431 = vadd.f32 0.0, %v5430
  %5432 = vmatmul.bf16.gmra.mxu0 %v5412
  %v5433 = vpop.f32.mrf.mxu0
  %v5434 = vadd.f32 0.0, %v5433
  %v5435 = vpop.f32.mrf.mxu0
  %v5436 = vadd.f32 0.0, %v5435
  %5437 = vmatmul.bf16.gmra.mxu0 %v5413
  %v5438 = vpop.f32.mrf.mxu0
  %v5439 = vadd.f32 0.0, %v5438
  %v5440 = vpop.f32.mrf.mxu0
  %v5441 = vadd.f32 0.0, %v5440
  %5442 = vmatmul.bf16.gmra.mxu0 %v5414
  %v5443 = vpop.f32.mrf.mxu0
  %v5444 = vadd.f32 0.0, %v5443
  %v5445 = vpop.f32.mrf.mxu0
  %v5446 = vadd.f32 0.0, %v5445
  %5447 = vmatmul.bf16.gmra.mxu0 %v5415
  %v5448 = vpop.f32.mrf.mxu0
  %v5449 = vadd.f32 0.0, %v5448
  %v5450 = vpop.f32.mrf.mxu0
  %v5451 = vadd.f32 0.0, %v5450
  %5452 = vmatmul.bf16.gmra.mxu0 %v5416
  %v5453 = vpop.f32.mrf.mxu0
  %v5454 = vadd.f32 0.0, %v5453
  %v5455 = vpop.f32.mrf.mxu0
  %v5456 = vadd.f32 0.0, %v5455
  %5457 = vmatmul.bf16.gmra.mxu0 %v5417
  %v5458 = vpop.f32.mrf.mxu0
  %v5459 = vadd.f32 0.0, %v5458
  %v5460 = vpop.f32.mrf.mxu0
  %v5461 = vadd.f32 0.0, %v5460
  %5462 = vmatmul.bf16.gmra.mxu0 %v5418
  %v5463 = vpop.f32.mrf.mxu0
  %v5464 = vadd.f32 0.0, %v5463
  %v5465 = vpop.f32.mrf.mxu0
  %v5466 = vadd.f32 0.0, %v5465
  %5467 = vdwg.mxu0
  %v5468 = vadd.f32 %v5395, %v5429
  %v5469 = vadd.f32 %v5396, %v5431
  %v5470 = vadd.f32 %v5397, %v5434
  %v5471 = vadd.f32 %v5398, %v5436
  %v5472 = vadd.f32 %v5399, %v5439
  %v5473 = vadd.f32 %v5400, %v5441
  %v5474 = vadd.f32 %v5401, %v5444
  %v5475 = vadd.f32 %v5402, %v5446
  %v5476 = vadd.f32 %v5403, %v5449
  %v5477 = vadd.f32 %v5404, %v5451
  %v5478 = vadd.f32 %v5405, %v5454
  %v5479 = vadd.f32 %v5406, %v5456
  %v5480 = vadd.f32 %v5407, %v5459
  %v5481 = vadd.f32 %v5408, %v5461
  %v5482 = vadd.f32 %v5409, %v5464
  %v5483 = vadd.f32 %v5410, %v5466
  %5484 = vst [vmem:[#allocation4] sm:$0xff] %v5468
  %5485 = vst [vmem:[#allocation4 + $0x8] sm:$0xff] %v5469
  %5486 = vst [vmem:[#allocation4 + $0x10] sm:$0xff] %v5470
  %5487 = vst [vmem:[#allocation4 + $0x18] sm:$0xff] %v5471
  %5488 = vst [vmem:[#allocation4 + $0x20] sm:$0xff] %v5472
  %5489 = vst [vmem:[#allocation4 + $0x28] sm:$0xff] %v5473
  %5490 = vst [vmem:[#allocation4 + $0x30] sm:$0xff] %v5474
  %5491 = vst [vmem:[#allocation4 + $0x38] sm:$0xff] %v5475
  %5492 = vst [vmem:[#allocation4 + $0x40] sm:$0xff] %v5476
  %5493 = vst [vmem:[#allocation4 + $0x48] sm:$0xff] %v5477
  %5494 = vst [vmem:[#allocation4 + $0x50] sm:$0xff] %v5478
  %5495 = vst [vmem:[#allocation4 + $0x58] sm:$0xff] %v5479
  %5496 = vst [vmem:[#allocation4 + $0x60] sm:$0xff] %v5480
  %5497 = vst [vmem:[#allocation4 + $0x68] sm:$0xff] %v5481
  %5498 = vst [vmem:[#allocation4 + $0x70] sm:$0xff] %v5482
  %5499 = vst [vmem:[#allocation4 + $0x78] sm:$0xff] %v5483
  %5500 = vset.pattern.permute.xlu0 4
  %5501 = vperm.xlu0 %5500, %v3967
  %v5502 = vpop.permute.xlu0 %5501
  %5504 = vset.pattern.permute.xlu0 4
  %5505 = vperm.xlu0 %5504, %v3969
  %v5506 = vpop.permute.xlu0 %5505
  %5508 = vset.pattern.permute.xlu0 4
  %5509 = vperm.xlu0 %5508, %v3972
  %v5510 = vpop.permute.xlu0 %5509
  %5512 = vset.pattern.permute.xlu0 4
  %5513 = vperm.xlu0 %5512, %v3974
  %v5514 = vpop.permute.xlu0 %5513
  %5516 = vset.pattern.permute.xlu0 4
  %5517 = vperm.xlu0 %5516, %v3977
  %v5518 = vpop.permute.xlu0 %5517
  %5520 = vset.pattern.permute.xlu0 4
  %5521 = vperm.xlu0 %5520, %v3979
  %v5522 = vpop.permute.xlu0 %5521
  %5524 = vset.pattern.permute.xlu0 4
  %5525 = vperm.xlu0 %5524, %v3982
  %v5526 = vpop.permute.xlu0 %5525
  %5528 = vset.pattern.permute.xlu0 4
  %5529 = vperm.xlu0 %5528, %v3984
  %v5530 = vpop.permute.xlu0 %5529
  %5532 = vset.pattern.permute.xlu0 4
  %5533 = vperm.xlu0 %5532, %v3987
  %v5534 = vpop.permute.xlu0 %5533
  %5536 = vset.pattern.permute.xlu0 4
  %5537 = vperm.xlu0 %5536, %v3989
  %v5538 = vpop.permute.xlu0 %5537
  %5540 = vset.pattern.permute.xlu0 4
  %5541 = vperm.xlu0 %5540, %v3992
  %v5542 = vpop.permute.xlu0 %5541
  %5544 = vset.pattern.permute.xlu0 4
  %5545 = vperm.xlu0 %5544, %v3994
  %v5546 = vpop.permute.xlu0 %5545
  %5548 = vset.pattern.permute.xlu0 4
  %5549 = vperm.xlu0 %5548, %v3997
  %v5550 = vpop.permute.xlu0 %5549
  %5552 = vset.pattern.permute.xlu0 4
  %5553 = vperm.xlu0 %5552, %v3999
  %v5554 = vpop.permute.xlu0 %5553
  %5556 = vset.pattern.permute.xlu0 4
  %5557 = vperm.xlu0 %5556, %v4002
  %v5558 = vpop.permute.xlu0 %5557
  %5560 = vset.pattern.permute.xlu0 4
  %5561 = vperm.xlu0 %5560, %v4004
  %v5562 = vpop.permute.xlu0 %5561
  %v5564 = vperm.slane %v4086, 4
  %v5565 = vadd.f32 %v5502, %v5564
  %v5566 = vadd.f32 %v5506, %v5564
  %v5567 = vadd.f32 %v5510, %v5564
  %v5568 = vadd.f32 %v5514, %v5564
  %v5569 = vadd.f32 %v5518, %v5564
  %v5570 = vadd.f32 %v5522, %v5564
  %v5571 = vadd.f32 %v5526, %v5564
  %v5572 = vadd.f32 %v5530, %v5564
  %v5573 = vadd.f32 %v5534, %v5564
  %v5574 = vadd.f32 %v5538, %v5564
  %v5575 = vadd.f32 %v5542, %v5564
  %v5576 = vadd.f32 %v5546, %v5564
  %v5577 = vadd.f32 %v5550, %v5564
  %v5578 = vadd.f32 %v5554, %v5564
  %v5579 = vadd.f32 %v5558, %v5564
  %v5580 = vadd.f32 %v5562, %v5564
  %v5581 = vmul.f32 %v5565, 0.2
  %v5582 = vmul.f32 %v5566, 0.2
  %v5583 = vmul.f32 %v5567, 0.2
  %v5584 = vmul.f32 %v5568, 0.2
  %v5585 = vmul.f32 %v5569, 0.2
  %v5586 = vmul.f32 %v5570, 0.2
  %v5587 = vmul.f32 %v5571, 0.2
  %v5588 = vmul.f32 %v5572, 0.2
  %v5589 = vmul.f32 %v5573, 0.2
  %v5590 = vmul.f32 %v5574, 0.2
  %v5591 = vmul.f32 %v5575, 0.2
  %v5592 = vmul.f32 %v5576, 0.2
  %v5593 = vmul.f32 %v5577, 0.2
  %v5594 = vmul.f32 %v5578, 0.2
  %v5595 = vmul.f32 %v5579, 0.2
  %v5596 = vmul.f32 %v5580, 0.2
  %v5597 = vmax.f32 %v5565, %v5581
  %v5598 = vmax.f32 %v5566, %v5582
  %v5599 = vmax.f32 %v5567, %v5583
  %v5600 = vmax.f32 %v5568, %v5584
  %v5601 = vmax.f32 %v5569, %v5585
  %v5602 = vmax.f32 %v5570, %v5586
  %v5603 = vmax.f32 %v5571, %v5587
  %v5604 = vmax.f32 %v5572, %v5588
  %v5605 = vmax.f32 %v5573, %v5589
  %v5606 = vmax.f32 %v5574, %v5590
  %v5607 = vmax.f32 %v5575, %v5591
  %v5608 = vmax.f32 %v5576, %v5592
  %v5609 = vmax.f32 %v5577, %v5593
  %v5610 = vmax.f32 %v5578, %v5594
  %v5611 = vmax.f32 %v5579, %v5595
  %v5612 = vmax.f32 %v5580, %v5596
  %v5613 = vsel %vm628, %v5597, -1e+30
  %v5614 = vsel %vm629, %v5598, -1e+30
  %v5615 = vsel %vm630, %v5599, -1e+30
  %v5616 = vsel %vm631, %v5600, -1e+30
  %v5617 = vsel %vm632, %v5601, -1e+30
  %v5618 = vsel %vm633, %v5602, -1e+30
  %v5619 = vsel %vm634, %v5603, -1e+30
  %v5620 = vsel %vm635, %v5604, -1e+30
  %v5621 = vsel %vm636, %v5605, -1e+30
  %v5622 = vsel %vm637, %v5606, -1e+30
  %v5623 = vsel %vm638, %v5607, -1e+30
  %v5624 = vsel %vm639, %v5608, -1e+30
  %v5625 = vsel %vm640, %v5609, -1e+30
  %v5626 = vsel %vm641, %v5610, -1e+30
  %v5627 = vsel %vm642, %v5611, -1e+30
  %v5628 = vsel %vm643, %v5612, -1e+30
  %5629 = vmax.xlane.f32.xlu0 %v5613
  %v5630 = vpop.xlane.xlu0 %5629
  %5631 = vmax.xlane.f32.xlu0 %v5614
  %v5632 = vpop.xlane.xlu0 %5631
  %5633 = vmax.xlane.f32.xlu0 %v5615
  %v5634 = vpop.xlane.xlu0 %5633
  %5635 = vmax.xlane.f32.xlu0 %v5616
  %v5636 = vpop.xlane.xlu0 %5635
  %5637 = vmax.xlane.f32.xlu0 %v5617
  %v5638 = vpop.xlane.xlu0 %5637
  %5639 = vmax.xlane.f32.xlu0 %v5618
  %v5640 = vpop.xlane.xlu0 %5639
  %5641 = vmax.xlane.f32.xlu0 %v5619
  %v5642 = vpop.xlane.xlu0 %5641
  %5643 = vmax.xlane.f32.xlu0 %v5620
  %v5644 = vpop.xlane.xlu0 %5643
  %5645 = vmax.xlane.f32.xlu0 %v5621
  %v5646 = vpop.xlane.xlu0 %5645
  %5647 = vmax.xlane.f32.xlu0 %v5622
  %v5648 = vpop.xlane.xlu0 %5647
  %5649 = vmax.xlane.f32.xlu0 %v5623
  %v5650 = vpop.xlane.xlu0 %5649
  %5651 = vmax.xlane.f32.xlu0 %v5624
  %v5652 = vpop.xlane.xlu0 %5651
  %5653 = vmax.xlane.f32.xlu0 %v5625
  %v5654 = vpop.xlane.xlu0 %5653
  %5655 = vmax.xlane.f32.xlu0 %v5626
  %v5656 = vpop.xlane.xlu0 %5655
  %5657 = vmax.xlane.f32.xlu0 %v5627
  %v5658 = vpop.xlane.xlu0 %5657
  %5659 = vmax.xlane.f32.xlu0 %v5628
  %v5660 = vpop.xlane.xlu0 %5659
  %v5661 = vsub.f32 %v5613, %v5630
  %v5662 = vsub.f32 %v5614, %v5632
  %v5663 = vsub.f32 %v5615, %v5634
  %v5664 = vsub.f32 %v5616, %v5636
  %v5665 = vsub.f32 %v5617, %v5638
  %v5666 = vsub.f32 %v5618, %v5640
  %v5667 = vsub.f32 %v5619, %v5642
  %v5668 = vsub.f32 %v5620, %v5644
  %v5669 = vsub.f32 %v5621, %v5646
  %v5670 = vsub.f32 %v5622, %v5648
  %v5671 = vsub.f32 %v5623, %v5650
  %v5672 = vsub.f32 %v5624, %v5652
  %v5673 = vsub.f32 %v5625, %v5654
  %v5674 = vsub.f32 %v5626, %v5656
  %v5675 = vsub.f32 %v5627, %v5658
  %v5676 = vsub.f32 %v5628, %v5660
  %v5677 = vmul.f32 %v5661, 1.442695
  %v5678 = vpow.pop %v5677
  %v5679 = vmul.f32 %v5662, 1.442695
  %v5680 = vpow.pop %v5679
  %v5681 = vmul.f32 %v5663, 1.442695
  %v5682 = vpow.pop %v5681
  %v5683 = vmul.f32 %v5664, 1.442695
  %v5684 = vpow.pop %v5683
  %v5685 = vmul.f32 %v5665, 1.442695
  %v5686 = vpow.pop %v5685
  %v5687 = vmul.f32 %v5666, 1.442695
  %v5688 = vpow.pop %v5687
  %v5689 = vmul.f32 %v5667, 1.442695
  %v5690 = vpow.pop %v5689
  %v5691 = vmul.f32 %v5668, 1.442695
  %v5692 = vpow.pop %v5691
  %v5693 = vmul.f32 %v5669, 1.442695
  %v5694 = vpow.pop %v5693
  %v5695 = vmul.f32 %v5670, 1.442695
  %v5696 = vpow.pop %v5695
  %v5697 = vmul.f32 %v5671, 1.442695
  %v5698 = vpow.pop %v5697
  %v5699 = vmul.f32 %v5672, 1.442695
  %v5700 = vpow.pop %v5699
  %v5701 = vmul.f32 %v5673, 1.442695
  %v5702 = vpow.pop %v5701
  %v5703 = vmul.f32 %v5674, 1.442695
  %v5704 = vpow.pop %v5703
  %v5705 = vmul.f32 %v5675, 1.442695
  %v5706 = vpow.pop %v5705
  %v5707 = vmul.f32 %v5676, 1.442695
  %v5708 = vpow.pop %v5707
  %v5709 = vperm.slane %v4328, 2
  %v5710 = vunpack.c.l.bf16 %v5709
  %v5711 = vmul.f32 %v4331, %v5710
  %v5712 = vmul.f32 %v4332, %v5710
  %v5713 = vmul.f32 %v4333, %v5710
  %v5714 = vmul.f32 %v4334, %v5710
  %v5715 = vmul.f32 %v4335, %v5710
  %v5716 = vmul.f32 %v4336, %v5710
  %v5717 = vmul.f32 %v4337, %v5710
  %v5718 = vmul.f32 %v4338, %v5710
  %v5719 = vmul.f32 %v4339, %v5710
  %v5720 = vmul.f32 %v4340, %v5710
  %v5721 = vmul.f32 %v4341, %v5710
  %v5722 = vmul.f32 %v4342, %v5710
  %v5723 = vmul.f32 %v4343, %v5710
  %v5724 = vmul.f32 %v4344, %v5710
  %v5725 = vmul.f32 %v4345, %v5710
  %v5726 = vmul.f32 %v4346, %v5710
  %v5727 = vpack.c.bf16 %v5712, %v5711
  %v5728 = vpack.c.bf16 %v5714, %v5713
  %v5729 = vpack.c.bf16 %v5716, %v5715
  %v5730 = vpack.c.bf16 %v5718, %v5717
  %v5731 = vpack.c.bf16 %v5720, %v5719
  %v5732 = vpack.c.bf16 %v5722, %v5721
  %v5733 = vpack.c.bf16 %v5724, %v5723
  %v5734 = vpack.c.bf16 %v5726, %v5725
  %v5735 = vld [vmem:[#allocation4] sm:$0xff]
  %v5736 = vld [vmem:[#allocation4 + $0x8] sm:$0xff]
  %v5737 = vld [vmem:[#allocation4 + $0x10] sm:$0xff]
  %v5738 = vld [vmem:[#allocation4 + $0x18] sm:$0xff]
  %v5739 = vld [vmem:[#allocation4 + $0x20] sm:$0xff]
  %v5740 = vld [vmem:[#allocation4 + $0x28] sm:$0xff]
  %v5741 = vld [vmem:[#allocation4 + $0x30] sm:$0xff]
  %v5742 = vld [vmem:[#allocation4 + $0x38] sm:$0xff]
  %v5743 = vld [vmem:[#allocation4 + $0x40] sm:$0xff]
  %v5744 = vld [vmem:[#allocation4 + $0x48] sm:$0xff]
  %v5745 = vld [vmem:[#allocation4 + $0x50] sm:$0xff]
  %v5746 = vld [vmem:[#allocation4 + $0x58] sm:$0xff]
  %v5747 = vld [vmem:[#allocation4 + $0x60] sm:$0xff]
  %v5748 = vld [vmem:[#allocation4 + $0x68] sm:$0xff]
  %v5749 = vld [vmem:[#allocation4 + $0x70] sm:$0xff]
  %v5750 = vld [vmem:[#allocation4 + $0x78] sm:$0xff]
  %v5751 = vpack.c.bf16 %v5680, %v5678
  %v5752 = vpack.c.bf16 %v5684, %v5682
  %v5753 = vpack.c.bf16 %v5688, %v5686
  %v5754 = vpack.c.bf16 %v5692, %v5690
  %v5755 = vpack.c.bf16 %v5696, %v5694
  %v5756 = vpack.c.bf16 %v5700, %v5698
  %v5757 = vpack.c.bf16 %v5704, %v5702
  %v5758 = vpack.c.bf16 %v5708, %v5706
  %5759 = vmatpush.bf16.msra.mxu0 %v5734
  %5760 = vmatpush.bf16.msra.mxu0 %v5733
  %5761 = vmatpush.bf16.msra.mxu0 %v5732
  %5762 = vmatpush.bf16.msra.mxu0 %v5731
  %5763 = vmatpush.bf16.msra.mxu0 %v5730
  %5764 = vmatpush.bf16.msra.mxu0 %v5729
  %5765 = vmatpush.bf16.msra.mxu0 %v5728
  %5766 = vmatpush.bf16.msra.mxu0 %v5727
  %5767 = vmatmul.bf16.gmra.mxu0 %v5751
  %v5768 = vpop.f32.mrf.mxu0
  %v5769 = vadd.f32 0.0, %v5768
  %v5770 = vpop.f32.mrf.mxu0
  %v5771 = vadd.f32 0.0, %v5770
  %5772 = vmatmul.bf16.gmra.mxu0 %v5752
  %v5773 = vpop.f32.mrf.mxu0
  %v5774 = vadd.f32 0.0, %v5773
  %v5775 = vpop.f32.mrf.mxu0
  %v5776 = vadd.f32 0.0, %v5775
  %5777 = vmatmul.bf16.gmra.mxu0 %v5753
  %v5778 = vpop.f32.mrf.mxu0
  %v5779 = vadd.f32 0.0, %v5778
  %v5780 = vpop.f32.mrf.mxu0
  %v5781 = vadd.f32 0.0, %v5780
  %5782 = vmatmul.bf16.gmra.mxu0 %v5754
  %v5783 = vpop.f32.mrf.mxu0
  %v5784 = vadd.f32 0.0, %v5783
  %v5785 = vpop.f32.mrf.mxu0
  %v5786 = vadd.f32 0.0, %v5785
  %5787 = vmatmul.bf16.gmra.mxu0 %v5755
  %v5788 = vpop.f32.mrf.mxu0
  %v5789 = vadd.f32 0.0, %v5788
  %v5790 = vpop.f32.mrf.mxu0
  %v5791 = vadd.f32 0.0, %v5790
  %5792 = vmatmul.bf16.gmra.mxu0 %v5756
  %v5793 = vpop.f32.mrf.mxu0
  %v5794 = vadd.f32 0.0, %v5793
  %v5795 = vpop.f32.mrf.mxu0
  %v5796 = vadd.f32 0.0, %v5795
  %5797 = vmatmul.bf16.gmra.mxu0 %v5757
  %v5798 = vpop.f32.mrf.mxu0
  %v5799 = vadd.f32 0.0, %v5798
  %v5800 = vpop.f32.mrf.mxu0
  %v5801 = vadd.f32 0.0, %v5800
  %5802 = vmatmul.bf16.gmra.mxu0 %v5758
  %v5803 = vpop.f32.mrf.mxu0
  %v5804 = vadd.f32 0.0, %v5803
  %v5805 = vpop.f32.mrf.mxu0
  %v5806 = vadd.f32 0.0, %v5805
  %5807 = vdwg.mxu0
  %v5808 = vadd.f32 %v5735, %v5769
  %v5809 = vadd.f32 %v5736, %v5771
  %v5810 = vadd.f32 %v5737, %v5774
  %v5811 = vadd.f32 %v5738, %v5776
  %v5812 = vadd.f32 %v5739, %v5779
  %v5813 = vadd.f32 %v5740, %v5781
  %v5814 = vadd.f32 %v5741, %v5784
  %v5815 = vadd.f32 %v5742, %v5786
  %v5816 = vadd.f32 %v5743, %v5789
  %v5817 = vadd.f32 %v5744, %v5791
  %v5818 = vadd.f32 %v5745, %v5794
  %v5819 = vadd.f32 %v5746, %v5796
  %v5820 = vadd.f32 %v5747, %v5799
  %v5821 = vadd.f32 %v5748, %v5801
  %v5822 = vadd.f32 %v5749, %v5804
  %v5823 = vadd.f32 %v5750, %v5806
  %5824 = vst [vmem:[#allocation4] sm:$0xff] %v5808
  %5825 = vst [vmem:[#allocation4 + $0x8] sm:$0xff] %v5809
  %5826 = vst [vmem:[#allocation4 + $0x10] sm:$0xff] %v5810
  %5827 = vst [vmem:[#allocation4 + $0x18] sm:$0xff] %v5811
  %5828 = vst [vmem:[#allocation4 + $0x20] sm:$0xff] %v5812
  %5829 = vst [vmem:[#allocation4 + $0x28] sm:$0xff] %v5813
  %5830 = vst [vmem:[#allocation4 + $0x30] sm:$0xff] %v5814
  %5831 = vst [vmem:[#allocation4 + $0x38] sm:$0xff] %v5815
  %5832 = vst [vmem:[#allocation4 + $0x40] sm:$0xff] %v5816
  %5833 = vst [vmem:[#allocation4 + $0x48] sm:$0xff] %v5817
  %5834 = vst [vmem:[#allocation4 + $0x50] sm:$0xff] %v5818
  %5835 = vst [vmem:[#allocation4 + $0x58] sm:$0xff] %v5819
  %5836 = vst [vmem:[#allocation4 + $0x60] sm:$0xff] %v5820
  %5837 = vst [vmem:[#allocation4 + $0x68] sm:$0xff] %v5821
  %5838 = vst [vmem:[#allocation4 + $0x70] sm:$0xff] %v5822
  %5839 = vst [vmem:[#allocation4 + $0x78] sm:$0xff] %v5823
  %5840 = vset.pattern.permute.xlu0 5
  %5841 = vperm.xlu0 %5840, %v3967
  %v5842 = vpop.permute.xlu0 %5841
  %5844 = vset.pattern.permute.xlu0 5
  %5845 = vperm.xlu0 %5844, %v3969
  %v5846 = vpop.permute.xlu0 %5845
  %5848 = vset.pattern.permute.xlu0 5
  %5849 = vperm.xlu0 %5848, %v3972
  %v5850 = vpop.permute.xlu0 %5849
  %5852 = vset.pattern.permute.xlu0 5
  %5853 = vperm.xlu0 %5852, %v3974
  %v5854 = vpop.permute.xlu0 %5853
  %5856 = vset.pattern.permute.xlu0 5
  %5857 = vperm.xlu0 %5856, %v3977
  %v5858 = vpop.permute.xlu0 %5857
  %5860 = vset.pattern.permute.xlu0 5
  %5861 = vperm.xlu0 %5860, %v3979
  %v5862 = vpop.permute.xlu0 %5861
  %5864 = vset.pattern.permute.xlu0 5
  %5865 = vperm.xlu0 %5864, %v3982
  %v5866 = vpop.permute.xlu0 %5865
  %5868 = vset.pattern.permute.xlu0 5
  %5869 = vperm.xlu0 %5868, %v3984
  %v5870 = vpop.permute.xlu0 %5869
  %5872 = vset.pattern.permute.xlu0 5
  %5873 = vperm.xlu0 %5872, %v3987
  %v5874 = vpop.permute.xlu0 %5873
  %5876 = vset.pattern.permute.xlu0 5
  %5877 = vperm.xlu0 %5876, %v3989
  %v5878 = vpop.permute.xlu0 %5877
  %5880 = vset.pattern.permute.xlu0 5
  %5881 = vperm.xlu0 %5880, %v3992
  %v5882 = vpop.permute.xlu0 %5881
  %5884 = vset.pattern.permute.xlu0 5
  %5885 = vperm.xlu0 %5884, %v3994
  %v5886 = vpop.permute.xlu0 %5885
  %5888 = vset.pattern.permute.xlu0 5
  %5889 = vperm.xlu0 %5888, %v3997
  %v5890 = vpop.permute.xlu0 %5889
  %5892 = vset.pattern.permute.xlu0 5
  %5893 = vperm.xlu0 %5892, %v3999
  %v5894 = vpop.permute.xlu0 %5893
  %5896 = vset.pattern.permute.xlu0 5
  %5897 = vperm.xlu0 %5896, %v4002
  %v5898 = vpop.permute.xlu0 %5897
  %5900 = vset.pattern.permute.xlu0 5
  %5901 = vperm.xlu0 %5900, %v4004
  %v5902 = vpop.permute.xlu0 %5901
  %v5904 = vperm.slane %v4086, 5
  %v5905 = vadd.f32 %v5842, %v5904
  %v5906 = vadd.f32 %v5846, %v5904
  %v5907 = vadd.f32 %v5850, %v5904
  %v5908 = vadd.f32 %v5854, %v5904
  %v5909 = vadd.f32 %v5858, %v5904
  %v5910 = vadd.f32 %v5862, %v5904
  %v5911 = vadd.f32 %v5866, %v5904
  %v5912 = vadd.f32 %v5870, %v5904
  %v5913 = vadd.f32 %v5874, %v5904
  %v5914 = vadd.f32 %v5878, %v5904
  %v5915 = vadd.f32 %v5882, %v5904
  %v5916 = vadd.f32 %v5886, %v5904
  %v5917 = vadd.f32 %v5890, %v5904
  %v5918 = vadd.f32 %v5894, %v5904
  %v5919 = vadd.f32 %v5898, %v5904
  %v5920 = vadd.f32 %v5902, %v5904
  %v5921 = vmul.f32 %v5905, 0.2
  %v5922 = vmul.f32 %v5906, 0.2
  %v5923 = vmul.f32 %v5907, 0.2
  %v5924 = vmul.f32 %v5908, 0.2
  %v5925 = vmul.f32 %v5909, 0.2
  %v5926 = vmul.f32 %v5910, 0.2
  %v5927 = vmul.f32 %v5911, 0.2
  %v5928 = vmul.f32 %v5912, 0.2
  %v5929 = vmul.f32 %v5913, 0.2
  %v5930 = vmul.f32 %v5914, 0.2
  %v5931 = vmul.f32 %v5915, 0.2
  %v5932 = vmul.f32 %v5916, 0.2
  %v5933 = vmul.f32 %v5917, 0.2
  %v5934 = vmul.f32 %v5918, 0.2
  %v5935 = vmul.f32 %v5919, 0.2
  %v5936 = vmul.f32 %v5920, 0.2
  %v5937 = vmax.f32 %v5905, %v5921
  %v5938 = vmax.f32 %v5906, %v5922
  %v5939 = vmax.f32 %v5907, %v5923
  %v5940 = vmax.f32 %v5908, %v5924
  %v5941 = vmax.f32 %v5909, %v5925
  %v5942 = vmax.f32 %v5910, %v5926
  %v5943 = vmax.f32 %v5911, %v5927
  %v5944 = vmax.f32 %v5912, %v5928
  %v5945 = vmax.f32 %v5913, %v5929
  %v5946 = vmax.f32 %v5914, %v5930
  %v5947 = vmax.f32 %v5915, %v5931
  %v5948 = vmax.f32 %v5916, %v5932
  %v5949 = vmax.f32 %v5917, %v5933
  %v5950 = vmax.f32 %v5918, %v5934
  %v5951 = vmax.f32 %v5919, %v5935
  %v5952 = vmax.f32 %v5920, %v5936
  %v5953 = vsel %vm628, %v5937, -1e+30
  %v5954 = vsel %vm629, %v5938, -1e+30
  %v5955 = vsel %vm630, %v5939, -1e+30
  %v5956 = vsel %vm631, %v5940, -1e+30
  %v5957 = vsel %vm632, %v5941, -1e+30
  %v5958 = vsel %vm633, %v5942, -1e+30
  %v5959 = vsel %vm634, %v5943, -1e+30
  %v5960 = vsel %vm635, %v5944, -1e+30
  %v5961 = vsel %vm636, %v5945, -1e+30
  %v5962 = vsel %vm637, %v5946, -1e+30
  %v5963 = vsel %vm638, %v5947, -1e+30
  %v5964 = vsel %vm639, %v5948, -1e+30
  %v5965 = vsel %vm640, %v5949, -1e+30
  %v5966 = vsel %vm641, %v5950, -1e+30
  %v5967 = vsel %vm642, %v5951, -1e+30
  %v5968 = vsel %vm643, %v5952, -1e+30
  %5969 = vmax.xlane.f32.xlu0 %v5953
  %v5970 = vpop.xlane.xlu0 %5969
  %5971 = vmax.xlane.f32.xlu0 %v5954
  %v5972 = vpop.xlane.xlu0 %5971
  %5973 = vmax.xlane.f32.xlu0 %v5955
  %v5974 = vpop.xlane.xlu0 %5973
  %5975 = vmax.xlane.f32.xlu0 %v5956
  %v5976 = vpop.xlane.xlu0 %5975
  %5977 = vmax.xlane.f32.xlu0 %v5957
  %v5978 = vpop.xlane.xlu0 %5977
  %5979 = vmax.xlane.f32.xlu0 %v5958
  %v5980 = vpop.xlane.xlu0 %5979
  %5981 = vmax.xlane.f32.xlu0 %v5959
  %v5982 = vpop.xlane.xlu0 %5981
  %5983 = vmax.xlane.f32.xlu0 %v5960
  %v5984 = vpop.xlane.xlu0 %5983
  %5985 = vmax.xlane.f32.xlu0 %v5961
  %v5986 = vpop.xlane.xlu0 %5985
  %5987 = vmax.xlane.f32.xlu0 %v5962
  %v5988 = vpop.xlane.xlu0 %5987
  %5989 = vmax.xlane.f32.xlu0 %v5963
  %v5990 = vpop.xlane.xlu0 %5989
  %5991 = vmax.xlane.f32.xlu0 %v5964
  %v5992 = vpop.xlane.xlu0 %5991
  %5993 = vmax.xlane.f32.xlu0 %v5965
  %v5994 = vpop.xlane.xlu0 %5993
  %5995 = vmax.xlane.f32.xlu0 %v5966
  %v5996 = vpop.xlane.xlu0 %5995
  %5997 = vmax.xlane.f32.xlu0 %v5967
  %v5998 = vpop.xlane.xlu0 %5997
  %5999 = vmax.xlane.f32.xlu0 %v5968
  %v6000 = vpop.xlane.xlu0 %5999
  %v6001 = vsub.f32 %v5953, %v5970
  %v6002 = vsub.f32 %v5954, %v5972
  %v6003 = vsub.f32 %v5955, %v5974
  %v6004 = vsub.f32 %v5956, %v5976
  %v6005 = vsub.f32 %v5957, %v5978
  %v6006 = vsub.f32 %v5958, %v5980
  %v6007 = vsub.f32 %v5959, %v5982
  %v6008 = vsub.f32 %v5960, %v5984
  %v6009 = vsub.f32 %v5961, %v5986
  %v6010 = vsub.f32 %v5962, %v5988
  %v6011 = vsub.f32 %v5963, %v5990
  %v6012 = vsub.f32 %v5964, %v5992
  %v6013 = vsub.f32 %v5965, %v5994
  %v6014 = vsub.f32 %v5966, %v5996
  %v6015 = vsub.f32 %v5967, %v5998
  %v6016 = vsub.f32 %v5968, %v6000
  %v6017 = vmul.f32 %v6001, 1.442695
  %v6018 = vpow.pop %v6017
  %v6019 = vmul.f32 %v6002, 1.442695
  %v6020 = vpow.pop %v6019
  %v6021 = vmul.f32 %v6003, 1.442695
  %v6022 = vpow.pop %v6021
  %v6023 = vmul.f32 %v6004, 1.442695
  %v6024 = vpow.pop %v6023
  %v6025 = vmul.f32 %v6005, 1.442695
  %v6026 = vpow.pop %v6025
  %v6027 = vmul.f32 %v6006, 1.442695
  %v6028 = vpow.pop %v6027
  %v6029 = vmul.f32 %v6007, 1.442695
  %v6030 = vpow.pop %v6029
  %v6031 = vmul.f32 %v6008, 1.442695
  %v6032 = vpow.pop %v6031
  %v6033 = vmul.f32 %v6009, 1.442695
  %v6034 = vpow.pop %v6033
  %v6035 = vmul.f32 %v6010, 1.442695
  %v6036 = vpow.pop %v6035
  %v6037 = vmul.f32 %v6011, 1.442695
  %v6038 = vpow.pop %v6037
  %v6039 = vmul.f32 %v6012, 1.442695
  %v6040 = vpow.pop %v6039
  %v6041 = vmul.f32 %v6013, 1.442695
  %v6042 = vpow.pop %v6041
  %v6043 = vmul.f32 %v6014, 1.442695
  %v6044 = vpow.pop %v6043
  %v6045 = vmul.f32 %v6015, 1.442695
  %v6046 = vpow.pop %v6045
  %v6047 = vmul.f32 %v6016, 1.442695
  %v6048 = vpow.pop %v6047
  %v6049 = vperm.slane %v4687, 2
  %v6050 = vunpack.c.l.bf16 %v6049
  %v6051 = vmul.f32 %v4331, %v6050
  %v6052 = vmul.f32 %v4332, %v6050
  %v6053 = vmul.f32 %v4333, %v6050
  %v6054 = vmul.f32 %v4334, %v6050
  %v6055 = vmul.f32 %v4335, %v6050
  %v6056 = vmul.f32 %v4336, %v6050
  %v6057 = vmul.f32 %v4337, %v6050
  %v6058 = vmul.f32 %v4338, %v6050
  %v6059 = vmul.f32 %v4339, %v6050
  %v6060 = vmul.f32 %v4340, %v6050
  %v6061 = vmul.f32 %v4341, %v6050
  %v6062 = vmul.f32 %v4342, %v6050
  %v6063 = vmul.f32 %v4343, %v6050
  %v6064 = vmul.f32 %v4344, %v6050
  %v6065 = vmul.f32 %v4345, %v6050
  %v6066 = vmul.f32 %v4346, %v6050
  %v6067 = vpack.c.bf16 %v6052, %v6051
  %v6068 = vpack.c.bf16 %v6054, %v6053
  %v6069 = vpack.c.bf16 %v6056, %v6055
  %v6070 = vpack.c.bf16 %v6058, %v6057
  %v6071 = vpack.c.bf16 %v6060, %v6059
  %v6072 = vpack.c.bf16 %v6062, %v6061
  %v6073 = vpack.c.bf16 %v6064, %v6063
  %v6074 = vpack.c.bf16 %v6066, %v6065
  %v6075 = vld [vmem:[#allocation4] sm:$0xff]
  %v6076 = vld [vmem:[#allocation4 + $0x8] sm:$0xff]
  %v6077 = vld [vmem:[#allocation4 + $0x10] sm:$0xff]
  %v6078 = vld [vmem:[#allocation4 + $0x18] sm:$0xff]
  %v6079 = vld [vmem:[#allocation4 + $0x20] sm:$0xff]
  %v6080 = vld [vmem:[#allocation4 + $0x28] sm:$0xff]
  %v6081 = vld [vmem:[#allocation4 + $0x30] sm:$0xff]
  %v6082 = vld [vmem:[#allocation4 + $0x38] sm:$0xff]
  %v6083 = vld [vmem:[#allocation4 + $0x40] sm:$0xff]
  %v6084 = vld [vmem:[#allocation4 + $0x48] sm:$0xff]
  %v6085 = vld [vmem:[#allocation4 + $0x50] sm:$0xff]
  %v6086 = vld [vmem:[#allocation4 + $0x58] sm:$0xff]
  %v6087 = vld [vmem:[#allocation4 + $0x60] sm:$0xff]
  %v6088 = vld [vmem:[#allocation4 + $0x68] sm:$0xff]
  %v6089 = vld [vmem:[#allocation4 + $0x70] sm:$0xff]
  %v6090 = vld [vmem:[#allocation4 + $0x78] sm:$0xff]
  %v6091 = vpack.c.bf16 %v6020, %v6018
  %v6092 = vpack.c.bf16 %v6024, %v6022
  %v6093 = vpack.c.bf16 %v6028, %v6026
  %v6094 = vpack.c.bf16 %v6032, %v6030
  %v6095 = vpack.c.bf16 %v6036, %v6034
  %v6096 = vpack.c.bf16 %v6040, %v6038
  %v6097 = vpack.c.bf16 %v6044, %v6042
  %v6098 = vpack.c.bf16 %v6048, %v6046
  %6099 = vmatpush.bf16.msra.mxu0 %v6074
  %6100 = vmatpush.bf16.msra.mxu0 %v6073
  %6101 = vmatpush.bf16.msra.mxu0 %v6072
  %6102 = vmatpush.bf16.msra.mxu0 %v6071
  %6103 = vmatpush.bf16.msra.mxu0 %v6070
  %6104 = vmatpush.bf16.msra.mxu0 %v6069
  %6105 = vmatpush.bf16.msra.mxu0 %v6068
  %6106 = vmatpush.bf16.msra.mxu0 %v6067
  %6107 = vmatmul.bf16.gmra.mxu0 %v6091
  %v6108 = vpop.f32.mrf.mxu0
  %v6109 = vadd.f32 0.0, %v6108
  %v6110 = vpop.f32.mrf.mxu0
  %v6111 = vadd.f32 0.0, %v6110
  %6112 = vmatmul.bf16.gmra.mxu0 %v6092
  %v6113 = vpop.f32.mrf.mxu0
  %v6114 = vadd.f32 0.0, %v6113
  %v6115 = vpop.f32.mrf.mxu0
  %v6116 = vadd.f32 0.0, %v6115
  %6117 = vmatmul.bf16.gmra.mxu0 %v6093
  %v6118 = vpop.f32.mrf.mxu0
  %v6119 = vadd.f32 0.0, %v6118
  %v6120 = vpop.f32.mrf.mxu0
  %v6121 = vadd.f32 0.0, %v6120
  %6122 = vmatmul.bf16.gmra.mxu0 %v6094
  %v6123 = vpop.f32.mrf.mxu0
  %v6124 = vadd.f32 0.0, %v6123
  %v6125 = vpop.f32.mrf.mxu0
  %v6126 = vadd.f32 0.0, %v6125
  %6127 = vmatmul.bf16.gmra.mxu0 %v6095
  %v6128 = vpop.f32.mrf.mxu0
  %v6129 = vadd.f32 0.0, %v6128
  %v6130 = vpop.f32.mrf.mxu0
  %v6131 = vadd.f32 0.0, %v6130
  %6132 = vmatmul.bf16.gmra.mxu0 %v6096
  %v6133 = vpop.f32.mrf.mxu0
  %v6134 = vadd.f32 0.0, %v6133
  %v6135 = vpop.f32.mrf.mxu0
  %v6136 = vadd.f32 0.0, %v6135
  %6137 = vmatmul.bf16.gmra.mxu0 %v6097
  %v6138 = vpop.f32.mrf.mxu0
  %v6139 = vadd.f32 0.0, %v6138
  %v6140 = vpop.f32.mrf.mxu0
  %v6141 = vadd.f32 0.0, %v6140
  %6142 = vmatmul.bf16.gmra.mxu0 %v6098
  %v6143 = vpop.f32.mrf.mxu0
  %v6144 = vadd.f32 0.0, %v6143
  %v6145 = vpop.f32.mrf.mxu0
  %v6146 = vadd.f32 0.0, %v6145
  %6147 = vdwg.mxu0
  %v6148 = vadd.f32 %v6075, %v6109
  %v6149 = vadd.f32 %v6076, %v6111
  %v6150 = vadd.f32 %v6077, %v6114
  %v6151 = vadd.f32 %v6078, %v6116
  %v6152 = vadd.f32 %v6079, %v6119
  %v6153 = vadd.f32 %v6080, %v6121
  %v6154 = vadd.f32 %v6081, %v6124
  %v6155 = vadd.f32 %v6082, %v6126
  %v6156 = vadd.f32 %v6083, %v6129
  %v6157 = vadd.f32 %v6084, %v6131
  %v6158 = vadd.f32 %v6085, %v6134
  %v6159 = vadd.f32 %v6086, %v6136
  %v6160 = vadd.f32 %v6087, %v6139
  %v6161 = vadd.f32 %v6088, %v6141
  %v6162 = vadd.f32 %v6089, %v6144
  %v6163 = vadd.f32 %v6090, %v6146
  %6164 = vst [vmem:[#allocation4] sm:$0xff] %v6148
  %6165 = vst [vmem:[#allocation4 + $0x8] sm:$0xff] %v6149
  %6166 = vst [vmem:[#allocation4 + $0x10] sm:$0xff] %v6150
  %6167 = vst [vmem:[#allocation4 + $0x18] sm:$0xff] %v6151
  %6168 = vst [vmem:[#allocation4 + $0x20] sm:$0xff] %v6152
  %6169 = vst [vmem:[#allocation4 + $0x28] sm:$0xff] %v6153
  %6170 = vst [vmem:[#allocation4 + $0x30] sm:$0xff] %v6154
  %6171 = vst [vmem:[#allocation4 + $0x38] sm:$0xff] %v6155
  %6172 = vst [vmem:[#allocation4 + $0x40] sm:$0xff] %v6156
  %6173 = vst [vmem:[#allocation4 + $0x48] sm:$0xff] %v6157
  %6174 = vst [vmem:[#allocation4 + $0x50] sm:$0xff] %v6158
  %6175 = vst [vmem:[#allocation4 + $0x58] sm:$0xff] %v6159
  %6176 = vst [vmem:[#allocation4 + $0x60] sm:$0xff] %v6160
  %6177 = vst [vmem:[#allocation4 + $0x68] sm:$0xff] %v6161
  %6178 = vst [vmem:[#allocation4 + $0x70] sm:$0xff] %v6162
  %6179 = vst [vmem:[#allocation4 + $0x78] sm:$0xff] %v6163
  %6180 = vset.pattern.permute.xlu0 6
  %6181 = vperm.xlu0 %6180, %v3967
  %v6182 = vpop.permute.xlu0 %6181
  %6184 = vset.pattern.permute.xlu0 6
  %6185 = vperm.xlu0 %6184, %v3969
  %v6186 = vpop.permute.xlu0 %6185
  %6188 = vset.pattern.permute.xlu0 6
  %6189 = vperm.xlu0 %6188, %v3972
  %v6190 = vpop.permute.xlu0 %6189
  %6192 = vset.pattern.permute.xlu0 6
  %6193 = vperm.xlu0 %6192, %v3974
  %v6194 = vpop.permute.xlu0 %6193
  %6196 = vset.pattern.permute.xlu0 6
  %6197 = vperm.xlu0 %6196, %v3977
  %v6198 = vpop.permute.xlu0 %6197
  %6200 = vset.pattern.permute.xlu0 6
  %6201 = vperm.xlu0 %6200, %v3979
  %v6202 = vpop.permute.xlu0 %6201
  %6204 = vset.pattern.permute.xlu0 6
  %6205 = vperm.xlu0 %6204, %v3982
  %v6206 = vpop.permute.xlu0 %6205
  %6208 = vset.pattern.permute.xlu0 6
  %6209 = vperm.xlu0 %6208, %v3984
  %v6210 = vpop.permute.xlu0 %6209
  %6212 = vset.pattern.permute.xlu0 6
  %6213 = vperm.xlu0 %6212, %v3987
  %v6214 = vpop.permute.xlu0 %6213
  %6216 = vset.pattern.permute.xlu0 6
  %6217 = vperm.xlu0 %6216, %v3989
  %v6218 = vpop.permute.xlu0 %6217
  %6220 = vset.pattern.permute.xlu0 6
  %6221 = vperm.xlu0 %6220, %v3992
  %v6222 = vpop.permute.xlu0 %6221
  %6224 = vset.pattern.permute.xlu0 6
  %6225 = vperm.xlu0 %6224, %v3994
  %v6226 = vpop.permute.xlu0 %6225
  %6228 = vset.pattern.permute.xlu0 6
  %6229 = vperm.xlu0 %6228, %v3997
  %v6230 = vpop.permute.xlu0 %6229
  %6232 = vset.pattern.permute.xlu0 6
  %6233 = vperm.xlu0 %6232, %v3999
  %v6234 = vpop.permute.xlu0 %6233
  %6236 = vset.pattern.permute.xlu0 6
  %6237 = vperm.xlu0 %6236, %v4002
  %v6238 = vpop.permute.xlu0 %6237
  %6240 = vset.pattern.permute.xlu0 6
  %6241 = vperm.xlu0 %6240, %v4004
  %v6242 = vpop.permute.xlu0 %6241
  %v6244 = vperm.slane %v4086, 6
  %v6245 = vadd.f32 %v6182, %v6244
  %v6246 = vadd.f32 %v6186, %v6244
  %v6247 = vadd.f32 %v6190, %v6244
  %v6248 = vadd.f32 %v6194, %v6244
  %v6249 = vadd.f32 %v6198, %v6244
  %v6250 = vadd.f32 %v6202, %v6244
  %v6251 = vadd.f32 %v6206, %v6244
  %v6252 = vadd.f32 %v6210, %v6244
  %v6253 = vadd.f32 %v6214, %v6244
  %v6254 = vadd.f32 %v6218, %v6244
  %v6255 = vadd.f32 %v6222, %v6244
  %v6256 = vadd.f32 %v6226, %v6244
  %v6257 = vadd.f32 %v6230, %v6244
  %v6258 = vadd.f32 %v6234, %v6244
  %v6259 = vadd.f32 %v6238, %v6244
  %v6260 = vadd.f32 %v6242, %v6244
  %v6261 = vmul.f32 %v6245, 0.2
  %v6262 = vmul.f32 %v6246, 0.2
  %v6263 = vmul.f32 %v6247, 0.2
  %v6264 = vmul.f32 %v6248, 0.2
  %v6265 = vmul.f32 %v6249, 0.2
  %v6266 = vmul.f32 %v6250, 0.2
  %v6267 = vmul.f32 %v6251, 0.2
  %v6268 = vmul.f32 %v6252, 0.2
  %v6269 = vmul.f32 %v6253, 0.2
  %v6270 = vmul.f32 %v6254, 0.2
  %v6271 = vmul.f32 %v6255, 0.2
  %v6272 = vmul.f32 %v6256, 0.2
  %v6273 = vmul.f32 %v6257, 0.2
  %v6274 = vmul.f32 %v6258, 0.2
  %v6275 = vmul.f32 %v6259, 0.2
  %v6276 = vmul.f32 %v6260, 0.2
  %v6277 = vmax.f32 %v6245, %v6261
  %v6278 = vmax.f32 %v6246, %v6262
  %v6279 = vmax.f32 %v6247, %v6263
  %v6280 = vmax.f32 %v6248, %v6264
  %v6281 = vmax.f32 %v6249, %v6265
  %v6282 = vmax.f32 %v6250, %v6266
  %v6283 = vmax.f32 %v6251, %v6267
  %v6284 = vmax.f32 %v6252, %v6268
  %v6285 = vmax.f32 %v6253, %v6269
  %v6286 = vmax.f32 %v6254, %v6270
  %v6287 = vmax.f32 %v6255, %v6271
  %v6288 = vmax.f32 %v6256, %v6272
  %v6289 = vmax.f32 %v6257, %v6273
  %v6290 = vmax.f32 %v6258, %v6274
  %v6291 = vmax.f32 %v6259, %v6275
  %v6292 = vmax.f32 %v6260, %v6276
  %v6293 = vsel %vm628, %v6277, -1e+30
  %v6294 = vsel %vm629, %v6278, -1e+30
  %v6295 = vsel %vm630, %v6279, -1e+30
  %v6296 = vsel %vm631, %v6280, -1e+30
  %v6297 = vsel %vm632, %v6281, -1e+30
  %v6298 = vsel %vm633, %v6282, -1e+30
  %v6299 = vsel %vm634, %v6283, -1e+30
  %v6300 = vsel %vm635, %v6284, -1e+30
  %v6301 = vsel %vm636, %v6285, -1e+30
  %v6302 = vsel %vm637, %v6286, -1e+30
  %v6303 = vsel %vm638, %v6287, -1e+30
  %v6304 = vsel %vm639, %v6288, -1e+30
  %v6305 = vsel %vm640, %v6289, -1e+30
  %v6306 = vsel %vm641, %v6290, -1e+30
  %v6307 = vsel %vm642, %v6291, -1e+30
  %v6308 = vsel %vm643, %v6292, -1e+30
  %6309 = vmax.xlane.f32.xlu0 %v6293
  %v6310 = vpop.xlane.xlu0 %6309
  %6311 = vmax.xlane.f32.xlu0 %v6294
  %v6312 = vpop.xlane.xlu0 %6311
  %6313 = vmax.xlane.f32.xlu0 %v6295
  %v6314 = vpop.xlane.xlu0 %6313
  %6315 = vmax.xlane.f32.xlu0 %v6296
  %v6316 = vpop.xlane.xlu0 %6315
  %6317 = vmax.xlane.f32.xlu0 %v6297
  %v6318 = vpop.xlane.xlu0 %6317
  %6319 = vmax.xlane.f32.xlu0 %v6298
  %v6320 = vpop.xlane.xlu0 %6319
  %6321 = vmax.xlane.f32.xlu0 %v6299
  %v6322 = vpop.xlane.xlu0 %6321
  %6323 = vmax.xlane.f32.xlu0 %v6300
  %v6324 = vpop.xlane.xlu0 %6323
  %6325 = vmax.xlane.f32.xlu0 %v6301
  %v6326 = vpop.xlane.xlu0 %6325
  %6327 = vmax.xlane.f32.xlu0 %v6302
  %v6328 = vpop.xlane.xlu0 %6327
  %6329 = vmax.xlane.f32.xlu0 %v6303
  %v6330 = vpop.xlane.xlu0 %6329
  %6331 = vmax.xlane.f32.xlu0 %v6304
  %v6332 = vpop.xlane.xlu0 %6331
  %6333 = vmax.xlane.f32.xlu0 %v6305
  %v6334 = vpop.xlane.xlu0 %6333
  %6335 = vmax.xlane.f32.xlu0 %v6306
  %v6336 = vpop.xlane.xlu0 %6335
  %6337 = vmax.xlane.f32.xlu0 %v6307
  %v6338 = vpop.xlane.xlu0 %6337
  %6339 = vmax.xlane.f32.xlu0 %v6308
  %v6340 = vpop.xlane.xlu0 %6339
  %v6341 = vsub.f32 %v6293, %v6310
  %v6342 = vsub.f32 %v6294, %v6312
  %v6343 = vsub.f32 %v6295, %v6314
  %v6344 = vsub.f32 %v6296, %v6316
  %v6345 = vsub.f32 %v6297, %v6318
  %v6346 = vsub.f32 %v6298, %v6320
  %v6347 = vsub.f32 %v6299, %v6322
  %v6348 = vsub.f32 %v6300, %v6324
  %v6349 = vsub.f32 %v6301, %v6326
  %v6350 = vsub.f32 %v6302, %v6328
  %v6351 = vsub.f32 %v6303, %v6330
  %v6352 = vsub.f32 %v6304, %v6332
  %v6353 = vsub.f32 %v6305, %v6334
  %v6354 = vsub.f32 %v6306, %v6336
  %v6355 = vsub.f32 %v6307, %v6338
  %v6356 = vsub.f32 %v6308, %v6340
  %v6357 = vmul.f32 %v6341, 1.442695
  %v6358 = vpow.pop %v6357
  %v6359 = vmul.f32 %v6342, 1.442695
  %v6360 = vpow.pop %v6359
  %v6361 = vmul.f32 %v6343, 1.442695
  %v6362 = vpow.pop %v6361
  %v6363 = vmul.f32 %v6344, 1.442695
  %v6364 = vpow.pop %v6363
  %v6365 = vmul.f32 %v6345, 1.442695
  %v6366 = vpow.pop %v6365
  %v6367 = vmul.f32 %v6346, 1.442695
  %v6368 = vpow.pop %v6367
  %v6369 = vmul.f32 %v6347, 1.442695
  %v6370 = vpow.pop %v6369
  %v6371 = vmul.f32 %v6348, 1.442695
  %v6372 = vpow.pop %v6371
  %v6373 = vmul.f32 %v6349, 1.442695
  %v6374 = vpow.pop %v6373
  %v6375 = vmul.f32 %v6350, 1.442695
  %v6376 = vpow.pop %v6375
  %v6377 = vmul.f32 %v6351, 1.442695
  %v6378 = vpow.pop %v6377
  %v6379 = vmul.f32 %v6352, 1.442695
  %v6380 = vpow.pop %v6379
  %v6381 = vmul.f32 %v6353, 1.442695
  %v6382 = vpow.pop %v6381
  %v6383 = vmul.f32 %v6354, 1.442695
  %v6384 = vpow.pop %v6383
  %v6385 = vmul.f32 %v6355, 1.442695
  %v6386 = vpow.pop %v6385
  %v6387 = vmul.f32 %v6356, 1.442695
  %v6388 = vpow.pop %v6387
  %v6389 = vperm.slane %v4328, 3
  %v6390 = vunpack.c.l.bf16 %v6389
  %v6391 = vmul.f32 %v4331, %v6390
  %v6392 = vmul.f32 %v4332, %v6390
  %v6393 = vmul.f32 %v4333, %v6390
  %v6394 = vmul.f32 %v4334, %v6390
  %v6395 = vmul.f32 %v4335, %v6390
  %v6396 = vmul.f32 %v4336, %v6390
  %v6397 = vmul.f32 %v4337, %v6390
  %v6398 = vmul.f32 %v4338, %v6390
  %v6399 = vmul.f32 %v4339, %v6390
  %v6400 = vmul.f32 %v4340, %v6390
  %v6401 = vmul.f32 %v4341, %v6390
  %v6402 = vmul.f32 %v4342, %v6390
  %v6403 = vmul.f32 %v4343, %v6390
  %v6404 = vmul.f32 %v4344, %v6390
  %v6405 = vmul.f32 %v4345, %v6390
  %v6406 = vmul.f32 %v4346, %v6390
  %v6407 = vpack.c.bf16 %v6392, %v6391
  %v6408 = vpack.c.bf16 %v6394, %v6393
  %v6409 = vpack.c.bf16 %v6396, %v6395
  %v6410 = vpack.c.bf16 %v6398, %v6397
  %v6411 = vpack.c.bf16 %v6400, %v6399
  %v6412 = vpack.c.bf16 %v6402, %v6401
  %v6413 = vpack.c.bf16 %v6404, %v6403
  %v6414 = vpack.c.bf16 %v6406, %v6405
  %v6415 = vld [vmem:[#allocation4] sm:$0xff]
  %v6416 = vld [vmem:[#allocation4 + $0x8] sm:$0xff]
  %v6417 = vld [vmem:[#allocation4 + $0x10] sm:$0xff]
  %v6418 = vld [vmem:[#allocation4 + $0x18] sm:$0xff]
  %v6419 = vld [vmem:[#allocation4 + $0x20] sm:$0xff]
  %v6420 = vld [vmem:[#allocation4 + $0x28] sm:$0xff]
  %v6421 = vld [vmem:[#allocation4 + $0x30] sm:$0xff]
  %v6422 = vld [vmem:[#allocation4 + $0x38] sm:$0xff]
  %v6423 = vld [vmem:[#allocation4 + $0x40] sm:$0xff]
  %v6424 = vld [vmem:[#allocation4 + $0x48] sm:$0xff]
  %v6425 = vld [vmem:[#allocation4 + $0x50] sm:$0xff]
  %v6426 = vld [vmem:[#allocation4 + $0x58] sm:$0xff]
  %v6427 = vld [vmem:[#allocation4 + $0x60] sm:$0xff]
  %v6428 = vld [vmem:[#allocation4 + $0x68] sm:$0xff]
  %v6429 = vld [vmem:[#allocation4 + $0x70] sm:$0xff]
  %v6430 = vld [vmem:[#allocation4 + $0x78] sm:$0xff]
  %v6431 = vpack.c.bf16 %v6360, %v6358
  %v6432 = vpack.c.bf16 %v6364, %v6362
  %v6433 = vpack.c.bf16 %v6368, %v6366
  %v6434 = vpack.c.bf16 %v6372, %v6370
  %v6435 = vpack.c.bf16 %v6376, %v6374
  %v6436 = vpack.c.bf16 %v6380, %v6378
  %v6437 = vpack.c.bf16 %v6384, %v6382
  %v6438 = vpack.c.bf16 %v6388, %v6386
  %6439 = vmatpush.bf16.msra.mxu0 %v6414
  %6440 = vmatpush.bf16.msra.mxu0 %v6413
  %6441 = vmatpush.bf16.msra.mxu0 %v6412
  %6442 = vmatpush.bf16.msra.mxu0 %v6411
  %6443 = vmatpush.bf16.msra.mxu0 %v6410
  %6444 = vmatpush.bf16.msra.mxu0 %v6409
  %6445 = vmatpush.bf16.msra.mxu0 %v6408
  %6446 = vmatpush.bf16.msra.mxu0 %v6407
  %6447 = vmatmul.bf16.gmra.mxu0 %v6431
  %v6448 = vpop.f32.mrf.mxu0
  %v6449 = vadd.f32 0.0, %v6448
  %v6450 = vpop.f32.mrf.mxu0
  %v6451 = vadd.f32 0.0, %v6450
  %6452 = vmatmul.bf16.gmra.mxu0 %v6432
  %v6453 = vpop.f32.mrf.mxu0
  %v6454 = vadd.f32 0.0, %v6453
  %v6455 = vpop.f32.mrf.mxu0
  %v6456 = vadd.f32 0.0, %v6455
  %6457 = vmatmul.bf16.gmra.mxu0 %v6433
  %v6458 = vpop.f32.mrf.mxu0
  %v6459 = vadd.f32 0.0, %v6458
  %v6460 = vpop.f32.mrf.mxu0
  %v6461 = vadd.f32 0.0, %v6460
  %6462 = vmatmul.bf16.gmra.mxu0 %v6434
  %v6463 = vpop.f32.mrf.mxu0
  %v6464 = vadd.f32 0.0, %v6463
  %v6465 = vpop.f32.mrf.mxu0
  %v6466 = vadd.f32 0.0, %v6465
  %6467 = vmatmul.bf16.gmra.mxu0 %v6435
  %v6468 = vpop.f32.mrf.mxu0
  %v6469 = vadd.f32 0.0, %v6468
  %v6470 = vpop.f32.mrf.mxu0
  %v6471 = vadd.f32 0.0, %v6470
  %6472 = vmatmul.bf16.gmra.mxu0 %v6436
  %v6473 = vpop.f32.mrf.mxu0
  %v6474 = vadd.f32 0.0, %v6473
  %v6475 = vpop.f32.mrf.mxu0
  %v6476 = vadd.f32 0.0, %v6475
  %6477 = vmatmul.bf16.gmra.mxu0 %v6437
  %v6478 = vpop.f32.mrf.mxu0
  %v6479 = vadd.f32 0.0, %v6478
  %v6480 = vpop.f32.mrf.mxu0
  %v6481 = vadd.f32 0.0, %v6480
  %6482 = vmatmul.bf16.gmra.mxu0 %v6438
  %v6483 = vpop.f32.mrf.mxu0
  %v6484 = vadd.f32 0.0, %v6483
  %v6485 = vpop.f32.mrf.mxu0
  %v6486 = vadd.f32 0.0, %v6485
  %6487 = vdwg.mxu0
  %v6488 = vadd.f32 %v6415, %v6449
  %v6489 = vadd.f32 %v6416, %v6451
  %v6490 = vadd.f32 %v6417, %v6454
  %v6491 = vadd.f32 %v6418, %v6456
  %v6492 = vadd.f32 %v6419, %v6459
  %v6493 = vadd.f32 %v6420, %v6461
  %v6494 = vadd.f32 %v6421, %v6464
  %v6495 = vadd.f32 %v6422, %v6466
  %v6496 = vadd.f32 %v6423, %v6469
  %v6497 = vadd.f32 %v6424, %v6471
  %v6498 = vadd.f32 %v6425, %v6474
  %v6499 = vadd.f32 %v6426, %v6476
  %v6500 = vadd.f32 %v6427, %v6479
  %v6501 = vadd.f32 %v6428, %v6481
  %v6502 = vadd.f32 %v6429, %v6484
  %v6503 = vadd.f32 %v6430, %v6486
  %6504 = vst [vmem:[#allocation4] sm:$0xff] %v6488
  %6505 = vst [vmem:[#allocation4 + $0x8] sm:$0xff] %v6489
  %6506 = vst [vmem:[#allocation4 + $0x10] sm:$0xff] %v6490
  %6507 = vst [vmem:[#allocation4 + $0x18] sm:$0xff] %v6491
  %6508 = vst [vmem:[#allocation4 + $0x20] sm:$0xff] %v6492
  %6509 = vst [vmem:[#allocation4 + $0x28] sm:$0xff] %v6493
  %6510 = vst [vmem:[#allocation4 + $0x30] sm:$0xff] %v6494
  %6511 = vst [vmem:[#allocation4 + $0x38] sm:$0xff] %v6495
  %6512 = vst [vmem:[#allocation4 + $0x40] sm:$0xff] %v6496
  %6513 = vst [vmem:[#allocation4 + $0x48] sm:$0xff] %v6497
  %6514 = vst [vmem:[#allocation4 + $0x50] sm:$0xff] %v6498
  %6515 = vst [vmem:[#allocation4 + $0x58] sm:$0xff] %v6499
  %6516 = vst [vmem:[#allocation4 + $0x60] sm:$0xff] %v6500
  %6517 = vst [vmem:[#allocation4 + $0x68] sm:$0xff] %v6501
  %6518 = vst [vmem:[#allocation4 + $0x70] sm:$0xff] %v6502
  %6519 = vst [vmem:[#allocation4 + $0x78] sm:$0xff] %v6503
  %6520 = vset.pattern.permute.xlu0 7
  %6521 = vperm.xlu0 %6520, %v3967
  %v6522 = vpop.permute.xlu0 %6521
  %6524 = vset.pattern.permute.xlu0 7
  %6525 = vperm.xlu0 %6524, %v3969
  %v6526 = vpop.permute.xlu0 %6525
  %6528 = vset.pattern.permute.xlu0 7
  %6529 = vperm.xlu0 %6528, %v3972
  %v6530 = vpop.permute.xlu0 %6529
  %6532 = vset.pattern.permute.xlu0 7
  %6533 = vperm.xlu0 %6532, %v3974
  %v6534 = vpop.permute.xlu0 %6533
  %6536 = vset.pattern.permute.xlu0 7
  %6537 = vperm.xlu0 %6536, %v3977
  %v6538 = vpop.permute.xlu0 %6537
  %6540 = vset.pattern.permute.xlu0 7
  %6541 = vperm.xlu0 %6540, %v3979
  %v6542 = vpop.permute.xlu0 %6541
  %6544 = vset.pattern.permute.xlu0 7
  %6545 = vperm.xlu0 %6544, %v3982
  %v6546 = vpop.permute.xlu0 %6545
  %6548 = vset.pattern.permute.xlu0 7
  %6549 = vperm.xlu0 %6548, %v3984
  %v6550 = vpop.permute.xlu0 %6549
  %6552 = vset.pattern.permute.xlu0 7
  %6553 = vperm.xlu0 %6552, %v3987
  %v6554 = vpop.permute.xlu0 %6553
  %6556 = vset.pattern.permute.xlu0 7
  %6557 = vperm.xlu0 %6556, %v3989
  %v6558 = vpop.permute.xlu0 %6557
  %6560 = vset.pattern.permute.xlu0 7
  %6561 = vperm.xlu0 %6560, %v3992
  %v6562 = vpop.permute.xlu0 %6561
  %6564 = vset.pattern.permute.xlu0 7
  %6565 = vperm.xlu0 %6564, %v3994
  %v6566 = vpop.permute.xlu0 %6565
  %6568 = vset.pattern.permute.xlu0 7
  %6569 = vperm.xlu0 %6568, %v3997
  %v6570 = vpop.permute.xlu0 %6569
  %6572 = vset.pattern.permute.xlu0 7
  %6573 = vperm.xlu0 %6572, %v3999
  %v6574 = vpop.permute.xlu0 %6573
  %6576 = vset.pattern.permute.xlu0 7
  %6577 = vperm.xlu0 %6576, %v4002
  %v6578 = vpop.permute.xlu0 %6577
  %6580 = vset.pattern.permute.xlu0 7
  %6581 = vperm.xlu0 %6580, %v4004
  %v6582 = vpop.permute.xlu0 %6581
  %v6584 = vperm.slane %v4086, 7
  %v6585 = vadd.f32 %v6522, %v6584
  %v6586 = vadd.f32 %v6526, %v6584
  %v6587 = vadd.f32 %v6530, %v6584
  %v6588 = vadd.f32 %v6534, %v6584
  %v6589 = vadd.f32 %v6538, %v6584
  %v6590 = vadd.f32 %v6542, %v6584
  %v6591 = vadd.f32 %v6546, %v6584
  %v6592 = vadd.f32 %v6550, %v6584
  %v6593 = vadd.f32 %v6554, %v6584
  %v6594 = vadd.f32 %v6558, %v6584
  %v6595 = vadd.f32 %v6562, %v6584
  %v6596 = vadd.f32 %v6566, %v6584
  %v6597 = vadd.f32 %v6570, %v6584
  %v6598 = vadd.f32 %v6574, %v6584
  %v6599 = vadd.f32 %v6578, %v6584
  %v6600 = vadd.f32 %v6582, %v6584
  %v6601 = vmul.f32 %v6585, 0.2
  %v6602 = vmul.f32 %v6586, 0.2
  %v6603 = vmul.f32 %v6587, 0.2
  %v6604 = vmul.f32 %v6588, 0.2
  %v6605 = vmul.f32 %v6589, 0.2
  %v6606 = vmul.f32 %v6590, 0.2
  %v6607 = vmul.f32 %v6591, 0.2
  %v6608 = vmul.f32 %v6592, 0.2
  %v6609 = vmul.f32 %v6593, 0.2
  %v6610 = vmul.f32 %v6594, 0.2
  %v6611 = vmul.f32 %v6595, 0.2
  %v6612 = vmul.f32 %v6596, 0.2
  %v6613 = vmul.f32 %v6597, 0.2
  %v6614 = vmul.f32 %v6598, 0.2
  %v6615 = vmul.f32 %v6599, 0.2
  %v6616 = vmul.f32 %v6600, 0.2
  %v6617 = vmax.f32 %v6585, %v6601
  %v6618 = vmax.f32 %v6586, %v6602
  %v6619 = vmax.f32 %v6587, %v6603
  %v6620 = vmax.f32 %v6588, %v6604
  %v6621 = vmax.f32 %v6589, %v6605
  %v6622 = vmax.f32 %v6590, %v6606
  %v6623 = vmax.f32 %v6591, %v6607
  %v6624 = vmax.f32 %v6592, %v6608
  %v6625 = vmax.f32 %v6593, %v6609
  %v6626 = vmax.f32 %v6594, %v6610
  %v6627 = vmax.f32 %v6595, %v6611
  %v6628 = vmax.f32 %v6596, %v6612
  %v6629 = vmax.f32 %v6597, %v6613
  %v6630 = vmax.f32 %v6598, %v6614
  %v6631 = vmax.f32 %v6599, %v6615
  %v6632 = vmax.f32 %v6600, %v6616
  %v6633 = vsel %vm628, %v6617, -1e+30
  %v6634 = vsel %vm629, %v6618, -1e+30
  %v6635 = vsel %vm630, %v6619, -1e+30
  %v6636 = vsel %vm631, %v6620, -1e+30
  %v6637 = vsel %vm632, %v6621, -1e+30
  %v6638 = vsel %vm633, %v6622, -1e+30
  %v6639 = vsel %vm634, %v6623, -1e+30
  %v6640 = vsel %vm635, %v6624, -1e+30
  %v6641 = vsel %vm636, %v6625, -1e+30
  %v6642 = vsel %vm637, %v6626, -1e+30
  %v6643 = vsel %vm638, %v6627, -1e+30
  %v6644 = vsel %vm639, %v6628, -1e+30
  %v6645 = vsel %vm640, %v6629, -1e+30
  %v6646 = vsel %vm641, %v6630, -1e+30
  %v6647 = vsel %vm642, %v6631, -1e+30
  %v6648 = vsel %vm643, %v6632, -1e+30
  %6649 = vmax.xlane.f32.xlu0 %v6633
  %v6650 = vpop.xlane.xlu0 %6649
  %6651 = vmax.xlane.f32.xlu0 %v6634
  %v6652 = vpop.xlane.xlu0 %6651
  %6653 = vmax.xlane.f32.xlu0 %v6635
  %v6654 = vpop.xlane.xlu0 %6653
  %6655 = vmax.xlane.f32.xlu0 %v6636
  %v6656 = vpop.xlane.xlu0 %6655
  %6657 = vmax.xlane.f32.xlu0 %v6637
  %v6658 = vpop.xlane.xlu0 %6657
  %6659 = vmax.xlane.f32.xlu0 %v6638
  %v6660 = vpop.xlane.xlu0 %6659
  %6661 = vmax.xlane.f32.xlu0 %v6639
  %v6662 = vpop.xlane.xlu0 %6661
  %6663 = vmax.xlane.f32.xlu0 %v6640
  %v6664 = vpop.xlane.xlu0 %6663
  %6665 = vmax.xlane.f32.xlu0 %v6641
  %v6666 = vpop.xlane.xlu0 %6665
  %6667 = vmax.xlane.f32.xlu0 %v6642
  %v6668 = vpop.xlane.xlu0 %6667
  %6669 = vmax.xlane.f32.xlu0 %v6643
  %v6670 = vpop.xlane.xlu0 %6669
  %6671 = vmax.xlane.f32.xlu0 %v6644
  %v6672 = vpop.xlane.xlu0 %6671
  %6673 = vmax.xlane.f32.xlu0 %v6645
  %v6674 = vpop.xlane.xlu0 %6673
  %6675 = vmax.xlane.f32.xlu0 %v6646
  %v6676 = vpop.xlane.xlu0 %6675
  %6677 = vmax.xlane.f32.xlu0 %v6647
  %v6678 = vpop.xlane.xlu0 %6677
  %6679 = vmax.xlane.f32.xlu0 %v6648
  %v6680 = vpop.xlane.xlu0 %6679
  %v6681 = vsub.f32 %v6633, %v6650
  %v6682 = vsub.f32 %v6634, %v6652
  %v6683 = vsub.f32 %v6635, %v6654
  %v6684 = vsub.f32 %v6636, %v6656
  %v6685 = vsub.f32 %v6637, %v6658
  %v6686 = vsub.f32 %v6638, %v6660
  %v6687 = vsub.f32 %v6639, %v6662
  %v6688 = vsub.f32 %v6640, %v6664
  %v6689 = vsub.f32 %v6641, %v6666
  %v6690 = vsub.f32 %v6642, %v6668
  %v6691 = vsub.f32 %v6643, %v6670
  %v6692 = vsub.f32 %v6644, %v6672
  %v6693 = vsub.f32 %v6645, %v6674
  %v6694 = vsub.f32 %v6646, %v6676
  %v6695 = vsub.f32 %v6647, %v6678
  %v6696 = vsub.f32 %v6648, %v6680
  %v6697 = vmul.f32 %v6681, 1.442695
  %v6698 = vpow.pop %v6697
  %v6699 = vmul.f32 %v6682, 1.442695
  %v6700 = vpow.pop %v6699
  %v6701 = vmul.f32 %v6683, 1.442695
  %v6702 = vpow.pop %v6701
  %v6703 = vmul.f32 %v6684, 1.442695
  %v6704 = vpow.pop %v6703
  %v6705 = vmul.f32 %v6685, 1.442695
  %v6706 = vpow.pop %v6705
  %v6707 = vmul.f32 %v6686, 1.442695
  %v6708 = vpow.pop %v6707
  %v6709 = vmul.f32 %v6687, 1.442695
  %v6710 = vpow.pop %v6709
  %v6711 = vmul.f32 %v6688, 1.442695
  %v6712 = vpow.pop %v6711
  %v6713 = vmul.f32 %v6689, 1.442695
  %v6714 = vpow.pop %v6713
  %v6715 = vmul.f32 %v6690, 1.442695
  %v6716 = vpow.pop %v6715
  %v6717 = vmul.f32 %v6691, 1.442695
  %v6718 = vpow.pop %v6717
  %v6719 = vmul.f32 %v6692, 1.442695
  %v6720 = vpow.pop %v6719
  %v6721 = vmul.f32 %v6693, 1.442695
  %v6722 = vpow.pop %v6721
  %v6723 = vmul.f32 %v6694, 1.442695
  %v6724 = vpow.pop %v6723
  %v6725 = vmul.f32 %v6695, 1.442695
  %v6726 = vpow.pop %v6725
  %v6727 = vmul.f32 %v6696, 1.442695
  %v6728 = vpow.pop %v6727
  %v6729 = vperm.slane %v4687, 3
  %v6730 = vunpack.c.l.bf16 %v6729
  %v6731 = vmul.f32 %v4331, %v6730
  %v6732 = vmul.f32 %v4332, %v6730
  %v6733 = vmul.f32 %v4333, %v6730
  %v6734 = vmul.f32 %v4334, %v6730
  %v6735 = vmul.f32 %v4335, %v6730
  %v6736 = vmul.f32 %v4336, %v6730
  %v6737 = vmul.f32 %v4337, %v6730
  %v6738 = vmul.f32 %v4338, %v6730
  %v6739 = vmul.f32 %v4339, %v6730
  %v6740 = vmul.f32 %v4340, %v6730
  %v6741 = vmul.f32 %v4341, %v6730
  %v6742 = vmul.f32 %v4342, %v6730
  %v6743 = vmul.f32 %v4343, %v6730
  %v6744 = vmul.f32 %v4344, %v6730
  %v6745 = vmul.f32 %v4345, %v6730
  %v6746 = vmul.f32 %v4346, %v6730
  %v6747 = vpack.c.bf16 %v6732, %v6731
  %v6748 = vpack.c.bf16 %v6734, %v6733
  %v6749 = vpack.c.bf16 %v6736, %v6735
  %v6750 = vpack.c.bf16 %v6738, %v6737
  %v6751 = vpack.c.bf16 %v6740, %v6739
  %v6752 = vpack.c.bf16 %v6742, %v6741
  %v6753 = vpack.c.bf16 %v6744, %v6743
  %v6754 = vpack.c.bf16 %v6746, %v6745
  %v6755 = vld [vmem:[#allocation4] sm:$0xff]
  %v6756 = vld [vmem:[#allocation4 + $0x8] sm:$0xff]
  %v6757 = vld [vmem:[#allocation4 + $0x10] sm:$0xff]
  %v6758 = vld [vmem:[#allocation4 + $0x18] sm:$0xff]
  %v6759 = vld [vmem:[#allocation4 + $0x20] sm:$0xff]
  %v6760 = vld [vmem:[#allocation4 + $0x28] sm:$0xff]
  %v6761 = vld [vmem:[#allocation4 + $0x30] sm:$0xff]
  %v6762 = vld [vmem:[#allocation4 + $0x38] sm:$0xff]
  %v6763 = vld [vmem:[#allocation4 + $0x40] sm:$0xff]
  %v6764 = vld [vmem:[#allocation4 + $0x48] sm:$0xff]
  %v6765 = vld [vmem:[#allocation4 + $0x50] sm:$0xff]
  %v6766 = vld [vmem:[#allocation4 + $0x58] sm:$0xff]
  %v6767 = vld [vmem:[#allocation4 + $0x60] sm:$0xff]
  %v6768 = vld [vmem:[#allocation4 + $0x68] sm:$0xff]
  %v6769 = vld [vmem:[#allocation4 + $0x70] sm:$0xff]
  %v6770 = vld [vmem:[#allocation4 + $0x78] sm:$0xff]
  %v6771 = vpack.c.bf16 %v6700, %v6698
  %v6772 = vpack.c.bf16 %v6704, %v6702
  %v6773 = vpack.c.bf16 %v6708, %v6706
  %v6774 = vpack.c.bf16 %v6712, %v6710
  %v6775 = vpack.c.bf16 %v6716, %v6714
  %v6776 = vpack.c.bf16 %v6720, %v6718
  %v6777 = vpack.c.bf16 %v6724, %v6722
  %v6778 = vpack.c.bf16 %v6728, %v6726
  %6779 = vmatpush.bf16.msra.mxu0 %v6754
  %6780 = vmatpush.bf16.msra.mxu0 %v6753
  %6781 = vmatpush.bf16.msra.mxu0 %v6752
  %6782 = vmatpush.bf16.msra.mxu0 %v6751
  %6783 = vmatpush.bf16.msra.mxu0 %v6750
  %6784 = vmatpush.bf16.msra.mxu0 %v6749
  %6785 = vmatpush.bf16.msra.mxu0 %v6748
  %6786 = vmatpush.bf16.msra.mxu0 %v6747
  %6787 = vmatmul.bf16.gmra.mxu0 %v6771
  %v6788 = vpop.f32.mrf.mxu0
  %v6789 = vadd.f32 0.0, %v6788
  %v6790 = vpop.f32.mrf.mxu0
  %v6791 = vadd.f32 0.0, %v6790
  %6792 = vmatmul.bf16.gmra.mxu0 %v6772
  %v6793 = vpop.f32.mrf.mxu0
  %v6794 = vadd.f32 0.0, %v6793
  %v6795 = vpop.f32.mrf.mxu0
  %v6796 = vadd.f32 0.0, %v6795
  %6797 = vmatmul.bf16.gmra.mxu0 %v6773
  %v6798 = vpop.f32.mrf.mxu0
  %v6799 = vadd.f32 0.0, %v6798
  %v6800 = vpop.f32.mrf.mxu0
  %v6801 = vadd.f32 0.0, %v6800
  %6802 = vmatmul.bf16.gmra.mxu0 %v6774
  %v6803 = vpop.f32.mrf.mxu0
  %v6804 = vadd.f32 0.0, %v6803
  %v6805 = vpop.f32.mrf.mxu0
  %v6806 = vadd.f32 0.0, %v6805
  %6807 = vmatmul.bf16.gmra.mxu0 %v6775
  %v6808 = vpop.f32.mrf.mxu0
  %v6809 = vadd.f32 0.0, %v6808
  %v6810 = vpop.f32.mrf.mxu0
  %v6811 = vadd.f32 0.0, %v6810
  %6812 = vmatmul.bf16.gmra.mxu0 %v6776
  %v6813 = vpop.f32.mrf.mxu0
  %v6814 = vadd.f32 0.0, %v6813
  %v6815 = vpop.f32.mrf.mxu0
  %v6816 = vadd.f32 0.0, %v6815
  %6817 = vmatmul.bf16.gmra.mxu0 %v6777
  %v6818 = vpop.f32.mrf.mxu0
  %v6819 = vadd.f32 0.0, %v6818
  %v6820 = vpop.f32.mrf.mxu0
  %v6821 = vadd.f32 0.0, %v6820
  %6822 = vmatmul.bf16.gmra.mxu0 %v6778
  %v6823 = vpop.f32.mrf.mxu0
  %v6824 = vadd.f32 0.0, %v6823
  %v6825 = vpop.f32.mrf.mxu0
  %v6826 = vadd.f32 0.0, %v6825
  %6827 = vdwg.mxu0
  %v6828 = vadd.f32 %v6755, %v6789
  %v6829 = vadd.f32 %v6756, %v6791
  %v6830 = vadd.f32 %v6757, %v6794
  %v6831 = vadd.f32 %v6758, %v6796
  %v6832 = vadd.f32 %v6759, %v6799
  %v6833 = vadd.f32 %v6760, %v6801
  %v6834 = vadd.f32 %v6761, %v6804
  %v6835 = vadd.f32 %v6762, %v6806
  %v6836 = vadd.f32 %v6763, %v6809
  %v6837 = vadd.f32 %v6764, %v6811
  %v6838 = vadd.f32 %v6765, %v6814
  %v6839 = vadd.f32 %v6766, %v6816
  %v6840 = vadd.f32 %v6767, %v6819
  %v6841 = vadd.f32 %v6768, %v6821
  %v6842 = vadd.f32 %v6769, %v6824
  %v6843 = vadd.f32 %v6770, %v6826
  %6844 = vst [vmem:[#allocation4] sm:$0xff] %v6828
  %6845 = vst [vmem:[#allocation4 + $0x8] sm:$0xff] %v6829
  %6846 = vst [vmem:[#allocation4 + $0x10] sm:$0xff] %v6830
  %6847 = vst [vmem:[#allocation4 + $0x18] sm:$0xff] %v6831
  %6848 = vst [vmem:[#allocation4 + $0x20] sm:$0xff] %v6832
  %6849 = vst [vmem:[#allocation4 + $0x28] sm:$0xff] %v6833
  %6850 = vst [vmem:[#allocation4 + $0x30] sm:$0xff] %v6834
  %6851 = vst [vmem:[#allocation4 + $0x38] sm:$0xff] %v6835
  %6852 = vst [vmem:[#allocation4 + $0x40] sm:$0xff] %v6836
  %6853 = vst [vmem:[#allocation4 + $0x48] sm:$0xff] %v6837
  %6854 = vst [vmem:[#allocation4 + $0x50] sm:$0xff] %v6838
  %6855 = vst [vmem:[#allocation4 + $0x58] sm:$0xff] %v6839
  %6856 = vst [vmem:[#allocation4 + $0x60] sm:$0xff] %v6840
  %6857 = vst [vmem:[#allocation4 + $0x68] sm:$0xff] %v6841
  %6858 = vst [vmem:[#allocation4 + $0x70] sm:$0xff] %v6842
  %6859 = vst [vmem:[#allocation4 + $0x78] sm:$0xff] %v6843
  %v6860 = vld [vmem:[#allocation4] sm:$0xff]
  %v6861 = vld [vmem:[#allocation4 + $0x8] sm:$0xff]
  %v6862 = vld [vmem:[#allocation4 + $0x10] sm:$0xff]
  %v6863 = vld [vmem:[#allocation4 + $0x18] sm:$0xff]
  %v6864 = vld [vmem:[#allocation4 + $0x20] sm:$0xff]
  %v6865 = vld [vmem:[#allocation4 + $0x28] sm:$0xff]
  %v6866 = vld [vmem:[#allocation4 + $0x30] sm:$0xff]
  %v6867 = vld [vmem:[#allocation4 + $0x38] sm:$0xff]
  %v6868 = vld [vmem:[#allocation4 + $0x40] sm:$0xff]
  %v6869 = vld [vmem:[#allocation4 + $0x48] sm:$0xff]
  %v6870 = vld [vmem:[#allocation4 + $0x50] sm:$0xff]
  %v6871 = vld [vmem:[#allocation4 + $0x58] sm:$0xff]
  %v6872 = vld [vmem:[#allocation4 + $0x60] sm:$0xff]
  %v6873 = vld [vmem:[#allocation4 + $0x68] sm:$0xff]
  %v6874 = vld [vmem:[#allocation4 + $0x70] sm:$0xff]
  %v6875 = vld [vmem:[#allocation4 + $0x78] sm:$0xff]
  %6892 = vrot.lane.b32.xlu0 %v6860, 64
  %v6893 = vpop.permute.xlu0 %6892
  %6894 = vrot.lane.b32.xlu0 %v6861, 64
  %v6895 = vpop.permute.xlu0 %6894
  %6896 = vrot.lane.b32.xlu0 %v6862, 64
  %v6897 = vpop.permute.xlu0 %6896
  %6898 = vrot.lane.b32.xlu0 %v6863, 64
  %v6899 = vpop.permute.xlu0 %6898
  %6900 = vrot.lane.b32.xlu0 %v6864, 64
  %v6901 = vpop.permute.xlu0 %6900
  %6902 = vrot.lane.b32.xlu0 %v6865, 64
  %v6903 = vpop.permute.xlu0 %6902
  %6904 = vrot.lane.b32.xlu0 %v6866, 64
  %v6905 = vpop.permute.xlu0 %6904
  %6906 = vrot.lane.b32.xlu0 %v6867, 64
  %v6907 = vpop.permute.xlu0 %6906
  %6908 = vrot.lane.b32.xlu0 %v6868, 64
  %v6909 = vpop.permute.xlu0 %6908
  %6910 = vrot.lane.b32.xlu0 %v6869, 64
  %v6911 = vpop.permute.xlu0 %6910
  %6912 = vrot.lane.b32.xlu0 %v6870, 64
  %v6913 = vpop.permute.xlu0 %6912
  %6914 = vrot.lane.b32.xlu0 %v6871, 64
  %v6915 = vpop.permute.xlu0 %6914
  %6916 = vrot.lane.b32.xlu0 %v6872, 64
  %v6917 = vpop.permute.xlu0 %6916
  %6918 = vrot.lane.b32.xlu0 %v6873, 64
  %v6919 = vpop.permute.xlu0 %6918
  %6920 = vrot.lane.b32.xlu0 %v6874, 64
  %v6921 = vpop.permute.xlu0 %6920
  %6922 = vrot.lane.b32.xlu0 %v6875, 64
  %v6923 = vpop.permute.xlu0 %6922
  %v6940 = vrcp.pop %v6893
  %v6941 = vmul.f32 %v6893, %v6940
  %v6942 = vsub.f32 1.0, %v6941
  %v6943 = vmul.f32 %v6940, %v6942
  %v6944 = vadd.f32 %v6940, %v6943
  %vm6945 = vweird.f32 %v6893
  %vm6946 = vweird.f32 %v6940
  %vm6947 = vmor %vm6945, %vm6946
  %v6948 = vsel %vm6947, %v6940, %v6944
  %v6949 = vand.u32 2147483647, %v6893
  %vm6950 = vcmp.eq.f32.partialorder %v6949, 8.507059e+37
  %v6951 = vand.u32 %v6893, 2147483648
  %v6952 = vor.u32 1.1754944e-38, %v6951
  %v6953 = vsel %vm6950, %v6952, %v6948
  %v6954 = vmul.f32 %v6860, %v6953
  %v6955 = vrcp.pop %v6895
  %v6956 = vmul.f32 %v6895, %v6955
  %v6957 = vsub.f32 1.0, %v6956
  %v6958 = vmul.f32 %v6955, %v6957
  %v6959 = vadd.f32 %v6955, %v6958
  %vm6960 = vweird.f32 %v6895
  %vm6961 = vweird.f32 %v6955
  %vm6962 = vmor %vm6960, %vm6961
  %v6963 = vsel %vm6962, %v6955, %v6959
  %v6964 = vand.u32 2147483647, %v6895
  %vm6965 = vcmp.eq.f32.partialorder %v6964, 8.507059e+37
  %v6966 = vand.u32 %v6895, 2147483648
  %v6967 = vor.u32 1.1754944e-38, %v6966
  %v6968 = vsel %vm6965, %v6967, %v6963
  %v6969 = vmul.f32 %v6861, %v6968
  %v6970 = vrcp.pop %v6897
  %v6971 = vmul.f32 %v6897, %v6970
  %v6972 = vsub.f32 1.0, %v6971
  %v6973 = vmul.f32 %v6970, %v6972
  %v6974 = vadd.f32 %v6970, %v6973
  %vm6975 = vweird.f32 %v6897
  %vm6976 = vweird.f32 %v6970
  %vm6977 = vmor %vm6975, %vm6976
  %v6978 = vsel %vm6977, %v6970, %v6974
  %v6979 = vand.u32 2147483647, %v6897
  %vm6980 = vcmp.eq.f32.partialorder %v6979, 8.507059e+37
  %v6981 = vand.u32 %v6897, 2147483648
  %v6982 = vor.u32 1.1754944e-38, %v6981
  %v6983 = vsel %vm6980, %v6982, %v6978
  %v6984 = vmul.f32 %v6862, %v6983
  %v6985 = vrcp.pop %v6899
  %v6986 = vmul.f32 %v6899, %v6985
  %v6987 = vsub.f32 1.0, %v6986
  %v6988 = vmul.f32 %v6985, %v6987
  %v6989 = vadd.f32 %v6985, %v6988
  %vm6990 = vweird.f32 %v6899
  %vm6991 = vweird.f32 %v6985
  %vm6992 = vmor %vm6990, %vm6991
  %v6993 = vsel %vm6992, %v6985, %v6989
  %v6994 = vand.u32 2147483647, %v6899
  %vm6995 = vcmp.eq.f32.partialorder %v6994, 8.507059e+37
  %v6996 = vand.u32 %v6899, 2147483648
  %v6997 = vor.u32 1.1754944e-38, %v6996
  %v6998 = vsel %vm6995, %v6997, %v6993
  %v6999 = vmul.f32 %v6863, %v6998
  %v7000 = vrcp.pop %v6901
  %v7001 = vmul.f32 %v6901, %v7000
  %v7002 = vsub.f32 1.0, %v7001
  %v7003 = vmul.f32 %v7000, %v7002
  %v7004 = vadd.f32 %v7000, %v7003
  %vm7005 = vweird.f32 %v6901
  %vm7006 = vweird.f32 %v7000
  %vm7007 = vmor %vm7005, %vm7006
  %v7008 = vsel %vm7007, %v7000, %v7004
  %v7009 = vand.u32 2147483647, %v6901
  %vm7010 = vcmp.eq.f32.partialorder %v7009, 8.507059e+37
  %v7011 = vand.u32 %v6901, 2147483648
  %v7012 = vor.u32 1.1754944e-38, %v7011
  %v7013 = vsel %vm7010, %v7012, %v7008
  %v7014 = vmul.f32 %v6864, %v7013
  %v7015 = vrcp.pop %v6903
  %v7016 = vmul.f32 %v6903, %v7015
  %v7017 = vsub.f32 1.0, %v7016
  %v7018 = vmul.f32 %v7015, %v7017
  %v7019 = vadd.f32 %v7015, %v7018
  %vm7020 = vweird.f32 %v6903
  %vm7021 = vweird.f32 %v7015
  %vm7022 = vmor %vm7020, %vm7021
  %v7023 = vsel %vm7022, %v7015, %v7019
  %v7024 = vand.u32 2147483647, %v6903
  %vm7025 = vcmp.eq.f32.partialorder %v7024, 8.507059e+37
  %v7026 = vand.u32 %v6903, 2147483648
  %v7027 = vor.u32 1.1754944e-38, %v7026
  %v7028 = vsel %vm7025, %v7027, %v7023
  %v7029 = vmul.f32 %v6865, %v7028
  %v7030 = vrcp.pop %v6905
  %v7031 = vmul.f32 %v6905, %v7030
  %v7032 = vsub.f32 1.0, %v7031
  %v7033 = vmul.f32 %v7030, %v7032
  %v7034 = vadd.f32 %v7030, %v7033
  %vm7035 = vweird.f32 %v6905
  %vm7036 = vweird.f32 %v7030
  %vm7037 = vmor %vm7035, %vm7036
  %v7038 = vsel %vm7037, %v7030, %v7034
  %v7039 = vand.u32 2147483647, %v6905
  %vm7040 = vcmp.eq.f32.partialorder %v7039, 8.507059e+37
  %v7041 = vand.u32 %v6905, 2147483648
  %v7042 = vor.u32 1.1754944e-38, %v7041
  %v7043 = vsel %vm7040, %v7042, %v7038
  %v7044 = vmul.f32 %v6866, %v7043
  %v7045 = vrcp.pop %v6907
  %v7046 = vmul.f32 %v6907, %v7045
  %v7047 = vsub.f32 1.0, %v7046
  %v7048 = vmul.f32 %v7045, %v7047
  %v7049 = vadd.f32 %v7045, %v7048
  %vm7050 = vweird.f32 %v6907
  %vm7051 = vweird.f32 %v7045
  %vm7052 = vmor %vm7050, %vm7051
  %v7053 = vsel %vm7052, %v7045, %v7049
  %v7054 = vand.u32 2147483647, %v6907
  %vm7055 = vcmp.eq.f32.partialorder %v7054, 8.507059e+37
  %v7056 = vand.u32 %v6907, 2147483648
  %v7057 = vor.u32 1.1754944e-38, %v7056
  %v7058 = vsel %vm7055, %v7057, %v7053
  %v7059 = vmul.f32 %v6867, %v7058
  %v7060 = vrcp.pop %v6909
  %v7061 = vmul.f32 %v6909, %v7060
  %v7062 = vsub.f32 1.0, %v7061
  %v7063 = vmul.f32 %v7060, %v7062
  %v7064 = vadd.f32 %v7060, %v7063
  %vm7065 = vweird.f32 %v6909
  %vm7066 = vweird.f32 %v7060
  %vm7067 = vmor %vm7065, %vm7066
  %v7068 = vsel %vm7067, %v7060, %v7064
  %v7069 = vand.u32 2147483647, %v6909
  %vm7070 = vcmp.eq.f32.partialorder %v7069, 8.507059e+37
  %v7071 = vand.u32 %v6909, 2147483648
  %v7072 = vor.u32 1.1754944e-38, %v7071
  %v7073 = vsel %vm7070, %v7072, %v7068
  %v7074 = vmul.f32 %v6868, %v7073
  %v7075 = vrcp.pop %v6911
  %v7076 = vmul.f32 %v6911, %v7075
  %v7077 = vsub.f32 1.0, %v7076
  %v7078 = vmul.f32 %v7075, %v7077
  %v7079 = vadd.f32 %v7075, %v7078
  %vm7080 = vweird.f32 %v6911
  %vm7081 = vweird.f32 %v7075
  %vm7082 = vmor %vm7080, %vm7081
  %v7083 = vsel %vm7082, %v7075, %v7079
  %v7084 = vand.u32 2147483647, %v6911
  %vm7085 = vcmp.eq.f32.partialorder %v7084, 8.507059e+37
  %v7086 = vand.u32 %v6911, 2147483648
  %v7087 = vor.u32 1.1754944e-38, %v7086
  %v7088 = vsel %vm7085, %v7087, %v7083
  %v7089 = vmul.f32 %v6869, %v7088
  %v7090 = vrcp.pop %v6913
  %v7091 = vmul.f32 %v6913, %v7090
  %v7092 = vsub.f32 1.0, %v7091
  %v7093 = vmul.f32 %v7090, %v7092
  %v7094 = vadd.f32 %v7090, %v7093
  %vm7095 = vweird.f32 %v6913
  %vm7096 = vweird.f32 %v7090
  %vm7097 = vmor %vm7095, %vm7096
  %v7098 = vsel %vm7097, %v7090, %v7094
  %v7099 = vand.u32 2147483647, %v6913
  %vm7100 = vcmp.eq.f32.partialorder %v7099, 8.507059e+37
  %v7101 = vand.u32 %v6913, 2147483648
  %v7102 = vor.u32 1.1754944e-38, %v7101
  %v7103 = vsel %vm7100, %v7102, %v7098
  %v7104 = vmul.f32 %v6870, %v7103
  %v7105 = vrcp.pop %v6915
  %v7106 = vmul.f32 %v6915, %v7105
  %v7107 = vsub.f32 1.0, %v7106
  %v7108 = vmul.f32 %v7105, %v7107
  %v7109 = vadd.f32 %v7105, %v7108
  %vm7110 = vweird.f32 %v6915
  %vm7111 = vweird.f32 %v7105
  %vm7112 = vmor %vm7110, %vm7111
  %v7113 = vsel %vm7112, %v7105, %v7109
  %v7114 = vand.u32 2147483647, %v6915
  %vm7115 = vcmp.eq.f32.partialorder %v7114, 8.507059e+37
  %v7116 = vand.u32 %v6915, 2147483648
  %v7117 = vor.u32 1.1754944e-38, %v7116
  %v7118 = vsel %vm7115, %v7117, %v7113
  %v7119 = vmul.f32 %v6871, %v7118
  %v7120 = vrcp.pop %v6917
  %v7121 = vmul.f32 %v6917, %v7120
  %v7122 = vsub.f32 1.0, %v7121
  %v7123 = vmul.f32 %v7120, %v7122
  %v7124 = vadd.f32 %v7120, %v7123
  %vm7125 = vweird.f32 %v6917
  %vm7126 = vweird.f32 %v7120
  %vm7127 = vmor %vm7125, %vm7126
  %v7128 = vsel %vm7127, %v7120, %v7124
  %v7129 = vand.u32 2147483647, %v6917
  %vm7130 = vcmp.eq.f32.partialorder %v7129, 8.507059e+37
  %v7131 = vand.u32 %v6917, 2147483648
  %v7132 = vor.u32 1.1754944e-38, %v7131
  %v7133 = vsel %vm7130, %v7132, %v7128
  %v7134 = vmul.f32 %v6872, %v7133
  %v7135 = vrcp.pop %v6919
  %v7136 = vmul.f32 %v6919, %v7135
  %v7137 = vsub.f32 1.0, %v7136
  %v7138 = vmul.f32 %v7135, %v7137
  %v7139 = vadd.f32 %v7135, %v7138
  %vm7140 = vweird.f32 %v6919
  %vm7141 = vweird.f32 %v7135
  %vm7142 = vmor %vm7140, %vm7141
  %v7143 = vsel %vm7142, %v7135, %v7139
  %v7144 = vand.u32 2147483647, %v6919
  %vm7145 = vcmp.eq.f32.partialorder %v7144, 8.507059e+37
  %v7146 = vand.u32 %v6919, 2147483648
  %v7147 = vor.u32 1.1754944e-38, %v7146
  %v7148 = vsel %vm7145, %v7147, %v7143
  %v7149 = vmul.f32 %v6873, %v7148
  %v7150 = vrcp.pop %v6921
  %v7151 = vmul.f32 %v6921, %v7150
  %v7152 = vsub.f32 1.0, %v7151
  %v7153 = vmul.f32 %v7150, %v7152
  %v7154 = vadd.f32 %v7150, %v7153
  %vm7155 = vweird.f32 %v6921
  %vm7156 = vweird.f32 %v7150
  %vm7157 = vmor %vm7155, %vm7156
  %v7158 = vsel %vm7157, %v7150, %v7154
  %v7159 = vand.u32 2147483647, %v6921
  %vm7160 = vcmp.eq.f32.partialorder %v7159, 8.507059e+37
  %v7161 = vand.u32 %v6921, 2147483648
  %v7162 = vor.u32 1.1754944e-38, %v7161
  %v7163 = vsel %vm7160, %v7162, %v7158
  %v7164 = vmul.f32 %v6874, %v7163
  %v7165 = vrcp.pop %v6923
  %v7166 = vmul.f32 %v6923, %v7165
  %v7167 = vsub.f32 1.0, %v7166
  %v7168 = vmul.f32 %v7165, %v7167
  %v7169 = vadd.f32 %v7165, %v7168
  %vm7170 = vweird.f32 %v6923
  %vm7171 = vweird.f32 %v7165
  %vm7172 = vmor %vm7170, %vm7171
  %v7173 = vsel %vm7172, %v7165, %v7169
  %v7174 = vand.u32 2147483647, %v6923
  %vm7175 = vcmp.eq.f32.partialorder %v7174, 8.507059e+37
  %v7176 = vand.u32 %v6923, 2147483648
  %v7177 = vor.u32 1.1754944e-38, %v7176
  %v7178 = vsel %vm7175, %v7177, %v7173
  %v7179 = vmul.f32 %v6875, %v7178
  %v7181 = vperm.slane %v3703, 0
  %v7183 = vadd.f32 %v6954, %v7181
  %v7184 = vadd.f32 %v6969, %v7181
  %v7185 = vadd.f32 %v6984, %v7181
  %v7186 = vadd.f32 %v6999, %v7181
  %v7187 = vadd.f32 %v7014, %v7181
  %v7188 = vadd.f32 %v7029, %v7181
  %v7189 = vadd.f32 %v7044, %v7181
  %v7190 = vadd.f32 %v7059, %v7181
  %v7191 = vadd.f32 %v7074, %v7181
  %v7192 = vadd.f32 %v7089, %v7181
  %v7193 = vadd.f32 %v7104, %v7181
  %v7194 = vadd.f32 %v7119, %v7181
  %v7195 = vadd.f32 %v7134, %v7181
  %v7196 = vadd.f32 %v7149, %v7181
  %v7197 = vadd.f32 %v7164, %v7181
  %v7198 = vadd.f32 %v7179, %v7181
  %7199 = vst.msk [vmem:[%s12] sm:$0xff] %vm3771, %v7183
  %7200 = vst.msk [vmem:[%s12 + $0x8] sm:$0xff] %vm3771, %v7184
  %7201 = vst.msk [vmem:[%s12 + $0x10] sm:$0xff] %vm3771, %v7185
  %7202 = vst.msk [vmem:[%s12 + $0x18] sm:$0xff] %vm3771, %v7186
  %7203 = vst.msk [vmem:[%s12 + $0x20] sm:$0xff] %vm3771, %v7187
  %7204 = vst.msk [vmem:[%s12 + $0x28] sm:$0xff] %vm3771, %v7188
  %7205 = vst.msk [vmem:[%s12 + $0x30] sm:$0xff] %vm3771, %v7189
  %7206 = vst.msk [vmem:[%s12 + $0x38] sm:$0xff] %vm3771, %v7190
  %7207 = vst.msk [vmem:[%s12 + $0x40] sm:$0xff] %vm3771, %v7191
  %7208 = vst.msk [vmem:[%s12 + $0x48] sm:$0xff] %vm3771, %v7192
  %7209 = vst.msk [vmem:[%s12 + $0x50] sm:$0xff] %vm3771, %v7193
  %7210 = vst.msk [vmem:[%s12 + $0x58] sm:$0xff] %vm3771, %v7194
  %7211 = vst.msk [vmem:[%s12 + $0x60] sm:$0xff] %vm3771, %v7195
  %7212 = vst.msk [vmem:[%s12 + $0x68] sm:$0xff] %vm3771, %v7196
  %7213 = vst.msk [vmem:[%s12 + $0x70] sm:$0xff] %vm3771, %v7197
  %7214 = vst.msk [vmem:[%s12 + $0x78] sm:$0xff] %vm3771, %v7198
  // Predicated region
  $region50: #{tpu_custom_call.1} parent=0 // pred_check
    _
  $region51: #{tpu_custom_call.1} parent=0 // pred_check_branch
    %7216 = sbr.rel (0) target = $region53
  $region52: #{tpu_custom_call.1} parent=0 // pred_region
    _
  $region53: #{tpu_custom_call.1} parent=0 // pred_fallthru
    _
  // Predicated region
  $region54: #{tpu_custom_call.1} parent=0 // pred_check
    _
  $region55: #{tpu_custom_call.1} parent=0 // pred_check_branch
    %7218 = sbr.rel (0) target = $region57
  $region56: #{tpu_custom_call.1} parent=0 // pred_region
    _
  $region57: #{tpu_custom_call.1} parent=0 // pred_fallthru
    _

</llo_original>
